<compile_context>
chip_gen: v7x
topology: tpu7x:2x2x1
jax: 0.10.0
libtpu: 0.0.40
codegen_flags: <defaults>
</compile_context>

<pallas_src>
import jax
import jax.numpy as jnp
from jax.experimental import pallas as pl
from jax.experimental.pallas import tpu as pltpu


# ----------------------------------------------------------------------------
# Fused kernel: LayerNorm + hoisted input projection + blocked LSTM recurrence.
# ----------------------------------------------------------------------------
def _lstm_layer_kernel(x_ref, w_ih_ref, w_hh_ref, bias_ref, gamma_ref, beta_ref,
                       out_ref, h_scr, c_scr, gx_scr):
    # Reset the carried (h, c) state at the start of every sequence.  Keyed on
    # the TIME axis (grid axis 1) so a parallel batch-block axis (axis 0) is
    # safe: every batch block restarts at time index 0.
    @pl.when(pl.program_id(1) == 0)
    def _():
        h_scr[...] = jnp.zeros_like(h_scr)
        c_scr[...] = jnp.zeros_like(c_scr)

    Bb, Tc, H = x_ref.shape

    # ---- LayerNorm(x) (eps=1e-5, affine), f32 --------------------------------
    x = x_ref[...]                                           # (Bb, Tc, H)
    mu = jnp.mean(x, axis=-1, keepdims=True)
    var = jnp.mean((x - mu) ** 2, axis=-1, keepdims=True)
    hn = (x - mu) * jax.lax.rsqrt(var + 1e-5) * gamma_ref[...] + beta_ref[...]

    # Residual base: out = norm(x); the per-step LSTM output is added below.
    out_ref[...] = hn

    # ---- Hoisted input projection: one big MXU GEMM for the whole block -----
    # (Bb*Tc, H) x (H, 4H), bf16 operands / f32 accumulation, fused bias.
    # Tc is a multiple of 8, so the leading-dim collapse is layout-free.
    hn2 = hn.reshape(Bb * Tc, H).astype(jnp.bfloat16)
    gx = jnp.dot(hn2, w_ih_ref[...],
                 preferred_element_type=jnp.float32) + bias_ref[...]
    gx_scr[...] = gx.reshape(Bb, Tc, 4 * H)                  # stays in VMEM

    # ---- Recurrence over the Tc timesteps of this block ----------------------
    # Only the small h @ W_hh matmul + gate math sits on the serial chain.
    w_hh = w_hh_ref[...]                                     # (H, 4H) bf16, resident
    h = h_scr[...]                                           # (Bb, H) f32
    c = c_scr[...]
    for tt in range(Tc):                                     # static unroll (Tc capped by wrapper)
        gates = gx_scr[:, tt, :] + jnp.dot(
            h.astype(jnp.bfloat16), w_hh, preferred_element_type=jnp.float32)
        i = jax.nn.sigmoid(gates[:, 0 * H:1 * H])            # PyTorch gate order: i, f, g, o
        f = jax.nn.sigmoid(gates[:, 1 * H:2 * H])
        g = jnp.tanh(gates[:, 2 * H:3 * H])
        o = jax.nn.sigmoid(gates[:, 3 * H:4 * H])
        c = f * c + i * g
        h = o * jnp.tanh(c)
        out_ref[:, tt, :] = out_ref[:, tt, :] + h            # residual: norm(x) + lstm_h
    h_scr[...] = h
    c_scr[...] = c


# ----------------------------------------------------------------------------
# Wrapper helpers
# ----------------------------------------------------------------------------
def _round_up(n, m):
    return ((n + m - 1) // m) * m


def _vmem_capacity_bytes():
    try:
        return int(pltpu.get_tpu_info().vmem_capacity_bytes)
    except Exception:
        return 64 * 1024 * 1024     # conservative: v7x per-TensorCore VMEM


def _block_vmem_bytes(Bb, Tc, H, weight_buffers):
    """Rough per-core VMEM footprint for one pipelined grid step."""
    io = 2 * 2 * Bb * Tc * H * 4                       # double-buffered x-in + out blocks (f32)
    gx = Bb * Tc * 4 * H * 4                           # gates_x scratch (f32)
    state = 2 * Bb * H * 4                             # h, c scratch
    weights = weight_buffers * (2 * (H * 4 * H * 2)    # W_ih^T + W_hh^T (bf16)
                                + (4 * H + 2 * H) * 4)  # bias + gamma + beta (f32)
    temps = 2 * Bb * Tc * H * 4 + Bb * Tc * 4 * H * 4 + 8 * Bb * 4 * H * 4
    return io + gx + state + weights + temps


def _pick_time_block(Tp, Bb, H, budget, max_unroll, weight_buffers):
    """Largest multiple-of-8 divisor of Tp (<= max_unroll) fitting the budget."""
    best = 8
    for tc in range(8, max(8, min(Tp, max_unroll)) + 1, 8):
        if Tp % tc == 0 and _block_vmem_bytes(Bb, tc, H, weight_buffers) <= budget:
            best = tc
    return best


# ----------------------------------------------------------------------------
# Wrapper
# ----------------------------------------------------------------------------
def lstm_layer(x, w_ih, w_hh, b_ih, b_hh, gamma, beta, *,
               batch_blocks=1, max_time_unroll=16, single_buffer_weights=True):
    """x: (B, T, H) batch-first, like PyTorch nn.LSTM(batch_first=True).

    batch_blocks: set to 2 on v7x to shard the recurrence across both
    TensorCores (grid axis 0 is 'parallel'); keep 1 on v5e/v6e.
    """
    B, T, H = x.shape
    f32 = jnp.float32

    # One-time parameter prep (weight-sized): transposed bf16 weights for the
    # MXU, fused LSTM bias.
    w_ih_t = jnp.asarray(w_ih, f32).T.astype(jnp.bfloat16)        # (H, 4H)
    w_hh_t = jnp.asarray(w_hh, f32).T.astype(jnp.bfloat16)        # (H, 4H)
    bias = (jnp.asarray(b_ih, f32) + jnp.asarray(b_hh, f32)).reshape(1, 4 * H)
    gamma2 = jnp.asarray(gamma, f32).reshape(1, H)
    beta2 = jnp.asarray(beta, f32).reshape(1, H)

    # Pad batch and time to the 8-sublane width (padding discarded at the end).
    Bp = _round_up(B, 8)
    Tp = _round_up(T, 8)
    xp = jnp.asarray(x, f32)
    if (Bp, Tp) != (B, T):
        xp = jnp.pad(xp, ((0, Bp - B), (0, Tp - T), (0, 0)))

    # Batch-block sharding (v7x megacore); fall back to 1 block if not tileable.
    if batch_blocks < 1 or Bp % batch_blocks or (Bp // batch_blocks) % 8:
        batch_blocks = 1
    Bb = Bp // batch_blocks

    # Derive the time block (= unroll depth) and VMEM limit from actual VMEM.
    weight_buffers = 1 if single_buffer_weights else 2
    vmem_cap = _vmem_capacity_bytes()
    Tc = _pick_time_block(Tp, Bb, H, int(0.75 * vmem_cap),
                          max_time_unroll, weight_buffers)
    est = _block_vmem_bytes(Bb, Tc, H, weight_buffers)
    vmem_limit = min(int(0.9 * vmem_cap), max(32 * 1024 * 1024, int(1.3 * est)))

    def resident_spec(shape):
        # Constant-index operands: DMA once; single-buffer to halve VMEM cost.
        if single_buffer_weights:
            try:
                return pl.BlockSpec(shape, lambda b, t: (0, 0),
                                    pipeline_mode=pl.Buffered(1))
            except Exception:
                pass   # older BlockSpec without pipeline_mode support
        return pl.BlockSpec(shape, lambda b, t: (0, 0))

    out_full = pl.pallas_call(
        _lstm_layer_kernel,
        out_shape=jax.ShapeDtypeStruct((Bp, Tp, H), f32),
        grid_spec=pltpu.PrefetchScalarGridSpec(
            num_scalar_prefetch=0,
            grid=(batch_blocks, Tp // Tc),
            in_specs=[
                pl.BlockSpec((Bb, Tc, H), lambda b, t: (b, t, 0)),   # x block
                resident_spec((H, 4 * H)),                           # W_ih^T (resident)
                resident_spec((H, 4 * H)),                           # W_hh^T (resident)
                resident_spec((1, 4 * H)),                           # fused bias
                resident_spec((1, H)),                               # LN gamma
                resident_spec((1, H)),                               # LN beta
            ],
            out_specs=pl.BlockSpec((Bb, Tc, H), lambda b, t: (b, t, 0)),
            scratch_shapes=[
                pltpu.VMEM((Bb, H), f32),            # h state (carried across time blocks)
                pltpu.VMEM((Bb, H), f32),            # c state
                pltpu.VMEM((Bb, Tc, 4 * H), f32),    # gates_x for this block (never hits HBM)
            ],
        ),
        compiler_params=pltpu.CompilerParams(
            dimension_semantics=("parallel", "arbitrary"),  # time must stay sequential
            vmem_limit_bytes=vmem_limit),
    )(xp, w_ih_t, w_hh_t, bias, gamma2, beta2)

    return out_full[:B, :T]


# ----------------------------------------------------------------------------
# Pure-JAX reference mirroring PyTorch LSTMLayer forward.
# mxu_bf16=True mirrors the kernel's MXU numerics (bf16 matmul operands,
# f32 accumulation / elementwise) for a tight apples-to-apples check.
# ----------------------------------------------------------------------------
def _reference(x, w_ih, w_hh, b_ih, b_hh, gamma, beta, *, mxu_bf16=False):
    f32 = jnp.float32
    x = jnp.asarray(x, f32)
    mu = jnp.mean(x, axis=-1, keepdims=True)
    var = jnp.mean((x - mu) ** 2, axis=-1, keepdims=True)
    hn = (x - mu) * jax.lax.rsqrt(var + 1e-5) * gamma + beta

    B, T, H = x.shape
    cast = (lambda a: a.astype(jnp.bfloat16)) if mxu_bf16 else (lambda a: a.astype(f32))
    w_ih_t = cast(jnp.asarray(w_ih, f32).T)
    w_hh_t = cast(jnp.asarray(w_hh, f32).T)
    bias = jnp.asarray(b_ih, f32) + jnp.asarray(b_hh, f32)

    gx = (jnp.dot(cast(hn).reshape(B * T, H), w_ih_t,
                  preferred_element_type=f32).reshape(B, T, 4 * H) + bias)

    def step(carry, g_t):
        h, c = carry
        gates = g_t + jnp.dot(cast(h), w_hh_t, preferred_element_type=f32)
        i = jax.nn.sigmoid(gates[:, 0 * H:1 * H])
        f = jax.nn.sigmoid(gates[:, 1 * H:2 * H])
        g = jnp.tanh(gates[:, 2 * H:3 * H])
        o = jax.nn.sigmoid(gates[:, 3 * H:4 * H])
        c = f * c + i * g
        h = o * jnp.tanh(c)
        return (h, c), h

    h0 = jnp.zeros((B, H), f32)
    c0 = jnp.zeros((B, H), f32)
    _, hs = jax.lax.scan(step, (h0, c0), jnp.transpose(gx, (1, 0, 2)))
    lstm_h = jnp.transpose(hs, (1, 0, 2))
    return hn + lstm_h


if __name__ == "__main__":
    B, T, H = 2, 8, 32

    key = jax.random.PRNGKey(0)
    kx, k1, k2, k3, k4 = jax.random.split(key, 5)
    bound = 1.0 / jnp.sqrt(H)   # PyTorch nn.LSTM default init range

    x = jax.random.normal(kx, (B, T, H), jnp.float32)
    w_ih = jax.random.uniform(k1, (4 * H, H), jnp.float32, -bound, bound)
    w_hh = jax.random.uniform(k2, (4 * H, H), jnp.float32, -bound, bound)
    b_ih = jax.random.uniform(k3, (4 * H,), jnp.float32, -bound, bound)
    b_hh = jax.random.uniform(k4, (4 * H,), jnp.float32, -bound, bound)
    gamma = jnp.ones((H,), jnp.float32)    # nn.LayerNorm default affine init
    beta = jnp.zeros((H,), jnp.float32)

    try:
        out = lstm_layer(x, w_ih, w_hh, b_ih, b_hh, gamma, beta)
    except Exception:
        # Fall back to default double-buffered resident weights if this JAX
        # build rejects pipeline_mode=pl.Buffered(1).
        out = lstm_layer(x, w_ih, w_hh, b_ih, b_hh, gamma, beta,
                         single_buffer_weights=False)
    out = jax.block_until_ready(out)
    assert out.shape == (B, T, H)

    # Tight check against a reference that mirrors the kernel's MXU numerics.
    ref_bf16 = _reference(x, w_ih, w_hh, b_ih, b_hh, gamma, beta, mxu_bf16=True)
    assert jnp.allclose(out, ref_bf16, atol=2e-3, rtol=2e-3), "mismatch vs bf16-MXU reference"

    # Loose sanity bound against the full-f32 reference (bounds bf16-MXU drift).
    ref_f32 = _reference(x, w_ih, w_hh, b_ih, b_hh, gamma, beta, mxu_bf16=False)
    assert jnp.allclose(out, ref_f32, atol=1e-1, rtol=1e-1), "mismatch vs f32 reference"

    print("KERNEL_OK")
</pallas_src>

<mosaic_0001>
module attributes {stable_mosaic.version = 11 : i64} {
  func.func @_lstm_layer_kernel(%arg0: i32, %arg1: i32, %arg2: memref<8x8x32xf32, #tpu.memory_space<vmem>>, %arg3: memref<32x128xbf16, #tpu.memory_space<vmem>>, %arg4: memref<32x128xbf16, #tpu.memory_space<vmem>>, %arg5: memref<1x128xf32, #tpu.memory_space<vmem>>, %arg6: memref<1x32xf32, #tpu.memory_space<vmem>>, %arg7: memref<1x32xf32, #tpu.memory_space<vmem>>, %arg8: memref<8x8x32xf32, #tpu.memory_space<vmem>>, %arg9: memref<8x32xf32, #tpu.memory_space<vmem>>, %arg10: memref<8x32xf32, #tpu.memory_space<vmem>>, %arg11: memref<8x8x128xf32, #tpu.memory_space<vmem>>) attributes {dimension_semantics = [#tpu.dimension_semantics<parallel>, #tpu.dimension_semantics<arbitrary>], iteration_bounds = array<i64: 1, 1>, scalar_prefetch = 0 : i64, scratch_operands = 3 : i64, tpu.core_type = #tpu.core_type<tc>, window_params = [{transform_indices = @transform_0, window_bounds = array<i64: 8, 8, 32>}, {pipeline_mode = #tpu.pipeline_mode<synchronous>, transform_indices = @transform_1, window_bounds = array<i64: 32, 128>}, {pipeline_mode = #tpu.pipeline_mode<synchronous>, transform_indices = @transform_2, window_bounds = array<i64: 32, 128>}, {pipeline_mode = #tpu.pipeline_mode<synchronous>, transform_indices = @transform_3, window_bounds = array<i64: 1, 128>}, {pipeline_mode = #tpu.pipeline_mode<synchronous>, transform_indices = @transform_4, window_bounds = array<i64: 1, 32>}, {pipeline_mode = #tpu.pipeline_mode<synchronous>, transform_indices = @transform_5, window_bounds = array<i64: 1, 32>}, {transform_indices = @transform_6, window_bounds = array<i64: 8, 8, 32>}]} {
    %c0_i32 = arith.constant 0 : i32
    %0 = arith.cmpi eq, %arg1, %c0_i32 : i32
    %1 = arith.extui %0 : i1 to i32
    %c0_i32_0 = arith.constant 0 : i32
    %2 = arith.cmpi ne, %1, %c0_i32_0 : i32
    scf.if %2 {
      %cst_129 = arith.constant 0.000000e+00 : f32
      %333 = vector.broadcast %cst_129 : f32 to vector<8x32xf32>
      %c0_130 = arith.constant 0 : index
      %c0_131 = arith.constant 0 : index
      %334 = vector.load %arg9[%c0_130, %c0_131] : memref<8x32xf32, #tpu.memory_space<vmem>>, vector<8x32xf32>
      tpu.vector_store %arg9[%c0_130, %c0_131], %333 {strides = array<i32>} : memref<8x32xf32, #tpu.memory_space<vmem>>, vector<8x32xf32>,
      %cst_132 = arith.constant 0.000000e+00 : f32
      %335 = vector.broadcast %cst_132 : f32 to vector<8x32xf32>
      %c0_133 = arith.constant 0 : index
      %c0_134 = arith.constant 0 : index
      %336 = vector.load %arg10[%c0_133, %c0_134] : memref<8x32xf32, #tpu.memory_space<vmem>>, vector<8x32xf32>
      tpu.vector_store %arg10[%c0_133, %c0_134], %335 {strides = array<i32>} : memref<8x32xf32, #tpu.memory_space<vmem>>, vector<8x32xf32>,
    } else {
    }
    %c0 = arith.constant 0 : index
    %c0_1 = arith.constant 0 : index
    %c0_2 = arith.constant 0 : index
    %3 = vector.load %arg2[%c0, %c0_1, %c0_2] : memref<8x8x32xf32, #tpu.memory_space<vmem>>, vector<8x8x32xf32>
    %cst = arith.constant dense<0.000000e+00> : vector<8x8xf32>
    %4 = vector.multi_reduction <add>, %3, %cst [2] : vector<8x8x32xf32> to vector<8x8xf32>
    %5 = vector.shape_cast %4 : vector<8x8xf32> to vector<8x8x1xf32>
    %cst_3 = arith.constant 3.200000e+01 : f32
    %6 = vector.broadcast %cst_3 : f32 to vector<8x8x1xf32>
    %7 = arith.divf %5, %6 : vector<8x8x1xf32>
    %8 = vector.broadcast %7 : vector<8x8x1xf32> to vector<8x8x32xf32>
    %9 = arith.subf %3, %8 : vector<8x8x32xf32>
    %10 = arith.mulf %9, %9 : vector<8x8x32xf32>
    %cst_4 = arith.constant dense<0.000000e+00> : vector<8x8xf32>
    %11 = vector.multi_reduction <add>, %10, %cst_4 [2] : vector<8x8x32xf32> to vector<8x8xf32>
    %12 = vector.shape_cast %11 : vector<8x8xf32> to vector<8x8x1xf32>
    %cst_5 = arith.constant 3.200000e+01 : f32
    %13 = vector.broadcast %cst_5 : f32 to vector<8x8x1xf32>
    %14 = arith.divf %12, %13 : vector<8x8x1xf32>
    %15 = vector.broadcast %7 : vector<8x8x1xf32> to vector<8x8x32xf32>
    %16 = arith.subf %3, %15 : vector<8x8x32xf32>
    %cst_6 = arith.constant 9.99999974E-6 : f32
    %17 = vector.broadcast %cst_6 : f32 to vector<8x8x1xf32>
    %18 = arith.addf %14, %17 : vector<8x8x1xf32>
    %19 = math.rsqrt %18 : vector<8x8x1xf32>
    %20 = vector.broadcast %19 : vector<8x8x1xf32> to vector<8x8x32xf32>
    %21 = arith.mulf %16, %20 : vector<8x8x32xf32>
    %c0_7 = arith.constant 0 : index
    %c0_8 = arith.constant 0 : index
    %22 = vector.load %arg6[%c0_7, %c0_8] : memref<1x32xf32, #tpu.memory_space<vmem>>, vector<1x32xf32>
    %23 = vector.shape_cast %22 : vector<1x32xf32> to vector<1x1x32xf32>
    %24 = vector.broadcast %23 : vector<1x1x32xf32> to vector<8x8x32xf32>
    %25 = arith.mulf %21, %24 : vector<8x8x32xf32>
    %c0_9 = arith.constant 0 : index
    %c0_10 = arith.constant 0 : index
    %26 = vector.load %arg7[%c0_9, %c0_10] : memref<1x32xf32, #tpu.memory_space<vmem>>, vector<1x32xf32>
    %27 = vector.shape_cast %26 : vector<1x32xf32> to vector<1x1x32xf32>
    %28 = vector.broadcast %27 : vector<1x1x32xf32> to vector<8x8x32xf32>
    %29 = arith.addf %25, %28 : vector<8x8x32xf32>
    %c0_11 = arith.constant 0 : index
    %c0_12 = arith.constant 0 : index
    %c0_13 = arith.constant 0 : index
    %30 = vector.load %arg8[%c0_11, %c0_12, %c0_13] : memref<8x8x32xf32, #tpu.memory_space<vmem>>, vector<8x8x32xf32>
    tpu.vector_store %arg8[%c0_11, %c0_12, %c0_13], %29 {strides = array<i32>} : memref<8x8x32xf32, #tpu.memory_space<vmem>>, vector<8x8x32xf32>,
    %31 = vector.shape_cast %29 : vector<8x8x32xf32> to vector<64x32xf32>
    %32 = arith.truncf %31 : vector<64x32xf32> to vector<64x32xbf16>
    %c0_14 = arith.constant 0 : index
    %c0_15 = arith.constant 0 : index
    %33 = vector.load %arg3[%c0_14, %c0_15] : memref<32x128xbf16, #tpu.memory_space<vmem>>, vector<32x128xbf16>
    %cst_16 = arith.constant dense<0.000000e+00> : vector<64x128xf32>
    %34 = tpu.matmul %32, %33, %cst_16 {dimension_numbers = #tpu.dot_dimension_numbers<[1], [0], [0], [1], [0, 0, 1, 1], [], []>} : vector<64x32xbf16>, vector<32x128xbf16>, vector<64x128xf32> -> vector<64x128xf32>
    %c0_17 = arith.constant 0 : index
    %c0_18 = arith.constant 0 : index
    %35 = vector.load %arg5[%c0_17, %c0_18] : memref<1x128xf32, #tpu.memory_space<vmem>>, vector<1x128xf32>
    %36 = vector.broadcast %35 : vector<1x128xf32> to vector<64x128xf32>
    %37 = arith.addf %34, %36 : vector<64x128xf32>
    %38 = vector.shape_cast %37 : vector<64x128xf32> to vector<8x8x128xf32>
    %c0_19 = arith.constant 0 : index
    %c0_20 = arith.constant 0 : index
    %c0_21 = arith.constant 0 : index
    %39 = vector.load %arg11[%c0_19, %c0_20, %c0_21] : memref<8x8x128xf32, #tpu.memory_space<vmem>>, vector<8x8x128xf32>
    tpu.vector_store %arg11[%c0_19, %c0_20, %c0_21], %38 {strides = array<i32>} : memref<8x8x128xf32, #tpu.memory_space<vmem>>, vector<8x8x128xf32>,
    %c0_22 = arith.constant 0 : index
    %c0_23 = arith.constant 0 : index
    %40 = vector.load %arg4[%c0_22, %c0_23] : memref<32x128xbf16, #tpu.memory_space<vmem>>, vector<32x128xbf16>
    %c0_24 = arith.constant 0 : index
    %c0_25 = arith.constant 0 : index
    %41 = vector.load %arg9[%c0_24, %c0_25] : memref<8x32xf32, #tpu.memory_space<vmem>>, vector<8x32xf32>
    %c0_26 = arith.constant 0 : index
    %c0_27 = arith.constant 0 : index
    %42 = vector.load %arg10[%c0_26, %c0_27] : memref<8x32xf32, #tpu.memory_space<vmem>>, vector<8x32xf32>
    %c0_28 = arith.constant 0 : index
    %c0_29 = arith.constant 0 : index
    %c0_30 = arith.constant 0 : index
    %43 = vector.load %arg11[%c0_28, %c0_29, %c0_30] : memref<8x8x128xf32, #tpu.memory_space<vmem>>, vector<8x1x128xf32>
    %44 = vector.shape_cast %43 : vector<8x1x128xf32> to vector<8x128xf32>
    %45 = arith.truncf %41 : vector<8x32xf32> to vector<8x32xbf16>
    %cst_31 = arith.constant dense<0.000000e+00> : vector<8x128xf32>
    %46 = tpu.matmul %45, %40, %cst_31 {dimension_numbers = #tpu.dot_dimension_numbers<[1], [0], [0], [1], [0, 0, 1, 1], [], []>} : vector<8x32xbf16>, vector<32x128xbf16>, vector<8x128xf32> -> vector<8x128xf32>
    %47 = arith.addf %44, %46 : vector<8x128xf32>
    %48 = vector.extract_strided_slice %47 {offsets = [0, 0], sizes = [8, 32], strides = [1, 1]} : vector<8x128xf32> to vector<8x32xf32>
    %49 = arith.negf %48 : vector<8x32xf32>
    %50 = math.exp %49 : vector<8x32xf32>
    %cst_32 = arith.constant 1.000000e+00 : f32
    %51 = vector.broadcast %cst_32 : f32 to vector<8x32xf32>
    %52 = arith.addf %51, %50 : vector<8x32xf32>
    %53 = arith.divf %51, %52 : vector<8x32xf32>
    %54 = vector.extract_strided_slice %47 {offsets = [0, 32], sizes = [8, 32], strides = [1, 1]} : vector<8x128xf32> to vector<8x32xf32>
    %55 = arith.negf %54 : vector<8x32xf32>
    %56 = math.exp %55 : vector<8x32xf32>
    %cst_33 = arith.constant 1.000000e+00 : f32
    %57 = vector.broadcast %cst_33 : f32 to vector<8x32xf32>
    %58 = arith.addf %57, %56 : vector<8x32xf32>
    %59 = arith.divf %57, %58 : vector<8x32xf32>
    %60 = vector.extract_strided_slice %47 {offsets = [0, 64], sizes = [8, 32], strides = [1, 1]} : vector<8x128xf32> to vector<8x32xf32>
    %61 = math.tanh %60 : vector<8x32xf32>
    %62 = vector.extract_strided_slice %47 {offsets = [0, 96], sizes = [8, 32], strides = [1, 1]} : vector<8x128xf32> to vector<8x32xf32>
    %63 = arith.negf %62 : vector<8x32xf32>
    %64 = math.exp %63 : vector<8x32xf32>
    %cst_34 = arith.constant 1.000000e+00 : f32
    %65 = vector.broadcast %cst_34 : f32 to vector<8x32xf32>
    %66 = arith.addf %65, %64 : vector<8x32xf32>
    %67 = arith.divf %65, %66 : vector<8x32xf32>
    %68 = arith.mulf %59, %42 : vector<8x32xf32>
    %69 = arith.mulf %53, %61 : vector<8x32xf32>
    %70 = arith.addf %68, %69 : vector<8x32xf32>
    %71 = math.tanh %70 : vector<8x32xf32>
    %72 = arith.mulf %67, %71 : vector<8x32xf32>
    %c0_35 = arith.constant 0 : index
    %c0_36 = arith.constant 0 : index
    %c0_37 = arith.constant 0 : index
    %73 = vector.load %arg8[%c0_35, %c0_36, %c0_37] : memref<8x8x32xf32, #tpu.memory_space<vmem>>, vector<8x1x32xf32>
    %74 = vector.shape_cast %73 : vector<8x1x32xf32> to vector<8x32xf32>
    %75 = arith.addf %74, %72 : vector<8x32xf32>
    %c0_38 = arith.constant 0 : index
    %c0_39 = arith.constant 0 : index
    %c0_40 = arith.constant 0 : index
    %76 = vector.load %arg8[%c0_38, %c0_39, %c0_40] : memref<8x8x32xf32, #tpu.memory_space<vmem>>, vector<8x1x32xf32>
    %77 = vector.shape_cast %76 : vector<8x1x32xf32> to vector<8x32xf32>
    %78 = vector.shape_cast %75 : vector<8x32xf32> to vector<8x1x32xf32>
    tpu.vector_store %arg8[%c0_38, %c0_39, %c0_40], %78 {strides = array<i32>} : memref<8x8x32xf32, #tpu.memory_space<vmem>>, vector<8x1x32xf32>,
    %c0_41 = arith.constant 0 : index
    %c1 = arith.constant 1 : index
    %c0_42 = arith.constant 0 : index
    %79 = vector.load %arg11[%c0_41, %c1, %c0_42] : memref<8x8x128xf32, #tpu.memory_space<vmem>>, vector<8x1x128xf32>
    %80 = vector.shape_cast %79 : vector<8x1x128xf32> to vector<8x128xf32>
    %81 = arith.truncf %72 : vector<8x32xf32> to vector<8x32xbf16>
    %cst_43 = arith.constant dense<0.000000e+00> : vector<8x128xf32>
    %82 = tpu.matmul %81, %40, %cst_43 {dimension_numbers = #tpu.dot_dimension_numbers<[1], [0], [0], [1], [0, 0, 1, 1], [], []>} : vector<8x32xbf16>, vector<32x128xbf16>, vector<8x128xf32> -> vector<8x128xf32>
    %83 = arith.addf %80, %82 : vector<8x128xf32>
    %84 = vector.extract_strided_slice %83 {offsets = [0, 0], sizes = [8, 32], strides = [1, 1]} : vector<8x128xf32> to vector<8x32xf32>
    %85 = arith.negf %84 : vector<8x32xf32>
    %86 = math.exp %85 : vector<8x32xf32>
    %cst_44 = arith.constant 1.000000e+00 : f32
    %87 = vector.broadcast %cst_44 : f32 to vector<8x32xf32>
    %88 = arith.addf %87, %86 : vector<8x32xf32>
    %89 = arith.divf %87, %88 : vector<8x32xf32>
    %90 = vector.extract_strided_slice %83 {offsets = [0, 32], sizes = [8, 32], strides = [1, 1]} : vector<8x128xf32> to vector<8x32xf32>
    %91 = arith.negf %90 : vector<8x32xf32>
    %92 = math.exp %91 : vector<8x32xf32>
    %cst_45 = arith.constant 1.000000e+00 : f32
    %93 = vector.broadcast %cst_45 : f32 to vector<8x32xf32>
    %94 = arith.addf %93, %92 : vector<8x32xf32>
    %95 = arith.divf %93, %94 : vector<8x32xf32>
    %96 = vector.extract_strided_slice %83 {offsets = [0, 64], sizes = [8, 32], strides = [1, 1]} : vector<8x128xf32> to vector<8x32xf32>
    %97 = math.tanh %96 : vector<8x32xf32>
    %98 = vector.extract_strided_slice %83 {offsets = [0, 96], sizes = [8, 32], strides = [1, 1]} : vector<8x128xf32> to vector<8x32xf32>
    %99 = arith.negf %98 : vector<8x32xf32>
    %100 = math.exp %99 : vector<8x32xf32>
    %cst_46 = arith.constant 1.000000e+00 : f32
    %101 = vector.broadcast %cst_46 : f32 to vector<8x32xf32>
    %102 = arith.addf %101, %100 : vector<8x32xf32>
    %103 = arith.divf %101, %102 : vector<8x32xf32>
    %104 = arith.mulf %95, %70 : vector<8x32xf32>
    %105 = arith.mulf %89, %97 : vector<8x32xf32>
    %106 = arith.addf %104, %105 : vector<8x32xf32>
    %107 = math.tanh %106 : vector<8x32xf32>
    %108 = arith.mulf %103, %107 : vector<8x32xf32>
    %c0_47 = arith.constant 0 : index
    %c1_48 = arith.constant 1 : index
    %c0_49 = arith.constant 0 : index
    %109 = vector.load %arg8[%c0_47, %c1_48, %c0_49] : memref<8x8x32xf32, #tpu.memory_space<vmem>>, vector<8x1x32xf32>
    %110 = vector.shape_cast %109 : vector<8x1x32xf32> to vector<8x32xf32>
    %111 = arith.addf %110, %108 : vector<8x32xf32>
    %c0_50 = arith.constant 0 : index
    %c1_51 = arith.constant 1 : index
    %c0_52 = arith.constant 0 : index
    %112 = vector.load %arg8[%c0_50, %c1_51, %c0_52] : memref<8x8x32xf32, #tpu.memory_space<vmem>>, vector<8x1x32xf32>
    %113 = vector.shape_cast %112 : vector<8x1x32xf32> to vector<8x32xf32>
    %114 = vector.shape_cast %111 : vector<8x32xf32> to vector<8x1x32xf32>
    tpu.vector_store %arg8[%c0_50, %c1_51, %c0_52], %114 {strides = array<i32>} : memref<8x8x32xf32, #tpu.memory_space<vmem>>, vector<8x1x32xf32>,
    %c0_53 = arith.constant 0 : index
    %c2 = arith.constant 2 : index
    %c0_54 = arith.constant 0 : index
    %115 = vector.load %arg11[%c0_53, %c2, %c0_54] : memref<8x8x128xf32, #tpu.memory_space<vmem>>, vector<8x1x128xf32>
    %116 = vector.shape_cast %115 : vector<8x1x128xf32> to vector<8x128xf32>
    %117 = arith.truncf %108 : vector<8x32xf32> to vector<8x32xbf16>
    %cst_55 = arith.constant dense<0.000000e+00> : vector<8x128xf32>
    %118 = tpu.matmul %117, %40, %cst_55 {dimension_numbers = #tpu.dot_dimension_numbers<[1], [0], [0], [1], [0, 0, 1, 1], [], []>} : vector<8x32xbf16>, vector<32x128xbf16>, vector<8x128xf32> -> vector<8x128xf32>
    %119 = arith.addf %116, %118 : vector<8x128xf32>
    %120 = vector.extract_strided_slice %119 {offsets = [0, 0], sizes = [8, 32], strides = [1, 1]} : vector<8x128xf32> to vector<8x32xf32>
    %121 = arith.negf %120 : vector<8x32xf32>
    %122 = math.exp %121 : vector<8x32xf32>
    %cst_56 = arith.constant 1.000000e+00 : f32
    %123 = vector.broadcast %cst_56 : f32 to vector<8x32xf32>
    %124 = arith.addf %123, %122 : vector<8x32xf32>
    %125 = arith.divf %123, %124 : vector<8x32xf32>
    %126 = vector.extract_strided_slice %119 {offsets = [0, 32], sizes = [8, 32], strides = [1, 1]} : vector<8x128xf32> to vector<8x32xf32>
    %127 = arith.negf %126 : vector<8x32xf32>
    %128 = math.exp %127 : vector<8x32xf32>
    %cst_57 = arith.constant 1.000000e+00 : f32
    %129 = vector.broadcast %cst_57 : f32 to vector<8x32xf32>
    %130 = arith.addf %129, %128 : vector<8x32xf32>
    %131 = arith.divf %129, %130 : vector<8x32xf32>
    %132 = vector.extract_strided_slice %119 {offsets = [0, 64], sizes = [8, 32], strides = [1, 1]} : vector<8x128xf32> to vector<8x32xf32>
    %133 = math.tanh %132 : vector<8x32xf32>
    %134 = vector.extract_strided_slice %119 {offsets = [0, 96], sizes = [8, 32], strides = [1, 1]} : vector<8x128xf32> to vector<8x32xf32>
    %135 = arith.negf %134 : vector<8x32xf32>
    %136 = math.exp %135 : vector<8x32xf32>
    %cst_58 = arith.constant 1.000000e+00 : f32
    %137 = vector.broadcast %cst_58 : f32 to vector<8x32xf32>
    %138 = arith.addf %137, %136 : vector<8x32xf32>
    %139 = arith.divf %137, %138 : vector<8x32xf32>
    %140 = arith.mulf %131, %106 : vector<8x32xf32>
    %141 = arith.mulf %125, %133 : vector<8x32xf32>
    %142 = arith.addf %140, %141 : vector<8x32xf32>
    %143 = math.tanh %142 : vector<8x32xf32>
    %144 = arith.mulf %139, %143 : vector<8x32xf32>
    %c0_59 = arith.constant 0 : index
    %c2_60 = arith.constant 2 : index
    %c0_61 = arith.constant 0 : index
    %145 = vector.load %arg8[%c0_59, %c2_60, %c0_61] : memref<8x8x32xf32, #tpu.memory_space<vmem>>, vector<8x1x32xf32>
    %146 = vector.shape_cast %145 : vector<8x1x32xf32> to vector<8x32xf32>
    %147 = arith.addf %146, %144 : vector<8x32xf32>
    %c0_62 = arith.constant 0 : index
    %c2_63 = arith.constant 2 : index
    %c0_64 = arith.constant 0 : index
    %148 = vector.load %arg8[%c0_62, %c2_63, %c0_64] : memref<8x8x32xf32, #tpu.memory_space<vmem>>, vector<8x1x32xf32>
    %149 = vector.shape_cast %148 : vector<8x1x32xf32> to vector<8x32xf32>
    %150 = vector.shape_cast %147 : vector<8x32xf32> to vector<8x1x32xf32>
    tpu.vector_store %arg8[%c0_62, %c2_63, %c0_64], %150 {strides = array<i32>} : memref<8x8x32xf32, #tpu.memory_space<vmem>>, vector<8x1x32xf32>,
    %c0_65 = arith.constant 0 : index
    %c3 = arith.constant 3 : index
    %c0_66 = arith.constant 0 : index
    %151 = vector.load %arg11[%c0_65, %c3, %c0_66] : memref<8x8x128xf32, #tpu.memory_space<vmem>>, vector<8x1x128xf32>
    %152 = vector.shape_cast %151 : vector<8x1x128xf32> to vector<8x128xf32>
    %153 = arith.truncf %144 : vector<8x32xf32> to vector<8x32xbf16>
    %cst_67 = arith.constant dense<0.000000e+00> : vector<8x128xf32>
    %154 = tpu.matmul %153, %40, %cst_67 {dimension_numbers = #tpu.dot_dimension_numbers<[1], [0], [0], [1], [0, 0, 1, 1], [], []>} : vector<8x32xbf16>, vector<32x128xbf16>, vector<8x128xf32> -> vector<8x128xf32>
    %155 = arith.addf %152, %154 : vector<8x128xf32>
    %156 = vector.extract_strided_slice %155 {offsets = [0, 0], sizes = [8, 32], strides = [1, 1]} : vector<8x128xf32> to vector<8x32xf32>
    %157 = arith.negf %156 : vector<8x32xf32>
    %158 = math.exp %157 : vector<8x32xf32>
    %cst_68 = arith.constant 1.000000e+00 : f32
    %159 = vector.broadcast %cst_68 : f32 to vector<8x32xf32>
    %160 = arith.addf %159, %158 : vector<8x32xf32>
    %161 = arith.divf %159, %160 : vector<8x32xf32>
    %162 = vector.extract_strided_slice %155 {offsets = [0, 32], sizes = [8, 32], strides = [1, 1]} : vector<8x128xf32> to vector<8x32xf32>
    %163 = arith.negf %162 : vector<8x32xf32>
    %164 = math.exp %163 : vector<8x32xf32>
    %cst_69 = arith.constant 1.000000e+00 : f32
    %165 = vector.broadcast %cst_69 : f32 to vector<8x32xf32>
    %166 = arith.addf %165, %164 : vector<8x32xf32>
    %167 = arith.divf %165, %166 : vector<8x32xf32>
    %168 = vector.extract_strided_slice %155 {offsets = [0, 64], sizes = [8, 32], strides = [1, 1]} : vector<8x128xf32> to vector<8x32xf32>
    %169 = math.tanh %168 : vector<8x32xf32>
    %170 = vector.extract_strided_slice %155 {offsets = [0, 96], sizes = [8, 32], strides = [1, 1]} : vector<8x128xf32> to vector<8x32xf32>
    %171 = arith.negf %170 : vector<8x32xf32>
    %172 = math.exp %171 : vector<8x32xf32>
    %cst_70 = arith.constant 1.000000e+00 : f32
    %173 = vector.broadcast %cst_70 : f32 to vector<8x32xf32>
    %174 = arith.addf %173, %172 : vector<8x32xf32>
    %175 = arith.divf %173, %174 : vector<8x32xf32>
    %176 = arith.mulf %167, %142 : vector<8x32xf32>
    %177 = arith.mulf %161, %169 : vector<8x32xf32>
    %178 = arith.addf %176, %177 : vector<8x32xf32>
    %179 = math.tanh %178 : vector<8x32xf32>
    %180 = arith.mulf %175, %179 : vector<8x32xf32>
    %c0_71 = arith.constant 0 : index
    %c3_72 = arith.constant 3 : index
    %c0_73 = arith.constant 0 : index
    %181 = vector.load %arg8[%c0_71, %c3_72, %c0_73] : memref<8x8x32xf32, #tpu.memory_space<vmem>>, vector<8x1x32xf32>
    %182 = vector.shape_cast %181 : vector<8x1x32xf32> to vector<8x32xf32>
    %183 = arith.addf %182, %180 : vector<8x32xf32>
    %c0_74 = arith.constant 0 : index
    %c3_75 = arith.constant 3 : index
    %c0_76 = arith.constant 0 : index
    %184 = vector.load %arg8[%c0_74, %c3_75, %c0_76] : memref<8x8x32xf32, #tpu.memory_space<vmem>>, vector<8x1x32xf32>
    %185 = vector.shape_cast %184 : vector<8x1x32xf32> to vector<8x32xf32>
    %186 = vector.shape_cast %183 : vector<8x32xf32> to vector<8x1x32xf32>
    tpu.vector_store %arg8[%c0_74, %c3_75, %c0_76], %186 {strides = array<i32>} : memref<8x8x32xf32, #tpu.memory_space<vmem>>, vector<8x1x32xf32>,
    %c0_77 = arith.constant 0 : index
    %c4 = arith.constant 4 : index
    %c0_78 = arith.constant 0 : index
    %187 = vector.load %arg11[%c0_77, %c4, %c0_78] : memref<8x8x128xf32, #tpu.memory_space<vmem>>, vector<8x1x128xf32>
    %188 = vector.shape_cast %187 : vector<8x1x128xf32> to vector<8x128xf32>
    %189 = arith.truncf %180 : vector<8x32xf32> to vector<8x32xbf16>
    %cst_79 = arith.constant dense<0.000000e+00> : vector<8x128xf32>
    %190 = tpu.matmul %189, %40, %cst_79 {dimension_numbers = #tpu.dot_dimension_numbers<[1], [0], [0], [1], [0, 0, 1, 1], [], []>} : vector<8x32xbf16>, vector<32x128xbf16>, vector<8x128xf32> -> vector<8x128xf32>
    %191 = arith.addf %188, %190 : vector<8x128xf32>
    %192 = vector.extract_strided_slice %191 {offsets = [0, 0], sizes = [8, 32], strides = [1, 1]} : vector<8x128xf32> to vector<8x32xf32>
    %193 = arith.negf %192 : vector<8x32xf32>
    %194 = math.exp %193 : vector<8x32xf32>
    %cst_80 = arith.constant 1.000000e+00 : f32
    %195 = vector.broadcast %cst_80 : f32 to vector<8x32xf32>
    %196 = arith.addf %195, %194 : vector<8x32xf32>
    %197 = arith.divf %195, %196 : vector<8x32xf32>
    %198 = vector.extract_strided_slice %191 {offsets = [0, 32], sizes = [8, 32], strides = [1, 1]} : vector<8x128xf32> to vector<8x32xf32>
    %199 = arith.negf %198 : vector<8x32xf32>
    %200 = math.exp %199 : vector<8x32xf32>
    %cst_81 = arith.constant 1.000000e+00 : f32
    %201 = vector.broadcast %cst_81 : f32 to vector<8x32xf32>
    %202 = arith.addf %201, %200 : vector<8x32xf32>
    %203 = arith.divf %201, %202 : vector<8x32xf32>
    %204 = vector.extract_strided_slice %191 {offsets = [0, 64], sizes = [8, 32], strides = [1, 1]} : vector<8x128xf32> to vector<8x32xf32>
    %205 = math.tanh %204 : vector<8x32xf32>
    %206 = vector.extract_strided_slice %191 {offsets = [0, 96], sizes = [8, 32], strides = [1, 1]} : vector<8x128xf32> to vector<8x32xf32>
    %207 = arith.negf %206 : vector<8x32xf32>
    %208 = math.exp %207 : vector<8x32xf32>
    %cst_82 = arith.constant 1.000000e+00 : f32
    %209 = vector.broadcast %cst_82 : f32 to vector<8x32xf32>
    %210 = arith.addf %209, %208 : vector<8x32xf32>
    %211 = arith.divf %209, %210 : vector<8x32xf32>
    %212 = arith.mulf %203, %178 : vector<8x32xf32>
    %213 = arith.mulf %197, %205 : vector<8x32xf32>
    %214 = arith.addf %212, %213 : vector<8x32xf32>
    %215 = math.tanh %214 : vector<8x32xf32>
    %216 = arith.mulf %211, %215 : vector<8x32xf32>
    %c0_83 = arith.constant 0 : index
    %c4_84 = arith.constant 4 : index
    %c0_85 = arith.constant 0 : index
    %217 = vector.load %arg8[%c0_83, %c4_84, %c0_85] : memref<8x8x32xf32, #tpu.memory_space<vmem>>, vector<8x1x32xf32>
    %218 = vector.shape_cast %217 : vector<8x1x32xf32> to vector<8x32xf32>
    %219 = arith.addf %218, %216 : vector<8x32xf32>
    %c0_86 = arith.constant 0 : index
    %c4_87 = arith.constant 4 : index
    %c0_88 = arith.constant 0 : index
    %220 = vector.load %arg8[%c0_86, %c4_87, %c0_88] : memref<8x8x32xf32, #tpu.memory_space<vmem>>, vector<8x1x32xf32>
    %221 = vector.shape_cast %220 : vector<8x1x32xf32> to vector<8x32xf32>
    %222 = vector.shape_cast %219 : vector<8x32xf32> to vector<8x1x32xf32>
    tpu.vector_store %arg8[%c0_86, %c4_87, %c0_88], %222 {strides = array<i32>} : memref<8x8x32xf32, #tpu.memory_space<vmem>>, vector<8x1x32xf32>,
    %c0_89 = arith.constant 0 : index
    %c5 = arith.constant 5 : index
    %c0_90 = arith.constant 0 : index
    %223 = vector.load %arg11[%c0_89, %c5, %c0_90] : memref<8x8x128xf32, #tpu.memory_space<vmem>>, vector<8x1x128xf32>
    %224 = vector.shape_cast %223 : vector<8x1x128xf32> to vector<8x128xf32>
    %225 = arith.truncf %216 : vector<8x32xf32> to vector<8x32xbf16>
    %cst_91 = arith.constant dense<0.000000e+00> : vector<8x128xf32>
    %226 = tpu.matmul %225, %40, %cst_91 {dimension_numbers = #tpu.dot_dimension_numbers<[1], [0], [0], [1], [0, 0, 1, 1], [], []>} : vector<8x32xbf16>, vector<32x128xbf16>, vector<8x128xf32> -> vector<8x128xf32>
    %227 = arith.addf %224, %226 : vector<8x128xf32>
    %228 = vector.extract_strided_slice %227 {offsets = [0, 0], sizes = [8, 32], strides = [1, 1]} : vector<8x128xf32> to vector<8x32xf32>
    %229 = arith.negf %228 : vector<8x32xf32>
    %230 = math.exp %229 : vector<8x32xf32>
    %cst_92 = arith.constant 1.000000e+00 : f32
    %231 = vector.broadcast %cst_92 : f32 to vector<8x32xf32>
    %232 = arith.addf %231, %230 : vector<8x32xf32>
    %233 = arith.divf %231, %232 : vector<8x32xf32>
    %234 = vector.extract_strided_slice %227 {offsets = [0, 32], sizes = [8, 32], strides = [1, 1]} : vector<8x128xf32> to vector<8x32xf32>
    %235 = arith.negf %234 : vector<8x32xf32>
    %236 = math.exp %235 : vector<8x32xf32>
    %cst_93 = arith.constant 1.000000e+00 : f32
    %237 = vector.broadcast %cst_93 : f32 to vector<8x32xf32>
    %238 = arith.addf %237, %236 : vector<8x32xf32>
    %239 = arith.divf %237, %238 : vector<8x32xf32>
    %240 = vector.extract_strided_slice %227 {offsets = [0, 64], sizes = [8, 32], strides = [1, 1]} : vector<8x128xf32> to vector<8x32xf32>
    %241 = math.tanh %240 : vector<8x32xf32>
    %242 = vector.extract_strided_slice %227 {offsets = [0, 96], sizes = [8, 32], strides = [1, 1]} : vector<8x128xf32> to vector<8x32xf32>
    %243 = arith.negf %242 : vector<8x32xf32>
    %244 = math.exp %243 : vector<8x32xf32>
    %cst_94 = arith.constant 1.000000e+00 : f32
    %245 = vector.broadcast %cst_94 : f32 to vector<8x32xf32>
    %246 = arith.addf %245, %244 : vector<8x32xf32>
    %247 = arith.divf %245, %246 : vector<8x32xf32>
    %248 = arith.mulf %239, %214 : vector<8x32xf32>
    %249 = arith.mulf %233, %241 : vector<8x32xf32>
    %250 = arith.addf %248, %249 : vector<8x32xf32>
    %251 = math.tanh %250 : vector<8x32xf32>
    %252 = arith.mulf %247, %251 : vector<8x32xf32>
    %c0_95 = arith.constant 0 : index
    %c5_96 = arith.constant 5 : index
    %c0_97 = arith.constant 0 : index
    %253 = vector.load %arg8[%c0_95, %c5_96, %c0_97] : memref<8x8x32xf32, #tpu.memory_space<vmem>>, vector<8x1x32xf32>
    %254 = vector.shape_cast %253 : vector<8x1x32xf32> to vector<8x32xf32>
    %255 = arith.addf %254, %252 : vector<8x32xf32>
    %c0_98 = arith.constant 0 : index
    %c5_99 = arith.constant 5 : index
    %c0_100 = arith.constant 0 : index
    %256 = vector.load %arg8[%c0_98, %c5_99, %c0_100] : memref<8x8x32xf32, #tpu.memory_space<vmem>>, vector<8x1x32xf32>
    %257 = vector.shape_cast %256 : vector<8x1x32xf32> to vector<8x32xf32>
    %258 = vector.shape_cast %255 : vector<8x32xf32> to vector<8x1x32xf32>
    tpu.vector_store %arg8[%c0_98, %c5_99, %c0_100], %258 {strides = array<i32>} : memref<8x8x32xf32, #tpu.memory_space<vmem>>, vector<8x1x32xf32>,
    %c0_101 = arith.constant 0 : index
    %c6 = arith.constant 6 : index
    %c0_102 = arith.constant 0 : index
    %259 = vector.load %arg11[%c0_101, %c6, %c0_102] : memref<8x8x128xf32, #tpu.memory_space<vmem>>, vector<8x1x128xf32>
    %260 = vector.shape_cast %259 : vector<8x1x128xf32> to vector<8x128xf32>
    %261 = arith.truncf %252 : vector<8x32xf32> to vector<8x32xbf16>
    %cst_103 = arith.constant dense<0.000000e+00> : vector<8x128xf32>
    %262 = tpu.matmul %261, %40, %cst_103 {dimension_numbers = #tpu.dot_dimension_numbers<[1], [0], [0], [1], [0, 0, 1, 1], [], []>} : vector<8x32xbf16>, vector<32x128xbf16>, vector<8x128xf32> -> vector<8x128xf32>
    %263 = arith.addf %260, %262 : vector<8x128xf32>
    %264 = vector.extract_strided_slice %263 {offsets = [0, 0], sizes = [8, 32], strides = [1, 1]} : vector<8x128xf32> to vector<8x32xf32>
    %265 = arith.negf %264 : vector<8x32xf32>
    %266 = math.exp %265 : vector<8x32xf32>
    %cst_104 = arith.constant 1.000000e+00 : f32
    %267 = vector.broadcast %cst_104 : f32 to vector<8x32xf32>
    %268 = arith.addf %267, %266 : vector<8x32xf32>
    %269 = arith.divf %267, %268 : vector<8x32xf32>
    %270 = vector.extract_strided_slice %263 {offsets = [0, 32], sizes = [8, 32], strides = [1, 1]} : vector<8x128xf32> to vector<8x32xf32>
    %271 = arith.negf %270 : vector<8x32xf32>
    %272 = math.exp %271 : vector<8x32xf32>
    %cst_105 = arith.constant 1.000000e+00 : f32
    %273 = vector.broadcast %cst_105 : f32 to vector<8x32xf32>
    %274 = arith.addf %273, %272 : vector<8x32xf32>
    %275 = arith.divf %273, %274 : vector<8x32xf32>
    %276 = vector.extract_strided_slice %263 {offsets = [0, 64], sizes = [8, 32], strides = [1, 1]} : vector<8x128xf32> to vector<8x32xf32>
    %277 = math.tanh %276 : vector<8x32xf32>
    %278 = vector.extract_strided_slice %263 {offsets = [0, 96], sizes = [8, 32], strides = [1, 1]} : vector<8x128xf32> to vector<8x32xf32>
    %279 = arith.negf %278 : vector<8x32xf32>
    %280 = math.exp %279 : vector<8x32xf32>
    %cst_106 = arith.constant 1.000000e+00 : f32
    %281 = vector.broadcast %cst_106 : f32 to vector<8x32xf32>
    %282 = arith.addf %281, %280 : vector<8x32xf32>
    %283 = arith.divf %281, %282 : vector<8x32xf32>
    %284 = arith.mulf %275, %250 : vector<8x32xf32>
    %285 = arith.mulf %269, %277 : vector<8x32xf32>
    %286 = arith.addf %284, %285 : vector<8x32xf32>
    %287 = math.tanh %286 : vector<8x32xf32>
    %288 = arith.mulf %283, %287 : vector<8x32xf32>
    %c0_107 = arith.constant 0 : index
    %c6_108 = arith.constant 6 : index
    %c0_109 = arith.constant 0 : index
    %289 = vector.load %arg8[%c0_107, %c6_108, %c0_109] : memref<8x8x32xf32, #tpu.memory_space<vmem>>, vector<8x1x32xf32>
    %290 = vector.shape_cast %289 : vector<8x1x32xf32> to vector<8x32xf32>
    %291 = arith.addf %290, %288 : vector<8x32xf32>
    %c0_110 = arith.constant 0 : index
    %c6_111 = arith.constant 6 : index
    %c0_112 = arith.constant 0 : index
    %292 = vector.load %arg8[%c0_110, %c6_111, %c0_112] : memref<8x8x32xf32, #tpu.memory_space<vmem>>, vector<8x1x32xf32>
    %293 = vector.shape_cast %292 : vector<8x1x32xf32> to vector<8x32xf32>
    %294 = vector.shape_cast %291 : vector<8x32xf32> to vector<8x1x32xf32>
    tpu.vector_store %arg8[%c0_110, %c6_111, %c0_112], %294 {strides = array<i32>} : memref<8x8x32xf32, #tpu.memory_space<vmem>>, vector<8x1x32xf32>,
    %c0_113 = arith.constant 0 : index
    %c7 = arith.constant 7 : index
    %c0_114 = arith.constant 0 : index
    %295 = vector.load %arg11[%c0_113, %c7, %c0_114] : memref<8x8x128xf32, #tpu.memory_space<vmem>>, vector<8x1x128xf32>
    %296 = vector.shape_cast %295 : vector<8x1x128xf32> to vector<8x128xf32>
    %297 = arith.truncf %288 : vector<8x32xf32> to vector<8x32xbf16>
    %cst_115 = arith.constant dense<0.000000e+00> : vector<8x128xf32>
    %298 = tpu.matmul %297, %40, %cst_115 {dimension_numbers = #tpu.dot_dimension_numbers<[1], [0], [0], [1], [0, 0, 1, 1], [], []>} : vector<8x32xbf16>, vector<32x128xbf16>, vector<8x128xf32> -> vector<8x128xf32>
    %299 = arith.addf %296, %298 : vector<8x128xf32>
    %300 = vector.extract_strided_slice %299 {offsets = [0, 0], sizes = [8, 32], strides = [1, 1]} : vector<8x128xf32> to vector<8x32xf32>
    %301 = arith.negf %300 : vector<8x32xf32>
    %302 = math.exp %301 : vector<8x32xf32>
    %cst_116 = arith.constant 1.000000e+00 : f32
    %303 = vector.broadcast %cst_116 : f32 to vector<8x32xf32>
    %304 = arith.addf %303, %302 : vector<8x32xf32>
    %305 = arith.divf %303, %304 : vector<8x32xf32>
    %306 = vector.extract_strided_slice %299 {offsets = [0, 32], sizes = [8, 32], strides = [1, 1]} : vector<8x128xf32> to vector<8x32xf32>
    %307 = arith.negf %306 : vector<8x32xf32>
    %308 = math.exp %307 : vector<8x32xf32>
    %cst_117 = arith.constant 1.000000e+00 : f32
    %309 = vector.broadcast %cst_117 : f32 to vector<8x32xf32>
    %310 = arith.addf %309, %308 : vector<8x32xf32>
    %311 = arith.divf %309, %310 : vector<8x32xf32>
    %312 = vector.extract_strided_slice %299 {offsets = [0, 64], sizes = [8, 32], strides = [1, 1]} : vector<8x128xf32> to vector<8x32xf32>
    %313 = math.tanh %312 : vector<8x32xf32>
    %314 = vector.extract_strided_slice %299 {offsets = [0, 96], sizes = [8, 32], strides = [1, 1]} : vector<8x128xf32> to vector<8x32xf32>
    %315 = arith.negf %314 : vector<8x32xf32>
    %316 = math.exp %315 : vector<8x32xf32>
    %cst_118 = arith.constant 1.000000e+00 : f32
    %317 = vector.broadcast %cst_118 : f32 to vector<8x32xf32>
    %318 = arith.addf %317, %316 : vector<8x32xf32>
    %319 = arith.divf %317, %318 : vector<8x32xf32>
    %320 = arith.mulf %311, %286 : vector<8x32xf32>
    %321 = arith.mulf %305, %313 : vector<8x32xf32>
    %322 = arith.addf %320, %321 : vector<8x32xf32>
    %323 = math.tanh %322 : vector<8x32xf32>
    %324 = arith.mulf %319, %323 : vector<8x32xf32>
    %c0_119 = arith.constant 0 : index
    %c7_120 = arith.constant 7 : index
    %c0_121 = arith.constant 0 : index
    %325 = vector.load %arg8[%c0_119, %c7_120, %c0_121] : memref<8x8x32xf32, #tpu.memory_space<vmem>>, vector<8x1x32xf32>
    %326 = vector.shape_cast %325 : vector<8x1x32xf32> to vector<8x32xf32>
    %327 = arith.addf %326, %324 : vector<8x32xf32>
    %c0_122 = arith.constant 0 : index
    %c7_123 = arith.constant 7 : index
    %c0_124 = arith.constant 0 : index
    %328 = vector.load %arg8[%c0_122, %c7_123, %c0_124] : memref<8x8x32xf32, #tpu.memory_space<vmem>>, vector<8x1x32xf32>
    %329 = vector.shape_cast %328 : vector<8x1x32xf32> to vector<8x32xf32>
    %330 = vector.shape_cast %327 : vector<8x32xf32> to vector<8x1x32xf32>
    tpu.vector_store %arg8[%c0_122, %c7_123, %c0_124], %330 {strides = array<i32>} : memref<8x8x32xf32, #tpu.memory_space<vmem>>, vector<8x1x32xf32>,
    %c0_125 = arith.constant 0 : index
    %c0_126 = arith.constant 0 : index
    %331 = vector.load %arg9[%c0_125, %c0_126] : memref<8x32xf32, #tpu.memory_space<vmem>>, vector<8x32xf32>
    tpu.vector_store %arg9[%c0_125, %c0_126], %324 {strides = array<i32>} : memref<8x32xf32, #tpu.memory_space<vmem>>, vector<8x32xf32>,
    %c0_127 = arith.constant 0 : index
    %c0_128 = arith.constant 0 : index
    %332 = vector.load %arg10[%c0_127, %c0_128] : memref<8x32xf32, #tpu.memory_space<vmem>>, vector<8x32xf32>
    tpu.vector_store %arg10[%c0_127, %c0_128], %322 {strides = array<i32>} : memref<8x32xf32, #tpu.memory_space<vmem>>, vector<8x32xf32>,
    return
  }
  func.func @transform_0(%arg0: i32, %arg1: i32) -> (i32, i32, i32) {
    %c0_i32 = arith.constant 0 : i32
    %c0_i32_0 = arith.constant 0 : i32
    return %arg0, %arg1, %c0_i32 : i32, i32, i32
  }
  func.func @transform_1(%arg0: i32, %arg1: i32) -> (i32, i32) {
    %c0_i32 = arith.constant 0 : i32
    %c0_i32_0 = arith.constant 0 : i32
    %c0_i32_1 = arith.constant 0 : i32
    return %c0_i32, %c0_i32_0 : i32, i32
  }
  func.func @transform_2(%arg0: i32, %arg1: i32) -> (i32, i32) {
    %c0_i32 = arith.constant 0 : i32
    %c0_i32_0 = arith.constant 0 : i32
    %c0_i32_1 = arith.constant 0 : i32
    return %c0_i32, %c0_i32_0 : i32, i32
  }
  func.func @transform_3(%arg0: i32, %arg1: i32) -> (i32, i32) {
    %c0_i32 = arith.constant 0 : i32
    %c0_i32_0 = arith.constant 0 : i32
    %c0_i32_1 = arith.constant 0 : i32
    return %c0_i32, %c0_i32_0 : i32, i32
  }
  func.func @transform_4(%arg0: i32, %arg1: i32) -> (i32, i32) {
    %c0_i32 = arith.constant 0 : i32
    %c0_i32_0 = arith.constant 0 : i32
    %c0_i32_1 = arith.constant 0 : i32
    return %c0_i32, %c0_i32_0 : i32, i32
  }
  func.func @transform_5(%arg0: i32, %arg1: i32) -> (i32, i32) {
    %c0_i32 = arith.constant 0 : i32
    %c0_i32_0 = arith.constant 0 : i32
    %c0_i32_1 = arith.constant 0 : i32
    return %c0_i32, %c0_i32_0 : i32, i32
  }
  func.func @transform_6(%arg0: i32, %arg1: i32) -> (i32, i32, i32) {
    %c0_i32 = arith.constant 0 : i32
    %c0_i32_0 = arith.constant 0 : i32
    return %arg0, %arg1, %c0_i32 : i32, i32, i32
  }
}

module attributes {stable_mosaic.version = 11 : i64} {
  func.func @_lstm_layer_kernel(%arg0: i32, %arg1: i32, %arg2: memref<8x8x32xf32, #tpu.memory_space<vmem>>, %arg3: memref<32x128xbf16, #tpu.memory_space<vmem>>, %arg4: memref<32x128xbf16, #tpu.memory_space<vmem>>, %arg5: memref<1x128xf32, #tpu.memory_space<vmem>>, %arg6: memref<1x32xf32, #tpu.memory_space<vmem>>, %arg7: memref<1x32xf32, #tpu.memory_space<vmem>>, %arg8: memref<8x8x32xf32, #tpu.memory_space<vmem>>, %arg9: memref<8x32xf32, #tpu.memory_space<vmem>>, %arg10: memref<8x32xf32, #tpu.memory_space<vmem>>, %arg11: memref<8x8x128xf32, #tpu.memory_space<vmem>>) attributes {dimension_semantics = [#tpu.dimension_semantics<parallel>, #tpu.dimension_semantics<arbitrary>], iteration_bounds = array<i64: 1, 1>, scalar_prefetch = 0 : i64, scratch_operands = 3 : i64, tpu.core_type = #tpu.core_type<tc>, window_params = [{transform_indices = @transform_0, window_bounds = array<i64: 8, 8, 32>}, {pipeline_mode = #tpu.pipeline_mode<synchronous>, transform_indices = @transform_1, window_bounds = array<i64: 32, 128>}, {pipeline_mode = #tpu.pipeline_mode<synchronous>, transform_indices = @transform_2, window_bounds = array<i64: 32, 128>}, {pipeline_mode = #tpu.pipeline_mode<synchronous>, transform_indices = @transform_3, window_bounds = array<i64: 1, 128>}, {pipeline_mode = #tpu.pipeline_mode<synchronous>, transform_indices = @transform_4, window_bounds = array<i64: 1, 32>}, {pipeline_mode = #tpu.pipeline_mode<synchronous>, transform_indices = @transform_5, window_bounds = array<i64: 1, 32>}, {transform_indices = @transform_6, window_bounds = array<i64: 8, 8, 32>}]} {
    %c0_i32 = arith.constant 0 : i32
    %0 = arith.cmpi eq, %arg1, %c0_i32 : i32
    %1 = arith.extui %0 : i1 to i32
    %c0_i32_0 = arith.constant 0 : i32
    %2 = arith.cmpi ne, %1, %c0_i32_0 : i32
    scf.if %2 {
      %cst_129 = arith.constant 0.000000e+00 : f32
      %333 = vector.broadcast %cst_129 : f32 to vector<8x32xf32>
      %c0_130 = arith.constant 0 : index
      %c0_131 = arith.constant 0 : index
      %334 = vector.load %arg9[%c0_130, %c0_131] : memref<8x32xf32, #tpu.memory_space<vmem>>, vector<8x32xf32>
      tpu.vector_store %arg9[%c0_130, %c0_131], %333 {strides = array<i32>} : memref<8x32xf32, #tpu.memory_space<vmem>>, vector<8x32xf32>,
      %cst_132 = arith.constant 0.000000e+00 : f32
      %335 = vector.broadcast %cst_132 : f32 to vector<8x32xf32>
      %c0_133 = arith.constant 0 : index
      %c0_134 = arith.constant 0 : index
      %336 = vector.load %arg10[%c0_133, %c0_134] : memref<8x32xf32, #tpu.memory_space<vmem>>, vector<8x32xf32>
      tpu.vector_store %arg10[%c0_133, %c0_134], %335 {strides = array<i32>} : memref<8x32xf32, #tpu.memory_space<vmem>>, vector<8x32xf32>,
    } else {
    }
    %c0 = arith.constant 0 : index
    %c0_1 = arith.constant 0 : index
    %c0_2 = arith.constant 0 : index
    %3 = vector.load %arg2[%c0, %c0_1, %c0_2] : memref<8x8x32xf32, #tpu.memory_space<vmem>>, vector<8x8x32xf32>
    %cst = arith.constant dense<0.000000e+00> : vector<8x8xf32>
    %4 = vector.multi_reduction <add>, %3, %cst [2] : vector<8x8x32xf32> to vector<8x8xf32>
    %5 = vector.shape_cast %4 : vector<8x8xf32> to vector<8x8x1xf32>
    %cst_3 = arith.constant 3.200000e+01 : f32
    %6 = vector.broadcast %cst_3 : f32 to vector<8x8x1xf32>
    %7 = arith.divf %5, %6 : vector<8x8x1xf32>
    %8 = vector.broadcast %7 : vector<8x8x1xf32> to vector<8x8x32xf32>
    %9 = arith.subf %3, %8 : vector<8x8x32xf32>
    %10 = arith.mulf %9, %9 : vector<8x8x32xf32>
    %cst_4 = arith.constant dense<0.000000e+00> : vector<8x8xf32>
    %11 = vector.multi_reduction <add>, %10, %cst_4 [2] : vector<8x8x32xf32> to vector<8x8xf32>
    %12 = vector.shape_cast %11 : vector<8x8xf32> to vector<8x8x1xf32>
    %cst_5 = arith.constant 3.200000e+01 : f32
    %13 = vector.broadcast %cst_5 : f32 to vector<8x8x1xf32>
    %14 = arith.divf %12, %13 : vector<8x8x1xf32>
    %15 = vector.broadcast %7 : vector<8x8x1xf32> to vector<8x8x32xf32>
    %16 = arith.subf %3, %15 : vector<8x8x32xf32>
    %cst_6 = arith.constant 9.99999974E-6 : f32
    %17 = vector.broadcast %cst_6 : f32 to vector<8x8x1xf32>
    %18 = arith.addf %14, %17 : vector<8x8x1xf32>
    %19 = math.rsqrt %18 : vector<8x8x1xf32>
    %20 = vector.broadcast %19 : vector<8x8x1xf32> to vector<8x8x32xf32>
    %21 = arith.mulf %16, %20 : vector<8x8x32xf32>
    %c0_7 = arith.constant 0 : index
    %c0_8 = arith.constant 0 : index
    %22 = vector.load %arg6[%c0_7, %c0_8] : memref<1x32xf32, #tpu.memory_space<vmem>>, vector<1x32xf32>
    %23 = vector.shape_cast %22 : vector<1x32xf32> to vector<1x1x32xf32>
    %24 = vector.broadcast %23 : vector<1x1x32xf32> to vector<8x8x32xf32>
    %25 = arith.mulf %21, %24 : vector<8x8x32xf32>
    %c0_9 = arith.constant 0 : index
    %c0_10 = arith.constant 0 : index
    %26 = vector.load %arg7[%c0_9, %c0_10] : memref<1x32xf32, #tpu.memory_space<vmem>>, vector<1x32xf32>
    %27 = vector.shape_cast %26 : vector<1x32xf32> to vector<1x1x32xf32>
    %28 = vector.broadcast %27 : vector<1x1x32xf32> to vector<8x8x32xf32>
    %29 = arith.addf %25, %28 : vector<8x8x32xf32>
    %c0_11 = arith.constant 0 : index
    %c0_12 = arith.constant 0 : index
    %c0_13 = arith.constant 0 : index
    %30 = vector.load %arg8[%c0_11, %c0_12, %c0_13] : memref<8x8x32xf32, #tpu.memory_space<vmem>>, vector<8x8x32xf32>
    tpu.vector_store %arg8[%c0_11, %c0_12, %c0_13], %29 {strides = array<i32>} : memref<8x8x32xf32, #tpu.memory_space<vmem>>, vector<8x8x32xf32>,
    %31 = vector.shape_cast %29 : vector<8x8x32xf32> to vector<64x32xf32>
    %32 = arith.truncf %31 : vector<64x32xf32> to vector<64x32xbf16>
    %c0_14 = arith.constant 0 : index
    %c0_15 = arith.constant 0 : index
    %33 = vector.load %arg3[%c0_14, %c0_15] : memref<32x128xbf16, #tpu.memory_space<vmem>>, vector<32x128xbf16>
    %cst_16 = arith.constant dense<0.000000e+00> : vector<64x128xf32>
    %34 = tpu.matmul %32, %33, %cst_16 {dimension_numbers = #tpu.dot_dimension_numbers<[1], [0], [0], [1], [0, 0, 1, 1], [], []>} : vector<64x32xbf16>, vector<32x128xbf16>, vector<64x128xf32> -> vector<64x128xf32>
    %c0_17 = arith.constant 0 : index
    %c0_18 = arith.constant 0 : index
    %35 = vector.load %arg5[%c0_17, %c0_18] : memref<1x128xf32, #tpu.memory_space<vmem>>, vector<1x128xf32>
    %36 = vector.broadcast %35 : vector<1x128xf32> to vector<64x128xf32>
    %37 = arith.addf %34, %36 : vector<64x128xf32>
    %38 = vector.shape_cast %37 : vector<64x128xf32> to vector<8x8x128xf32>
    %c0_19 = arith.constant 0 : index
    %c0_20 = arith.constant 0 : index
    %c0_21 = arith.constant 0 : index
    %39 = vector.load %arg11[%c0_19, %c0_20, %c0_21] : memref<8x8x128xf32, #tpu.memory_space<vmem>>, vector<8x8x128xf32>
    tpu.vector_store %arg11[%c0_19, %c0_20, %c0_21], %38 {strides = array<i32>} : memref<8x8x128xf32, #tpu.memory_space<vmem>>, vector<8x8x128xf32>,
    %c0_22 = arith.constant 0 : index
    %c0_23 = arith.constant 0 : index
    %40 = vector.load %arg4[%c0_22, %c0_23] : memref<32x128xbf16, #tpu.memory_space<vmem>>, vector<32x128xbf16>
    %c0_24 = arith.constant 0 : index
    %c0_25 = arith.constant 0 : index
    %41 = vector.load %arg9[%c0_24, %c0_25] : memref<8x32xf32, #tpu.memory_space<vmem>>, vector<8x32xf32>
    %c0_26 = arith.constant 0 : index
    %c0_27 = arith.constant 0 : index
    %42 = vector.load %arg10[%c0_26, %c0_27] : memref<8x32xf32, #tpu.memory_space<vmem>>, vector<8x32xf32>
    %c0_28 = arith.constant 0 : index
    %c0_29 = arith.constant 0 : index
    %c0_30 = arith.constant 0 : index
    %43 = vector.load %arg11[%c0_28, %c0_29, %c0_30] : memref<8x8x128xf32, #tpu.memory_space<vmem>>, vector<8x1x128xf32>
    %44 = vector.shape_cast %43 : vector<8x1x128xf32> to vector<8x128xf32>
    %45 = arith.truncf %41 : vector<8x32xf32> to vector<8x32xbf16>
    %cst_31 = arith.constant dense<0.000000e+00> : vector<8x128xf32>
    %46 = tpu.matmul %45, %40, %cst_31 {dimension_numbers = #tpu.dot_dimension_numbers<[1], [0], [0], [1], [0, 0, 1, 1], [], []>} : vector<8x32xbf16>, vector<32x128xbf16>, vector<8x128xf32> -> vector<8x128xf32>
    %47 = arith.addf %44, %46 : vector<8x128xf32>
    %48 = vector.extract_strided_slice %47 {offsets = [0, 0], sizes = [8, 32], strides = [1, 1]} : vector<8x128xf32> to vector<8x32xf32>
    %49 = arith.negf %48 : vector<8x32xf32>
    %50 = math.exp %49 : vector<8x32xf32>
    %cst_32 = arith.constant 1.000000e+00 : f32
    %51 = vector.broadcast %cst_32 : f32 to vector<8x32xf32>
    %52 = arith.addf %51, %50 : vector<8x32xf32>
    %53 = arith.divf %51, %52 : vector<8x32xf32>
    %54 = vector.extract_strided_slice %47 {offsets = [0, 32], sizes = [8, 32], strides = [1, 1]} : vector<8x128xf32> to vector<8x32xf32>
    %55 = arith.negf %54 : vector<8x32xf32>
    %56 = math.exp %55 : vector<8x32xf32>
    %cst_33 = arith.constant 1.000000e+00 : f32
    %57 = vector.broadcast %cst_33 : f32 to vector<8x32xf32>
    %58 = arith.addf %57, %56 : vector<8x32xf32>
    %59 = arith.divf %57, %58 : vector<8x32xf32>
    %60 = vector.extract_strided_slice %47 {offsets = [0, 64], sizes = [8, 32], strides = [1, 1]} : vector<8x128xf32> to vector<8x32xf32>
    %61 = math.tanh %60 : vector<8x32xf32>
    %62 = vector.extract_strided_slice %47 {offsets = [0, 96], sizes = [8, 32], strides = [1, 1]} : vector<8x128xf32> to vector<8x32xf32>
    %63 = arith.negf %62 : vector<8x32xf32>
    %64 = math.exp %63 : vector<8x32xf32>
    %cst_34 = arith.constant 1.000000e+00 : f32
    %65 = vector.broadcast %cst_34 : f32 to vector<8x32xf32>
    %66 = arith.addf %65, %64 : vector<8x32xf32>
    %67 = arith.divf %65, %66 : vector<8x32xf32>
    %68 = arith.mulf %59, %42 : vector<8x32xf32>
    %69 = arith.mulf %53, %61 : vector<8x32xf32>
    %70 = arith.addf %68, %69 : vector<8x32xf32>
    %71 = math.tanh %70 : vector<8x32xf32>
    %72 = arith.mulf %67, %71 : vector<8x32xf32>
    %c0_35 = arith.constant 0 : index
    %c0_36 = arith.constant 0 : index
    %c0_37 = arith.constant 0 : index
    %73 = vector.load %arg8[%c0_35, %c0_36, %c0_37] : memref<8x8x32xf32, #tpu.memory_space<vmem>>, vector<8x1x32xf32>
    %74 = vector.shape_cast %73 : vector<8x1x32xf32> to vector<8x32xf32>
    %75 = arith.addf %74, %72 : vector<8x32xf32>
    %c0_38 = arith.constant 0 : index
    %c0_39 = arith.constant 0 : index
    %c0_40 = arith.constant 0 : index
    %76 = vector.load %arg8[%c0_38, %c0_39, %c0_40] : memref<8x8x32xf32, #tpu.memory_space<vmem>>, vector<8x1x32xf32>
    %77 = vector.shape_cast %76 : vector<8x1x32xf32> to vector<8x32xf32>
    %78 = vector.shape_cast %75 : vector<8x32xf32> to vector<8x1x32xf32>
    tpu.vector_store %arg8[%c0_38, %c0_39, %c0_40], %78 {strides = array<i32>} : memref<8x8x32xf32, #tpu.memory_space<vmem>>, vector<8x1x32xf32>,
    %c0_41 = arith.constant 0 : index
    %c1 = arith.constant 1 : index
    %c0_42 = arith.constant 0 : index
    %79 = vector.load %arg11[%c0_41, %c1, %c0_42] : memref<8x8x128xf32, #tpu.memory_space<vmem>>, vector<8x1x128xf32>
    %80 = vector.shape_cast %79 : vector<8x1x128xf32> to vector<8x128xf32>
    %81 = arith.truncf %72 : vector<8x32xf32> to vector<8x32xbf16>
    %cst_43 = arith.constant dense<0.000000e+00> : vector<8x128xf32>
    %82 = tpu.matmul %81, %40, %cst_43 {dimension_numbers = #tpu.dot_dimension_numbers<[1], [0], [0], [1], [0, 0, 1, 1], [], []>} : vector<8x32xbf16>, vector<32x128xbf16>, vector<8x128xf32> -> vector<8x128xf32>
    %83 = arith.addf %80, %82 : vector<8x128xf32>
    %84 = vector.extract_strided_slice %83 {offsets = [0, 0], sizes = [8, 32], strides = [1, 1]} : vector<8x128xf32> to vector<8x32xf32>
    %85 = arith.negf %84 : vector<8x32xf32>
    %86 = math.exp %85 : vector<8x32xf32>
    %cst_44 = arith.constant 1.000000e+00 : f32
    %87 = vector.broadcast %cst_44 : f32 to vector<8x32xf32>
    %88 = arith.addf %87, %86 : vector<8x32xf32>
    %89 = arith.divf %87, %88 : vector<8x32xf32>
    %90 = vector.extract_strided_slice %83 {offsets = [0, 32], sizes = [8, 32], strides = [1, 1]} : vector<8x128xf32> to vector<8x32xf32>
    %91 = arith.negf %90 : vector<8x32xf32>
    %92 = math.exp %91 : vector<8x32xf32>
    %cst_45 = arith.constant 1.000000e+00 : f32
    %93 = vector.broadcast %cst_45 : f32 to vector<8x32xf32>
    %94 = arith.addf %93, %92 : vector<8x32xf32>
    %95 = arith.divf %93, %94 : vector<8x32xf32>
    %96 = vector.extract_strided_slice %83 {offsets = [0, 64], sizes = [8, 32], strides = [1, 1]} : vector<8x128xf32> to vector<8x32xf32>
    %97 = math.tanh %96 : vector<8x32xf32>
    %98 = vector.extract_strided_slice %83 {offsets = [0, 96], sizes = [8, 32], strides = [1, 1]} : vector<8x128xf32> to vector<8x32xf32>
    %99 = arith.negf %98 : vector<8x32xf32>
    %100 = math.exp %99 : vector<8x32xf32>
    %cst_46 = arith.constant 1.000000e+00 : f32
    %101 = vector.broadcast %cst_46 : f32 to vector<8x32xf32>
    %102 = arith.addf %101, %100 : vector<8x32xf32>
    %103 = arith.divf %101, %102 : vector<8x32xf32>
    %104 = arith.mulf %95, %70 : vector<8x32xf32>
    %105 = arith.mulf %89, %97 : vector<8x32xf32>
    %106 = arith.addf %104, %105 : vector<8x32xf32>
    %107 = math.tanh %106 : vector<8x32xf32>
    %108 = arith.mulf %103, %107 : vector<8x32xf32>
    %c0_47 = arith.constant 0 : index
    %c1_48 = arith.constant 1 : index
    %c0_49 = arith.constant 0 : index
    %109 = vector.load %arg8[%c0_47, %c1_48, %c0_49] : memref<8x8x32xf32, #tpu.memory_space<vmem>>, vector<8x1x32xf32>
    %110 = vector.shape_cast %109 : vector<8x1x32xf32> to vector<8x32xf32>
    %111 = arith.addf %110, %108 : vector<8x32xf32>
    %c0_50 = arith.constant 0 : index
    %c1_51 = arith.constant 1 : index
    %c0_52 = arith.constant 0 : index
    %112 = vector.load %arg8[%c0_50, %c1_51, %c0_52] : memref<8x8x32xf32, #tpu.memory_space<vmem>>, vector<8x1x32xf32>
    %113 = vector.shape_cast %112 : vector<8x1x32xf32> to vector<8x32xf32>
    %114 = vector.shape_cast %111 : vector<8x32xf32> to vector<8x1x32xf32>
    tpu.vector_store %arg8[%c0_50, %c1_51, %c0_52], %114 {strides = array<i32>} : memref<8x8x32xf32, #tpu.memory_space<vmem>>, vector<8x1x32xf32>,
    %c0_53 = arith.constant 0 : index
    %c2 = arith.constant 2 : index
    %c0_54 = arith.constant 0 : index
    %115 = vector.load %arg11[%c0_53, %c2, %c0_54] : memref<8x8x128xf32, #tpu.memory_space<vmem>>, vector<8x1x128xf32>
    %116 = vector.shape_cast %115 : vector<8x1x128xf32> to vector<8x128xf32>
    %117 = arith.truncf %108 : vector<8x32xf32> to vector<8x32xbf16>
    %cst_55 = arith.constant dense<0.000000e+00> : vector<8x128xf32>
    %118 = tpu.matmul %117, %40, %cst_55 {dimension_numbers = #tpu.dot_dimension_numbers<[1], [0], [0], [1], [0, 0, 1, 1], [], []>} : vector<8x32xbf16>, vector<32x128xbf16>, vector<8x128xf32> -> vector<8x128xf32>
    %119 = arith.addf %116, %118 : vector<8x128xf32>
    %120 = vector.extract_strided_slice %119 {offsets = [0, 0], sizes = [8, 32], strides = [1, 1]} : vector<8x128xf32> to vector<8x32xf32>
    %121 = arith.negf %120 : vector<8x32xf32>
    %122 = math.exp %121 : vector<8x32xf32>
    %cst_56 = arith.constant 1.000000e+00 : f32
    %123 = vector.broadcast %cst_56 : f32 to vector<8x32xf32>
    %124 = arith.addf %123, %122 : vector<8x32xf32>
    %125 = arith.divf %123, %124 : vector<8x32xf32>
    %126 = vector.extract_strided_slice %119 {offsets = [0, 32], sizes = [8, 32], strides = [1, 1]} : vector<8x128xf32> to vector<8x32xf32>
    %127 = arith.negf %126 : vector<8x32xf32>
    %128 = math.exp %127 : vector<8x32xf32>
    %cst_57 = arith.constant 1.000000e+00 : f32
    %129 = vector.broadcast %cst_57 : f32 to vector<8x32xf32>
    %130 = arith.addf %129, %128 : vector<8x32xf32>
    %131 = arith.divf %129, %130 : vector<8x32xf32>
    %132 = vector.extract_strided_slice %119 {offsets = [0, 64], sizes = [8, 32], strides = [1, 1]} : vector<8x128xf32> to vector<8x32xf32>
    %133 = math.tanh %132 : vector<8x32xf32>
    %134 = vector.extract_strided_slice %119 {offsets = [0, 96], sizes = [8, 32], strides = [1, 1]} : vector<8x128xf32> to vector<8x32xf32>
    %135 = arith.negf %134 : vector<8x32xf32>
    %136 = math.exp %135 : vector<8x32xf32>
    %cst_58 = arith.constant 1.000000e+00 : f32
    %137 = vector.broadcast %cst_58 : f32 to vector<8x32xf32>
    %138 = arith.addf %137, %136 : vector<8x32xf32>
    %139 = arith.divf %137, %138 : vector<8x32xf32>
    %140 = arith.mulf %131, %106 : vector<8x32xf32>
    %141 = arith.mulf %125, %133 : vector<8x32xf32>
    %142 = arith.addf %140, %141 : vector<8x32xf32>
    %143 = math.tanh %142 : vector<8x32xf32>
    %144 = arith.mulf %139, %143 : vector<8x32xf32>
    %c0_59 = arith.constant 0 : index
    %c2_60 = arith.constant 2 : index
    %c0_61 = arith.constant 0 : index
    %145 = vector.load %arg8[%c0_59, %c2_60, %c0_61] : memref<8x8x32xf32, #tpu.memory_space<vmem>>, vector<8x1x32xf32>
    %146 = vector.shape_cast %145 : vector<8x1x32xf32> to vector<8x32xf32>
    %147 = arith.addf %146, %144 : vector<8x32xf32>
    %c0_62 = arith.constant 0 : index
    %c2_63 = arith.constant 2 : index
    %c0_64 = arith.constant 0 : index
    %148 = vector.load %arg8[%c0_62, %c2_63, %c0_64] : memref<8x8x32xf32, #tpu.memory_space<vmem>>, vector<8x1x32xf32>
    %149 = vector.shape_cast %148 : vector<8x1x32xf32> to vector<8x32xf32>
    %150 = vector.shape_cast %147 : vector<8x32xf32> to vector<8x1x32xf32>
    tpu.vector_store %arg8[%c0_62, %c2_63, %c0_64], %150 {strides = array<i32>} : memref<8x8x32xf32, #tpu.memory_space<vmem>>, vector<8x1x32xf32>,
    %c0_65 = arith.constant 0 : index
    %c3 = arith.constant 3 : index
    %c0_66 = arith.constant 0 : index
    %151 = vector.load %arg11[%c0_65, %c3, %c0_66] : memref<8x8x128xf32, #tpu.memory_space<vmem>>, vector<8x1x128xf32>
    %152 = vector.shape_cast %151 : vector<8x1x128xf32> to vector<8x128xf32>
    %153 = arith.truncf %144 : vector<8x32xf32> to vector<8x32xbf16>
    %cst_67 = arith.constant dense<0.000000e+00> : vector<8x128xf32>
    %154 = tpu.matmul %153, %40, %cst_67 {dimension_numbers = #tpu.dot_dimension_numbers<[1], [0], [0], [1], [0, 0, 1, 1], [], []>} : vector<8x32xbf16>, vector<32x128xbf16>, vector<8x128xf32> -> vector<8x128xf32>
    %155 = arith.addf %152, %154 : vector<8x128xf32>
    %156 = vector.extract_strided_slice %155 {offsets = [0, 0], sizes = [8, 32], strides = [1, 1]} : vector<8x128xf32> to vector<8x32xf32>
    %157 = arith.negf %156 : vector<8x32xf32>
    %158 = math.exp %157 : vector<8x32xf32>
    %cst_68 = arith.constant 1.000000e+00 : f32
    %159 = vector.broadcast %cst_68 : f32 to vector<8x32xf32>
    %160 = arith.addf %159, %158 : vector<8x32xf32>
    %161 = arith.divf %159, %160 : vector<8x32xf32>
    %162 = vector.extract_strided_slice %155 {offsets = [0, 32], sizes = [8, 32], strides = [1, 1]} : vector<8x128xf32> to vector<8x32xf32>
    %163 = arith.negf %162 : vector<8x32xf32>
    %164 = math.exp %163 : vector<8x32xf32>
    %cst_69 = arith.constant 1.000000e+00 : f32
    %165 = vector.broadcast %cst_69 : f32 to vector<8x32xf32>
    %166 = arith.addf %165, %164 : vector<8x32xf32>
    %167 = arith.divf %165, %166 : vector<8x32xf32>
    %168 = vector.extract_strided_slice %155 {offsets = [0, 64], sizes = [8, 32], strides = [1, 1]} : vector<8x128xf32> to vector<8x32xf32>
    %169 = math.tanh %168 : vector<8x32xf32>
    %170 = vector.extract_strided_slice %155 {offsets = [0, 96], sizes = [8, 32], strides = [1, 1]} : vector<8x128xf32> to vector<8x32xf32>
    %171 = arith.negf %170 : vector<8x32xf32>
    %172 = math.exp %171 : vector<8x32xf32>
    %cst_70 = arith.constant 1.000000e+00 : f32
    %173 = vector.broadcast %cst_70 : f32 to vector<8x32xf32>
    %174 = arith.addf %173, %172 : vector<8x32xf32>
    %175 = arith.divf %173, %174 : vector<8x32xf32>
    %176 = arith.mulf %167, %142 : vector<8x32xf32>
    %177 = arith.mulf %161, %169 : vector<8x32xf32>
    %178 = arith.addf %176, %177 : vector<8x32xf32>
    %179 = math.tanh %178 : vector<8x32xf32>
    %180 = arith.mulf %175, %179 : vector<8x32xf32>
    %c0_71 = arith.constant 0 : index
    %c3_72 = arith.constant 3 : index
    %c0_73 = arith.constant 0 : index
    %181 = vector.load %arg8[%c0_71, %c3_72, %c0_73] : memref<8x8x32xf32, #tpu.memory_space<vmem>>, vector<8x1x32xf32>
    %182 = vector.shape_cast %181 : vector<8x1x32xf32> to vector<8x32xf32>
    %183 = arith.addf %182, %180 : vector<8x32xf32>
    %c0_74 = arith.constant 0 : index
    %c3_75 = arith.constant 3 : index
    %c0_76 = arith.constant 0 : index
    %184 = vector.load %arg8[%c0_74, %c3_75, %c0_76] : memref<8x8x32xf32, #tpu.memory_space<vmem>>, vector<8x1x32xf32>
    %185 = vector.shape_cast %184 : vector<8x1x32xf32> to vector<8x32xf32>
    %186 = vector.shape_cast %183 : vector<8x32xf32> to vector<8x1x32xf32>
    tpu.vector_store %arg8[%c0_74, %c3_75, %c0_76], %186 {strides = array<i32>} : memref<8x8x32xf32, #tpu.memory_space<vmem>>, vector<8x1x32xf32>,
    %c0_77 = arith.constant 0 : index
    %c4 = arith.constant 4 : index
    %c0_78 = arith.constant 0 : index
    %187 = vector.load %arg11[%c0_77, %c4, %c0_78] : memref<8x8x128xf32, #tpu.memory_space<vmem>>, vector<8x1x128xf32>
    %188 = vector.shape_cast %187 : vector<8x1x128xf32> to vector<8x128xf32>
    %189 = arith.truncf %180 : vector<8x32xf32> to vector<8x32xbf16>
    %cst_79 = arith.constant dense<0.000000e+00> : vector<8x128xf32>
    %190 = tpu.matmul %189, %40, %cst_79 {dimension_numbers = #tpu.dot_dimension_numbers<[1], [0], [0], [1], [0, 0, 1, 1], [], []>} : vector<8x32xbf16>, vector<32x128xbf16>, vector<8x128xf32> -> vector<8x128xf32>
    %191 = arith.addf %188, %190 : vector<8x128xf32>
    %192 = vector.extract_strided_slice %191 {offsets = [0, 0], sizes = [8, 32], strides = [1, 1]} : vector<8x128xf32> to vector<8x32xf32>
    %193 = arith.negf %192 : vector<8x32xf32>
    %194 = math.exp %193 : vector<8x32xf32>
    %cst_80 = arith.constant 1.000000e+00 : f32
    %195 = vector.broadcast %cst_80 : f32 to vector<8x32xf32>
    %196 = arith.addf %195, %194 : vector<8x32xf32>
    %197 = arith.divf %195, %196 : vector<8x32xf32>
    %198 = vector.extract_strided_slice %191 {offsets = [0, 32], sizes = [8, 32], strides = [1, 1]} : vector<8x128xf32> to vector<8x32xf32>
    %199 = arith.negf %198 : vector<8x32xf32>
    %200 = math.exp %199 : vector<8x32xf32>
    %cst_81 = arith.constant 1.000000e+00 : f32
    %201 = vector.broadcast %cst_81 : f32 to vector<8x32xf32>
    %202 = arith.addf %201, %200 : vector<8x32xf32>
    %203 = arith.divf %201, %202 : vector<8x32xf32>
    %204 = vector.extract_strided_slice %191 {offsets = [0, 64], sizes = [8, 32], strides = [1, 1]} : vector<8x128xf32> to vector<8x32xf32>
    %205 = math.tanh %204 : vector<8x32xf32>
    %206 = vector.extract_strided_slice %191 {offsets = [0, 96], sizes = [8, 32], strides = [1, 1]} : vector<8x128xf32> to vector<8x32xf32>
    %207 = arith.negf %206 : vector<8x32xf32>
    %208 = math.exp %207 : vector<8x32xf32>
    %cst_82 = arith.constant 1.000000e+00 : f32
    %209 = vector.broadcast %cst_82 : f32 to vector<8x32xf32>
    %210 = arith.addf %209, %208 : vector<8x32xf32>
    %211 = arith.divf %209, %210 : vector<8x32xf32>
    %212 = arith.mulf %203, %178 : vector<8x32xf32>
    %213 = arith.mulf %197, %205 : vector<8x32xf32>
    %214 = arith.addf %212, %213 : vector<8x32xf32>
    %215 = math.tanh %214 : vector<8x32xf32>
    %216 = arith.mulf %211, %215 : vector<8x32xf32>
    %c0_83 = arith.constant 0 : index
    %c4_84 = arith.constant 4 : index
    %c0_85 = arith.constant 0 : index
    %217 = vector.load %arg8[%c0_83, %c4_84, %c0_85] : memref<8x8x32xf32, #tpu.memory_space<vmem>>, vector<8x1x32xf32>
    %218 = vector.shape_cast %217 : vector<8x1x32xf32> to vector<8x32xf32>
    %219 = arith.addf %218, %216 : vector<8x32xf32>
    %c0_86 = arith.constant 0 : index
    %c4_87 = arith.constant 4 : index
    %c0_88 = arith.constant 0 : index
    %220 = vector.load %arg8[%c0_86, %c4_87, %c0_88] : memref<8x8x32xf32, #tpu.memory_space<vmem>>, vector<8x1x32xf32>
    %221 = vector.shape_cast %220 : vector<8x1x32xf32> to vector<8x32xf32>
    %222 = vector.shape_cast %219 : vector<8x32xf32> to vector<8x1x32xf32>
    tpu.vector_store %arg8[%c0_86, %c4_87, %c0_88], %222 {strides = array<i32>} : memref<8x8x32xf32, #tpu.memory_space<vmem>>, vector<8x1x32xf32>,
    %c0_89 = arith.constant 0 : index
    %c5 = arith.constant 5 : index
    %c0_90 = arith.constant 0 : index
    %223 = vector.load %arg11[%c0_89, %c5, %c0_90] : memref<8x8x128xf32, #tpu.memory_space<vmem>>, vector<8x1x128xf32>
    %224 = vector.shape_cast %223 : vector<8x1x128xf32> to vector<8x128xf32>
    %225 = arith.truncf %216 : vector<8x32xf32> to vector<8x32xbf16>
    %cst_91 = arith.constant dense<0.000000e+00> : vector<8x128xf32>
    %226 = tpu.matmul %225, %40, %cst_91 {dimension_numbers = #tpu.dot_dimension_numbers<[1], [0], [0], [1], [0, 0, 1, 1], [], []>} : vector<8x32xbf16>, vector<32x128xbf16>, vector<8x128xf32> -> vector<8x128xf32>
    %227 = arith.addf %224, %226 : vector<8x128xf32>
    %228 = vector.extract_strided_slice %227 {offsets = [0, 0], sizes = [8, 32], strides = [1, 1]} : vector<8x128xf32> to vector<8x32xf32>
    %229 = arith.negf %228 : vector<8x32xf32>
    %230 = math.exp %229 : vector<8x32xf32>
    %cst_92 = arith.constant 1.000000e+00 : f32
    %231 = vector.broadcast %cst_92 : f32 to vector<8x32xf32>
    %232 = arith.addf %231, %230 : vector<8x32xf32>
    %233 = arith.divf %231, %232 : vector<8x32xf32>
    %234 = vector.extract_strided_slice %227 {offsets = [0, 32], sizes = [8, 32], strides = [1, 1]} : vector<8x128xf32> to vector<8x32xf32>
    %235 = arith.negf %234 : vector<8x32xf32>
    %236 = math.exp %235 : vector<8x32xf32>
    %cst_93 = arith.constant 1.000000e+00 : f32
    %237 = vector.broadcast %cst_93 : f32 to vector<8x32xf32>
    %238 = arith.addf %237, %236 : vector<8x32xf32>
    %239 = arith.divf %237, %238 : vector<8x32xf32>
    %240 = vector.extract_strided_slice %227 {offsets = [0, 64], sizes = [8, 32], strides = [1, 1]} : vector<8x128xf32> to vector<8x32xf32>
    %241 = math.tanh %240 : vector<8x32xf32>
    %242 = vector.extract_strided_slice %227 {offsets = [0, 96], sizes = [8, 32], strides = [1, 1]} : vector<8x128xf32> to vector<8x32xf32>
    %243 = arith.negf %242 : vector<8x32xf32>
    %244 = math.exp %243 : vector<8x32xf32>
    %cst_94 = arith.constant 1.000000e+00 : f32
    %245 = vector.broadcast %cst_94 : f32 to vector<8x32xf32>
    %246 = arith.addf %245, %244 : vector<8x32xf32>
    %247 = arith.divf %245, %246 : vector<8x32xf32>
    %248 = arith.mulf %239, %214 : vector<8x32xf32>
    %249 = arith.mulf %233, %241 : vector<8x32xf32>
    %250 = arith.addf %248, %249 : vector<8x32xf32>
    %251 = math.tanh %250 : vector<8x32xf32>
    %252 = arith.mulf %247, %251 : vector<8x32xf32>
    %c0_95 = arith.constant 0 : index
    %c5_96 = arith.constant 5 : index
    %c0_97 = arith.constant 0 : index
    %253 = vector.load %arg8[%c0_95, %c5_96, %c0_97] : memref<8x8x32xf32, #tpu.memory_space<vmem>>, vector<8x1x32xf32>
    %254 = vector.shape_cast %253 : vector<8x1x32xf32> to vector<8x32xf32>
    %255 = arith.addf %254, %252 : vector<8x32xf32>
    %c0_98 = arith.constant 0 : index
    %c5_99 = arith.constant 5 : index
    %c0_100 = arith.constant 0 : index
    %256 = vector.load %arg8[%c0_98, %c5_99, %c0_100] : memref<8x8x32xf32, #tpu.memory_space<vmem>>, vector<8x1x32xf32>
    %257 = vector.shape_cast %256 : vector<8x1x32xf32> to vector<8x32xf32>
    %258 = vector.shape_cast %255 : vector<8x32xf32> to vector<8x1x32xf32>
    tpu.vector_store %arg8[%c0_98, %c5_99, %c0_100], %258 {strides = array<i32>} : memref<8x8x32xf32, #tpu.memory_space<vmem>>, vector<8x1x32xf32>,
    %c0_101 = arith.constant 0 : index
    %c6 = arith.constant 6 : index
    %c0_102 = arith.constant 0 : index
    %259 = vector.load %arg11[%c0_101, %c6, %c0_102] : memref<8x8x128xf32, #tpu.memory_space<vmem>>, vector<8x1x128xf32>
    %260 = vector.shape_cast %259 : vector<8x1x128xf32> to vector<8x128xf32>
    %261 = arith.truncf %252 : vector<8x32xf32> to vector<8x32xbf16>
    %cst_103 = arith.constant dense<0.000000e+00> : vector<8x128xf32>
    %262 = tpu.matmul %261, %40, %cst_103 {dimension_numbers = #tpu.dot_dimension_numbers<[1], [0], [0], [1], [0, 0, 1, 1], [], []>} : vector<8x32xbf16>, vector<32x128xbf16>, vector<8x128xf32> -> vector<8x128xf32>
    %263 = arith.addf %260, %262 : vector<8x128xf32>
    %264 = vector.extract_strided_slice %263 {offsets = [0, 0], sizes = [8, 32], strides = [1, 1]} : vector<8x128xf32> to vector<8x32xf32>
    %265 = arith.negf %264 : vector<8x32xf32>
    %266 = math.exp %265 : vector<8x32xf32>
    %cst_104 = arith.constant 1.000000e+00 : f32
    %267 = vector.broadcast %cst_104 : f32 to vector<8x32xf32>
    %268 = arith.addf %267, %266 : vector<8x32xf32>
    %269 = arith.divf %267, %268 : vector<8x32xf32>
    %270 = vector.extract_strided_slice %263 {offsets = [0, 32], sizes = [8, 32], strides = [1, 1]} : vector<8x128xf32> to vector<8x32xf32>
    %271 = arith.negf %270 : vector<8x32xf32>
    %272 = math.exp %271 : vector<8x32xf32>
    %cst_105 = arith.constant 1.000000e+00 : f32
    %273 = vector.broadcast %cst_105 : f32 to vector<8x32xf32>
    %274 = arith.addf %273, %272 : vector<8x32xf32>
    %275 = arith.divf %273, %274 : vector<8x32xf32>
    %276 = vector.extract_strided_slice %263 {offsets = [0, 64], sizes = [8, 32], strides = [1, 1]} : vector<8x128xf32> to vector<8x32xf32>
    %277 = math.tanh %276 : vector<8x32xf32>
    %278 = vector.extract_strided_slice %263 {offsets = [0, 96], sizes = [8, 32], strides = [1, 1]} : vector<8x128xf32> to vector<8x32xf32>
    %279 = arith.negf %278 : vector<8x32xf32>
    %280 = math.exp %279 : vector<8x32xf32>
    %cst_106 = arith.constant 1.000000e+00 : f32
    %281 = vector.broadcast %cst_106 : f32 to vector<8x32xf32>
    %282 = arith.addf %281, %280 : vector<8x32xf32>
    %283 = arith.divf %281, %282 : vector<8x32xf32>
    %284 = arith.mulf %275, %250 : vector<8x32xf32>
    %285 = arith.mulf %269, %277 : vector<8x32xf32>
    %286 = arith.addf %284, %285 : vector<8x32xf32>
    %287 = math.tanh %286 : vector<8x32xf32>
    %288 = arith.mulf %283, %287 : vector<8x32xf32>
    %c0_107 = arith.constant 0 : index
    %c6_108 = arith.constant 6 : index
    %c0_109 = arith.constant 0 : index
    %289 = vector.load %arg8[%c0_107, %c6_108, %c0_109] : memref<8x8x32xf32, #tpu.memory_space<vmem>>, vector<8x1x32xf32>
    %290 = vector.shape_cast %289 : vector<8x1x32xf32> to vector<8x32xf32>
    %291 = arith.addf %290, %288 : vector<8x32xf32>
    %c0_110 = arith.constant 0 : index
    %c6_111 = arith.constant 6 : index
    %c0_112 = arith.constant 0 : index
    %292 = vector.load %arg8[%c0_110, %c6_111, %c0_112] : memref<8x8x32xf32, #tpu.memory_space<vmem>>, vector<8x1x32xf32>
    %293 = vector.shape_cast %292 : vector<8x1x32xf32> to vector<8x32xf32>
    %294 = vector.shape_cast %291 : vector<8x32xf32> to vector<8x1x32xf32>
    tpu.vector_store %arg8[%c0_110, %c6_111, %c0_112], %294 {strides = array<i32>} : memref<8x8x32xf32, #tpu.memory_space<vmem>>, vector<8x1x32xf32>,
    %c0_113 = arith.constant 0 : index
    %c7 = arith.constant 7 : index
    %c0_114 = arith.constant 0 : index
    %295 = vector.load %arg11[%c0_113, %c7, %c0_114] : memref<8x8x128xf32, #tpu.memory_space<vmem>>, vector<8x1x128xf32>
    %296 = vector.shape_cast %295 : vector<8x1x128xf32> to vector<8x128xf32>
    %297 = arith.truncf %288 : vector<8x32xf32> to vector<8x32xbf16>
    %cst_115 = arith.constant dense<0.000000e+00> : vector<8x128xf32>
    %298 = tpu.matmul %297, %40, %cst_115 {dimension_numbers = #tpu.dot_dimension_numbers<[1], [0], [0], [1], [0, 0, 1, 1], [], []>} : vector<8x32xbf16>, vector<32x128xbf16>, vector<8x128xf32> -> vector<8x128xf32>
    %299 = arith.addf %296, %298 : vector<8x128xf32>
    %300 = vector.extract_strided_slice %299 {offsets = [0, 0], sizes = [8, 32], strides = [1, 1]} : vector<8x128xf32> to vector<8x32xf32>
    %301 = arith.negf %300 : vector<8x32xf32>
    %302 = math.exp %301 : vector<8x32xf32>
    %cst_116 = arith.constant 1.000000e+00 : f32
    %303 = vector.broadcast %cst_116 : f32 to vector<8x32xf32>
    %304 = arith.addf %303, %302 : vector<8x32xf32>
    %305 = arith.divf %303, %304 : vector<8x32xf32>
    %306 = vector.extract_strided_slice %299 {offsets = [0, 32], sizes = [8, 32], strides = [1, 1]} : vector<8x128xf32> to vector<8x32xf32>
    %307 = arith.negf %306 : vector<8x32xf32>
    %308 = math.exp %307 : vector<8x32xf32>
    %cst_117 = arith.constant 1.000000e+00 : f32
    %309 = vector.broadcast %cst_117 : f32 to vector<8x32xf32>
    %310 = arith.addf %309, %308 : vector<8x32xf32>
    %311 = arith.divf %309, %310 : vector<8x32xf32>
    %312 = vector.extract_strided_slice %299 {offsets = [0, 64], sizes = [8, 32], strides = [1, 1]} : vector<8x128xf32> to vector<8x32xf32>
    %313 = math.tanh %312 : vector<8x32xf32>
    %314 = vector.extract_strided_slice %299 {offsets = [0, 96], sizes = [8, 32], strides = [1, 1]} : vector<8x128xf32> to vector<8x32xf32>
    %315 = arith.negf %314 : vector<8x32xf32>
    %316 = math.exp %315 : vector<8x32xf32>
    %cst_118 = arith.constant 1.000000e+00 : f32
    %317 = vector.broadcast %cst_118 : f32 to vector<8x32xf32>
    %318 = arith.addf %317, %316 : vector<8x32xf32>
    %319 = arith.divf %317, %318 : vector<8x32xf32>
    %320 = arith.mulf %311, %286 : vector<8x32xf32>
    %321 = arith.mulf %305, %313 : vector<8x32xf32>
    %322 = arith.addf %320, %321 : vector<8x32xf32>
    %323 = math.tanh %322 : vector<8x32xf32>
    %324 = arith.mulf %319, %323 : vector<8x32xf32>
    %c0_119 = arith.constant 0 : index
    %c7_120 = arith.constant 7 : index
    %c0_121 = arith.constant 0 : index
    %325 = vector.load %arg8[%c0_119, %c7_120, %c0_121] : memref<8x8x32xf32, #tpu.memory_space<vmem>>, vector<8x1x32xf32>
    %326 = vector.shape_cast %325 : vector<8x1x32xf32> to vector<8x32xf32>
    %327 = arith.addf %326, %324 : vector<8x32xf32>
    %c0_122 = arith.constant 0 : index
    %c7_123 = arith.constant 7 : index
    %c0_124 = arith.constant 0 : index
    %328 = vector.load %arg8[%c0_122, %c7_123, %c0_124] : memref<8x8x32xf32, #tpu.memory_space<vmem>>, vector<8x1x32xf32>
    %329 = vector.shape_cast %328 : vector<8x1x32xf32> to vector<8x32xf32>
    %330 = vector.shape_cast %327 : vector<8x32xf32> to vector<8x1x32xf32>
    tpu.vector_store %arg8[%c0_122, %c7_123, %c0_124], %330 {strides = array<i32>} : memref<8x8x32xf32, #tpu.memory_space<vmem>>, vector<8x1x32xf32>,
    %c0_125 = arith.constant 0 : index
    %c0_126 = arith.constant 0 : index
    %331 = vector.load %arg9[%c0_125, %c0_126] : memref<8x32xf32, #tpu.memory_space<vmem>>, vector<8x32xf32>
    tpu.vector_store %arg9[%c0_125, %c0_126], %324 {strides = array<i32>} : memref<8x32xf32, #tpu.memory_space<vmem>>, vector<8x32xf32>,
    %c0_127 = arith.constant 0 : index
    %c0_128 = arith.constant 0 : index
    %332 = vector.load %arg10[%c0_127, %c0_128] : memref<8x32xf32, #tpu.memory_space<vmem>>, vector<8x32xf32>
    tpu.vector_store %arg10[%c0_127, %c0_128], %322 {strides = array<i32>} : memref<8x32xf32, #tpu.memory_space<vmem>>, vector<8x32xf32>,
    return
  }
  func.func @transform_0(%arg0: i32, %arg1: i32) -> (i32, i32, i32) {
    %c0_i32 = arith.constant 0 : i32
    %c0_i32_0 = arith.constant 0 : i32
    return %arg0, %arg1, %c0_i32 : i32, i32, i32
  }
  func.func @transform_1(%arg0: i32, %arg1: i32) -> (i32, i32) {
    %c0_i32 = arith.constant 0 : i32
    %c0_i32_0 = arith.constant 0 : i32
    %c0_i32_1 = arith.constant 0 : i32
    return %c0_i32, %c0_i32_0 : i32, i32
  }
  func.func @transform_2(%arg0: i32, %arg1: i32) -> (i32, i32) {
    %c0_i32 = arith.constant 0 : i32
    %c0_i32_0 = arith.constant 0 : i32
    %c0_i32_1 = arith.constant 0 : i32
    return %c0_i32, %c0_i32_0 : i32, i32
  }
  func.func @transform_3(%arg0: i32, %arg1: i32) -> (i32, i32) {
    %c0_i32 = arith.constant 0 : i32
    %c0_i32_0 = arith.constant 0 : i32
    %c0_i32_1 = arith.constant 0 : i32
    return %c0_i32, %c0_i32_0 : i32, i32
  }
  func.func @transform_4(%arg0: i32, %arg1: i32) -> (i32, i32) {
    %c0_i32 = arith.constant 0 : i32
    %c0_i32_0 = arith.constant 0 : i32
    %c0_i32_1 = arith.constant 0 : i32
    return %c0_i32, %c0_i32_0 : i32, i32
  }
  func.func @transform_5(%arg0: i32, %arg1: i32) -> (i32, i32) {
    %c0_i32 = arith.constant 0 : i32
    %c0_i32_0 = arith.constant 0 : i32
    %c0_i32_1 = arith.constant 0 : i32
    return %c0_i32, %c0_i32_0 : i32, i32
  }
  func.func @transform_6(%arg0: i32, %arg1: i32) -> (i32, i32, i32) {
    %c0_i32 = arith.constant 0 : i32
    %c0_i32_0 = arith.constant 0 : i32
    return %arg0, %arg1, %c0_i32 : i32, i32, i32
  }
}

</mosaic_0001>

<llo_original>
// kernel: tpu_custom_call.1
$region0: #{tpu_custom_call.1}
  #allocation0 [shape = 'u32[]', space=smem, size = 0x4, offset = 0x4, fixed_abs, tag = 'smem constant byte address 0x4 - core index']
  #allocation1 [shape = 'u32[144,128]{1,0:T(1,128)}', space=vmem, size = 0x12000, scoped, tag = 'internal scratch']
  #allocation2 [shape = 'f32[8,32]{1,0:T(8,128)}', space=vmem, size = 0x1000, scoped, tag = 'scratch operand']
  #allocation3 [shape = 'f32[8,32]{1,0:T(8,128)}', space=vmem, size = 0x1000, scoped, tag = 'scratch operand']
  #allocation4 [shape = 'f32[8,8,128]{2,1,0:T(8,128)}', space=vmem, size = 0x8000, scoped, tag = 'scratch operand']
  %s0 = inlined_call_operand.hbm [shape: f32[8,8,32], index: 0, kind: input, shape index: {}]
  %s1 = inlined_call_operand.hbm [shape: bf16[32,128], index: 1, kind: input, shape index: {}]
  %s2 = inlined_call_operand.hbm [shape: bf16[32,128], index: 2, kind: input, shape index: {}]
  %s3 = inlined_call_operand.vmem [shape: f32[1,128], index: 3, kind: input, shape index: {}]
  %s4 = inlined_call_operand.vmem [shape: f32[1,32], index: 4, kind: input, shape index: {}]
  %s5 = inlined_call_operand.vmem [shape: f32[1,32], index: 5, kind: input, shape index: {}]
  %s6 = inlined_call_operand.hbm [shape: f32[8,8,32], index: 6, kind: output, shape index: {}]
  %s7 = sld [smem:[#allocation0]]
  $region50: #{tpu_custom_call.1} parent=0
    _
  %s9 = ssub.s32 1, %s7
  %s10 = scalar_select 0, %s9, %s7
  $region1: #{tpu_custom_call.1} parent=0
    #allocation5 [shape = 'u8[32768]{0}', space=vmem, size = 0x8000, scoped, tag = 'input window, operand 0, single buffered']
    #allocation6 [shape = 's32[1]{0}', space=sflag, size = 0x4, scoped, tag = 'scoped memory for tpu_custom_call.1']
    #allocation7 [shape = 's32[1]{0}', space=sflag, size = 0x4, scoped, tag = 'scoped memory for tpu_custom_call.1']
    #allocation8 [shape = 'u8[8192]{0}', space=vmem, size = 0x2000, scoped, tag = 'input window, operand 1, single buffered']
    #allocation9 [shape = 's32[1]{0}', space=sflag, size = 0x4, scoped, tag = 'scoped memory for tpu_custom_call.1']
    #allocation10 [shape = 'u8[8192]{0}', space=vmem, size = 0x2000, scoped, tag = 'input window, operand 2, single buffered']
    #allocation11 [shape = 'u8[32768]{0}', space=vmem, size = 0x8000, scoped, tag = 'output window, operand 0, single buffered']
    %11 = vsyncpa [#allocation6], 0
    %12 = vsyncpa [#allocation9], 0
    %13 = vsyncpa [#allocation7], 0
    // Predicated region
    $region2: #{tpu_custom_call.1} parent=1 // pred_check
      _
    $region3: #{tpu_custom_call.1} parent=1 // pred_check_branch
      %15 = sbr.rel (0) target = $region5
    $region4: #{tpu_custom_call.1} parent=1 // pred_region
      %s17 = ssub.s32 1024, 1024
      %18 = vsyncadd [#allocation6], %s17
      %s19 = sshll.u32 [#allocation5], 4
      %s20 = int_to_ptr.vmem [resolvable:$true] %s19
      %25 = dma.hbm_to_vmem [thread:$0]  %s0, 1024, %s20, [#allocation6], 128, 128, 8
    $region5: #{tpu_custom_call.1} parent=1 // pred_fallthru
      _
    // Predicated region
    $region6: #{tpu_custom_call.1} parent=1 // pred_check
      _
    $region7: #{tpu_custom_call.1} parent=1 // pred_check_branch
      %27 = sbr.rel (0) target = $region9
    $region8: #{tpu_custom_call.1} parent=1 // pred_region
      %s29 = ssub.s32 256, 256
      %30 = vsyncadd [#allocation9], %s29
      %s31 = sshll.u32 [#allocation8], 4
      %s32 = int_to_ptr.vmem [resolvable:$true] %s31
      %37 = dma.hbm_to_vmem [thread:$0]  %s1, 256, %s32, [#allocation9], 64, 64, 4
    $region9: #{tpu_custom_call.1} parent=1 // pred_fallthru
      _
    // Predicated region
    $region10: #{tpu_custom_call.1} parent=1 // pred_check
      _
    $region11: #{tpu_custom_call.1} parent=1 // pred_check_branch
      %39 = sbr.rel (0) target = $region13
    $region12: #{tpu_custom_call.1} parent=1 // pred_region
      %s41 = ssub.s32 256, 256
      %42 = vsyncadd [#allocation9], %s41
      %s43 = sshll.u32 [#allocation10], 4
      %s44 = int_to_ptr.vmem [resolvable:$true] %s43
      %49 = dma.hbm_to_vmem [thread:$0]  %s2, 256, %s44, [#allocation9], 64, 64, 4
    $region13: #{tpu_custom_call.1} parent=1 // pred_fallthru
      _
    // Predicated region
    $region14: #{tpu_custom_call.1} parent=1 // pred_check
      _
    $region15: #{tpu_custom_call.1} parent=1 // pred_check_branch
      %51 = sbr.rel (0) target = $region17
    $region16: #{tpu_custom_call.1} parent=1 // pred_region
      _
    $region17: #{tpu_custom_call.1} parent=1 // pred_fallthru
      _
    // Predicated region
    $region18: #{tpu_custom_call.1} parent=1 // pred_check
      _
    $region19: #{tpu_custom_call.1} parent=1 // pred_check_branch
      %53 = sbr.rel (0) target = $region21
    $region20: #{tpu_custom_call.1} parent=1 // pred_region
      _
    $region21: #{tpu_custom_call.1} parent=1 // pred_fallthru
      _
    // Predicated region
    $region22: #{tpu_custom_call.1} parent=1 // pred_check
      _
    $region23: #{tpu_custom_call.1} parent=1 // pred_check_branch
      %55 = sbr.rel (0) target = $region25
    $region24: #{tpu_custom_call.1} parent=1 // pred_region
      _
    $region25: #{tpu_custom_call.1} parent=1 // pred_fallthru
      _
    // Predicated region
    $region26: #{tpu_custom_call.1} parent=1 // pred_check
      _
    $region27: #{tpu_custom_call.1} parent=1 // pred_check_branch
      %57 = sbr.rel (0) target = $region29
    $region28: #{tpu_custom_call.1} parent=1 // pred_region
      %58 = dma.done [#allocation6], 1024
    $region29: #{tpu_custom_call.1} parent=1 // pred_fallthru
      _
    // Predicated region
    $region30: #{tpu_custom_call.1} parent=1 // pred_check
      _
    $region31: #{tpu_custom_call.1} parent=1 // pred_check_branch
      %60 = sbr.rel (0) target = $region33
    $region32: #{tpu_custom_call.1} parent=1 // pred_region
      %61 = dma.done [#allocation9], 256
    $region33: #{tpu_custom_call.1} parent=1 // pred_fallthru
      _
    // Predicated region
    $region34: #{tpu_custom_call.1} parent=1 // pred_check
      _
    $region35: #{tpu_custom_call.1} parent=1 // pred_check_branch
      %63 = sbr.rel (0) target = $region37
    $region36: #{tpu_custom_call.1} parent=1 // pred_region
      %64 = dma.done [#allocation9], 256
    $region37: #{tpu_custom_call.1} parent=1 // pred_fallthru
      _
    %p66 = scmp.eq.s32.totalorder 0, 0
    // Predicated region
    $region38: #{tpu_custom_call.1} parent=1 // pred_check
      %p67 = pneg %p66
    $region39: #{tpu_custom_call.1} parent=1 // pred_check_branch
      %69 = sbr.rel (%p67) target = $region41
    $region40: #{tpu_custom_call.1} parent=1 // pred_region
      %vm70 = vcmask 261120
      %71 = vst.msk [vmem:[#allocation2] sm:$0xff] %vm70, 0.0
      %72 = vst.msk [vmem:[#allocation3] sm:$0xff] %vm70, 0.0
    $region41: #{tpu_custom_call.1} parent=1 // pred_fallthru
      _
    %v73 = vld [vmem:[#allocation5] sm:$0xff]
    %v74 = vld [vmem:[#allocation5 + $0x8] sm:$0xff]
    %v75 = vld [vmem:[#allocation5 + $0x10] sm:$0xff]
    %v76 = vld [vmem:[#allocation5 + $0x18] sm:$0xff]
    %v77 = vld [vmem:[#allocation5 + $0x20] sm:$0xff]
    %v78 = vld [vmem:[#allocation5 + $0x28] sm:$0xff]
    %v79 = vld [vmem:[#allocation5 + $0x30] sm:$0xff]
    %v80 = vld [vmem:[#allocation5 + $0x38] sm:$0xff]
    %vm81 = vcmask 261120
    %v82 = vsel %vm81, %v73, 0.0
    %83 = vadd.xlane.f32.xlu0 %v82
    %v84 = vpop.xlane.xlu0 %83
    %v85 = vsel %vm81, %v74, 0.0
    %86 = vadd.xlane.f32.xlu0 %v85
    %v87 = vpop.xlane.xlu0 %86
    %v88 = vsel %vm81, %v75, 0.0
    %89 = vadd.xlane.f32.xlu0 %v88
    %v90 = vpop.xlane.xlu0 %89
    %v91 = vsel %vm81, %v76, 0.0
    %92 = vadd.xlane.f32.xlu0 %v91
    %v93 = vpop.xlane.xlu0 %92
    %v94 = vsel %vm81, %v77, 0.0
    %95 = vadd.xlane.f32.xlu0 %v94
    %v96 = vpop.xlane.xlu0 %95
    %v97 = vsel %vm81, %v78, 0.0
    %98 = vadd.xlane.f32.xlu0 %v97
    %v99 = vpop.xlane.xlu0 %98
    %v100 = vsel %vm81, %v79, 0.0
    %101 = vadd.xlane.f32.xlu0 %v100
    %v102 = vpop.xlane.xlu0 %101
    %v103 = vsel %vm81, %v80, 0.0
    %104 = vadd.xlane.f32.xlu0 %v103
    %v105 = vpop.xlane.xlu0 %104
    %v106 = vrcp.pop 32.0
    %v107 = vmul.f32 %v84, %v106
    %v108 = vmul.f32 %v87, %v106
    %v109 = vmul.f32 %v90, %v106
    %v110 = vmul.f32 %v93, %v106
    %v111 = vmul.f32 %v96, %v106
    %v112 = vmul.f32 %v99, %v106
    %v113 = vmul.f32 %v102, %v106
    %v114 = vmul.f32 %v105, %v106
    %v115 = vsub.f32 %v73, %v107
    %v116 = vsub.f32 %v74, %v108
    %v117 = vsub.f32 %v75, %v109
    %v118 = vsub.f32 %v76, %v110
    %v119 = vsub.f32 %v77, %v111
    %v120 = vsub.f32 %v78, %v112
    %v121 = vsub.f32 %v79, %v113
    %v122 = vsub.f32 %v80, %v114
    %v123 = vmul.f32 %v115, %v115
    %v124 = vmul.f32 %v116, %v116
    %v125 = vmul.f32 %v117, %v117
    %v126 = vmul.f32 %v118, %v118
    %v127 = vmul.f32 %v119, %v119
    %v128 = vmul.f32 %v120, %v120
    %v129 = vmul.f32 %v121, %v121
    %v130 = vmul.f32 %v122, %v122
    %v131 = vsel %vm81, %v123, 0.0
    %132 = vadd.xlane.f32.xlu0 %v131
    %v133 = vpop.xlane.xlu0 %132
    %v134 = vsel %vm81, %v124, 0.0
    %135 = vadd.xlane.f32.xlu0 %v134
    %v136 = vpop.xlane.xlu0 %135
    %v137 = vsel %vm81, %v125, 0.0
    %138 = vadd.xlane.f32.xlu0 %v137
    %v139 = vpop.xlane.xlu0 %138
    %v140 = vsel %vm81, %v126, 0.0
    %141 = vadd.xlane.f32.xlu0 %v140
    %v142 = vpop.xlane.xlu0 %141
    %v143 = vsel %vm81, %v127, 0.0
    %144 = vadd.xlane.f32.xlu0 %v143
    %v145 = vpop.xlane.xlu0 %144
    %v146 = vsel %vm81, %v128, 0.0
    %147 = vadd.xlane.f32.xlu0 %v146
    %v148 = vpop.xlane.xlu0 %147
    %v149 = vsel %vm81, %v129, 0.0
    %150 = vadd.xlane.f32.xlu0 %v149
    %v151 = vpop.xlane.xlu0 %150
    %v152 = vsel %vm81, %v130, 0.0
    %153 = vadd.xlane.f32.xlu0 %v152
    %v154 = vpop.xlane.xlu0 %153
    %v155 = vmul.f32 %v133, %v106
    %v156 = vmul.f32 %v136, %v106
    %v157 = vmul.f32 %v139, %v106
    %v158 = vmul.f32 %v142, %v106
    %v159 = vmul.f32 %v145, %v106
    %v160 = vmul.f32 %v148, %v106
    %v161 = vmul.f32 %v151, %v106
    %v162 = vmul.f32 %v154, %v106
    %v163 = vadd.f32 %v155, 1e-05
    %v164 = vadd.f32 %v156, 1e-05
    %v165 = vadd.f32 %v157, 1e-05
    %v166 = vadd.f32 %v158, 1e-05
    %v167 = vadd.f32 %v159, 1e-05
    %v168 = vadd.f32 %v160, 1e-05
    %v169 = vadd.f32 %v161, 1e-05
    %v170 = vadd.f32 %v162, 1e-05
    %v171 = vrsqrt.pop %v163
    %v172 = vrsqrt.pop %v164
    %v173 = vrsqrt.pop %v165
    %v174 = vrsqrt.pop %v166
    %v175 = vrsqrt.pop %v167
    %v176 = vrsqrt.pop %v168
    %v177 = vrsqrt.pop %v169
    %v178 = vrsqrt.pop %v170
    %v179 = vmul.f32 %v115, %v171
    %v180 = vmul.f32 %v116, %v172
    %v181 = vmul.f32 %v117, %v173
    %v182 = vmul.f32 %v118, %v174
    %v183 = vmul.f32 %v119, %v175
    %v184 = vmul.f32 %v120, %v176
    %v185 = vmul.f32 %v121, %v177
    %v186 = vmul.f32 %v122, %v178
    %v187 = vld [vmem:[%s4] sm:$0x1]
    %v189 = vlaneseq
    %v190 = vshrl.u32 %v189, 7
    %v191 = vsub.s32 0, %v190
    %v192 = vrot.slane %v187, %v191
    %v194 = vmul.f32 %v179, %v192
    %v195 = vmul.f32 %v180, %v192
    %v196 = vmul.f32 %v181, %v192
    %v197 = vmul.f32 %v182, %v192
    %v198 = vmul.f32 %v183, %v192
    %v199 = vmul.f32 %v184, %v192
    %v200 = vmul.f32 %v185, %v192
    %v201 = vmul.f32 %v186, %v192
    %v202 = vld [vmem:[%s5] sm:$0x1]
    %v204 = vlaneseq
    %v205 = vshrl.u32 %v204, 7
    %v206 = vsub.s32 0, %v205
    %v207 = vrot.slane %v202, %v206
    %v209 = vadd.f32 %v194, %v207
    %v210 = vadd.f32 %v195, %v207
    %v211 = vadd.f32 %v196, %v207
    %v212 = vadd.f32 %v197, %v207
    %v213 = vadd.f32 %v198, %v207
    %v214 = vadd.f32 %v199, %v207
    %v215 = vadd.f32 %v200, %v207
    %v216 = vadd.f32 %v201, %v207
    %217 = vst.msk [vmem:[#allocation11] sm:$0xff] %vm81, %v209
    %218 = vst.msk [vmem:[#allocation11 + $0x8] sm:$0xff] %vm81, %v210
    %219 = vst.msk [vmem:[#allocation11 + $0x10] sm:$0xff] %vm81, %v211
    %220 = vst.msk [vmem:[#allocation11 + $0x18] sm:$0xff] %vm81, %v212
    %221 = vst.msk [vmem:[#allocation11 + $0x20] sm:$0xff] %vm81, %v213
    %222 = vst.msk [vmem:[#allocation11 + $0x28] sm:$0xff] %vm81, %v214
    %223 = vst.msk [vmem:[#allocation11 + $0x30] sm:$0xff] %vm81, %v215
    %224 = vst.msk [vmem:[#allocation11 + $0x38] sm:$0xff] %vm81, %v216
    %v225 = vpack.c.bf16 %v210, %v209
    %v226 = vpack.c.bf16 %v212, %v211
    %v227 = vpack.c.bf16 %v214, %v213
    %v228 = vpack.c.bf16 %v216, %v215
    %v229 = vld [vmem:[#allocation8] sm:$0xf]
    %v230 = vld [vmem:[#allocation8 + $0x4] sm:$0xf]
    %v231 = vld [vmem:[#allocation8 + $0x8] sm:$0xf]
    %v232 = vld [vmem:[#allocation8 + $0xc] sm:$0xf]
    %v233 = vld [vmem:[%s3] sm:$0x1]
    %v235 = vlaneseq
    %v236 = vshrl.u32 %v235, 7
    %v237 = vsub.s32 0, %v236
    %v238 = vrot.slane %v233, %v237
    %v244 = vunpack.c.l.b16 %v229
    %v245 = vunpack.c.l.b16 %v230
    %v246 = vunpack.c.l.b16 %v231
    %v247 = vunpack.c.l.b16 %v232
    %v248 = vpack.c.b16 %v245, %v244
    %v249 = vpack.c.b16 %v247, %v246
    %v253 = vsel %vm81, %v225, 0
    %v256 = vsel %vm81, %v226, 0
    %v259 = vsel %vm81, %v227, 0
    %v262 = vsel %vm81, %v228, 0
    %264 = vmatprep.subr.bf16.mxu0 0
    %265 = vmatpush1.bf16.msra.mxu0 %v248
    %266 = vmatprep.subr.bf16.mxu0 0
    %267 = vmatpush1.bf16.msra.mxu0 %v249
    %268 = vmatprep.subr.bf16.mxu0 0
    %269 = vmatpush1.bf16.msra.mxu0 0
    %270 = vmatprep.subr.bf16.mxu0 0
    %271 = vmatpush1.bf16.msra.mxu0 0
    %272 = vmatprep.subr.bf16.mxu0 0
    %273 = vmatpush1.bf16.msra.mxu0 0
    %274 = vmatprep.subr.bf16.mxu0 0
    %275 = vmatpush1.bf16.msra.mxu0 0
    %276 = vmatprep.subr.bf16.mxu0 0
    %277 = vmatpush1.bf16.msra.mxu0 0
    %278 = vmatprep.subr.bf16.mxu0 0
    %279 = vmatpush1.bf16.msra.mxu0 0
    %280 = vmatprep.subr.bf16.mxu0 0
    %281 = vmatpush1.bf16.msra.mxu0 0
    %282 = vmatprep.subr.bf16.mxu0 0
    %283 = vmatpush1.bf16.msra.mxu0 0
    %284 = vmatprep.subr.bf16.mxu0 0
    %285 = vmatpush1.bf16.msra.mxu0 0
    %286 = vmatprep.subr.bf16.mxu0 0
    %287 = vmatpush1.bf16.msra.mxu0 0
    %288 = vmatprep.subr.bf16.mxu0 0
    %289 = vmatpush1.bf16.msra.mxu0 0
    %290 = vmatprep.subr.bf16.mxu0 0
    %291 = vmatpush1.bf16.msra.mxu0 0
    %292 = vmatprep.subr.bf16.mxu0 0
    %293 = vmatpush1.bf16.msra.mxu0 0
    %294 = vmatprep.subr.bf16.mxu0 0
    %295 = vmatpush1.bf16.msra.mxu0 0
    %296 = vmatprep.mubr.bf16.mxu0 0
    %297 = vmatmul.mubr.bf16.gmra.mrb[0].mxu0 %v253
    %v298 = vpop.f32.mrb[0].mxu0
    %v299 = vadd.f32 %v238, %v298
    %v300 = vpop.f32.mrb[0].mxu0
    %v301 = vpop.f32.mrb[0].mxu0
    %v302 = vadd.f32 %v238, %v301
    %v303 = vpop.f32.mrb[0].mxu0
    %304 = vmatprep.mubr.bf16.mxu0 0
    %305 = vmatmul.mubr.bf16.gmra.mrb[0].mxu0 %v256
    %v306 = vpop.f32.mrb[0].mxu0
    %v307 = vadd.f32 %v238, %v306
    %v308 = vpop.f32.mrb[0].mxu0
    %v309 = vpop.f32.mrb[0].mxu0
    %v310 = vadd.f32 %v238, %v309
    %v311 = vpop.f32.mrb[0].mxu0
    %312 = vmatprep.mubr.bf16.mxu0 0
    %313 = vmatmul.mubr.bf16.gmra.mrb[0].mxu0 %v259
    %v314 = vpop.f32.mrb[0].mxu0
    %v315 = vadd.f32 %v238, %v314
    %v316 = vpop.f32.mrb[0].mxu0
    %v317 = vpop.f32.mrb[0].mxu0
    %v318 = vadd.f32 %v238, %v317
    %v319 = vpop.f32.mrb[0].mxu0
    %320 = vmatprep.mubr.bf16.mxu0 0
    %321 = vmatmul.mubr.bf16.gmra.mrb[0].mxu0 %v262
    %v322 = vpop.f32.mrb[0].mxu0
    %v323 = vadd.f32 %v238, %v322
    %v324 = vpop.f32.mrb[0].mxu0
    %v325 = vpop.f32.mrb[0].mxu0
    %v326 = vadd.f32 %v238, %v325
    %v327 = vpop.f32.mrb[0].mxu0
    %328 = vdwg.mxu0
    %329 = vst [vmem:[#allocation4] sm:$0xff] %v299
    %330 = vst [vmem:[#allocation4 + $0x8] sm:$0xff] %v302
    %331 = vst [vmem:[#allocation4 + $0x10] sm:$0xff] %v307
    %332 = vst [vmem:[#allocation4 + $0x18] sm:$0xff] %v310
    %333 = vst [vmem:[#allocation4 + $0x20] sm:$0xff] %v315
    %334 = vst [vmem:[#allocation4 + $0x28] sm:$0xff] %v318
    %335 = vst [vmem:[#allocation4 + $0x30] sm:$0xff] %v323
    %336 = vst [vmem:[#allocation4 + $0x38] sm:$0xff] %v326
    %v337 = vld [vmem:[#allocation10] sm:$0xf]
    %v338 = vld [vmem:[#allocation10 + $0x4] sm:$0xf]
    %v339 = vld [vmem:[#allocation10 + $0x8] sm:$0xf]
    %v340 = vld [vmem:[#allocation10 + $0xc] sm:$0xf]
    %v341 = vld [vmem:[#allocation2] sm:$0xff]
    %v342 = vld [vmem:[#allocation3] sm:$0xff]
    %v343 = vld [vmem:[#allocation4] sm:$0x1]
    %v344 = vld [vmem:[#allocation4 + $0x8] sm:$0x1]
    %v345 = vld [vmem:[#allocation4 + $0x10] sm:$0x1]
    %v346 = vld [vmem:[#allocation4 + $0x18] sm:$0x1]
    %v347 = vld [vmem:[#allocation4 + $0x20] sm:$0x1]
    %v348 = vld [vmem:[#allocation4 + $0x28] sm:$0x1]
    %v349 = vld [vmem:[#allocation4 + $0x30] sm:$0x1]
    %v350 = vld [vmem:[#allocation4 + $0x38] sm:$0x1]
    %v351 = vpack.c.bf16 %v341, %v341
    %v356 = vunpack.c.l.b16 %v337
    %v357 = vunpack.c.l.b16 %v338
    %v358 = vunpack.c.l.b16 %v339
    %v359 = vunpack.c.l.b16 %v340
    %v360 = vpack.c.b16 %v357, %v356
    %v361 = vpack.c.b16 %v359, %v358
    %v365 = vsel %vm81, %v351, 0
    %367 = vmatprep.subr.bf16.mxu0 0
    %368 = vmatpush1.bf16.msra.mxu0 %v360
    %369 = vmatprep.subr.bf16.mxu0 0
    %370 = vmatpush1.bf16.msra.mxu0 %v361
    %371 = vmatprep.subr.bf16.mxu0 0
    %372 = vmatpush1.bf16.msra.mxu0 0
    %373 = vmatprep.subr.bf16.mxu0 0
    %374 = vmatpush1.bf16.msra.mxu0 0
    %375 = vmatprep.subr.bf16.mxu0 0
    %376 = vmatpush1.bf16.msra.mxu0 0
    %377 = vmatprep.subr.bf16.mxu0 0
    %378 = vmatpush1.bf16.msra.mxu0 0
    %379 = vmatprep.subr.bf16.mxu0 0
    %380 = vmatpush1.bf16.msra.mxu0 0
    %381 = vmatprep.subr.bf16.mxu0 0
    %382 = vmatpush1.bf16.msra.mxu0 0
    %383 = vmatprep.subr.bf16.mxu0 0
    %384 = vmatpush1.bf16.msra.mxu0 0
    %385 = vmatprep.subr.bf16.mxu0 0
    %386 = vmatpush1.bf16.msra.mxu0 0
    %387 = vmatprep.subr.bf16.mxu0 0
    %388 = vmatpush1.bf16.msra.mxu0 0
    %389 = vmatprep.subr.bf16.mxu0 0
    %390 = vmatpush1.bf16.msra.mxu0 0
    %391 = vmatprep.subr.bf16.mxu0 0
    %392 = vmatpush1.bf16.msra.mxu0 0
    %393 = vmatprep.subr.bf16.mxu0 0
    %394 = vmatpush1.bf16.msra.mxu0 0
    %395 = vmatprep.subr.bf16.mxu0 0
    %396 = vmatpush1.bf16.msra.mxu0 0
    %397 = vmatprep.subr.bf16.mxu0 0
    %398 = vmatpush1.bf16.msra.mxu0 0
    %399 = vmatprep.mubr.bf16.mxu0 0
    %400 = vmatmul.mubr.bf16.gmra.mrb[0].mxu0 %v365
    %v401 = vpop.f32.mrb[0].mxu0
    %v402 = vadd.f32 0.0, %v401
    %v403 = vpop.f32.mrb[0].mxu0
    %v404 = vpop.f32.mrb[0].mxu0
    %v405 = vpop.f32.mrb[0].mxu0
    %406 = vdwg.mxu0
    %v408 = vrot.slane %v402, 1
    %v409 = vrot.slane %v402, 2
    %v410 = vrot.slane %v402, 3
    %v411 = vrot.slane %v402, 4
    %v412 = vrot.slane %v402, 5
    %v413 = vrot.slane %v402, 6
    %v414 = vrot.slane %v402, 7
    %v423 = vadd.f32 %v343, %v402
    %v424 = vadd.f32 %v344, %v408
    %v425 = vadd.f32 %v345, %v409
    %v426 = vadd.f32 %v346, %v410
    %v427 = vadd.f32 %v347, %v411
    %v428 = vadd.f32 %v348, %v412
    %v429 = vadd.f32 %v349, %v413
    %v430 = vadd.f32 %v350, %v414
    %v431 = vxor.u32 %v423, 2147483648
    %v432 = vxor.u32 %v424, 2147483648
    %v433 = vxor.u32 %v425, 2147483648
    %v434 = vxor.u32 %v426, 2147483648
    %v435 = vxor.u32 %v427, 2147483648
    %v436 = vxor.u32 %v428, 2147483648
    %v437 = vxor.u32 %v429, 2147483648
    %v438 = vxor.u32 %v430, 2147483648
    %v439 = vmul.f32 %v431, 1.442695
    %v440 = vpow.pop %v439
    %v441 = vmul.f32 %v432, 1.442695
    %v442 = vpow.pop %v441
    %v443 = vmul.f32 %v433, 1.442695
    %v444 = vpow.pop %v443
    %v445 = vmul.f32 %v434, 1.442695
    %v446 = vpow.pop %v445
    %v447 = vmul.f32 %v435, 1.442695
    %v448 = vpow.pop %v447
    %v449 = vmul.f32 %v436, 1.442695
    %v450 = vpow.pop %v449
    %v451 = vmul.f32 %v437, 1.442695
    %v452 = vpow.pop %v451
    %v453 = vmul.f32 %v438, 1.442695
    %v454 = vpow.pop %v453
    %v455 = vadd.f32 %v440, 1.0
    %v456 = vadd.f32 %v442, 1.0
    %v457 = vadd.f32 %v444, 1.0
    %v458 = vadd.f32 %v446, 1.0
    %v459 = vadd.f32 %v448, 1.0
    %v460 = vadd.f32 %v450, 1.0
    %v461 = vadd.f32 %v452, 1.0
    %v462 = vadd.f32 %v454, 1.0
    %v463 = vrcp.pop %v455
    %v464 = vmul.f32 1.0, %v463
    %v465 = vrcp.pop %v456
    %v466 = vmul.f32 1.0, %v465
    %v467 = vrcp.pop %v457
    %v468 = vmul.f32 1.0, %v467
    %v469 = vrcp.pop %v458
    %v470 = vmul.f32 1.0, %v469
    %v471 = vrcp.pop %v459
    %v472 = vmul.f32 1.0, %v471
    %v473 = vrcp.pop %v460
    %v474 = vmul.f32 1.0, %v473
    %v475 = vrcp.pop %v461
    %v476 = vmul.f32 1.0, %v475
    %v477 = vrcp.pop %v462
    %v478 = vmul.f32 1.0, %v477
    %v479 = vtanh.pop %v423
    %v480 = vtanh.pop %v424
    %v481 = vtanh.pop %v425
    %v482 = vtanh.pop %v426
    %v483 = vtanh.pop %v427
    %v484 = vtanh.pop %v428
    %v485 = vtanh.pop %v429
    %v486 = vtanh.pop %v430
    %v488 = vrot.slane %v342, 1
    %v489 = vrot.slane %v342, 2
    %v490 = vrot.slane %v342, 3
    %v491 = vrot.slane %v342, 4
    %v492 = vrot.slane %v342, 5
    %v493 = vrot.slane %v342, 6
    %v494 = vrot.slane %v342, 7
    %495 = vrot.lane.b32.xlu0 %v342, 32
    %v496 = vpop.permute.xlu0 %495
    %497 = vrot.lane.b32.xlu0 %v488, 32
    %v498 = vpop.permute.xlu0 %497
    %499 = vrot.lane.b32.xlu0 %v489, 32
    %v500 = vpop.permute.xlu0 %499
    %501 = vrot.lane.b32.xlu0 %v490, 32
    %v502 = vpop.permute.xlu0 %501
    %503 = vrot.lane.b32.xlu0 %v491, 32
    %v504 = vpop.permute.xlu0 %503
    %505 = vrot.lane.b32.xlu0 %v492, 32
    %v506 = vpop.permute.xlu0 %505
    %507 = vrot.lane.b32.xlu0 %v493, 32
    %v508 = vpop.permute.xlu0 %507
    %509 = vrot.lane.b32.xlu0 %v494, 32
    %v510 = vpop.permute.xlu0 %509
    %v519 = vmul.f32 %v464, %v496
    %v520 = vmul.f32 %v466, %v498
    %v521 = vmul.f32 %v468, %v500
    %v522 = vmul.f32 %v470, %v502
    %v523 = vmul.f32 %v472, %v504
    %v524 = vmul.f32 %v474, %v506
    %v525 = vmul.f32 %v476, %v508
    %v526 = vmul.f32 %v478, %v510
    %535 = vrot.lane.b32.xlu0 %v479, 64
    %v536 = vpop.permute.xlu0 %535
    %537 = vrot.lane.b32.xlu0 %v480, 64
    %v538 = vpop.permute.xlu0 %537
    %539 = vrot.lane.b32.xlu0 %v481, 64
    %v540 = vpop.permute.xlu0 %539
    %541 = vrot.lane.b32.xlu0 %v482, 64
    %v542 = vpop.permute.xlu0 %541
    %543 = vrot.lane.b32.xlu0 %v483, 64
    %v544 = vpop.permute.xlu0 %543
    %545 = vrot.lane.b32.xlu0 %v484, 64
    %v546 = vpop.permute.xlu0 %545
    %547 = vrot.lane.b32.xlu0 %v485, 64
    %v548 = vpop.permute.xlu0 %547
    %549 = vrot.lane.b32.xlu0 %v486, 64
    %v550 = vpop.permute.xlu0 %549
    %v559 = vmul.f32 %v464, %v536
    %v560 = vmul.f32 %v466, %v538
    %v561 = vmul.f32 %v468, %v540
    %v562 = vmul.f32 %v470, %v542
    %v563 = vmul.f32 %v472, %v544
    %v564 = vmul.f32 %v474, %v546
    %v565 = vmul.f32 %v476, %v548
    %v566 = vmul.f32 %v478, %v550
    %575 = vrot.lane.b32.xlu0 %v559, 32
    %v576 = vpop.permute.xlu0 %575
    %577 = vrot.lane.b32.xlu0 %v560, 32
    %v578 = vpop.permute.xlu0 %577
    %579 = vrot.lane.b32.xlu0 %v561, 32
    %v580 = vpop.permute.xlu0 %579
    %581 = vrot.lane.b32.xlu0 %v562, 32
    %v582 = vpop.permute.xlu0 %581
    %583 = vrot.lane.b32.xlu0 %v563, 32
    %v584 = vpop.permute.xlu0 %583
    %585 = vrot.lane.b32.xlu0 %v564, 32
    %v586 = vpop.permute.xlu0 %585
    %587 = vrot.lane.b32.xlu0 %v565, 32
    %v588 = vpop.permute.xlu0 %587
    %589 = vrot.lane.b32.xlu0 %v566, 32
    %v590 = vpop.permute.xlu0 %589
    %v599 = vadd.f32 %v519, %v576
    %v600 = vadd.f32 %v520, %v578
    %v601 = vadd.f32 %v521, %v580
    %v602 = vadd.f32 %v522, %v582
    %v603 = vadd.f32 %v523, %v584
    %v604 = vadd.f32 %v524, %v586
    %v605 = vadd.f32 %v525, %v588
    %v606 = vadd.f32 %v526, %v590
    %v607 = vtanh.pop %v599
    %v608 = vtanh.pop %v600
    %v609 = vtanh.pop %v601
    %v610 = vtanh.pop %v602
    %v611 = vtanh.pop %v603
    %v612 = vtanh.pop %v604
    %v613 = vtanh.pop %v605
    %v614 = vtanh.pop %v606
    %623 = vrot.lane.b32.xlu0 %v607, 64
    %v624 = vpop.permute.xlu0 %623
    %625 = vrot.lane.b32.xlu0 %v608, 64
    %v626 = vpop.permute.xlu0 %625
    %627 = vrot.lane.b32.xlu0 %v609, 64
    %v628 = vpop.permute.xlu0 %627
    %629 = vrot.lane.b32.xlu0 %v610, 64
    %v630 = vpop.permute.xlu0 %629
    %631 = vrot.lane.b32.xlu0 %v611, 64
    %v632 = vpop.permute.xlu0 %631
    %633 = vrot.lane.b32.xlu0 %v612, 64
    %v634 = vpop.permute.xlu0 %633
    %635 = vrot.lane.b32.xlu0 %v613, 64
    %v636 = vpop.permute.xlu0 %635
    %637 = vrot.lane.b32.xlu0 %v614, 64
    %v638 = vpop.permute.xlu0 %637
    %v647 = vmul.f32 %v464, %v624
    %v648 = vmul.f32 %v466, %v626
    %v649 = vmul.f32 %v468, %v628
    %v650 = vmul.f32 %v470, %v630
    %v651 = vmul.f32 %v472, %v632
    %v652 = vmul.f32 %v474, %v634
    %v653 = vmul.f32 %v476, %v636
    %v654 = vmul.f32 %v478, %v638
    %v655 = vld [vmem:[#allocation11] sm:$0x1]
    %v656 = vld [vmem:[#allocation11 + $0x8] sm:$0x1]
    %v657 = vld [vmem:[#allocation11 + $0x10] sm:$0x1]
    %v658 = vld [vmem:[#allocation11 + $0x18] sm:$0x1]
    %v659 = vld [vmem:[#allocation11 + $0x20] sm:$0x1]
    %v660 = vld [vmem:[#allocation11 + $0x28] sm:$0x1]
    %v661 = vld [vmem:[#allocation11 + $0x30] sm:$0x1]
    %v662 = vld [vmem:[#allocation11 + $0x38] sm:$0x1]
    %671 = vrot.lane.b32.xlu0 %v647, 32
    %v672 = vpop.permute.xlu0 %671
    %673 = vrot.lane.b32.xlu0 %v648, 32
    %v674 = vpop.permute.xlu0 %673
    %675 = vrot.lane.b32.xlu0 %v649, 32
    %v676 = vpop.permute.xlu0 %675
    %677 = vrot.lane.b32.xlu0 %v650, 32
    %v678 = vpop.permute.xlu0 %677
    %679 = vrot.lane.b32.xlu0 %v651, 32
    %v680 = vpop.permute.xlu0 %679
    %681 = vrot.lane.b32.xlu0 %v652, 32
    %v682 = vpop.permute.xlu0 %681
    %683 = vrot.lane.b32.xlu0 %v653, 32
    %v684 = vpop.permute.xlu0 %683
    %685 = vrot.lane.b32.xlu0 %v654, 32
    %v686 = vpop.permute.xlu0 %685
    %v695 = vadd.f32 %v655, %v672
    %v696 = vadd.f32 %v656, %v674
    %v697 = vadd.f32 %v657, %v676
    %v698 = vadd.f32 %v658, %v678
    %v699 = vadd.f32 %v659, %v680
    %v700 = vadd.f32 %v660, %v682
    %v701 = vadd.f32 %v661, %v684
    %v702 = vadd.f32 %v662, %v686
    %vm703 = vcmask 253952
    %704 = vst.msk [vmem:[#allocation11] sm:$0x1] %vm703, %v695
    %705 = vst.msk [vmem:[#allocation11 + $0x8] sm:$0x1] %vm703, %v696
    %706 = vst.msk [vmem:[#allocation11 + $0x10] sm:$0x1] %vm703, %v697
    %707 = vst.msk [vmem:[#allocation11 + $0x18] sm:$0x1] %vm703, %v698
    %708 = vst.msk [vmem:[#allocation11 + $0x20] sm:$0x1] %vm703, %v699
    %709 = vst.msk [vmem:[#allocation11 + $0x28] sm:$0x1] %vm703, %v700
    %710 = vst.msk [vmem:[#allocation11 + $0x30] sm:$0x1] %vm703, %v701
    %711 = vst.msk [vmem:[#allocation11 + $0x38] sm:$0x1] %vm703, %v702
    %v712 = vld [vmem:[#allocation4 + $0x1] sm:$0x1]
    %v713 = vld [vmem:[#allocation4 + $0x9] sm:$0x1]
    %v714 = vld [vmem:[#allocation4 + $0x11] sm:$0x1]
    %v715 = vld [vmem:[#allocation4 + $0x19] sm:$0x1]
    %v716 = vld [vmem:[#allocation4 + $0x21] sm:$0x1]
    %v717 = vld [vmem:[#allocation4 + $0x29] sm:$0x1]
    %v718 = vld [vmem:[#allocation4 + $0x31] sm:$0x1]
    %v719 = vld [vmem:[#allocation4 + $0x39] sm:$0x1]
    %v720 = vpack.c.bf16 %v647, %v647
    %v721 = vpack.c.bf16 %v648, %v648
    %v722 = vpack.c.bf16 %v649, %v649
    %v723 = vpack.c.bf16 %v650, %v650
    %v724 = vpack.c.bf16 %v651, %v651
    %v725 = vpack.c.bf16 %v652, %v652
    %v726 = vpack.c.bf16 %v653, %v653
    %v727 = vpack.c.bf16 %v654, %v654
    %v736 = vunpack.c.l.b16 %v720
    %v737 = vunpack.c.l.b16 %v721
    %v738 = vunpack.c.l.b16 %v722
    %v739 = vunpack.c.l.b16 %v723
    %v740 = vunpack.c.l.b16 %v724
    %v741 = vunpack.c.l.b16 %v725
    %v742 = vunpack.c.l.b16 %v726
    %v743 = vunpack.c.l.b16 %v727
    %v744 = vrot.slane %v737, 7
    %vm745 = vcmask 1041409
    %v746 = vsel %vm745, %v744, %v736
    %v747 = vrot.slane %v738, 6
    %vm748 = vcmask 1042434
    %v749 = vsel %vm748, %v747, %v746
    %v750 = vrot.slane %v739, 5
    %vm751 = vcmask 1043459
    %v752 = vsel %vm751, %v750, %v749
    %v753 = vrot.slane %v740, 4
    %vm754 = vcmask 1044484
    %v755 = vsel %vm754, %v753, %v752
    %v756 = vrot.slane %v741, 3
    %vm757 = vcmask 1045509
    %v758 = vsel %vm757, %v756, %v755
    %v759 = vrot.slane %v742, 2
    %vm760 = vcmask 1046534
    %v761 = vsel %vm760, %v759, %v758
    %v762 = vrot.slane %v743, 1
    %vm763 = vcmask 1047559
    %v764 = vsel %vm763, %v762, %v761
    %v765 = vpack.c.b16 %v764, %v764
    %766 = vrot.lane.b32.xlu0 %v765, 32
    %v767 = vpop.permute.xlu0 %766
    %v769 = vsel %vm81, %v767, 0
    %771 = vmatprep.subr.bf16.mxu0 0
    %772 = vmatpush1.bf16.msra.mxu0 %v360
    %773 = vmatprep.subr.bf16.mxu0 0
    %774 = vmatpush1.bf16.msra.mxu0 %v361
    %775 = vmatprep.subr.bf16.mxu0 0
    %776 = vmatpush1.bf16.msra.mxu0 0
    %777 = vmatprep.subr.bf16.mxu0 0
    %778 = vmatpush1.bf16.msra.mxu0 0
    %779 = vmatprep.subr.bf16.mxu0 0
    %780 = vmatpush1.bf16.msra.mxu0 0
    %781 = vmatprep.subr.bf16.mxu0 0
    %782 = vmatpush1.bf16.msra.mxu0 0
    %783 = vmatprep.subr.bf16.mxu0 0
    %784 = vmatpush1.bf16.msra.mxu0 0
    %785 = vmatprep.subr.bf16.mxu0 0
    %786 = vmatpush1.bf16.msra.mxu0 0
    %787 = vmatprep.subr.bf16.mxu0 0
    %788 = vmatpush1.bf16.msra.mxu0 0
    %789 = vmatprep.subr.bf16.mxu0 0
    %790 = vmatpush1.bf16.msra.mxu0 0
    %791 = vmatprep.subr.bf16.mxu0 0
    %792 = vmatpush1.bf16.msra.mxu0 0
    %793 = vmatprep.subr.bf16.mxu0 0
    %794 = vmatpush1.bf16.msra.mxu0 0
    %795 = vmatprep.subr.bf16.mxu0 0
    %796 = vmatpush1.bf16.msra.mxu0 0
    %797 = vmatprep.subr.bf16.mxu0 0
    %798 = vmatpush1.bf16.msra.mxu0 0
    %799 = vmatprep.subr.bf16.mxu0 0
    %800 = vmatpush1.bf16.msra.mxu0 0
    %801 = vmatprep.subr.bf16.mxu0 0
    %802 = vmatpush1.bf16.msra.mxu0 0
    %803 = vmatprep.mubr.bf16.mxu0 0
    %804 = vmatmul.mubr.bf16.gmra.mrb[0].mxu0 %v769
    %v805 = vpop.f32.mrb[0].mxu0
    %v806 = vadd.f32 0.0, %v805
    %v807 = vpop.f32.mrb[0].mxu0
    %v808 = vpop.f32.mrb[0].mxu0
    %v809 = vpop.f32.mrb[0].mxu0
    %810 = vdwg.mxu0
    %v812 = vrot.slane %v806, 1
    %v813 = vrot.slane %v806, 2
    %v814 = vrot.slane %v806, 3
    %v815 = vrot.slane %v806, 4
    %v816 = vrot.slane %v806, 5
    %v817 = vrot.slane %v806, 6
    %v818 = vrot.slane %v806, 7
    %v827 = vadd.f32 %v712, %v806
    %v828 = vadd.f32 %v713, %v812
    %v829 = vadd.f32 %v714, %v813
    %v830 = vadd.f32 %v715, %v814
    %v831 = vadd.f32 %v716, %v815
    %v832 = vadd.f32 %v717, %v816
    %v833 = vadd.f32 %v718, %v817
    %v834 = vadd.f32 %v719, %v818
    %v835 = vxor.u32 %v827, 2147483648
    %v836 = vxor.u32 %v828, 2147483648
    %v837 = vxor.u32 %v829, 2147483648
    %v838 = vxor.u32 %v830, 2147483648
    %v839 = vxor.u32 %v831, 2147483648
    %v840 = vxor.u32 %v832, 2147483648
    %v841 = vxor.u32 %v833, 2147483648
    %v842 = vxor.u32 %v834, 2147483648
    %v843 = vmul.f32 %v835, 1.442695
    %v844 = vpow.pop %v843
    %v845 = vmul.f32 %v836, 1.442695
    %v846 = vpow.pop %v845
    %v847 = vmul.f32 %v837, 1.442695
    %v848 = vpow.pop %v847
    %v849 = vmul.f32 %v838, 1.442695
    %v850 = vpow.pop %v849
    %v851 = vmul.f32 %v839, 1.442695
    %v852 = vpow.pop %v851
    %v853 = vmul.f32 %v840, 1.442695
    %v854 = vpow.pop %v853
    %v855 = vmul.f32 %v841, 1.442695
    %v856 = vpow.pop %v855
    %v857 = vmul.f32 %v842, 1.442695
    %v858 = vpow.pop %v857
    %v859 = vadd.f32 %v844, 1.0
    %v860 = vadd.f32 %v846, 1.0
    %v861 = vadd.f32 %v848, 1.0
    %v862 = vadd.f32 %v850, 1.0
    %v863 = vadd.f32 %v852, 1.0
    %v864 = vadd.f32 %v854, 1.0
    %v865 = vadd.f32 %v856, 1.0
    %v866 = vadd.f32 %v858, 1.0
    %v867 = vrcp.pop %v859
    %v868 = vmul.f32 1.0, %v867
    %v869 = vrcp.pop %v860
    %v870 = vmul.f32 1.0, %v869
    %v871 = vrcp.pop %v861
    %v872 = vmul.f32 1.0, %v871
    %v873 = vrcp.pop %v862
    %v874 = vmul.f32 1.0, %v873
    %v875 = vrcp.pop %v863
    %v876 = vmul.f32 1.0, %v875
    %v877 = vrcp.pop %v864
    %v878 = vmul.f32 1.0, %v877
    %v879 = vrcp.pop %v865
    %v880 = vmul.f32 1.0, %v879
    %v881 = vrcp.pop %v866
    %v882 = vmul.f32 1.0, %v881
    %v883 = vtanh.pop %v827
    %v884 = vtanh.pop %v828
    %v885 = vtanh.pop %v829
    %v886 = vtanh.pop %v830
    %v887 = vtanh.pop %v831
    %v888 = vtanh.pop %v832
    %v889 = vtanh.pop %v833
    %v890 = vtanh.pop %v834
    %v891 = vmul.f32 %v868, %v599
    %v892 = vmul.f32 %v870, %v600
    %v893 = vmul.f32 %v872, %v601
    %v894 = vmul.f32 %v874, %v602
    %v895 = vmul.f32 %v876, %v603
    %v896 = vmul.f32 %v878, %v604
    %v897 = vmul.f32 %v880, %v605
    %v898 = vmul.f32 %v882, %v606
    %907 = vrot.lane.b32.xlu0 %v883, 64
    %v908 = vpop.permute.xlu0 %907
    %909 = vrot.lane.b32.xlu0 %v884, 64
    %v910 = vpop.permute.xlu0 %909
    %911 = vrot.lane.b32.xlu0 %v885, 64
    %v912 = vpop.permute.xlu0 %911
    %913 = vrot.lane.b32.xlu0 %v886, 64
    %v914 = vpop.permute.xlu0 %913
    %915 = vrot.lane.b32.xlu0 %v887, 64
    %v916 = vpop.permute.xlu0 %915
    %917 = vrot.lane.b32.xlu0 %v888, 64
    %v918 = vpop.permute.xlu0 %917
    %919 = vrot.lane.b32.xlu0 %v889, 64
    %v920 = vpop.permute.xlu0 %919
    %921 = vrot.lane.b32.xlu0 %v890, 64
    %v922 = vpop.permute.xlu0 %921
    %v931 = vmul.f32 %v868, %v908
    %v932 = vmul.f32 %v870, %v910
    %v933 = vmul.f32 %v872, %v912
    %v934 = vmul.f32 %v874, %v914
    %v935 = vmul.f32 %v876, %v916
    %v936 = vmul.f32 %v878, %v918
    %v937 = vmul.f32 %v880, %v920
    %v938 = vmul.f32 %v882, %v922
    %947 = vrot.lane.b32.xlu0 %v931, 32
    %v948 = vpop.permute.xlu0 %947
    %949 = vrot.lane.b32.xlu0 %v932, 32
    %v950 = vpop.permute.xlu0 %949
    %951 = vrot.lane.b32.xlu0 %v933, 32
    %v952 = vpop.permute.xlu0 %951
    %953 = vrot.lane.b32.xlu0 %v934, 32
    %v954 = vpop.permute.xlu0 %953
    %955 = vrot.lane.b32.xlu0 %v935, 32
    %v956 = vpop.permute.xlu0 %955
    %957 = vrot.lane.b32.xlu0 %v936, 32
    %v958 = vpop.permute.xlu0 %957
    %959 = vrot.lane.b32.xlu0 %v937, 32
    %v960 = vpop.permute.xlu0 %959
    %961 = vrot.lane.b32.xlu0 %v938, 32
    %v962 = vpop.permute.xlu0 %961
    %v971 = vadd.f32 %v891, %v948
    %v972 = vadd.f32 %v892, %v950
    %v973 = vadd.f32 %v893, %v952
    %v974 = vadd.f32 %v894, %v954
    %v975 = vadd.f32 %v895, %v956
    %v976 = vadd.f32 %v896, %v958
    %v977 = vadd.f32 %v897, %v960
    %v978 = vadd.f32 %v898, %v962
    %v979 = vtanh.pop %v971
    %v980 = vtanh.pop %v972
    %v981 = vtanh.pop %v973
    %v982 = vtanh.pop %v974
    %v983 = vtanh.pop %v975
    %v984 = vtanh.pop %v976
    %v985 = vtanh.pop %v977
    %v986 = vtanh.pop %v978
    %995 = vrot.lane.b32.xlu0 %v979, 64
    %v996 = vpop.permute.xlu0 %995
    %997 = vrot.lane.b32.xlu0 %v980, 64
    %v998 = vpop.permute.xlu0 %997
    %999 = vrot.lane.b32.xlu0 %v981, 64
    %v1000 = vpop.permute.xlu0 %999
    %1001 = vrot.lane.b32.xlu0 %v982, 64
    %v1002 = vpop.permute.xlu0 %1001
    %1003 = vrot.lane.b32.xlu0 %v983, 64
    %v1004 = vpop.permute.xlu0 %1003
    %1005 = vrot.lane.b32.xlu0 %v984, 64
    %v1006 = vpop.permute.xlu0 %1005
    %1007 = vrot.lane.b32.xlu0 %v985, 64
    %v1008 = vpop.permute.xlu0 %1007
    %1009 = vrot.lane.b32.xlu0 %v986, 64
    %v1010 = vpop.permute.xlu0 %1009
    %v1019 = vmul.f32 %v868, %v996
    %v1020 = vmul.f32 %v870, %v998
    %v1021 = vmul.f32 %v872, %v1000
    %v1022 = vmul.f32 %v874, %v1002
    %v1023 = vmul.f32 %v876, %v1004
    %v1024 = vmul.f32 %v878, %v1006
    %v1025 = vmul.f32 %v880, %v1008
    %v1026 = vmul.f32 %v882, %v1010
    %v1027 = vld [vmem:[#allocation11 + $0x1] sm:$0x1]
    %v1028 = vld [vmem:[#allocation11 + $0x9] sm:$0x1]
    %v1029 = vld [vmem:[#allocation11 + $0x11] sm:$0x1]
    %v1030 = vld [vmem:[#allocation11 + $0x19] sm:$0x1]
    %v1031 = vld [vmem:[#allocation11 + $0x21] sm:$0x1]
    %v1032 = vld [vmem:[#allocation11 + $0x29] sm:$0x1]
    %v1033 = vld [vmem:[#allocation11 + $0x31] sm:$0x1]
    %v1034 = vld [vmem:[#allocation11 + $0x39] sm:$0x1]
    %1043 = vrot.lane.b32.xlu0 %v1019, 32
    %v1044 = vpop.permute.xlu0 %1043
    %1045 = vrot.lane.b32.xlu0 %v1020, 32
    %v1046 = vpop.permute.xlu0 %1045
    %1047 = vrot.lane.b32.xlu0 %v1021, 32
    %v1048 = vpop.permute.xlu0 %1047
    %1049 = vrot.lane.b32.xlu0 %v1022, 32
    %v1050 = vpop.permute.xlu0 %1049
    %1051 = vrot.lane.b32.xlu0 %v1023, 32
    %v1052 = vpop.permute.xlu0 %1051
    %1053 = vrot.lane.b32.xlu0 %v1024, 32
    %v1054 = vpop.permute.xlu0 %1053
    %1055 = vrot.lane.b32.xlu0 %v1025, 32
    %v1056 = vpop.permute.xlu0 %1055
    %1057 = vrot.lane.b32.xlu0 %v1026, 32
    %v1058 = vpop.permute.xlu0 %1057
    %v1067 = vadd.f32 %v1027, %v1044
    %v1068 = vadd.f32 %v1028, %v1046
    %v1069 = vadd.f32 %v1029, %v1048
    %v1070 = vadd.f32 %v1030, %v1050
    %v1071 = vadd.f32 %v1031, %v1052
    %v1072 = vadd.f32 %v1032, %v1054
    %v1073 = vadd.f32 %v1033, %v1056
    %v1074 = vadd.f32 %v1034, %v1058
    %1075 = vst.msk [vmem:[#allocation11 + $0x1] sm:$0x1] %vm703, %v1067
    %1076 = vst.msk [vmem:[#allocation11 + $0x9] sm:$0x1] %vm703, %v1068
    %1077 = vst.msk [vmem:[#allocation11 + $0x11] sm:$0x1] %vm703, %v1069
    %1078 = vst.msk [vmem:[#allocation11 + $0x19] sm:$0x1] %vm703, %v1070
    %1079 = vst.msk [vmem:[#allocation11 + $0x21] sm:$0x1] %vm703, %v1071
    %1080 = vst.msk [vmem:[#allocation11 + $0x29] sm:$0x1] %vm703, %v1072
    %1081 = vst.msk [vmem:[#allocation11 + $0x31] sm:$0x1] %vm703, %v1073
    %1082 = vst.msk [vmem:[#allocation11 + $0x39] sm:$0x1] %vm703, %v1074
    %v1083 = vld [vmem:[#allocation4 + $0x2] sm:$0x1]
    %v1084 = vld [vmem:[#allocation4 + $0xa] sm:$0x1]
    %v1085 = vld [vmem:[#allocation4 + $0x12] sm:$0x1]
    %v1086 = vld [vmem:[#allocation4 + $0x1a] sm:$0x1]
    %v1087 = vld [vmem:[#allocation4 + $0x22] sm:$0x1]
    %v1088 = vld [vmem:[#allocation4 + $0x2a] sm:$0x1]
    %v1089 = vld [vmem:[#allocation4 + $0x32] sm:$0x1]
    %v1090 = vld [vmem:[#allocation4 + $0x3a] sm:$0x1]
    %v1091 = vpack.c.bf16 %v1019, %v1019
    %v1092 = vpack.c.bf16 %v1020, %v1020
    %v1093 = vpack.c.bf16 %v1021, %v1021
    %v1094 = vpack.c.bf16 %v1022, %v1022
    %v1095 = vpack.c.bf16 %v1023, %v1023
    %v1096 = vpack.c.bf16 %v1024, %v1024
    %v1097 = vpack.c.bf16 %v1025, %v1025
    %v1098 = vpack.c.bf16 %v1026, %v1026
    %v1107 = vunpack.c.l.b16 %v1091
    %v1108 = vunpack.c.l.b16 %v1092
    %v1109 = vunpack.c.l.b16 %v1093
    %v1110 = vunpack.c.l.b16 %v1094
    %v1111 = vunpack.c.l.b16 %v1095
    %v1112 = vunpack.c.l.b16 %v1096
    %v1113 = vunpack.c.l.b16 %v1097
    %v1114 = vunpack.c.l.b16 %v1098
    %v1115 = vrot.slane %v1108, 7
    %v1116 = vsel %vm745, %v1115, %v1107
    %v1117 = vrot.slane %v1109, 6
    %v1118 = vsel %vm748, %v1117, %v1116
    %v1119 = vrot.slane %v1110, 5
    %v1120 = vsel %vm751, %v1119, %v1118
    %v1121 = vrot.slane %v1111, 4
    %v1122 = vsel %vm754, %v1121, %v1120
    %v1123 = vrot.slane %v1112, 3
    %v1124 = vsel %vm757, %v1123, %v1122
    %v1125 = vrot.slane %v1113, 2
    %v1126 = vsel %vm760, %v1125, %v1124
    %v1127 = vrot.slane %v1114, 1
    %v1128 = vsel %vm763, %v1127, %v1126
    %v1129 = vpack.c.b16 %v1128, %v1128
    %1130 = vrot.lane.b32.xlu0 %v1129, 32
    %v1131 = vpop.permute.xlu0 %1130
    %v1133 = vsel %vm81, %v1131, 0
    %1135 = vmatprep.subr.bf16.mxu0 0
    %1136 = vmatpush1.bf16.msra.mxu0 %v360
    %1137 = vmatprep.subr.bf16.mxu0 0
    %1138 = vmatpush1.bf16.msra.mxu0 %v361
    %1139 = vmatprep.subr.bf16.mxu0 0
    %1140 = vmatpush1.bf16.msra.mxu0 0
    %1141 = vmatprep.subr.bf16.mxu0 0
    %1142 = vmatpush1.bf16.msra.mxu0 0
    %1143 = vmatprep.subr.bf16.mxu0 0
    %1144 = vmatpush1.bf16.msra.mxu0 0
    %1145 = vmatprep.subr.bf16.mxu0 0
    %1146 = vmatpush1.bf16.msra.mxu0 0
    %1147 = vmatprep.subr.bf16.mxu0 0
    %1148 = vmatpush1.bf16.msra.mxu0 0
    %1149 = vmatprep.subr.bf16.mxu0 0
    %1150 = vmatpush1.bf16.msra.mxu0 0
    %1151 = vmatprep.subr.bf16.mxu0 0
    %1152 = vmatpush1.bf16.msra.mxu0 0
    %1153 = vmatprep.subr.bf16.mxu0 0
    %1154 = vmatpush1.bf16.msra.mxu0 0
    %1155 = vmatprep.subr.bf16.mxu0 0
    %1156 = vmatpush1.bf16.msra.mxu0 0
    %1157 = vmatprep.subr.bf16.mxu0 0
    %1158 = vmatpush1.bf16.msra.mxu0 0
    %1159 = vmatprep.subr.bf16.mxu0 0
    %1160 = vmatpush1.bf16.msra.mxu0 0
    %1161 = vmatprep.subr.bf16.mxu0 0
    %1162 = vmatpush1.bf16.msra.mxu0 0
    %1163 = vmatprep.subr.bf16.mxu0 0
    %1164 = vmatpush1.bf16.msra.mxu0 0
    %1165 = vmatprep.subr.bf16.mxu0 0
    %1166 = vmatpush1.bf16.msra.mxu0 0
    %1167 = vmatprep.mubr.bf16.mxu0 0
    %1168 = vmatmul.mubr.bf16.gmra.mrb[0].mxu0 %v1133
    %v1169 = vpop.f32.mrb[0].mxu0
    %v1170 = vadd.f32 0.0, %v1169
    %v1171 = vpop.f32.mrb[0].mxu0
    %v1172 = vpop.f32.mrb[0].mxu0
    %v1173 = vpop.f32.mrb[0].mxu0
    %1174 = vdwg.mxu0
    %v1176 = vrot.slane %v1170, 1
    %v1177 = vrot.slane %v1170, 2
    %v1178 = vrot.slane %v1170, 3
    %v1179 = vrot.slane %v1170, 4
    %v1180 = vrot.slane %v1170, 5
    %v1181 = vrot.slane %v1170, 6
    %v1182 = vrot.slane %v1170, 7
    %v1191 = vadd.f32 %v1083, %v1170
    %v1192 = vadd.f32 %v1084, %v1176
    %v1193 = vadd.f32 %v1085, %v1177
    %v1194 = vadd.f32 %v1086, %v1178
    %v1195 = vadd.f32 %v1087, %v1179
    %v1196 = vadd.f32 %v1088, %v1180
    %v1197 = vadd.f32 %v1089, %v1181
    %v1198 = vadd.f32 %v1090, %v1182
    %v1199 = vxor.u32 %v1191, 2147483648
    %v1200 = vxor.u32 %v1192, 2147483648
    %v1201 = vxor.u32 %v1193, 2147483648
    %v1202 = vxor.u32 %v1194, 2147483648
    %v1203 = vxor.u32 %v1195, 2147483648
    %v1204 = vxor.u32 %v1196, 2147483648
    %v1205 = vxor.u32 %v1197, 2147483648
    %v1206 = vxor.u32 %v1198, 2147483648
    %v1207 = vmul.f32 %v1199, 1.442695
    %v1208 = vpow.pop %v1207
    %v1209 = vmul.f32 %v1200, 1.442695
    %v1210 = vpow.pop %v1209
    %v1211 = vmul.f32 %v1201, 1.442695
    %v1212 = vpow.pop %v1211
    %v1213 = vmul.f32 %v1202, 1.442695
    %v1214 = vpow.pop %v1213
    %v1215 = vmul.f32 %v1203, 1.442695
    %v1216 = vpow.pop %v1215
    %v1217 = vmul.f32 %v1204, 1.442695
    %v1218 = vpow.pop %v1217
    %v1219 = vmul.f32 %v1205, 1.442695
    %v1220 = vpow.pop %v1219
    %v1221 = vmul.f32 %v1206, 1.442695
    %v1222 = vpow.pop %v1221
    %v1223 = vadd.f32 %v1208, 1.0
    %v1224 = vadd.f32 %v1210, 1.0
    %v1225 = vadd.f32 %v1212, 1.0
    %v1226 = vadd.f32 %v1214, 1.0
    %v1227 = vadd.f32 %v1216, 1.0
    %v1228 = vadd.f32 %v1218, 1.0
    %v1229 = vadd.f32 %v1220, 1.0
    %v1230 = vadd.f32 %v1222, 1.0
    %v1231 = vrcp.pop %v1223
    %v1232 = vmul.f32 1.0, %v1231
    %v1233 = vrcp.pop %v1224
    %v1234 = vmul.f32 1.0, %v1233
    %v1235 = vrcp.pop %v1225
    %v1236 = vmul.f32 1.0, %v1235
    %v1237 = vrcp.pop %v1226
    %v1238 = vmul.f32 1.0, %v1237
    %v1239 = vrcp.pop %v1227
    %v1240 = vmul.f32 1.0, %v1239
    %v1241 = vrcp.pop %v1228
    %v1242 = vmul.f32 1.0, %v1241
    %v1243 = vrcp.pop %v1229
    %v1244 = vmul.f32 1.0, %v1243
    %v1245 = vrcp.pop %v1230
    %v1246 = vmul.f32 1.0, %v1245
    %v1247 = vtanh.pop %v1191
    %v1248 = vtanh.pop %v1192
    %v1249 = vtanh.pop %v1193
    %v1250 = vtanh.pop %v1194
    %v1251 = vtanh.pop %v1195
    %v1252 = vtanh.pop %v1196
    %v1253 = vtanh.pop %v1197
    %v1254 = vtanh.pop %v1198
    %v1255 = vmul.f32 %v1232, %v971
    %v1256 = vmul.f32 %v1234, %v972
    %v1257 = vmul.f32 %v1236, %v973
    %v1258 = vmul.f32 %v1238, %v974
    %v1259 = vmul.f32 %v1240, %v975
    %v1260 = vmul.f32 %v1242, %v976
    %v1261 = vmul.f32 %v1244, %v977
    %v1262 = vmul.f32 %v1246, %v978
    %1271 = vrot.lane.b32.xlu0 %v1247, 64
    %v1272 = vpop.permute.xlu0 %1271
    %1273 = vrot.lane.b32.xlu0 %v1248, 64
    %v1274 = vpop.permute.xlu0 %1273
    %1275 = vrot.lane.b32.xlu0 %v1249, 64
    %v1276 = vpop.permute.xlu0 %1275
    %1277 = vrot.lane.b32.xlu0 %v1250, 64
    %v1278 = vpop.permute.xlu0 %1277
    %1279 = vrot.lane.b32.xlu0 %v1251, 64
    %v1280 = vpop.permute.xlu0 %1279
    %1281 = vrot.lane.b32.xlu0 %v1252, 64
    %v1282 = vpop.permute.xlu0 %1281
    %1283 = vrot.lane.b32.xlu0 %v1253, 64
    %v1284 = vpop.permute.xlu0 %1283
    %1285 = vrot.lane.b32.xlu0 %v1254, 64
    %v1286 = vpop.permute.xlu0 %1285
    %v1295 = vmul.f32 %v1232, %v1272
    %v1296 = vmul.f32 %v1234, %v1274
    %v1297 = vmul.f32 %v1236, %v1276
    %v1298 = vmul.f32 %v1238, %v1278
    %v1299 = vmul.f32 %v1240, %v1280
    %v1300 = vmul.f32 %v1242, %v1282
    %v1301 = vmul.f32 %v1244, %v1284
    %v1302 = vmul.f32 %v1246, %v1286
    %1311 = vrot.lane.b32.xlu0 %v1295, 32
    %v1312 = vpop.permute.xlu0 %1311
    %1313 = vrot.lane.b32.xlu0 %v1296, 32
    %v1314 = vpop.permute.xlu0 %1313
    %1315 = vrot.lane.b32.xlu0 %v1297, 32
    %v1316 = vpop.permute.xlu0 %1315
    %1317 = vrot.lane.b32.xlu0 %v1298, 32
    %v1318 = vpop.permute.xlu0 %1317
    %1319 = vrot.lane.b32.xlu0 %v1299, 32
    %v1320 = vpop.permute.xlu0 %1319
    %1321 = vrot.lane.b32.xlu0 %v1300, 32
    %v1322 = vpop.permute.xlu0 %1321
    %1323 = vrot.lane.b32.xlu0 %v1301, 32
    %v1324 = vpop.permute.xlu0 %1323
    %1325 = vrot.lane.b32.xlu0 %v1302, 32
    %v1326 = vpop.permute.xlu0 %1325
    %v1335 = vadd.f32 %v1255, %v1312
    %v1336 = vadd.f32 %v1256, %v1314
    %v1337 = vadd.f32 %v1257, %v1316
    %v1338 = vadd.f32 %v1258, %v1318
    %v1339 = vadd.f32 %v1259, %v1320
    %v1340 = vadd.f32 %v1260, %v1322
    %v1341 = vadd.f32 %v1261, %v1324
    %v1342 = vadd.f32 %v1262, %v1326
    %v1343 = vtanh.pop %v1335
    %v1344 = vtanh.pop %v1336
    %v1345 = vtanh.pop %v1337
    %v1346 = vtanh.pop %v1338
    %v1347 = vtanh.pop %v1339
    %v1348 = vtanh.pop %v1340
    %v1349 = vtanh.pop %v1341
    %v1350 = vtanh.pop %v1342
    %1359 = vrot.lane.b32.xlu0 %v1343, 64
    %v1360 = vpop.permute.xlu0 %1359
    %1361 = vrot.lane.b32.xlu0 %v1344, 64
    %v1362 = vpop.permute.xlu0 %1361
    %1363 = vrot.lane.b32.xlu0 %v1345, 64
    %v1364 = vpop.permute.xlu0 %1363
    %1365 = vrot.lane.b32.xlu0 %v1346, 64
    %v1366 = vpop.permute.xlu0 %1365
    %1367 = vrot.lane.b32.xlu0 %v1347, 64
    %v1368 = vpop.permute.xlu0 %1367
    %1369 = vrot.lane.b32.xlu0 %v1348, 64
    %v1370 = vpop.permute.xlu0 %1369
    %1371 = vrot.lane.b32.xlu0 %v1349, 64
    %v1372 = vpop.permute.xlu0 %1371
    %1373 = vrot.lane.b32.xlu0 %v1350, 64
    %v1374 = vpop.permute.xlu0 %1373
    %v1383 = vmul.f32 %v1232, %v1360
    %v1384 = vmul.f32 %v1234, %v1362
    %v1385 = vmul.f32 %v1236, %v1364
    %v1386 = vmul.f32 %v1238, %v1366
    %v1387 = vmul.f32 %v1240, %v1368
    %v1388 = vmul.f32 %v1242, %v1370
    %v1389 = vmul.f32 %v1244, %v1372
    %v1390 = vmul.f32 %v1246, %v1374
    %v1391 = vld [vmem:[#allocation11 + $0x2] sm:$0x1]
    %v1392 = vld [vmem:[#allocation11 + $0xa] sm:$0x1]
    %v1393 = vld [vmem:[#allocation11 + $0x12] sm:$0x1]
    %v1394 = vld [vmem:[#allocation11 + $0x1a] sm:$0x1]
    %v1395 = vld [vmem:[#allocation11 + $0x22] sm:$0x1]
    %v1396 = vld [vmem:[#allocation11 + $0x2a] sm:$0x1]
    %v1397 = vld [vmem:[#allocation11 + $0x32] sm:$0x1]
    %v1398 = vld [vmem:[#allocation11 + $0x3a] sm:$0x1]
    %1407 = vrot.lane.b32.xlu0 %v1383, 32
    %v1408 = vpop.permute.xlu0 %1407
    %1409 = vrot.lane.b32.xlu0 %v1384, 32
    %v1410 = vpop.permute.xlu0 %1409
    %1411 = vrot.lane.b32.xlu0 %v1385, 32
    %v1412 = vpop.permute.xlu0 %1411
    %1413 = vrot.lane.b32.xlu0 %v1386, 32
    %v1414 = vpop.permute.xlu0 %1413
    %1415 = vrot.lane.b32.xlu0 %v1387, 32
    %v1416 = vpop.permute.xlu0 %1415
    %1417 = vrot.lane.b32.xlu0 %v1388, 32
    %v1418 = vpop.permute.xlu0 %1417
    %1419 = vrot.lane.b32.xlu0 %v1389, 32
    %v1420 = vpop.permute.xlu0 %1419
    %1421 = vrot.lane.b32.xlu0 %v1390, 32
    %v1422 = vpop.permute.xlu0 %1421
    %v1431 = vadd.f32 %v1391, %v1408
    %v1432 = vadd.f32 %v1392, %v1410
    %v1433 = vadd.f32 %v1393, %v1412
    %v1434 = vadd.f32 %v1394, %v1414
    %v1435 = vadd.f32 %v1395, %v1416
    %v1436 = vadd.f32 %v1396, %v1418
    %v1437 = vadd.f32 %v1397, %v1420
    %v1438 = vadd.f32 %v1398, %v1422
    %1439 = vst.msk [vmem:[#allocation11 + $0x2] sm:$0x1] %vm703, %v1431
    %1440 = vst.msk [vmem:[#allocation11 + $0xa] sm:$0x1] %vm703, %v1432
    %1441 = vst.msk [vmem:[#allocation11 + $0x12] sm:$0x1] %vm703, %v1433
    %1442 = vst.msk [vmem:[#allocation11 + $0x1a] sm:$0x1] %vm703, %v1434
    %1443 = vst.msk [vmem:[#allocation11 + $0x22] sm:$0x1] %vm703, %v1435
    %1444 = vst.msk [vmem:[#allocation11 + $0x2a] sm:$0x1] %vm703, %v1436
    %1445 = vst.msk [vmem:[#allocation11 + $0x32] sm:$0x1] %vm703, %v1437
    %1446 = vst.msk [vmem:[#allocation11 + $0x3a] sm:$0x1] %vm703, %v1438
    %v1447 = vld [vmem:[#allocation4 + $0x3] sm:$0x1]
    %v1448 = vld [vmem:[#allocation4 + $0xb] sm:$0x1]
    %v1449 = vld [vmem:[#allocation4 + $0x13] sm:$0x1]
    %v1450 = vld [vmem:[#allocation4 + $0x1b] sm:$0x1]
    %v1451 = vld [vmem:[#allocation4 + $0x23] sm:$0x1]
    %v1452 = vld [vmem:[#allocation4 + $0x2b] sm:$0x1]
    %v1453 = vld [vmem:[#allocation4 + $0x33] sm:$0x1]
    %v1454 = vld [vmem:[#allocation4 + $0x3b] sm:$0x1]
    %v1455 = vpack.c.bf16 %v1383, %v1383
    %v1456 = vpack.c.bf16 %v1384, %v1384
    %v1457 = vpack.c.bf16 %v1385, %v1385
    %v1458 = vpack.c.bf16 %v1386, %v1386
    %v1459 = vpack.c.bf16 %v1387, %v1387
    %v1460 = vpack.c.bf16 %v1388, %v1388
    %v1461 = vpack.c.bf16 %v1389, %v1389
    %v1462 = vpack.c.bf16 %v1390, %v1390
    %v1471 = vunpack.c.l.b16 %v1455
    %v1472 = vunpack.c.l.b16 %v1456
    %v1473 = vunpack.c.l.b16 %v1457
    %v1474 = vunpack.c.l.b16 %v1458
    %v1475 = vunpack.c.l.b16 %v1459
    %v1476 = vunpack.c.l.b16 %v1460
    %v1477 = vunpack.c.l.b16 %v1461
    %v1478 = vunpack.c.l.b16 %v1462
    %v1479 = vrot.slane %v1472, 7
    %v1480 = vsel %vm745, %v1479, %v1471
    %v1481 = vrot.slane %v1473, 6
    %v1482 = vsel %vm748, %v1481, %v1480
    %v1483 = vrot.slane %v1474, 5
    %v1484 = vsel %vm751, %v1483, %v1482
    %v1485 = vrot.slane %v1475, 4
    %v1486 = vsel %vm754, %v1485, %v1484
    %v1487 = vrot.slane %v1476, 3
    %v1488 = vsel %vm757, %v1487, %v1486
    %v1489 = vrot.slane %v1477, 2
    %v1490 = vsel %vm760, %v1489, %v1488
    %v1491 = vrot.slane %v1478, 1
    %v1492 = vsel %vm763, %v1491, %v1490
    %v1493 = vpack.c.b16 %v1492, %v1492
    %1494 = vrot.lane.b32.xlu0 %v1493, 32
    %v1495 = vpop.permute.xlu0 %1494
    %v1497 = vsel %vm81, %v1495, 0
    %1499 = vmatprep.subr.bf16.mxu0 0
    %1500 = vmatpush1.bf16.msra.mxu0 %v360
    %1501 = vmatprep.subr.bf16.mxu0 0
    %1502 = vmatpush1.bf16.msra.mxu0 %v361
    %1503 = vmatprep.subr.bf16.mxu0 0
    %1504 = vmatpush1.bf16.msra.mxu0 0
    %1505 = vmatprep.subr.bf16.mxu0 0
    %1506 = vmatpush1.bf16.msra.mxu0 0
    %1507 = vmatprep.subr.bf16.mxu0 0
    %1508 = vmatpush1.bf16.msra.mxu0 0
    %1509 = vmatprep.subr.bf16.mxu0 0
    %1510 = vmatpush1.bf16.msra.mxu0 0
    %1511 = vmatprep.subr.bf16.mxu0 0
    %1512 = vmatpush1.bf16.msra.mxu0 0
    %1513 = vmatprep.subr.bf16.mxu0 0
    %1514 = vmatpush1.bf16.msra.mxu0 0
    %1515 = vmatprep.subr.bf16.mxu0 0
    %1516 = vmatpush1.bf16.msra.mxu0 0
    %1517 = vmatprep.subr.bf16.mxu0 0
    %1518 = vmatpush1.bf16.msra.mxu0 0
    %1519 = vmatprep.subr.bf16.mxu0 0
    %1520 = vmatpush1.bf16.msra.mxu0 0
    %1521 = vmatprep.subr.bf16.mxu0 0
    %1522 = vmatpush1.bf16.msra.mxu0 0
    %1523 = vmatprep.subr.bf16.mxu0 0
    %1524 = vmatpush1.bf16.msra.mxu0 0
    %1525 = vmatprep.subr.bf16.mxu0 0
    %1526 = vmatpush1.bf16.msra.mxu0 0
    %1527 = vmatprep.subr.bf16.mxu0 0
    %1528 = vmatpush1.bf16.msra.mxu0 0
    %1529 = vmatprep.subr.bf16.mxu0 0
    %1530 = vmatpush1.bf16.msra.mxu0 0
    %1531 = vmatprep.mubr.bf16.mxu0 0
    %1532 = vmatmul.mubr.bf16.gmra.mrb[0].mxu0 %v1497
    %v1533 = vpop.f32.mrb[0].mxu0
    %v1534 = vadd.f32 0.0, %v1533
    %v1535 = vpop.f32.mrb[0].mxu0
    %v1536 = vpop.f32.mrb[0].mxu0
    %v1537 = vpop.f32.mrb[0].mxu0
    %1538 = vdwg.mxu0
    %v1540 = vrot.slane %v1534, 1
    %v1541 = vrot.slane %v1534, 2
    %v1542 = vrot.slane %v1534, 3
    %v1543 = vrot.slane %v1534, 4
    %v1544 = vrot.slane %v1534, 5
    %v1545 = vrot.slane %v1534, 6
    %v1546 = vrot.slane %v1534, 7
    %v1555 = vadd.f32 %v1447, %v1534
    %v1556 = vadd.f32 %v1448, %v1540
    %v1557 = vadd.f32 %v1449, %v1541
    %v1558 = vadd.f32 %v1450, %v1542
    %v1559 = vadd.f32 %v1451, %v1543
    %v1560 = vadd.f32 %v1452, %v1544
    %v1561 = vadd.f32 %v1453, %v1545
    %v1562 = vadd.f32 %v1454, %v1546
    %v1563 = vxor.u32 %v1555, 2147483648
    %v1564 = vxor.u32 %v1556, 2147483648
    %v1565 = vxor.u32 %v1557, 2147483648
    %v1566 = vxor.u32 %v1558, 2147483648
    %v1567 = vxor.u32 %v1559, 2147483648
    %v1568 = vxor.u32 %v1560, 2147483648
    %v1569 = vxor.u32 %v1561, 2147483648
    %v1570 = vxor.u32 %v1562, 2147483648
    %v1571 = vmul.f32 %v1563, 1.442695
    %v1572 = vpow.pop %v1571
    %v1573 = vmul.f32 %v1564, 1.442695
    %v1574 = vpow.pop %v1573
    %v1575 = vmul.f32 %v1565, 1.442695
    %v1576 = vpow.pop %v1575
    %v1577 = vmul.f32 %v1566, 1.442695
    %v1578 = vpow.pop %v1577
    %v1579 = vmul.f32 %v1567, 1.442695
    %v1580 = vpow.pop %v1579
    %v1581 = vmul.f32 %v1568, 1.442695
    %v1582 = vpow.pop %v1581
    %v1583 = vmul.f32 %v1569, 1.442695
    %v1584 = vpow.pop %v1583
    %v1585 = vmul.f32 %v1570, 1.442695
    %v1586 = vpow.pop %v1585
    %v1587 = vadd.f32 %v1572, 1.0
    %v1588 = vadd.f32 %v1574, 1.0
    %v1589 = vadd.f32 %v1576, 1.0
    %v1590 = vadd.f32 %v1578, 1.0
    %v1591 = vadd.f32 %v1580, 1.0
    %v1592 = vadd.f32 %v1582, 1.0
    %v1593 = vadd.f32 %v1584, 1.0
    %v1594 = vadd.f32 %v1586, 1.0
    %v1595 = vrcp.pop %v1587
    %v1596 = vmul.f32 1.0, %v1595
    %v1597 = vrcp.pop %v1588
    %v1598 = vmul.f32 1.0, %v1597
    %v1599 = vrcp.pop %v1589
    %v1600 = vmul.f32 1.0, %v1599
    %v1601 = vrcp.pop %v1590
    %v1602 = vmul.f32 1.0, %v1601
    %v1603 = vrcp.pop %v1591
    %v1604 = vmul.f32 1.0, %v1603
    %v1605 = vrcp.pop %v1592
    %v1606 = vmul.f32 1.0, %v1605
    %v1607 = vrcp.pop %v1593
    %v1608 = vmul.f32 1.0, %v1607
    %v1609 = vrcp.pop %v1594
    %v1610 = vmul.f32 1.0, %v1609
    %v1611 = vtanh.pop %v1555
    %v1612 = vtanh.pop %v1556
    %v1613 = vtanh.pop %v1557
    %v1614 = vtanh.pop %v1558
    %v1615 = vtanh.pop %v1559
    %v1616 = vtanh.pop %v1560
    %v1617 = vtanh.pop %v1561
    %v1618 = vtanh.pop %v1562
    %v1619 = vmul.f32 %v1596, %v1335
    %v1620 = vmul.f32 %v1598, %v1336
    %v1621 = vmul.f32 %v1600, %v1337
    %v1622 = vmul.f32 %v1602, %v1338
    %v1623 = vmul.f32 %v1604, %v1339
    %v1624 = vmul.f32 %v1606, %v1340
    %v1625 = vmul.f32 %v1608, %v1341
    %v1626 = vmul.f32 %v1610, %v1342
    %1635 = vrot.lane.b32.xlu0 %v1611, 64
    %v1636 = vpop.permute.xlu0 %1635
    %1637 = vrot.lane.b32.xlu0 %v1612, 64
    %v1638 = vpop.permute.xlu0 %1637
    %1639 = vrot.lane.b32.xlu0 %v1613, 64
    %v1640 = vpop.permute.xlu0 %1639
    %1641 = vrot.lane.b32.xlu0 %v1614, 64
    %v1642 = vpop.permute.xlu0 %1641
    %1643 = vrot.lane.b32.xlu0 %v1615, 64
    %v1644 = vpop.permute.xlu0 %1643
    %1645 = vrot.lane.b32.xlu0 %v1616, 64
    %v1646 = vpop.permute.xlu0 %1645
    %1647 = vrot.lane.b32.xlu0 %v1617, 64
    %v1648 = vpop.permute.xlu0 %1647
    %1649 = vrot.lane.b32.xlu0 %v1618, 64
    %v1650 = vpop.permute.xlu0 %1649
    %v1659 = vmul.f32 %v1596, %v1636
    %v1660 = vmul.f32 %v1598, %v1638
    %v1661 = vmul.f32 %v1600, %v1640
    %v1662 = vmul.f32 %v1602, %v1642
    %v1663 = vmul.f32 %v1604, %v1644
    %v1664 = vmul.f32 %v1606, %v1646
    %v1665 = vmul.f32 %v1608, %v1648
    %v1666 = vmul.f32 %v1610, %v1650
    %1675 = vrot.lane.b32.xlu0 %v1659, 32
    %v1676 = vpop.permute.xlu0 %1675
    %1677 = vrot.lane.b32.xlu0 %v1660, 32
    %v1678 = vpop.permute.xlu0 %1677
    %1679 = vrot.lane.b32.xlu0 %v1661, 32
    %v1680 = vpop.permute.xlu0 %1679
    %1681 = vrot.lane.b32.xlu0 %v1662, 32
    %v1682 = vpop.permute.xlu0 %1681
    %1683 = vrot.lane.b32.xlu0 %v1663, 32
    %v1684 = vpop.permute.xlu0 %1683
    %1685 = vrot.lane.b32.xlu0 %v1664, 32
    %v1686 = vpop.permute.xlu0 %1685
    %1687 = vrot.lane.b32.xlu0 %v1665, 32
    %v1688 = vpop.permute.xlu0 %1687
    %1689 = vrot.lane.b32.xlu0 %v1666, 32
    %v1690 = vpop.permute.xlu0 %1689
    %v1699 = vadd.f32 %v1619, %v1676
    %v1700 = vadd.f32 %v1620, %v1678
    %v1701 = vadd.f32 %v1621, %v1680
    %v1702 = vadd.f32 %v1622, %v1682
    %v1703 = vadd.f32 %v1623, %v1684
    %v1704 = vadd.f32 %v1624, %v1686
    %v1705 = vadd.f32 %v1625, %v1688
    %v1706 = vadd.f32 %v1626, %v1690
    %v1707 = vtanh.pop %v1699
    %v1708 = vtanh.pop %v1700
    %v1709 = vtanh.pop %v1701
    %v1710 = vtanh.pop %v1702
    %v1711 = vtanh.pop %v1703
    %v1712 = vtanh.pop %v1704
    %v1713 = vtanh.pop %v1705
    %v1714 = vtanh.pop %v1706
    %1723 = vrot.lane.b32.xlu0 %v1707, 64
    %v1724 = vpop.permute.xlu0 %1723
    %1725 = vrot.lane.b32.xlu0 %v1708, 64
    %v1726 = vpop.permute.xlu0 %1725
    %1727 = vrot.lane.b32.xlu0 %v1709, 64
    %v1728 = vpop.permute.xlu0 %1727
    %1729 = vrot.lane.b32.xlu0 %v1710, 64
    %v1730 = vpop.permute.xlu0 %1729
    %1731 = vrot.lane.b32.xlu0 %v1711, 64
    %v1732 = vpop.permute.xlu0 %1731
    %1733 = vrot.lane.b32.xlu0 %v1712, 64
    %v1734 = vpop.permute.xlu0 %1733
    %1735 = vrot.lane.b32.xlu0 %v1713, 64
    %v1736 = vpop.permute.xlu0 %1735
    %1737 = vrot.lane.b32.xlu0 %v1714, 64
    %v1738 = vpop.permute.xlu0 %1737
    %v1747 = vmul.f32 %v1596, %v1724
    %v1748 = vmul.f32 %v1598, %v1726
    %v1749 = vmul.f32 %v1600, %v1728
    %v1750 = vmul.f32 %v1602, %v1730
    %v1751 = vmul.f32 %v1604, %v1732
    %v1752 = vmul.f32 %v1606, %v1734
    %v1753 = vmul.f32 %v1608, %v1736
    %v1754 = vmul.f32 %v1610, %v1738
    %v1755 = vld [vmem:[#allocation11 + $0x3] sm:$0x1]
    %v1756 = vld [vmem:[#allocation11 + $0xb] sm:$0x1]
    %v1757 = vld [vmem:[#allocation11 + $0x13] sm:$0x1]
    %v1758 = vld [vmem:[#allocation11 + $0x1b] sm:$0x1]
    %v1759 = vld [vmem:[#allocation11 + $0x23] sm:$0x1]
    %v1760 = vld [vmem:[#allocation11 + $0x2b] sm:$0x1]
    %v1761 = vld [vmem:[#allocation11 + $0x33] sm:$0x1]
    %v1762 = vld [vmem:[#allocation11 + $0x3b] sm:$0x1]
    %1771 = vrot.lane.b32.xlu0 %v1747, 32
    %v1772 = vpop.permute.xlu0 %1771
    %1773 = vrot.lane.b32.xlu0 %v1748, 32
    %v1774 = vpop.permute.xlu0 %1773
    %1775 = vrot.lane.b32.xlu0 %v1749, 32
    %v1776 = vpop.permute.xlu0 %1775
    %1777 = vrot.lane.b32.xlu0 %v1750, 32
    %v1778 = vpop.permute.xlu0 %1777
    %1779 = vrot.lane.b32.xlu0 %v1751, 32
    %v1780 = vpop.permute.xlu0 %1779
    %1781 = vrot.lane.b32.xlu0 %v1752, 32
    %v1782 = vpop.permute.xlu0 %1781
    %1783 = vrot.lane.b32.xlu0 %v1753, 32
    %v1784 = vpop.permute.xlu0 %1783
    %1785 = vrot.lane.b32.xlu0 %v1754, 32
    %v1786 = vpop.permute.xlu0 %1785
    %v1795 = vadd.f32 %v1755, %v1772
    %v1796 = vadd.f32 %v1756, %v1774
    %v1797 = vadd.f32 %v1757, %v1776
    %v1798 = vadd.f32 %v1758, %v1778
    %v1799 = vadd.f32 %v1759, %v1780
    %v1800 = vadd.f32 %v1760, %v1782
    %v1801 = vadd.f32 %v1761, %v1784
    %v1802 = vadd.f32 %v1762, %v1786
    %1803 = vst.msk [vmem:[#allocation11 + $0x3] sm:$0x1] %vm703, %v1795
    %1804 = vst.msk [vmem:[#allocation11 + $0xb] sm:$0x1] %vm703, %v1796
    %1805 = vst.msk [vmem:[#allocation11 + $0x13] sm:$0x1] %vm703, %v1797
    %1806 = vst.msk [vmem:[#allocation11 + $0x1b] sm:$0x1] %vm703, %v1798
    %1807 = vst.msk [vmem:[#allocation11 + $0x23] sm:$0x1] %vm703, %v1799
    %1808 = vst.msk [vmem:[#allocation11 + $0x2b] sm:$0x1] %vm703, %v1800
    %1809 = vst.msk [vmem:[#allocation11 + $0x33] sm:$0x1] %vm703, %v1801
    %1810 = vst.msk [vmem:[#allocation11 + $0x3b] sm:$0x1] %vm703, %v1802
    %v1811 = vld [vmem:[#allocation4 + $0x4] sm:$0x1]
    %v1812 = vld [vmem:[#allocation4 + $0xc] sm:$0x1]
    %v1813 = vld [vmem:[#allocation4 + $0x14] sm:$0x1]
    %v1814 = vld [vmem:[#allocation4 + $0x1c] sm:$0x1]
    %v1815 = vld [vmem:[#allocation4 + $0x24] sm:$0x1]
    %v1816 = vld [vmem:[#allocation4 + $0x2c] sm:$0x1]
    %v1817 = vld [vmem:[#allocation4 + $0x34] sm:$0x1]
    %v1818 = vld [vmem:[#allocation4 + $0x3c] sm:$0x1]
    %v1819 = vpack.c.bf16 %v1747, %v1747
    %v1820 = vpack.c.bf16 %v1748, %v1748
    %v1821 = vpack.c.bf16 %v1749, %v1749
    %v1822 = vpack.c.bf16 %v1750, %v1750
    %v1823 = vpack.c.bf16 %v1751, %v1751
    %v1824 = vpack.c.bf16 %v1752, %v1752
    %v1825 = vpack.c.bf16 %v1753, %v1753
    %v1826 = vpack.c.bf16 %v1754, %v1754
    %v1835 = vunpack.c.l.b16 %v1819
    %v1836 = vunpack.c.l.b16 %v1820
    %v1837 = vunpack.c.l.b16 %v1821
    %v1838 = vunpack.c.l.b16 %v1822
    %v1839 = vunpack.c.l.b16 %v1823
    %v1840 = vunpack.c.l.b16 %v1824
    %v1841 = vunpack.c.l.b16 %v1825
    %v1842 = vunpack.c.l.b16 %v1826
    %v1843 = vrot.slane %v1836, 7
    %v1844 = vsel %vm745, %v1843, %v1835
    %v1845 = vrot.slane %v1837, 6
    %v1846 = vsel %vm748, %v1845, %v1844
    %v1847 = vrot.slane %v1838, 5
    %v1848 = vsel %vm751, %v1847, %v1846
    %v1849 = vrot.slane %v1839, 4
    %v1850 = vsel %vm754, %v1849, %v1848
    %v1851 = vrot.slane %v1840, 3
    %v1852 = vsel %vm757, %v1851, %v1850
    %v1853 = vrot.slane %v1841, 2
    %v1854 = vsel %vm760, %v1853, %v1852
    %v1855 = vrot.slane %v1842, 1
    %v1856 = vsel %vm763, %v1855, %v1854
    %v1857 = vpack.c.b16 %v1856, %v1856
    %1858 = vrot.lane.b32.xlu0 %v1857, 32
    %v1859 = vpop.permute.xlu0 %1858
    %v1861 = vsel %vm81, %v1859, 0
    %1863 = vmatprep.subr.bf16.mxu0 0
    %1864 = vmatpush1.bf16.msra.mxu0 %v360
    %1865 = vmatprep.subr.bf16.mxu0 0
    %1866 = vmatpush1.bf16.msra.mxu0 %v361
    %1867 = vmatprep.subr.bf16.mxu0 0
    %1868 = vmatpush1.bf16.msra.mxu0 0
    %1869 = vmatprep.subr.bf16.mxu0 0
    %1870 = vmatpush1.bf16.msra.mxu0 0
    %1871 = vmatprep.subr.bf16.mxu0 0
    %1872 = vmatpush1.bf16.msra.mxu0 0
    %1873 = vmatprep.subr.bf16.mxu0 0
    %1874 = vmatpush1.bf16.msra.mxu0 0
    %1875 = vmatprep.subr.bf16.mxu0 0
    %1876 = vmatpush1.bf16.msra.mxu0 0
    %1877 = vmatprep.subr.bf16.mxu0 0
    %1878 = vmatpush1.bf16.msra.mxu0 0
    %1879 = vmatprep.subr.bf16.mxu0 0
    %1880 = vmatpush1.bf16.msra.mxu0 0
    %1881 = vmatprep.subr.bf16.mxu0 0
    %1882 = vmatpush1.bf16.msra.mxu0 0
    %1883 = vmatprep.subr.bf16.mxu0 0
    %1884 = vmatpush1.bf16.msra.mxu0 0
    %1885 = vmatprep.subr.bf16.mxu0 0
    %1886 = vmatpush1.bf16.msra.mxu0 0
    %1887 = vmatprep.subr.bf16.mxu0 0
    %1888 = vmatpush1.bf16.msra.mxu0 0
    %1889 = vmatprep.subr.bf16.mxu0 0
    %1890 = vmatpush1.bf16.msra.mxu0 0
    %1891 = vmatprep.subr.bf16.mxu0 0
    %1892 = vmatpush1.bf16.msra.mxu0 0
    %1893 = vmatprep.subr.bf16.mxu0 0
    %1894 = vmatpush1.bf16.msra.mxu0 0
    %1895 = vmatprep.mubr.bf16.mxu0 0
    %1896 = vmatmul.mubr.bf16.gmra.mrb[0].mxu0 %v1861
    %v1897 = vpop.f32.mrb[0].mxu0
    %v1898 = vadd.f32 0.0, %v1897
    %v1899 = vpop.f32.mrb[0].mxu0
    %v1900 = vpop.f32.mrb[0].mxu0
    %v1901 = vpop.f32.mrb[0].mxu0
    %1902 = vdwg.mxu0
    %v1904 = vrot.slane %v1898, 1
    %v1905 = vrot.slane %v1898, 2
    %v1906 = vrot.slane %v1898, 3
    %v1907 = vrot.slane %v1898, 4
    %v1908 = vrot.slane %v1898, 5
    %v1909 = vrot.slane %v1898, 6
    %v1910 = vrot.slane %v1898, 7
    %v1919 = vadd.f32 %v1811, %v1898
    %v1920 = vadd.f32 %v1812, %v1904
    %v1921 = vadd.f32 %v1813, %v1905
    %v1922 = vadd.f32 %v1814, %v1906
    %v1923 = vadd.f32 %v1815, %v1907
    %v1924 = vadd.f32 %v1816, %v1908
    %v1925 = vadd.f32 %v1817, %v1909
    %v1926 = vadd.f32 %v1818, %v1910
    %v1927 = vxor.u32 %v1919, 2147483648
    %v1928 = vxor.u32 %v1920, 2147483648
    %v1929 = vxor.u32 %v1921, 2147483648
    %v1930 = vxor.u32 %v1922, 2147483648
    %v1931 = vxor.u32 %v1923, 2147483648
    %v1932 = vxor.u32 %v1924, 2147483648
    %v1933 = vxor.u32 %v1925, 2147483648
    %v1934 = vxor.u32 %v1926, 2147483648
    %v1935 = vmul.f32 %v1927, 1.442695
    %v1936 = vpow.pop %v1935
    %v1937 = vmul.f32 %v1928, 1.442695
    %v1938 = vpow.pop %v1937
    %v1939 = vmul.f32 %v1929, 1.442695
    %v1940 = vpow.pop %v1939
    %v1941 = vmul.f32 %v1930, 1.442695
    %v1942 = vpow.pop %v1941
    %v1943 = vmul.f32 %v1931, 1.442695
    %v1944 = vpow.pop %v1943
    %v1945 = vmul.f32 %v1932, 1.442695
    %v1946 = vpow.pop %v1945
    %v1947 = vmul.f32 %v1933, 1.442695
    %v1948 = vpow.pop %v1947
    %v1949 = vmul.f32 %v1934, 1.442695
    %v1950 = vpow.pop %v1949
    %v1951 = vadd.f32 %v1936, 1.0
    %v1952 = vadd.f32 %v1938, 1.0
    %v1953 = vadd.f32 %v1940, 1.0
    %v1954 = vadd.f32 %v1942, 1.0
    %v1955 = vadd.f32 %v1944, 1.0
    %v1956 = vadd.f32 %v1946, 1.0
    %v1957 = vadd.f32 %v1948, 1.0
    %v1958 = vadd.f32 %v1950, 1.0
    %v1959 = vrcp.pop %v1951
    %v1960 = vmul.f32 1.0, %v1959
    %v1961 = vrcp.pop %v1952
    %v1962 = vmul.f32 1.0, %v1961
    %v1963 = vrcp.pop %v1953
    %v1964 = vmul.f32 1.0, %v1963
    %v1965 = vrcp.pop %v1954
    %v1966 = vmul.f32 1.0, %v1965
    %v1967 = vrcp.pop %v1955
    %v1968 = vmul.f32 1.0, %v1967
    %v1969 = vrcp.pop %v1956
    %v1970 = vmul.f32 1.0, %v1969
    %v1971 = vrcp.pop %v1957
    %v1972 = vmul.f32 1.0, %v1971
    %v1973 = vrcp.pop %v1958
    %v1974 = vmul.f32 1.0, %v1973
    %v1975 = vtanh.pop %v1919
    %v1976 = vtanh.pop %v1920
    %v1977 = vtanh.pop %v1921
    %v1978 = vtanh.pop %v1922
    %v1979 = vtanh.pop %v1923
    %v1980 = vtanh.pop %v1924
    %v1981 = vtanh.pop %v1925
    %v1982 = vtanh.pop %v1926
    %v1983 = vmul.f32 %v1960, %v1699
    %v1984 = vmul.f32 %v1962, %v1700
    %v1985 = vmul.f32 %v1964, %v1701
    %v1986 = vmul.f32 %v1966, %v1702
    %v1987 = vmul.f32 %v1968, %v1703
    %v1988 = vmul.f32 %v1970, %v1704
    %v1989 = vmul.f32 %v1972, %v1705
    %v1990 = vmul.f32 %v1974, %v1706
    %1999 = vrot.lane.b32.xlu0 %v1975, 64
    %v2000 = vpop.permute.xlu0 %1999
    %2001 = vrot.lane.b32.xlu0 %v1976, 64
    %v2002 = vpop.permute.xlu0 %2001
    %2003 = vrot.lane.b32.xlu0 %v1977, 64
    %v2004 = vpop.permute.xlu0 %2003
    %2005 = vrot.lane.b32.xlu0 %v1978, 64
    %v2006 = vpop.permute.xlu0 %2005
    %2007 = vrot.lane.b32.xlu0 %v1979, 64
    %v2008 = vpop.permute.xlu0 %2007
    %2009 = vrot.lane.b32.xlu0 %v1980, 64
    %v2010 = vpop.permute.xlu0 %2009
    %2011 = vrot.lane.b32.xlu0 %v1981, 64
    %v2012 = vpop.permute.xlu0 %2011
    %2013 = vrot.lane.b32.xlu0 %v1982, 64
    %v2014 = vpop.permute.xlu0 %2013
    %v2023 = vmul.f32 %v1960, %v2000
    %v2024 = vmul.f32 %v1962, %v2002
    %v2025 = vmul.f32 %v1964, %v2004
    %v2026 = vmul.f32 %v1966, %v2006
    %v2027 = vmul.f32 %v1968, %v2008
    %v2028 = vmul.f32 %v1970, %v2010
    %v2029 = vmul.f32 %v1972, %v2012
    %v2030 = vmul.f32 %v1974, %v2014
    %2039 = vrot.lane.b32.xlu0 %v2023, 32
    %v2040 = vpop.permute.xlu0 %2039
    %2041 = vrot.lane.b32.xlu0 %v2024, 32
    %v2042 = vpop.permute.xlu0 %2041
    %2043 = vrot.lane.b32.xlu0 %v2025, 32
    %v2044 = vpop.permute.xlu0 %2043
    %2045 = vrot.lane.b32.xlu0 %v2026, 32
    %v2046 = vpop.permute.xlu0 %2045
    %2047 = vrot.lane.b32.xlu0 %v2027, 32
    %v2048 = vpop.permute.xlu0 %2047
    %2049 = vrot.lane.b32.xlu0 %v2028, 32
    %v2050 = vpop.permute.xlu0 %2049
    %2051 = vrot.lane.b32.xlu0 %v2029, 32
    %v2052 = vpop.permute.xlu0 %2051
    %2053 = vrot.lane.b32.xlu0 %v2030, 32
    %v2054 = vpop.permute.xlu0 %2053
    %v2063 = vadd.f32 %v1983, %v2040
    %v2064 = vadd.f32 %v1984, %v2042
    %v2065 = vadd.f32 %v1985, %v2044
    %v2066 = vadd.f32 %v1986, %v2046
    %v2067 = vadd.f32 %v1987, %v2048
    %v2068 = vadd.f32 %v1988, %v2050
    %v2069 = vadd.f32 %v1989, %v2052
    %v2070 = vadd.f32 %v1990, %v2054
    %v2071 = vtanh.pop %v2063
    %v2072 = vtanh.pop %v2064
    %v2073 = vtanh.pop %v2065
    %v2074 = vtanh.pop %v2066
    %v2075 = vtanh.pop %v2067
    %v2076 = vtanh.pop %v2068
    %v2077 = vtanh.pop %v2069
    %v2078 = vtanh.pop %v2070
    %2087 = vrot.lane.b32.xlu0 %v2071, 64
    %v2088 = vpop.permute.xlu0 %2087
    %2089 = vrot.lane.b32.xlu0 %v2072, 64
    %v2090 = vpop.permute.xlu0 %2089
    %2091 = vrot.lane.b32.xlu0 %v2073, 64
    %v2092 = vpop.permute.xlu0 %2091
    %2093 = vrot.lane.b32.xlu0 %v2074, 64
    %v2094 = vpop.permute.xlu0 %2093
    %2095 = vrot.lane.b32.xlu0 %v2075, 64
    %v2096 = vpop.permute.xlu0 %2095
    %2097 = vrot.lane.b32.xlu0 %v2076, 64
    %v2098 = vpop.permute.xlu0 %2097
    %2099 = vrot.lane.b32.xlu0 %v2077, 64
    %v2100 = vpop.permute.xlu0 %2099
    %2101 = vrot.lane.b32.xlu0 %v2078, 64
    %v2102 = vpop.permute.xlu0 %2101
    %v2111 = vmul.f32 %v1960, %v2088
    %v2112 = vmul.f32 %v1962, %v2090
    %v2113 = vmul.f32 %v1964, %v2092
    %v2114 = vmul.f32 %v1966, %v2094
    %v2115 = vmul.f32 %v1968, %v2096
    %v2116 = vmul.f32 %v1970, %v2098
    %v2117 = vmul.f32 %v1972, %v2100
    %v2118 = vmul.f32 %v1974, %v2102
    %v2119 = vld [vmem:[#allocation11 + $0x4] sm:$0x1]
    %v2120 = vld [vmem:[#allocation11 + $0xc] sm:$0x1]
    %v2121 = vld [vmem:[#allocation11 + $0x14] sm:$0x1]
    %v2122 = vld [vmem:[#allocation11 + $0x1c] sm:$0x1]
    %v2123 = vld [vmem:[#allocation11 + $0x24] sm:$0x1]
    %v2124 = vld [vmem:[#allocation11 + $0x2c] sm:$0x1]
    %v2125 = vld [vmem:[#allocation11 + $0x34] sm:$0x1]
    %v2126 = vld [vmem:[#allocation11 + $0x3c] sm:$0x1]
    %2135 = vrot.lane.b32.xlu0 %v2111, 32
    %v2136 = vpop.permute.xlu0 %2135
    %2137 = vrot.lane.b32.xlu0 %v2112, 32
    %v2138 = vpop.permute.xlu0 %2137
    %2139 = vrot.lane.b32.xlu0 %v2113, 32
    %v2140 = vpop.permute.xlu0 %2139
    %2141 = vrot.lane.b32.xlu0 %v2114, 32
    %v2142 = vpop.permute.xlu0 %2141
    %2143 = vrot.lane.b32.xlu0 %v2115, 32
    %v2144 = vpop.permute.xlu0 %2143
    %2145 = vrot.lane.b32.xlu0 %v2116, 32
    %v2146 = vpop.permute.xlu0 %2145
    %2147 = vrot.lane.b32.xlu0 %v2117, 32
    %v2148 = vpop.permute.xlu0 %2147
    %2149 = vrot.lane.b32.xlu0 %v2118, 32
    %v2150 = vpop.permute.xlu0 %2149
    %v2159 = vadd.f32 %v2119, %v2136
    %v2160 = vadd.f32 %v2120, %v2138
    %v2161 = vadd.f32 %v2121, %v2140
    %v2162 = vadd.f32 %v2122, %v2142
    %v2163 = vadd.f32 %v2123, %v2144
    %v2164 = vadd.f32 %v2124, %v2146
    %v2165 = vadd.f32 %v2125, %v2148
    %v2166 = vadd.f32 %v2126, %v2150
    %2167 = vst.msk [vmem:[#allocation11 + $0x4] sm:$0x1] %vm703, %v2159
    %2168 = vst.msk [vmem:[#allocation11 + $0xc] sm:$0x1] %vm703, %v2160
    %2169 = vst.msk [vmem:[#allocation11 + $0x14] sm:$0x1] %vm703, %v2161
    %2170 = vst.msk [vmem:[#allocation11 + $0x1c] sm:$0x1] %vm703, %v2162
    %2171 = vst.msk [vmem:[#allocation11 + $0x24] sm:$0x1] %vm703, %v2163
    %2172 = vst.msk [vmem:[#allocation11 + $0x2c] sm:$0x1] %vm703, %v2164
    %2173 = vst.msk [vmem:[#allocation11 + $0x34] sm:$0x1] %vm703, %v2165
    %2174 = vst.msk [vmem:[#allocation11 + $0x3c] sm:$0x1] %vm703, %v2166
    %v2175 = vld [vmem:[#allocation4 + $0x5] sm:$0x1]
    %v2176 = vld [vmem:[#allocation4 + $0xd] sm:$0x1]
    %v2177 = vld [vmem:[#allocation4 + $0x15] sm:$0x1]
    %v2178 = vld [vmem:[#allocation4 + $0x1d] sm:$0x1]
    %v2179 = vld [vmem:[#allocation4 + $0x25] sm:$0x1]
    %v2180 = vld [vmem:[#allocation4 + $0x2d] sm:$0x1]
    %v2181 = vld [vmem:[#allocation4 + $0x35] sm:$0x1]
    %v2182 = vld [vmem:[#allocation4 + $0x3d] sm:$0x1]
    %v2183 = vpack.c.bf16 %v2111, %v2111
    %v2184 = vpack.c.bf16 %v2112, %v2112
    %v2185 = vpack.c.bf16 %v2113, %v2113
    %v2186 = vpack.c.bf16 %v2114, %v2114
    %v2187 = vpack.c.bf16 %v2115, %v2115
    %v2188 = vpack.c.bf16 %v2116, %v2116
    %v2189 = vpack.c.bf16 %v2117, %v2117
    %v2190 = vpack.c.bf16 %v2118, %v2118
    %v2199 = vunpack.c.l.b16 %v2183
    %v2200 = vunpack.c.l.b16 %v2184
    %v2201 = vunpack.c.l.b16 %v2185
    %v2202 = vunpack.c.l.b16 %v2186
    %v2203 = vunpack.c.l.b16 %v2187
    %v2204 = vunpack.c.l.b16 %v2188
    %v2205 = vunpack.c.l.b16 %v2189
    %v2206 = vunpack.c.l.b16 %v2190
    %v2207 = vrot.slane %v2200, 7
    %v2208 = vsel %vm745, %v2207, %v2199
    %v2209 = vrot.slane %v2201, 6
    %v2210 = vsel %vm748, %v2209, %v2208
    %v2211 = vrot.slane %v2202, 5
    %v2212 = vsel %vm751, %v2211, %v2210
    %v2213 = vrot.slane %v2203, 4
    %v2214 = vsel %vm754, %v2213, %v2212
    %v2215 = vrot.slane %v2204, 3
    %v2216 = vsel %vm757, %v2215, %v2214
    %v2217 = vrot.slane %v2205, 2
    %v2218 = vsel %vm760, %v2217, %v2216
    %v2219 = vrot.slane %v2206, 1
    %v2220 = vsel %vm763, %v2219, %v2218
    %v2221 = vpack.c.b16 %v2220, %v2220
    %2222 = vrot.lane.b32.xlu0 %v2221, 32
    %v2223 = vpop.permute.xlu0 %2222
    %v2225 = vsel %vm81, %v2223, 0
    %2227 = vmatprep.subr.bf16.mxu0 0
    %2228 = vmatpush1.bf16.msra.mxu0 %v360
    %2229 = vmatprep.subr.bf16.mxu0 0
    %2230 = vmatpush1.bf16.msra.mxu0 %v361
    %2231 = vmatprep.subr.bf16.mxu0 0
    %2232 = vmatpush1.bf16.msra.mxu0 0
    %2233 = vmatprep.subr.bf16.mxu0 0
    %2234 = vmatpush1.bf16.msra.mxu0 0
    %2235 = vmatprep.subr.bf16.mxu0 0
    %2236 = vmatpush1.bf16.msra.mxu0 0
    %2237 = vmatprep.subr.bf16.mxu0 0
    %2238 = vmatpush1.bf16.msra.mxu0 0
    %2239 = vmatprep.subr.bf16.mxu0 0
    %2240 = vmatpush1.bf16.msra.mxu0 0
    %2241 = vmatprep.subr.bf16.mxu0 0
    %2242 = vmatpush1.bf16.msra.mxu0 0
    %2243 = vmatprep.subr.bf16.mxu0 0
    %2244 = vmatpush1.bf16.msra.mxu0 0
    %2245 = vmatprep.subr.bf16.mxu0 0
    %2246 = vmatpush1.bf16.msra.mxu0 0
    %2247 = vmatprep.subr.bf16.mxu0 0
    %2248 = vmatpush1.bf16.msra.mxu0 0
    %2249 = vmatprep.subr.bf16.mxu0 0
    %2250 = vmatpush1.bf16.msra.mxu0 0
    %2251 = vmatprep.subr.bf16.mxu0 0
    %2252 = vmatpush1.bf16.msra.mxu0 0
    %2253 = vmatprep.subr.bf16.mxu0 0
    %2254 = vmatpush1.bf16.msra.mxu0 0
    %2255 = vmatprep.subr.bf16.mxu0 0
    %2256 = vmatpush1.bf16.msra.mxu0 0
    %2257 = vmatprep.subr.bf16.mxu0 0
    %2258 = vmatpush1.bf16.msra.mxu0 0
    %2259 = vmatprep.mubr.bf16.mxu0 0
    %2260 = vmatmul.mubr.bf16.gmra.mrb[0].mxu0 %v2225
    %v2261 = vpop.f32.mrb[0].mxu0
    %v2262 = vadd.f32 0.0, %v2261
    %v2263 = vpop.f32.mrb[0].mxu0
    %v2264 = vpop.f32.mrb[0].mxu0
    %v2265 = vpop.f32.mrb[0].mxu0
    %2266 = vdwg.mxu0
    %v2268 = vrot.slane %v2262, 1
    %v2269 = vrot.slane %v2262, 2
    %v2270 = vrot.slane %v2262, 3
    %v2271 = vrot.slane %v2262, 4
    %v2272 = vrot.slane %v2262, 5
    %v2273 = vrot.slane %v2262, 6
    %v2274 = vrot.slane %v2262, 7
    %v2283 = vadd.f32 %v2175, %v2262
    %v2284 = vadd.f32 %v2176, %v2268
    %v2285 = vadd.f32 %v2177, %v2269
    %v2286 = vadd.f32 %v2178, %v2270
    %v2287 = vadd.f32 %v2179, %v2271
    %v2288 = vadd.f32 %v2180, %v2272
    %v2289 = vadd.f32 %v2181, %v2273
    %v2290 = vadd.f32 %v2182, %v2274
    %v2291 = vxor.u32 %v2283, 2147483648
    %v2292 = vxor.u32 %v2284, 2147483648
    %v2293 = vxor.u32 %v2285, 2147483648
    %v2294 = vxor.u32 %v2286, 2147483648
    %v2295 = vxor.u32 %v2287, 2147483648
    %v2296 = vxor.u32 %v2288, 2147483648
    %v2297 = vxor.u32 %v2289, 2147483648
    %v2298 = vxor.u32 %v2290, 2147483648
    %v2299 = vmul.f32 %v2291, 1.442695
    %v2300 = vpow.pop %v2299
    %v2301 = vmul.f32 %v2292, 1.442695
    %v2302 = vpow.pop %v2301
    %v2303 = vmul.f32 %v2293, 1.442695
    %v2304 = vpow.pop %v2303
    %v2305 = vmul.f32 %v2294, 1.442695
    %v2306 = vpow.pop %v2305
    %v2307 = vmul.f32 %v2295, 1.442695
    %v2308 = vpow.pop %v2307
    %v2309 = vmul.f32 %v2296, 1.442695
    %v2310 = vpow.pop %v2309
    %v2311 = vmul.f32 %v2297, 1.442695
    %v2312 = vpow.pop %v2311
    %v2313 = vmul.f32 %v2298, 1.442695
    %v2314 = vpow.pop %v2313
    %v2315 = vadd.f32 %v2300, 1.0
    %v2316 = vadd.f32 %v2302, 1.0
    %v2317 = vadd.f32 %v2304, 1.0
    %v2318 = vadd.f32 %v2306, 1.0
    %v2319 = vadd.f32 %v2308, 1.0
    %v2320 = vadd.f32 %v2310, 1.0
    %v2321 = vadd.f32 %v2312, 1.0
    %v2322 = vadd.f32 %v2314, 1.0
    %v2323 = vrcp.pop %v2315
    %v2324 = vmul.f32 1.0, %v2323
    %v2325 = vrcp.pop %v2316
    %v2326 = vmul.f32 1.0, %v2325
    %v2327 = vrcp.pop %v2317
    %v2328 = vmul.f32 1.0, %v2327
    %v2329 = vrcp.pop %v2318
    %v2330 = vmul.f32 1.0, %v2329
    %v2331 = vrcp.pop %v2319
    %v2332 = vmul.f32 1.0, %v2331
    %v2333 = vrcp.pop %v2320
    %v2334 = vmul.f32 1.0, %v2333
    %v2335 = vrcp.pop %v2321
    %v2336 = vmul.f32 1.0, %v2335
    %v2337 = vrcp.pop %v2322
    %v2338 = vmul.f32 1.0, %v2337
    %v2339 = vtanh.pop %v2283
    %v2340 = vtanh.pop %v2284
    %v2341 = vtanh.pop %v2285
    %v2342 = vtanh.pop %v2286
    %v2343 = vtanh.pop %v2287
    %v2344 = vtanh.pop %v2288
    %v2345 = vtanh.pop %v2289
    %v2346 = vtanh.pop %v2290
    %v2347 = vmul.f32 %v2324, %v2063
    %v2348 = vmul.f32 %v2326, %v2064
    %v2349 = vmul.f32 %v2328, %v2065
    %v2350 = vmul.f32 %v2330, %v2066
    %v2351 = vmul.f32 %v2332, %v2067
    %v2352 = vmul.f32 %v2334, %v2068
    %v2353 = vmul.f32 %v2336, %v2069
    %v2354 = vmul.f32 %v2338, %v2070
    %2363 = vrot.lane.b32.xlu0 %v2339, 64
    %v2364 = vpop.permute.xlu0 %2363
    %2365 = vrot.lane.b32.xlu0 %v2340, 64
    %v2366 = vpop.permute.xlu0 %2365
    %2367 = vrot.lane.b32.xlu0 %v2341, 64
    %v2368 = vpop.permute.xlu0 %2367
    %2369 = vrot.lane.b32.xlu0 %v2342, 64
    %v2370 = vpop.permute.xlu0 %2369
    %2371 = vrot.lane.b32.xlu0 %v2343, 64
    %v2372 = vpop.permute.xlu0 %2371
    %2373 = vrot.lane.b32.xlu0 %v2344, 64
    %v2374 = vpop.permute.xlu0 %2373
    %2375 = vrot.lane.b32.xlu0 %v2345, 64
    %v2376 = vpop.permute.xlu0 %2375
    %2377 = vrot.lane.b32.xlu0 %v2346, 64
    %v2378 = vpop.permute.xlu0 %2377
    %v2387 = vmul.f32 %v2324, %v2364
    %v2388 = vmul.f32 %v2326, %v2366
    %v2389 = vmul.f32 %v2328, %v2368
    %v2390 = vmul.f32 %v2330, %v2370
    %v2391 = vmul.f32 %v2332, %v2372
    %v2392 = vmul.f32 %v2334, %v2374
    %v2393 = vmul.f32 %v2336, %v2376
    %v2394 = vmul.f32 %v2338, %v2378
    %2403 = vrot.lane.b32.xlu0 %v2387, 32
    %v2404 = vpop.permute.xlu0 %2403
    %2405 = vrot.lane.b32.xlu0 %v2388, 32
    %v2406 = vpop.permute.xlu0 %2405
    %2407 = vrot.lane.b32.xlu0 %v2389, 32
    %v2408 = vpop.permute.xlu0 %2407
    %2409 = vrot.lane.b32.xlu0 %v2390, 32
    %v2410 = vpop.permute.xlu0 %2409
    %2411 = vrot.lane.b32.xlu0 %v2391, 32
    %v2412 = vpop.permute.xlu0 %2411
    %2413 = vrot.lane.b32.xlu0 %v2392, 32
    %v2414 = vpop.permute.xlu0 %2413
    %2415 = vrot.lane.b32.xlu0 %v2393, 32
    %v2416 = vpop.permute.xlu0 %2415
    %2417 = vrot.lane.b32.xlu0 %v2394, 32
    %v2418 = vpop.permute.xlu0 %2417
    %v2427 = vadd.f32 %v2347, %v2404
    %v2428 = vadd.f32 %v2348, %v2406
    %v2429 = vadd.f32 %v2349, %v2408
    %v2430 = vadd.f32 %v2350, %v2410
    %v2431 = vadd.f32 %v2351, %v2412
    %v2432 = vadd.f32 %v2352, %v2414
    %v2433 = vadd.f32 %v2353, %v2416
    %v2434 = vadd.f32 %v2354, %v2418
    %v2435 = vtanh.pop %v2427
    %v2436 = vtanh.pop %v2428
    %v2437 = vtanh.pop %v2429
    %v2438 = vtanh.pop %v2430
    %v2439 = vtanh.pop %v2431
    %v2440 = vtanh.pop %v2432
    %v2441 = vtanh.pop %v2433
    %v2442 = vtanh.pop %v2434
    %2451 = vrot.lane.b32.xlu0 %v2435, 64
    %v2452 = vpop.permute.xlu0 %2451
    %2453 = vrot.lane.b32.xlu0 %v2436, 64
    %v2454 = vpop.permute.xlu0 %2453
    %2455 = vrot.lane.b32.xlu0 %v2437, 64
    %v2456 = vpop.permute.xlu0 %2455
    %2457 = vrot.lane.b32.xlu0 %v2438, 64
    %v2458 = vpop.permute.xlu0 %2457
    %2459 = vrot.lane.b32.xlu0 %v2439, 64
    %v2460 = vpop.permute.xlu0 %2459
    %2461 = vrot.lane.b32.xlu0 %v2440, 64
    %v2462 = vpop.permute.xlu0 %2461
    %2463 = vrot.lane.b32.xlu0 %v2441, 64
    %v2464 = vpop.permute.xlu0 %2463
    %2465 = vrot.lane.b32.xlu0 %v2442, 64
    %v2466 = vpop.permute.xlu0 %2465
    %v2475 = vmul.f32 %v2324, %v2452
    %v2476 = vmul.f32 %v2326, %v2454
    %v2477 = vmul.f32 %v2328, %v2456
    %v2478 = vmul.f32 %v2330, %v2458
    %v2479 = vmul.f32 %v2332, %v2460
    %v2480 = vmul.f32 %v2334, %v2462
    %v2481 = vmul.f32 %v2336, %v2464
    %v2482 = vmul.f32 %v2338, %v2466
    %v2483 = vld [vmem:[#allocation11 + $0x5] sm:$0x1]
    %v2484 = vld [vmem:[#allocation11 + $0xd] sm:$0x1]
    %v2485 = vld [vmem:[#allocation11 + $0x15] sm:$0x1]
    %v2486 = vld [vmem:[#allocation11 + $0x1d] sm:$0x1]
    %v2487 = vld [vmem:[#allocation11 + $0x25] sm:$0x1]
    %v2488 = vld [vmem:[#allocation11 + $0x2d] sm:$0x1]
    %v2489 = vld [vmem:[#allocation11 + $0x35] sm:$0x1]
    %v2490 = vld [vmem:[#allocation11 + $0x3d] sm:$0x1]
    %2499 = vrot.lane.b32.xlu0 %v2475, 32
    %v2500 = vpop.permute.xlu0 %2499
    %2501 = vrot.lane.b32.xlu0 %v2476, 32
    %v2502 = vpop.permute.xlu0 %2501
    %2503 = vrot.lane.b32.xlu0 %v2477, 32
    %v2504 = vpop.permute.xlu0 %2503
    %2505 = vrot.lane.b32.xlu0 %v2478, 32
    %v2506 = vpop.permute.xlu0 %2505
    %2507 = vrot.lane.b32.xlu0 %v2479, 32
    %v2508 = vpop.permute.xlu0 %2507
    %2509 = vrot.lane.b32.xlu0 %v2480, 32
    %v2510 = vpop.permute.xlu0 %2509
    %2511 = vrot.lane.b32.xlu0 %v2481, 32
    %v2512 = vpop.permute.xlu0 %2511
    %2513 = vrot.lane.b32.xlu0 %v2482, 32
    %v2514 = vpop.permute.xlu0 %2513
    %v2523 = vadd.f32 %v2483, %v2500
    %v2524 = vadd.f32 %v2484, %v2502
    %v2525 = vadd.f32 %v2485, %v2504
    %v2526 = vadd.f32 %v2486, %v2506
    %v2527 = vadd.f32 %v2487, %v2508
    %v2528 = vadd.f32 %v2488, %v2510
    %v2529 = vadd.f32 %v2489, %v2512
    %v2530 = vadd.f32 %v2490, %v2514
    %2531 = vst.msk [vmem:[#allocation11 + $0x5] sm:$0x1] %vm703, %v2523
    %2532 = vst.msk [vmem:[#allocation11 + $0xd] sm:$0x1] %vm703, %v2524
    %2533 = vst.msk [vmem:[#allocation11 + $0x15] sm:$0x1] %vm703, %v2525
    %2534 = vst.msk [vmem:[#allocation11 + $0x1d] sm:$0x1] %vm703, %v2526
    %2535 = vst.msk [vmem:[#allocation11 + $0x25] sm:$0x1] %vm703, %v2527
    %2536 = vst.msk [vmem:[#allocation11 + $0x2d] sm:$0x1] %vm703, %v2528
    %2537 = vst.msk [vmem:[#allocation11 + $0x35] sm:$0x1] %vm703, %v2529
    %2538 = vst.msk [vmem:[#allocation11 + $0x3d] sm:$0x1] %vm703, %v2530
    %v2539 = vld [vmem:[#allocation4 + $0x6] sm:$0x1]
    %v2540 = vld [vmem:[#allocation4 + $0xe] sm:$0x1]
    %v2541 = vld [vmem:[#allocation4 + $0x16] sm:$0x1]
    %v2542 = vld [vmem:[#allocation4 + $0x1e] sm:$0x1]
    %v2543 = vld [vmem:[#allocation4 + $0x26] sm:$0x1]
    %v2544 = vld [vmem:[#allocation4 + $0x2e] sm:$0x1]
    %v2545 = vld [vmem:[#allocation4 + $0x36] sm:$0x1]
    %v2546 = vld [vmem:[#allocation4 + $0x3e] sm:$0x1]
    %v2547 = vpack.c.bf16 %v2475, %v2475
    %v2548 = vpack.c.bf16 %v2476, %v2476
    %v2549 = vpack.c.bf16 %v2477, %v2477
    %v2550 = vpack.c.bf16 %v2478, %v2478
    %v2551 = vpack.c.bf16 %v2479, %v2479
    %v2552 = vpack.c.bf16 %v2480, %v2480
    %v2553 = vpack.c.bf16 %v2481, %v2481
    %v2554 = vpack.c.bf16 %v2482, %v2482
    %v2563 = vunpack.c.l.b16 %v2547
    %v2564 = vunpack.c.l.b16 %v2548
    %v2565 = vunpack.c.l.b16 %v2549
    %v2566 = vunpack.c.l.b16 %v2550
    %v2567 = vunpack.c.l.b16 %v2551
    %v2568 = vunpack.c.l.b16 %v2552
    %v2569 = vunpack.c.l.b16 %v2553
    %v2570 = vunpack.c.l.b16 %v2554
    %v2571 = vrot.slane %v2564, 7
    %v2572 = vsel %vm745, %v2571, %v2563
    %v2573 = vrot.slane %v2565, 6
    %v2574 = vsel %vm748, %v2573, %v2572
    %v2575 = vrot.slane %v2566, 5
    %v2576 = vsel %vm751, %v2575, %v2574
    %v2577 = vrot.slane %v2567, 4
    %v2578 = vsel %vm754, %v2577, %v2576
    %v2579 = vrot.slane %v2568, 3
    %v2580 = vsel %vm757, %v2579, %v2578
    %v2581 = vrot.slane %v2569, 2
    %v2582 = vsel %vm760, %v2581, %v2580
    %v2583 = vrot.slane %v2570, 1
    %v2584 = vsel %vm763, %v2583, %v2582
    %v2585 = vpack.c.b16 %v2584, %v2584
    %2586 = vrot.lane.b32.xlu0 %v2585, 32
    %v2587 = vpop.permute.xlu0 %2586
    %v2589 = vsel %vm81, %v2587, 0
    %2591 = vmatprep.subr.bf16.mxu0 0
    %2592 = vmatpush1.bf16.msra.mxu0 %v360
    %2593 = vmatprep.subr.bf16.mxu0 0
    %2594 = vmatpush1.bf16.msra.mxu0 %v361
    %2595 = vmatprep.subr.bf16.mxu0 0
    %2596 = vmatpush1.bf16.msra.mxu0 0
    %2597 = vmatprep.subr.bf16.mxu0 0
    %2598 = vmatpush1.bf16.msra.mxu0 0
    %2599 = vmatprep.subr.bf16.mxu0 0
    %2600 = vmatpush1.bf16.msra.mxu0 0
    %2601 = vmatprep.subr.bf16.mxu0 0
    %2602 = vmatpush1.bf16.msra.mxu0 0
    %2603 = vmatprep.subr.bf16.mxu0 0
    %2604 = vmatpush1.bf16.msra.mxu0 0
    %2605 = vmatprep.subr.bf16.mxu0 0
    %2606 = vmatpush1.bf16.msra.mxu0 0
    %2607 = vmatprep.subr.bf16.mxu0 0
    %2608 = vmatpush1.bf16.msra.mxu0 0
    %2609 = vmatprep.subr.bf16.mxu0 0
    %2610 = vmatpush1.bf16.msra.mxu0 0
    %2611 = vmatprep.subr.bf16.mxu0 0
    %2612 = vmatpush1.bf16.msra.mxu0 0
    %2613 = vmatprep.subr.bf16.mxu0 0
    %2614 = vmatpush1.bf16.msra.mxu0 0
    %2615 = vmatprep.subr.bf16.mxu0 0
    %2616 = vmatpush1.bf16.msra.mxu0 0
    %2617 = vmatprep.subr.bf16.mxu0 0
    %2618 = vmatpush1.bf16.msra.mxu0 0
    %2619 = vmatprep.subr.bf16.mxu0 0
    %2620 = vmatpush1.bf16.msra.mxu0 0
    %2621 = vmatprep.subr.bf16.mxu0 0
    %2622 = vmatpush1.bf16.msra.mxu0 0
    %2623 = vmatprep.mubr.bf16.mxu0 0
    %2624 = vmatmul.mubr.bf16.gmra.mrb[0].mxu0 %v2589
    %v2625 = vpop.f32.mrb[0].mxu0
    %v2626 = vadd.f32 0.0, %v2625
    %v2627 = vpop.f32.mrb[0].mxu0
    %v2628 = vpop.f32.mrb[0].mxu0
    %v2629 = vpop.f32.mrb[0].mxu0
    %2630 = vdwg.mxu0
    %v2632 = vrot.slane %v2626, 1
    %v2633 = vrot.slane %v2626, 2
    %v2634 = vrot.slane %v2626, 3
    %v2635 = vrot.slane %v2626, 4
    %v2636 = vrot.slane %v2626, 5
    %v2637 = vrot.slane %v2626, 6
    %v2638 = vrot.slane %v2626, 7
    %v2647 = vadd.f32 %v2539, %v2626
    %v2648 = vadd.f32 %v2540, %v2632
    %v2649 = vadd.f32 %v2541, %v2633
    %v2650 = vadd.f32 %v2542, %v2634
    %v2651 = vadd.f32 %v2543, %v2635
    %v2652 = vadd.f32 %v2544, %v2636
    %v2653 = vadd.f32 %v2545, %v2637
    %v2654 = vadd.f32 %v2546, %v2638
    %v2655 = vxor.u32 %v2647, 2147483648
    %v2656 = vxor.u32 %v2648, 2147483648
    %v2657 = vxor.u32 %v2649, 2147483648
    %v2658 = vxor.u32 %v2650, 2147483648
    %v2659 = vxor.u32 %v2651, 2147483648
    %v2660 = vxor.u32 %v2652, 2147483648
    %v2661 = vxor.u32 %v2653, 2147483648
    %v2662 = vxor.u32 %v2654, 2147483648
    %v2663 = vmul.f32 %v2655, 1.442695
    %v2664 = vpow.pop %v2663
    %v2665 = vmul.f32 %v2656, 1.442695
    %v2666 = vpow.pop %v2665
    %v2667 = vmul.f32 %v2657, 1.442695
    %v2668 = vpow.pop %v2667
    %v2669 = vmul.f32 %v2658, 1.442695
    %v2670 = vpow.pop %v2669
    %v2671 = vmul.f32 %v2659, 1.442695
    %v2672 = vpow.pop %v2671
    %v2673 = vmul.f32 %v2660, 1.442695
    %v2674 = vpow.pop %v2673
    %v2675 = vmul.f32 %v2661, 1.442695
    %v2676 = vpow.pop %v2675
    %v2677 = vmul.f32 %v2662, 1.442695
    %v2678 = vpow.pop %v2677
    %v2679 = vadd.f32 %v2664, 1.0
    %v2680 = vadd.f32 %v2666, 1.0
    %v2681 = vadd.f32 %v2668, 1.0
    %v2682 = vadd.f32 %v2670, 1.0
    %v2683 = vadd.f32 %v2672, 1.0
    %v2684 = vadd.f32 %v2674, 1.0
    %v2685 = vadd.f32 %v2676, 1.0
    %v2686 = vadd.f32 %v2678, 1.0
    %v2687 = vrcp.pop %v2679
    %v2688 = vmul.f32 1.0, %v2687
    %v2689 = vrcp.pop %v2680
    %v2690 = vmul.f32 1.0, %v2689
    %v2691 = vrcp.pop %v2681
    %v2692 = vmul.f32 1.0, %v2691
    %v2693 = vrcp.pop %v2682
    %v2694 = vmul.f32 1.0, %v2693
    %v2695 = vrcp.pop %v2683
    %v2696 = vmul.f32 1.0, %v2695
    %v2697 = vrcp.pop %v2684
    %v2698 = vmul.f32 1.0, %v2697
    %v2699 = vrcp.pop %v2685
    %v2700 = vmul.f32 1.0, %v2699
    %v2701 = vrcp.pop %v2686
    %v2702 = vmul.f32 1.0, %v2701
    %v2703 = vtanh.pop %v2647
    %v2704 = vtanh.pop %v2648
    %v2705 = vtanh.pop %v2649
    %v2706 = vtanh.pop %v2650
    %v2707 = vtanh.pop %v2651
    %v2708 = vtanh.pop %v2652
    %v2709 = vtanh.pop %v2653
    %v2710 = vtanh.pop %v2654
    %v2711 = vmul.f32 %v2688, %v2427
    %v2712 = vmul.f32 %v2690, %v2428
    %v2713 = vmul.f32 %v2692, %v2429
    %v2714 = vmul.f32 %v2694, %v2430
    %v2715 = vmul.f32 %v2696, %v2431
    %v2716 = vmul.f32 %v2698, %v2432
    %v2717 = vmul.f32 %v2700, %v2433
    %v2718 = vmul.f32 %v2702, %v2434
    %2727 = vrot.lane.b32.xlu0 %v2703, 64
    %v2728 = vpop.permute.xlu0 %2727
    %2729 = vrot.lane.b32.xlu0 %v2704, 64
    %v2730 = vpop.permute.xlu0 %2729
    %2731 = vrot.lane.b32.xlu0 %v2705, 64
    %v2732 = vpop.permute.xlu0 %2731
    %2733 = vrot.lane.b32.xlu0 %v2706, 64
    %v2734 = vpop.permute.xlu0 %2733
    %2735 = vrot.lane.b32.xlu0 %v2707, 64
    %v2736 = vpop.permute.xlu0 %2735
    %2737 = vrot.lane.b32.xlu0 %v2708, 64
    %v2738 = vpop.permute.xlu0 %2737
    %2739 = vrot.lane.b32.xlu0 %v2709, 64
    %v2740 = vpop.permute.xlu0 %2739
    %2741 = vrot.lane.b32.xlu0 %v2710, 64
    %v2742 = vpop.permute.xlu0 %2741
    %v2751 = vmul.f32 %v2688, %v2728
    %v2752 = vmul.f32 %v2690, %v2730
    %v2753 = vmul.f32 %v2692, %v2732
    %v2754 = vmul.f32 %v2694, %v2734
    %v2755 = vmul.f32 %v2696, %v2736
    %v2756 = vmul.f32 %v2698, %v2738
    %v2757 = vmul.f32 %v2700, %v2740
    %v2758 = vmul.f32 %v2702, %v2742
    %2767 = vrot.lane.b32.xlu0 %v2751, 32
    %v2768 = vpop.permute.xlu0 %2767
    %2769 = vrot.lane.b32.xlu0 %v2752, 32
    %v2770 = vpop.permute.xlu0 %2769
    %2771 = vrot.lane.b32.xlu0 %v2753, 32
    %v2772 = vpop.permute.xlu0 %2771
    %2773 = vrot.lane.b32.xlu0 %v2754, 32
    %v2774 = vpop.permute.xlu0 %2773
    %2775 = vrot.lane.b32.xlu0 %v2755, 32
    %v2776 = vpop.permute.xlu0 %2775
    %2777 = vrot.lane.b32.xlu0 %v2756, 32
    %v2778 = vpop.permute.xlu0 %2777
    %2779 = vrot.lane.b32.xlu0 %v2757, 32
    %v2780 = vpop.permute.xlu0 %2779
    %2781 = vrot.lane.b32.xlu0 %v2758, 32
    %v2782 = vpop.permute.xlu0 %2781
    %v2791 = vadd.f32 %v2711, %v2768
    %v2792 = vadd.f32 %v2712, %v2770
    %v2793 = vadd.f32 %v2713, %v2772
    %v2794 = vadd.f32 %v2714, %v2774
    %v2795 = vadd.f32 %v2715, %v2776
    %v2796 = vadd.f32 %v2716, %v2778
    %v2797 = vadd.f32 %v2717, %v2780
    %v2798 = vadd.f32 %v2718, %v2782
    %v2799 = vtanh.pop %v2791
    %v2800 = vtanh.pop %v2792
    %v2801 = vtanh.pop %v2793
    %v2802 = vtanh.pop %v2794
    %v2803 = vtanh.pop %v2795
    %v2804 = vtanh.pop %v2796
    %v2805 = vtanh.pop %v2797
    %v2806 = vtanh.pop %v2798
    %2815 = vrot.lane.b32.xlu0 %v2799, 64
    %v2816 = vpop.permute.xlu0 %2815
    %2817 = vrot.lane.b32.xlu0 %v2800, 64
    %v2818 = vpop.permute.xlu0 %2817
    %2819 = vrot.lane.b32.xlu0 %v2801, 64
    %v2820 = vpop.permute.xlu0 %2819
    %2821 = vrot.lane.b32.xlu0 %v2802, 64
    %v2822 = vpop.permute.xlu0 %2821
    %2823 = vrot.lane.b32.xlu0 %v2803, 64
    %v2824 = vpop.permute.xlu0 %2823
    %2825 = vrot.lane.b32.xlu0 %v2804, 64
    %v2826 = vpop.permute.xlu0 %2825
    %2827 = vrot.lane.b32.xlu0 %v2805, 64
    %v2828 = vpop.permute.xlu0 %2827
    %2829 = vrot.lane.b32.xlu0 %v2806, 64
    %v2830 = vpop.permute.xlu0 %2829
    %v2839 = vmul.f32 %v2688, %v2816
    %v2840 = vmul.f32 %v2690, %v2818
    %v2841 = vmul.f32 %v2692, %v2820
    %v2842 = vmul.f32 %v2694, %v2822
    %v2843 = vmul.f32 %v2696, %v2824
    %v2844 = vmul.f32 %v2698, %v2826
    %v2845 = vmul.f32 %v2700, %v2828
    %v2846 = vmul.f32 %v2702, %v2830
    %v2847 = vld [vmem:[#allocation11 + $0x6] sm:$0x1]
    %v2848 = vld [vmem:[#allocation11 + $0xe] sm:$0x1]
    %v2849 = vld [vmem:[#allocation11 + $0x16] sm:$0x1]
    %v2850 = vld [vmem:[#allocation11 + $0x1e] sm:$0x1]
    %v2851 = vld [vmem:[#allocation11 + $0x26] sm:$0x1]
    %v2852 = vld [vmem:[#allocation11 + $0x2e] sm:$0x1]
    %v2853 = vld [vmem:[#allocation11 + $0x36] sm:$0x1]
    %v2854 = vld [vmem:[#allocation11 + $0x3e] sm:$0x1]
    %2863 = vrot.lane.b32.xlu0 %v2839, 32
    %v2864 = vpop.permute.xlu0 %2863
    %2865 = vrot.lane.b32.xlu0 %v2840, 32
    %v2866 = vpop.permute.xlu0 %2865
    %2867 = vrot.lane.b32.xlu0 %v2841, 32
    %v2868 = vpop.permute.xlu0 %2867
    %2869 = vrot.lane.b32.xlu0 %v2842, 32
    %v2870 = vpop.permute.xlu0 %2869
    %2871 = vrot.lane.b32.xlu0 %v2843, 32
    %v2872 = vpop.permute.xlu0 %2871
    %2873 = vrot.lane.b32.xlu0 %v2844, 32
    %v2874 = vpop.permute.xlu0 %2873
    %2875 = vrot.lane.b32.xlu0 %v2845, 32
    %v2876 = vpop.permute.xlu0 %2875
    %2877 = vrot.lane.b32.xlu0 %v2846, 32
    %v2878 = vpop.permute.xlu0 %2877
    %v2887 = vadd.f32 %v2847, %v2864
    %v2888 = vadd.f32 %v2848, %v2866
    %v2889 = vadd.f32 %v2849, %v2868
    %v2890 = vadd.f32 %v2850, %v2870
    %v2891 = vadd.f32 %v2851, %v2872
    %v2892 = vadd.f32 %v2852, %v2874
    %v2893 = vadd.f32 %v2853, %v2876
    %v2894 = vadd.f32 %v2854, %v2878
    %2895 = vst.msk [vmem:[#allocation11 + $0x6] sm:$0x1] %vm703, %v2887
    %2896 = vst.msk [vmem:[#allocation11 + $0xe] sm:$0x1] %vm703, %v2888
    %2897 = vst.msk [vmem:[#allocation11 + $0x16] sm:$0x1] %vm703, %v2889
    %2898 = vst.msk [vmem:[#allocation11 + $0x1e] sm:$0x1] %vm703, %v2890
    %2899 = vst.msk [vmem:[#allocation11 + $0x26] sm:$0x1] %vm703, %v2891
    %2900 = vst.msk [vmem:[#allocation11 + $0x2e] sm:$0x1] %vm703, %v2892
    %2901 = vst.msk [vmem:[#allocation11 + $0x36] sm:$0x1] %vm703, %v2893
    %2902 = vst.msk [vmem:[#allocation11 + $0x3e] sm:$0x1] %vm703, %v2894
    %v2903 = vld [vmem:[#allocation4 + $0x7] sm:$0x1]
    %v2904 = vld [vmem:[#allocation4 + $0xf] sm:$0x1]
    %v2905 = vld [vmem:[#allocation4 + $0x17] sm:$0x1]
    %v2906 = vld [vmem:[#allocation4 + $0x1f] sm:$0x1]
    %v2907 = vld [vmem:[#allocation4 + $0x27] sm:$0x1]
    %v2908 = vld [vmem:[#allocation4 + $0x2f] sm:$0x1]
    %v2909 = vld [vmem:[#allocation4 + $0x37] sm:$0x1]
    %v2910 = vld [vmem:[#allocation4 + $0x3f] sm:$0x1]
    %v2911 = vpack.c.bf16 %v2839, %v2839
    %v2912 = vpack.c.bf16 %v2840, %v2840
    %v2913 = vpack.c.bf16 %v2841, %v2841
    %v2914 = vpack.c.bf16 %v2842, %v2842
    %v2915 = vpack.c.bf16 %v2843, %v2843
    %v2916 = vpack.c.bf16 %v2844, %v2844
    %v2917 = vpack.c.bf16 %v2845, %v2845
    %v2918 = vpack.c.bf16 %v2846, %v2846
    %v2927 = vunpack.c.l.b16 %v2911
    %v2928 = vunpack.c.l.b16 %v2912
    %v2929 = vunpack.c.l.b16 %v2913
    %v2930 = vunpack.c.l.b16 %v2914
    %v2931 = vunpack.c.l.b16 %v2915
    %v2932 = vunpack.c.l.b16 %v2916
    %v2933 = vunpack.c.l.b16 %v2917
    %v2934 = vunpack.c.l.b16 %v2918
    %v2935 = vrot.slane %v2928, 7
    %v2936 = vsel %vm745, %v2935, %v2927
    %v2937 = vrot.slane %v2929, 6
    %v2938 = vsel %vm748, %v2937, %v2936
    %v2939 = vrot.slane %v2930, 5
    %v2940 = vsel %vm751, %v2939, %v2938
    %v2941 = vrot.slane %v2931, 4
    %v2942 = vsel %vm754, %v2941, %v2940
    %v2943 = vrot.slane %v2932, 3
    %v2944 = vsel %vm757, %v2943, %v2942
    %v2945 = vrot.slane %v2933, 2
    %v2946 = vsel %vm760, %v2945, %v2944
    %v2947 = vrot.slane %v2934, 1
    %v2948 = vsel %vm763, %v2947, %v2946
    %v2949 = vpack.c.b16 %v2948, %v2948
    %2950 = vrot.lane.b32.xlu0 %v2949, 32
    %v2951 = vpop.permute.xlu0 %2950
    %v2953 = vsel %vm81, %v2951, 0
    %2955 = vmatprep.subr.bf16.mxu0 0
    %2956 = vmatpush1.bf16.msra.mxu0 %v360
    %2957 = vmatprep.subr.bf16.mxu0 0
    %2958 = vmatpush1.bf16.msra.mxu0 %v361
    %2959 = vmatprep.subr.bf16.mxu0 0
    %2960 = vmatpush1.bf16.msra.mxu0 0
    %2961 = vmatprep.subr.bf16.mxu0 0
    %2962 = vmatpush1.bf16.msra.mxu0 0
    %2963 = vmatprep.subr.bf16.mxu0 0
    %2964 = vmatpush1.bf16.msra.mxu0 0
    %2965 = vmatprep.subr.bf16.mxu0 0
    %2966 = vmatpush1.bf16.msra.mxu0 0
    %2967 = vmatprep.subr.bf16.mxu0 0
    %2968 = vmatpush1.bf16.msra.mxu0 0
    %2969 = vmatprep.subr.bf16.mxu0 0
    %2970 = vmatpush1.bf16.msra.mxu0 0
    %2971 = vmatprep.subr.bf16.mxu0 0
    %2972 = vmatpush1.bf16.msra.mxu0 0
    %2973 = vmatprep.subr.bf16.mxu0 0
    %2974 = vmatpush1.bf16.msra.mxu0 0
    %2975 = vmatprep.subr.bf16.mxu0 0
    %2976 = vmatpush1.bf16.msra.mxu0 0
    %2977 = vmatprep.subr.bf16.mxu0 0
    %2978 = vmatpush1.bf16.msra.mxu0 0
    %2979 = vmatprep.subr.bf16.mxu0 0
    %2980 = vmatpush1.bf16.msra.mxu0 0
    %2981 = vmatprep.subr.bf16.mxu0 0
    %2982 = vmatpush1.bf16.msra.mxu0 0
    %2983 = vmatprep.subr.bf16.mxu0 0
    %2984 = vmatpush1.bf16.msra.mxu0 0
    %2985 = vmatprep.subr.bf16.mxu0 0
    %2986 = vmatpush1.bf16.msra.mxu0 0
    %2987 = vmatprep.mubr.bf16.mxu0 0
    %2988 = vmatmul.mubr.bf16.gmra.mrb[0].mxu0 %v2953
    %v2989 = vpop.f32.mrb[0].mxu0
    %v2990 = vadd.f32 0.0, %v2989
    %v2991 = vpop.f32.mrb[0].mxu0
    %v2992 = vpop.f32.mrb[0].mxu0
    %v2993 = vpop.f32.mrb[0].mxu0
    %2994 = vdwg.mxu0
    %v2996 = vrot.slane %v2990, 1
    %v2997 = vrot.slane %v2990, 2
    %v2998 = vrot.slane %v2990, 3
    %v2999 = vrot.slane %v2990, 4
    %v3000 = vrot.slane %v2990, 5
    %v3001 = vrot.slane %v2990, 6
    %v3002 = vrot.slane %v2990, 7
    %v3011 = vadd.f32 %v2903, %v2990
    %v3012 = vadd.f32 %v2904, %v2996
    %v3013 = vadd.f32 %v2905, %v2997
    %v3014 = vadd.f32 %v2906, %v2998
    %v3015 = vadd.f32 %v2907, %v2999
    %v3016 = vadd.f32 %v2908, %v3000
    %v3017 = vadd.f32 %v2909, %v3001
    %v3018 = vadd.f32 %v2910, %v3002
    %v3019 = vxor.u32 %v3011, 2147483648
    %v3020 = vxor.u32 %v3012, 2147483648
    %v3021 = vxor.u32 %v3013, 2147483648
    %v3022 = vxor.u32 %v3014, 2147483648
    %v3023 = vxor.u32 %v3015, 2147483648
    %v3024 = vxor.u32 %v3016, 2147483648
    %v3025 = vxor.u32 %v3017, 2147483648
    %v3026 = vxor.u32 %v3018, 2147483648
    %v3027 = vmul.f32 %v3019, 1.442695
    %v3028 = vpow.pop %v3027
    %v3029 = vmul.f32 %v3020, 1.442695
    %v3030 = vpow.pop %v3029
    %v3031 = vmul.f32 %v3021, 1.442695
    %v3032 = vpow.pop %v3031
    %v3033 = vmul.f32 %v3022, 1.442695
    %v3034 = vpow.pop %v3033
    %v3035 = vmul.f32 %v3023, 1.442695
    %v3036 = vpow.pop %v3035
    %v3037 = vmul.f32 %v3024, 1.442695
    %v3038 = vpow.pop %v3037
    %v3039 = vmul.f32 %v3025, 1.442695
    %v3040 = vpow.pop %v3039
    %v3041 = vmul.f32 %v3026, 1.442695
    %v3042 = vpow.pop %v3041
    %v3043 = vadd.f32 %v3028, 1.0
    %v3044 = vadd.f32 %v3030, 1.0
    %v3045 = vadd.f32 %v3032, 1.0
    %v3046 = vadd.f32 %v3034, 1.0
    %v3047 = vadd.f32 %v3036, 1.0
    %v3048 = vadd.f32 %v3038, 1.0
    %v3049 = vadd.f32 %v3040, 1.0
    %v3050 = vadd.f32 %v3042, 1.0
    %v3051 = vrcp.pop %v3043
    %v3052 = vmul.f32 1.0, %v3051
    %v3053 = vrcp.pop %v3044
    %v3054 = vmul.f32 1.0, %v3053
    %v3055 = vrcp.pop %v3045
    %v3056 = vmul.f32 1.0, %v3055
    %v3057 = vrcp.pop %v3046
    %v3058 = vmul.f32 1.0, %v3057
    %v3059 = vrcp.pop %v3047
    %v3060 = vmul.f32 1.0, %v3059
    %v3061 = vrcp.pop %v3048
    %v3062 = vmul.f32 1.0, %v3061
    %v3063 = vrcp.pop %v3049
    %v3064 = vmul.f32 1.0, %v3063
    %v3065 = vrcp.pop %v3050
    %v3066 = vmul.f32 1.0, %v3065
    %v3067 = vtanh.pop %v3011
    %v3068 = vtanh.pop %v3012
    %v3069 = vtanh.pop %v3013
    %v3070 = vtanh.pop %v3014
    %v3071 = vtanh.pop %v3015
    %v3072 = vtanh.pop %v3016
    %v3073 = vtanh.pop %v3017
    %v3074 = vtanh.pop %v3018
    %v3075 = vmul.f32 %v3052, %v2791
    %v3076 = vmul.f32 %v3054, %v2792
    %v3077 = vmul.f32 %v3056, %v2793
    %v3078 = vmul.f32 %v3058, %v2794
    %v3079 = vmul.f32 %v3060, %v2795
    %v3080 = vmul.f32 %v3062, %v2796
    %v3081 = vmul.f32 %v3064, %v2797
    %v3082 = vmul.f32 %v3066, %v2798
    %3091 = vrot.lane.b32.xlu0 %v3067, 64
    %v3092 = vpop.permute.xlu0 %3091
    %3093 = vrot.lane.b32.xlu0 %v3068, 64
    %v3094 = vpop.permute.xlu0 %3093
    %3095 = vrot.lane.b32.xlu0 %v3069, 64
    %v3096 = vpop.permute.xlu0 %3095
    %3097 = vrot.lane.b32.xlu0 %v3070, 64
    %v3098 = vpop.permute.xlu0 %3097
    %3099 = vrot.lane.b32.xlu0 %v3071, 64
    %v3100 = vpop.permute.xlu0 %3099
    %3101 = vrot.lane.b32.xlu0 %v3072, 64
    %v3102 = vpop.permute.xlu0 %3101
    %3103 = vrot.lane.b32.xlu0 %v3073, 64
    %v3104 = vpop.permute.xlu0 %3103
    %3105 = vrot.lane.b32.xlu0 %v3074, 64
    %v3106 = vpop.permute.xlu0 %3105
    %v3115 = vmul.f32 %v3052, %v3092
    %v3116 = vmul.f32 %v3054, %v3094
    %v3117 = vmul.f32 %v3056, %v3096
    %v3118 = vmul.f32 %v3058, %v3098
    %v3119 = vmul.f32 %v3060, %v3100
    %v3120 = vmul.f32 %v3062, %v3102
    %v3121 = vmul.f32 %v3064, %v3104
    %v3122 = vmul.f32 %v3066, %v3106
    %3131 = vrot.lane.b32.xlu0 %v3115, 32
    %v3132 = vpop.permute.xlu0 %3131
    %3133 = vrot.lane.b32.xlu0 %v3116, 32
    %v3134 = vpop.permute.xlu0 %3133
    %3135 = vrot.lane.b32.xlu0 %v3117, 32
    %v3136 = vpop.permute.xlu0 %3135
    %3137 = vrot.lane.b32.xlu0 %v3118, 32
    %v3138 = vpop.permute.xlu0 %3137
    %3139 = vrot.lane.b32.xlu0 %v3119, 32
    %v3140 = vpop.permute.xlu0 %3139
    %3141 = vrot.lane.b32.xlu0 %v3120, 32
    %v3142 = vpop.permute.xlu0 %3141
    %3143 = vrot.lane.b32.xlu0 %v3121, 32
    %v3144 = vpop.permute.xlu0 %3143
    %3145 = vrot.lane.b32.xlu0 %v3122, 32
    %v3146 = vpop.permute.xlu0 %3145
    %v3155 = vadd.f32 %v3075, %v3132
    %v3156 = vadd.f32 %v3076, %v3134
    %v3157 = vadd.f32 %v3077, %v3136
    %v3158 = vadd.f32 %v3078, %v3138
    %v3159 = vadd.f32 %v3079, %v3140
    %v3160 = vadd.f32 %v3080, %v3142
    %v3161 = vadd.f32 %v3081, %v3144
    %v3162 = vadd.f32 %v3082, %v3146
    %v3163 = vtanh.pop %v3155
    %v3164 = vtanh.pop %v3156
    %v3165 = vtanh.pop %v3157
    %v3166 = vtanh.pop %v3158
    %v3167 = vtanh.pop %v3159
    %v3168 = vtanh.pop %v3160
    %v3169 = vtanh.pop %v3161
    %v3170 = vtanh.pop %v3162
    %3179 = vrot.lane.b32.xlu0 %v3163, 64
    %v3180 = vpop.permute.xlu0 %3179
    %3181 = vrot.lane.b32.xlu0 %v3164, 64
    %v3182 = vpop.permute.xlu0 %3181
    %3183 = vrot.lane.b32.xlu0 %v3165, 64
    %v3184 = vpop.permute.xlu0 %3183
    %3185 = vrot.lane.b32.xlu0 %v3166, 64
    %v3186 = vpop.permute.xlu0 %3185
    %3187 = vrot.lane.b32.xlu0 %v3167, 64
    %v3188 = vpop.permute.xlu0 %3187
    %3189 = vrot.lane.b32.xlu0 %v3168, 64
    %v3190 = vpop.permute.xlu0 %3189
    %3191 = vrot.lane.b32.xlu0 %v3169, 64
    %v3192 = vpop.permute.xlu0 %3191
    %3193 = vrot.lane.b32.xlu0 %v3170, 64
    %v3194 = vpop.permute.xlu0 %3193
    %v3203 = vmul.f32 %v3052, %v3180
    %v3204 = vmul.f32 %v3054, %v3182
    %v3205 = vmul.f32 %v3056, %v3184
    %v3206 = vmul.f32 %v3058, %v3186
    %v3207 = vmul.f32 %v3060, %v3188
    %v3208 = vmul.f32 %v3062, %v3190
    %v3209 = vmul.f32 %v3064, %v3192
    %v3210 = vmul.f32 %v3066, %v3194
    %v3211 = vld [vmem:[#allocation11 + $0x7] sm:$0x1]
    %v3212 = vld [vmem:[#allocation11 + $0xf] sm:$0x1]
    %v3213 = vld [vmem:[#allocation11 + $0x17] sm:$0x1]
    %v3214 = vld [vmem:[#allocation11 + $0x1f] sm:$0x1]
    %v3215 = vld [vmem:[#allocation11 + $0x27] sm:$0x1]
    %v3216 = vld [vmem:[#allocation11 + $0x2f] sm:$0x1]
    %v3217 = vld [vmem:[#allocation11 + $0x37] sm:$0x1]
    %v3218 = vld [vmem:[#allocation11 + $0x3f] sm:$0x1]
    %3227 = vrot.lane.b32.xlu0 %v3203, 32
    %v3228 = vpop.permute.xlu0 %3227
    %3229 = vrot.lane.b32.xlu0 %v3204, 32
    %v3230 = vpop.permute.xlu0 %3229
    %3231 = vrot.lane.b32.xlu0 %v3205, 32
    %v3232 = vpop.permute.xlu0 %3231
    %3233 = vrot.lane.b32.xlu0 %v3206, 32
    %v3234 = vpop.permute.xlu0 %3233
    %3235 = vrot.lane.b32.xlu0 %v3207, 32
    %v3236 = vpop.permute.xlu0 %3235
    %3237 = vrot.lane.b32.xlu0 %v3208, 32
    %v3238 = vpop.permute.xlu0 %3237
    %3239 = vrot.lane.b32.xlu0 %v3209, 32
    %v3240 = vpop.permute.xlu0 %3239
    %3241 = vrot.lane.b32.xlu0 %v3210, 32
    %v3242 = vpop.permute.xlu0 %3241
    %v3251 = vadd.f32 %v3211, %v3228
    %v3252 = vadd.f32 %v3212, %v3230
    %v3253 = vadd.f32 %v3213, %v3232
    %v3254 = vadd.f32 %v3214, %v3234
    %v3255 = vadd.f32 %v3215, %v3236
    %v3256 = vadd.f32 %v3216, %v3238
    %v3257 = vadd.f32 %v3217, %v3240
    %v3258 = vadd.f32 %v3218, %v3242
    %3259 = vst.msk [vmem:[#allocation11 + $0x7] sm:$0x1] %vm703, %v3251
    %3260 = vst.msk [vmem:[#allocation11 + $0xf] sm:$0x1] %vm703, %v3252
    %3261 = vst.msk [vmem:[#allocation11 + $0x17] sm:$0x1] %vm703, %v3253
    %3262 = vst.msk [vmem:[#allocation11 + $0x1f] sm:$0x1] %vm703, %v3254
    %3263 = vst.msk [vmem:[#allocation11 + $0x27] sm:$0x1] %vm703, %v3255
    %3264 = vst.msk [vmem:[#allocation11 + $0x2f] sm:$0x1] %vm703, %v3256
    %3265 = vst.msk [vmem:[#allocation11 + $0x37] sm:$0x1] %vm703, %v3257
    %3266 = vst.msk [vmem:[#allocation11 + $0x3f] sm:$0x1] %vm703, %v3258
    %v3267 = vrot.slane %v3204, 7
    %v3268 = vsel %vm745, %v3267, %v3203
    %v3269 = vrot.slane %v3205, 6
    %v3270 = vsel %vm748, %v3269, %v3268
    %v3271 = vrot.slane %v3206, 5
    %v3272 = vsel %vm751, %v3271, %v3270
    %v3273 = vrot.slane %v3207, 4
    %v3274 = vsel %vm754, %v3273, %v3272
    %v3275 = vrot.slane %v3208, 3
    %v3276 = vsel %vm757, %v3275, %v3274
    %v3277 = vrot.slane %v3209, 2
    %v3278 = vsel %vm760, %v3277, %v3276
    %v3279 = vrot.slane %v3210, 1
    %v3280 = vsel %vm763, %v3279, %v3278
    %3281 = vrot.lane.b32.xlu0 %v3280, 32
    %v3282 = vpop.permute.xlu0 %3281
    %3284 = vst.msk [vmem:[#allocation2] sm:$0xff] %vm81, %v3282
    %v3293 = vrot.slane %v3156, 7
    %v3294 = vsel %vm745, %v3293, %v3155
    %v3295 = vrot.slane %v3157, 6
    %v3296 = vsel %vm748, %v3295, %v3294
    %v3297 = vrot.slane %v3158, 5
    %v3298 = vsel %vm751, %v3297, %v3296
    %v3299 = vrot.slane %v3159, 4
    %v3300 = vsel %vm754, %v3299, %v3298
    %v3301 = vrot.slane %v3160, 3
    %v3302 = vsel %vm757, %v3301, %v3300
    %v3303 = vrot.slane %v3161, 2
    %v3304 = vsel %vm760, %v3303, %v3302
    %v3305 = vrot.slane %v3162, 1
    %v3306 = vsel %vm763, %v3305, %v3304
    %3307 = vrot.lane.b32.xlu0 %v3306, 96
    %v3308 = vpop.permute.xlu0 %3307
    %3310 = vst.msk [vmem:[#allocation3] sm:$0xff] %vm81, %v3308
    // Predicated region
    $region42: #{tpu_custom_call.1} parent=1 // pred_check
      _
    $region43: #{tpu_custom_call.1} parent=1 // pred_check_branch
      %3312 = sbr.rel (0) target = $region45
    $region44: #{tpu_custom_call.1} parent=1 // pred_region
      %s3314 = ssub.s32 1024, 1024
      %3315 = vsyncadd [#allocation7], %s3314
      %s3316 = sshll.u32 [#allocation11], 4
      %s3317 = int_to_ptr.vmem [resolvable:$true] %s3316
      %3322 = dma.vmem_to_hbm [thread:$0]  %s3317, 1024, %s6, [#allocation7], 128, 128, 8
    $region45: #{tpu_custom_call.1} parent=1 // pred_fallthru
      _
    // Predicated region
    $region46: #{tpu_custom_call.1} parent=1 // pred_check
      _
    $region47: #{tpu_custom_call.1} parent=1 // pred_check_branch
      %3324 = sbr.rel (0) target = $region49
    $region48: #{tpu_custom_call.1} parent=1 // pred_region
      %3325 = dma.done [#allocation7], 1024
    $region49: #{tpu_custom_call.1} parent=1 // pred_fallthru
      _
    %3326 = vsyncpa [#allocation6], 1
    %3327 = vsyncpa [#allocation9], 1
    %3328 = vsyncpa [#allocation7], 1

// kernel: tpu_custom_call.1
$region0: #{tpu_custom_call.1}
  #allocation0 [shape = 'u32[]', space=smem, size = 0x4, offset = 0x4, fixed_abs, tag = 'smem constant byte address 0x4 - core index']
  #allocation1 [shape = 'u32[144,128]{1,0:T(1,128)}', space=vmem, size = 0x12000, scoped, tag = 'internal scratch']
  #allocation2 [shape = 'f32[8,32]{1,0:T(8,128)}', space=vmem, size = 0x1000, scoped, tag = 'scratch operand']
  #allocation3 [shape = 'f32[8,32]{1,0:T(8,128)}', space=vmem, size = 0x1000, scoped, tag = 'scratch operand']
  #allocation4 [shape = 'f32[8,8,128]{2,1,0:T(8,128)}', space=vmem, size = 0x8000, scoped, tag = 'scratch operand']
  %s0 = inlined_call_operand.hbm [shape: f32[8,8,32], index: 0, kind: input, shape index: {}]
  %s1 = inlined_call_operand.hbm [shape: bf16[32,128], index: 1, kind: input, shape index: {}]
  %s2 = inlined_call_operand.hbm [shape: bf16[32,128], index: 2, kind: input, shape index: {}]
  %s3 = inlined_call_operand.vmem [shape: f32[1,128], index: 3, kind: input, shape index: {}]
  %s4 = inlined_call_operand.vmem [shape: f32[1,32], index: 4, kind: input, shape index: {}]
  %s5 = inlined_call_operand.vmem [shape: f32[1,32], index: 5, kind: input, shape index: {}]
  %s6 = inlined_call_operand.hbm [shape: f32[8,8,32], index: 6, kind: output, shape index: {}]
  %s7 = sld [smem:[#allocation0]]
  $region50: #{tpu_custom_call.1} parent=0
    _
  %s9 = ssub.s32 1, %s7
  %s10 = scalar_select 0, %s9, %s7
  $region1: #{tpu_custom_call.1} parent=0
    #allocation5 [shape = 'u8[32768]{0}', space=vmem, size = 0x8000, scoped, tag = 'input window, operand 0, single buffered']
    #allocation6 [shape = 's32[1]{0}', space=sflag, size = 0x4, scoped, tag = 'scoped memory for tpu_custom_call.1']
    #allocation7 [shape = 's32[1]{0}', space=sflag, size = 0x4, scoped, tag = 'scoped memory for tpu_custom_call.1']
    #allocation8 [shape = 'u8[8192]{0}', space=vmem, size = 0x2000, scoped, tag = 'input window, operand 1, single buffered']
    #allocation9 [shape = 's32[1]{0}', space=sflag, size = 0x4, scoped, tag = 'scoped memory for tpu_custom_call.1']
    #allocation10 [shape = 'u8[8192]{0}', space=vmem, size = 0x2000, scoped, tag = 'input window, operand 2, single buffered']
    #allocation11 [shape = 'u8[32768]{0}', space=vmem, size = 0x8000, scoped, tag = 'output window, operand 0, single buffered']
    %11 = vsyncpa [#allocation6], 0
    %12 = vsyncpa [#allocation9], 0
    %13 = vsyncpa [#allocation7], 0
    // Predicated region
    $region2: #{tpu_custom_call.1} parent=1 // pred_check
      _
    $region3: #{tpu_custom_call.1} parent=1 // pred_check_branch
      %15 = sbr.rel (0) target = $region5
    $region4: #{tpu_custom_call.1} parent=1 // pred_region
      %s17 = ssub.s32 1024, 1024
      %18 = vsyncadd [#allocation6], %s17
      %s19 = sshll.u32 [#allocation5], 4
      %s20 = int_to_ptr.vmem [resolvable:$true] %s19
      %25 = dma.hbm_to_vmem [thread:$0]  %s0, 1024, %s20, [#allocation6], 128, 128, 8
    $region5: #{tpu_custom_call.1} parent=1 // pred_fallthru
      _
    // Predicated region
    $region6: #{tpu_custom_call.1} parent=1 // pred_check
      _
    $region7: #{tpu_custom_call.1} parent=1 // pred_check_branch
      %27 = sbr.rel (0) target = $region9
    $region8: #{tpu_custom_call.1} parent=1 // pred_region
      %s29 = ssub.s32 256, 256
      %30 = vsyncadd [#allocation9], %s29
      %s31 = sshll.u32 [#allocation8], 4
      %s32 = int_to_ptr.vmem [resolvable:$true] %s31
      %37 = dma.hbm_to_vmem [thread:$0]  %s1, 256, %s32, [#allocation9], 64, 64, 4
    $region9: #{tpu_custom_call.1} parent=1 // pred_fallthru
      _
    // Predicated region
    $region10: #{tpu_custom_call.1} parent=1 // pred_check
      _
    $region11: #{tpu_custom_call.1} parent=1 // pred_check_branch
      %39 = sbr.rel (0) target = $region13
    $region12: #{tpu_custom_call.1} parent=1 // pred_region
      %s41 = ssub.s32 256, 256
      %42 = vsyncadd [#allocation9], %s41
      %s43 = sshll.u32 [#allocation10], 4
      %s44 = int_to_ptr.vmem [resolvable:$true] %s43
      %49 = dma.hbm_to_vmem [thread:$0]  %s2, 256, %s44, [#allocation9], 64, 64, 4
    $region13: #{tpu_custom_call.1} parent=1 // pred_fallthru
      _
    // Predicated region
    $region14: #{tpu_custom_call.1} parent=1 // pred_check
      _
    $region15: #{tpu_custom_call.1} parent=1 // pred_check_branch
      %51 = sbr.rel (0) target = $region17
    $region16: #{tpu_custom_call.1} parent=1 // pred_region
      _
    $region17: #{tpu_custom_call.1} parent=1 // pred_fallthru
      _
    // Predicated region
    $region18: #{tpu_custom_call.1} parent=1 // pred_check
      _
    $region19: #{tpu_custom_call.1} parent=1 // pred_check_branch
      %53 = sbr.rel (0) target = $region21
    $region20: #{tpu_custom_call.1} parent=1 // pred_region
      _
    $region21: #{tpu_custom_call.1} parent=1 // pred_fallthru
      _
    // Predicated region
    $region22: #{tpu_custom_call.1} parent=1 // pred_check
      _
    $region23: #{tpu_custom_call.1} parent=1 // pred_check_branch
      %55 = sbr.rel (0) target = $region25
    $region24: #{tpu_custom_call.1} parent=1 // pred_region
      _
    $region25: #{tpu_custom_call.1} parent=1 // pred_fallthru
      _
    // Predicated region
    $region26: #{tpu_custom_call.1} parent=1 // pred_check
      _
    $region27: #{tpu_custom_call.1} parent=1 // pred_check_branch
      %57 = sbr.rel (0) target = $region29
    $region28: #{tpu_custom_call.1} parent=1 // pred_region
      %58 = dma.done [#allocation6], 1024
    $region29: #{tpu_custom_call.1} parent=1 // pred_fallthru
      _
    // Predicated region
    $region30: #{tpu_custom_call.1} parent=1 // pred_check
      _
    $region31: #{tpu_custom_call.1} parent=1 // pred_check_branch
      %60 = sbr.rel (0) target = $region33
    $region32: #{tpu_custom_call.1} parent=1 // pred_region
      %61 = dma.done [#allocation9], 256
    $region33: #{tpu_custom_call.1} parent=1 // pred_fallthru
      _
    // Predicated region
    $region34: #{tpu_custom_call.1} parent=1 // pred_check
      _
    $region35: #{tpu_custom_call.1} parent=1 // pred_check_branch
      %63 = sbr.rel (0) target = $region37
    $region36: #{tpu_custom_call.1} parent=1 // pred_region
      %64 = dma.done [#allocation9], 256
    $region37: #{tpu_custom_call.1} parent=1 // pred_fallthru
      _
    %p66 = scmp.eq.s32.totalorder 0, 0
    // Predicated region
    $region38: #{tpu_custom_call.1} parent=1 // pred_check
      %p67 = pneg %p66
    $region39: #{tpu_custom_call.1} parent=1 // pred_check_branch
      %69 = sbr.rel (%p67) target = $region41
    $region40: #{tpu_custom_call.1} parent=1 // pred_region
      %vm70 = vcmask 261120
      %71 = vst.msk [vmem:[#allocation2] sm:$0xff] %vm70, 0.0
      %72 = vst.msk [vmem:[#allocation3] sm:$0xff] %vm70, 0.0
    $region41: #{tpu_custom_call.1} parent=1 // pred_fallthru
      _
    %v73 = vld [vmem:[#allocation5] sm:$0xff]
    %v74 = vld [vmem:[#allocation5 + $0x8] sm:$0xff]
    %v75 = vld [vmem:[#allocation5 + $0x10] sm:$0xff]
    %v76 = vld [vmem:[#allocation5 + $0x18] sm:$0xff]
    %v77 = vld [vmem:[#allocation5 + $0x20] sm:$0xff]
    %v78 = vld [vmem:[#allocation5 + $0x28] sm:$0xff]
    %v79 = vld [vmem:[#allocation5 + $0x30] sm:$0xff]
    %v80 = vld [vmem:[#allocation5 + $0x38] sm:$0xff]
    %vm81 = vcmask 261120
    %v82 = vsel %vm81, %v73, 0.0
    %83 = vadd.xlane.f32.xlu0 %v82
    %v84 = vpop.xlane.xlu0 %83
    %v85 = vsel %vm81, %v74, 0.0
    %86 = vadd.xlane.f32.xlu0 %v85
    %v87 = vpop.xlane.xlu0 %86
    %v88 = vsel %vm81, %v75, 0.0
    %89 = vadd.xlane.f32.xlu0 %v88
    %v90 = vpop.xlane.xlu0 %89
    %v91 = vsel %vm81, %v76, 0.0
    %92 = vadd.xlane.f32.xlu0 %v91
    %v93 = vpop.xlane.xlu0 %92
    %v94 = vsel %vm81, %v77, 0.0
    %95 = vadd.xlane.f32.xlu0 %v94
    %v96 = vpop.xlane.xlu0 %95
    %v97 = vsel %vm81, %v78, 0.0
    %98 = vadd.xlane.f32.xlu0 %v97
    %v99 = vpop.xlane.xlu0 %98
    %v100 = vsel %vm81, %v79, 0.0
    %101 = vadd.xlane.f32.xlu0 %v100
    %v102 = vpop.xlane.xlu0 %101
    %v103 = vsel %vm81, %v80, 0.0
    %104 = vadd.xlane.f32.xlu0 %v103
    %v105 = vpop.xlane.xlu0 %104
    %v106 = vrcp.pop 32.0
    %v107 = vmul.f32 %v84, %v106
    %v108 = vmul.f32 %v87, %v106
    %v109 = vmul.f32 %v90, %v106
    %v110 = vmul.f32 %v93, %v106
    %v111 = vmul.f32 %v96, %v106
    %v112 = vmul.f32 %v99, %v106
    %v113 = vmul.f32 %v102, %v106
    %v114 = vmul.f32 %v105, %v106
    %v115 = vsub.f32 %v73, %v107
    %v116 = vsub.f32 %v74, %v108
    %v117 = vsub.f32 %v75, %v109
    %v118 = vsub.f32 %v76, %v110
    %v119 = vsub.f32 %v77, %v111
    %v120 = vsub.f32 %v78, %v112
    %v121 = vsub.f32 %v79, %v113
    %v122 = vsub.f32 %v80, %v114
    %v123 = vmul.f32 %v115, %v115
    %v124 = vmul.f32 %v116, %v116
    %v125 = vmul.f32 %v117, %v117
    %v126 = vmul.f32 %v118, %v118
    %v127 = vmul.f32 %v119, %v119
    %v128 = vmul.f32 %v120, %v120
    %v129 = vmul.f32 %v121, %v121
    %v130 = vmul.f32 %v122, %v122
    %v131 = vsel %vm81, %v123, 0.0
    %132 = vadd.xlane.f32.xlu0 %v131
    %v133 = vpop.xlane.xlu0 %132
    %v134 = vsel %vm81, %v124, 0.0
    %135 = vadd.xlane.f32.xlu0 %v134
    %v136 = vpop.xlane.xlu0 %135
    %v137 = vsel %vm81, %v125, 0.0
    %138 = vadd.xlane.f32.xlu0 %v137
    %v139 = vpop.xlane.xlu0 %138
    %v140 = vsel %vm81, %v126, 0.0
    %141 = vadd.xlane.f32.xlu0 %v140
    %v142 = vpop.xlane.xlu0 %141
    %v143 = vsel %vm81, %v127, 0.0
    %144 = vadd.xlane.f32.xlu0 %v143
    %v145 = vpop.xlane.xlu0 %144
    %v146 = vsel %vm81, %v128, 0.0
    %147 = vadd.xlane.f32.xlu0 %v146
    %v148 = vpop.xlane.xlu0 %147
    %v149 = vsel %vm81, %v129, 0.0
    %150 = vadd.xlane.f32.xlu0 %v149
    %v151 = vpop.xlane.xlu0 %150
    %v152 = vsel %vm81, %v130, 0.0
    %153 = vadd.xlane.f32.xlu0 %v152
    %v154 = vpop.xlane.xlu0 %153
    %v155 = vmul.f32 %v133, %v106
    %v156 = vmul.f32 %v136, %v106
    %v157 = vmul.f32 %v139, %v106
    %v158 = vmul.f32 %v142, %v106
    %v159 = vmul.f32 %v145, %v106
    %v160 = vmul.f32 %v148, %v106
    %v161 = vmul.f32 %v151, %v106
    %v162 = vmul.f32 %v154, %v106
    %v163 = vadd.f32 %v155, 1e-05
    %v164 = vadd.f32 %v156, 1e-05
    %v165 = vadd.f32 %v157, 1e-05
    %v166 = vadd.f32 %v158, 1e-05
    %v167 = vadd.f32 %v159, 1e-05
    %v168 = vadd.f32 %v160, 1e-05
    %v169 = vadd.f32 %v161, 1e-05
    %v170 = vadd.f32 %v162, 1e-05
    %v171 = vrsqrt.pop %v163
    %v172 = vrsqrt.pop %v164
    %v173 = vrsqrt.pop %v165
    %v174 = vrsqrt.pop %v166
    %v175 = vrsqrt.pop %v167
    %v176 = vrsqrt.pop %v168
    %v177 = vrsqrt.pop %v169
    %v178 = vrsqrt.pop %v170
    %v179 = vmul.f32 %v115, %v171
    %v180 = vmul.f32 %v116, %v172
    %v181 = vmul.f32 %v117, %v173
    %v182 = vmul.f32 %v118, %v174
    %v183 = vmul.f32 %v119, %v175
    %v184 = vmul.f32 %v120, %v176
    %v185 = vmul.f32 %v121, %v177
    %v186 = vmul.f32 %v122, %v178
    %v187 = vld [vmem:[%s4] sm:$0x1]
    %v189 = vlaneseq
    %v190 = vshrl.u32 %v189, 7
    %v191 = vsub.s32 0, %v190
    %v192 = vrot.slane %v187, %v191
    %v194 = vmul.f32 %v179, %v192
    %v195 = vmul.f32 %v180, %v192
    %v196 = vmul.f32 %v181, %v192
    %v197 = vmul.f32 %v182, %v192
    %v198 = vmul.f32 %v183, %v192
    %v199 = vmul.f32 %v184, %v192
    %v200 = vmul.f32 %v185, %v192
    %v201 = vmul.f32 %v186, %v192
    %v202 = vld [vmem:[%s5] sm:$0x1]
    %v204 = vlaneseq
    %v205 = vshrl.u32 %v204, 7
    %v206 = vsub.s32 0, %v205
    %v207 = vrot.slane %v202, %v206
    %v209 = vadd.f32 %v194, %v207
    %v210 = vadd.f32 %v195, %v207
    %v211 = vadd.f32 %v196, %v207
    %v212 = vadd.f32 %v197, %v207
    %v213 = vadd.f32 %v198, %v207
    %v214 = vadd.f32 %v199, %v207
    %v215 = vadd.f32 %v200, %v207
    %v216 = vadd.f32 %v201, %v207
    %217 = vst.msk [vmem:[#allocation11] sm:$0xff] %vm81, %v209
    %218 = vst.msk [vmem:[#allocation11 + $0x8] sm:$0xff] %vm81, %v210
    %219 = vst.msk [vmem:[#allocation11 + $0x10] sm:$0xff] %vm81, %v211
    %220 = vst.msk [vmem:[#allocation11 + $0x18] sm:$0xff] %vm81, %v212
    %221 = vst.msk [vmem:[#allocation11 + $0x20] sm:$0xff] %vm81, %v213
    %222 = vst.msk [vmem:[#allocation11 + $0x28] sm:$0xff] %vm81, %v214
    %223 = vst.msk [vmem:[#allocation11 + $0x30] sm:$0xff] %vm81, %v215
    %224 = vst.msk [vmem:[#allocation11 + $0x38] sm:$0xff] %vm81, %v216
    %v225 = vpack.c.bf16 %v210, %v209
    %v226 = vpack.c.bf16 %v212, %v211
    %v227 = vpack.c.bf16 %v214, %v213
    %v228 = vpack.c.bf16 %v216, %v215
    %v229 = vld [vmem:[#allocation8] sm:$0xf]
    %v230 = vld [vmem:[#allocation8 + $0x4] sm:$0xf]
    %v231 = vld [vmem:[#allocation8 + $0x8] sm:$0xf]
    %v232 = vld [vmem:[#allocation8 + $0xc] sm:$0xf]
    %v233 = vld [vmem:[%s3] sm:$0x1]
    %v235 = vlaneseq
    %v236 = vshrl.u32 %v235, 7
    %v237 = vsub.s32 0, %v236
    %v238 = vrot.slane %v233, %v237
    %v244 = vunpack.c.l.b16 %v229
    %v245 = vunpack.c.l.b16 %v230
    %v246 = vunpack.c.l.b16 %v231
    %v247 = vunpack.c.l.b16 %v232
    %v248 = vpack.c.b16 %v245, %v244
    %v249 = vpack.c.b16 %v247, %v246
    %v253 = vsel %vm81, %v225, 0
    %v256 = vsel %vm81, %v226, 0
    %v259 = vsel %vm81, %v227, 0
    %v262 = vsel %vm81, %v228, 0
    %264 = vmatprep.subr.bf16.mxu0 0
    %265 = vmatpush1.bf16.msra.mxu0 %v248
    %266 = vmatprep.subr.bf16.mxu0 0
    %267 = vmatpush1.bf16.msra.mxu0 %v249
    %268 = vmatprep.subr.bf16.mxu0 0
    %269 = vmatpush1.bf16.msra.mxu0 0
    %270 = vmatprep.subr.bf16.mxu0 0
    %271 = vmatpush1.bf16.msra.mxu0 0
    %272 = vmatprep.subr.bf16.mxu0 0
    %273 = vmatpush1.bf16.msra.mxu0 0
    %274 = vmatprep.subr.bf16.mxu0 0
    %275 = vmatpush1.bf16.msra.mxu0 0
    %276 = vmatprep.subr.bf16.mxu0 0
    %277 = vmatpush1.bf16.msra.mxu0 0
    %278 = vmatprep.subr.bf16.mxu0 0
    %279 = vmatpush1.bf16.msra.mxu0 0
    %280 = vmatprep.subr.bf16.mxu0 0
    %281 = vmatpush1.bf16.msra.mxu0 0
    %282 = vmatprep.subr.bf16.mxu0 0
    %283 = vmatpush1.bf16.msra.mxu0 0
    %284 = vmatprep.subr.bf16.mxu0 0
    %285 = vmatpush1.bf16.msra.mxu0 0
    %286 = vmatprep.subr.bf16.mxu0 0
    %287 = vmatpush1.bf16.msra.mxu0 0
    %288 = vmatprep.subr.bf16.mxu0 0
    %289 = vmatpush1.bf16.msra.mxu0 0
    %290 = vmatprep.subr.bf16.mxu0 0
    %291 = vmatpush1.bf16.msra.mxu0 0
    %292 = vmatprep.subr.bf16.mxu0 0
    %293 = vmatpush1.bf16.msra.mxu0 0
    %294 = vmatprep.subr.bf16.mxu0 0
    %295 = vmatpush1.bf16.msra.mxu0 0
    %296 = vmatprep.mubr.bf16.mxu0 0
    %297 = vmatmul.mubr.bf16.gmra.mrb[0].mxu0 %v253
    %v298 = vpop.f32.mrb[0].mxu0
    %v299 = vadd.f32 %v238, %v298
    %v300 = vpop.f32.mrb[0].mxu0
    %v301 = vpop.f32.mrb[0].mxu0
    %v302 = vadd.f32 %v238, %v301
    %v303 = vpop.f32.mrb[0].mxu0
    %304 = vmatprep.mubr.bf16.mxu0 0
    %305 = vmatmul.mubr.bf16.gmra.mrb[0].mxu0 %v256
    %v306 = vpop.f32.mrb[0].mxu0
    %v307 = vadd.f32 %v238, %v306
    %v308 = vpop.f32.mrb[0].mxu0
    %v309 = vpop.f32.mrb[0].mxu0
    %v310 = vadd.f32 %v238, %v309
    %v311 = vpop.f32.mrb[0].mxu0
    %312 = vmatprep.mubr.bf16.mxu0 0
    %313 = vmatmul.mubr.bf16.gmra.mrb[0].mxu0 %v259
    %v314 = vpop.f32.mrb[0].mxu0
    %v315 = vadd.f32 %v238, %v314
    %v316 = vpop.f32.mrb[0].mxu0
    %v317 = vpop.f32.mrb[0].mxu0
    %v318 = vadd.f32 %v238, %v317
    %v319 = vpop.f32.mrb[0].mxu0
    %320 = vmatprep.mubr.bf16.mxu0 0
    %321 = vmatmul.mubr.bf16.gmra.mrb[0].mxu0 %v262
    %v322 = vpop.f32.mrb[0].mxu0
    %v323 = vadd.f32 %v238, %v322
    %v324 = vpop.f32.mrb[0].mxu0
    %v325 = vpop.f32.mrb[0].mxu0
    %v326 = vadd.f32 %v238, %v325
    %v327 = vpop.f32.mrb[0].mxu0
    %328 = vdwg.mxu0
    %329 = vst [vmem:[#allocation4] sm:$0xff] %v299
    %330 = vst [vmem:[#allocation4 + $0x8] sm:$0xff] %v302
    %331 = vst [vmem:[#allocation4 + $0x10] sm:$0xff] %v307
    %332 = vst [vmem:[#allocation4 + $0x18] sm:$0xff] %v310
    %333 = vst [vmem:[#allocation4 + $0x20] sm:$0xff] %v315
    %334 = vst [vmem:[#allocation4 + $0x28] sm:$0xff] %v318
    %335 = vst [vmem:[#allocation4 + $0x30] sm:$0xff] %v323
    %336 = vst [vmem:[#allocation4 + $0x38] sm:$0xff] %v326
    %v337 = vld [vmem:[#allocation10] sm:$0xf]
    %v338 = vld [vmem:[#allocation10 + $0x4] sm:$0xf]
    %v339 = vld [vmem:[#allocation10 + $0x8] sm:$0xf]
    %v340 = vld [vmem:[#allocation10 + $0xc] sm:$0xf]
    %v341 = vld [vmem:[#allocation2] sm:$0xff]
    %v342 = vld [vmem:[#allocation3] sm:$0xff]
    %v343 = vld [vmem:[#allocation4] sm:$0x1]
    %v344 = vld [vmem:[#allocation4 + $0x8] sm:$0x1]
    %v345 = vld [vmem:[#allocation4 + $0x10] sm:$0x1]
    %v346 = vld [vmem:[#allocation4 + $0x18] sm:$0x1]
    %v347 = vld [vmem:[#allocation4 + $0x20] sm:$0x1]
    %v348 = vld [vmem:[#allocation4 + $0x28] sm:$0x1]
    %v349 = vld [vmem:[#allocation4 + $0x30] sm:$0x1]
    %v350 = vld [vmem:[#allocation4 + $0x38] sm:$0x1]
    %v351 = vpack.c.bf16 %v341, %v341
    %v356 = vunpack.c.l.b16 %v337
    %v357 = vunpack.c.l.b16 %v338
    %v358 = vunpack.c.l.b16 %v339
    %v359 = vunpack.c.l.b16 %v340
    %v360 = vpack.c.b16 %v357, %v356
    %v361 = vpack.c.b16 %v359, %v358
    %v365 = vsel %vm81, %v351, 0
    %367 = vmatprep.subr.bf16.mxu0 0
    %368 = vmatpush1.bf16.msra.mxu0 %v360
    %369 = vmatprep.subr.bf16.mxu0 0
    %370 = vmatpush1.bf16.msra.mxu0 %v361
    %371 = vmatprep.subr.bf16.mxu0 0
    %372 = vmatpush1.bf16.msra.mxu0 0
    %373 = vmatprep.subr.bf16.mxu0 0
    %374 = vmatpush1.bf16.msra.mxu0 0
    %375 = vmatprep.subr.bf16.mxu0 0
    %376 = vmatpush1.bf16.msra.mxu0 0
    %377 = vmatprep.subr.bf16.mxu0 0
    %378 = vmatpush1.bf16.msra.mxu0 0
    %379 = vmatprep.subr.bf16.mxu0 0
    %380 = vmatpush1.bf16.msra.mxu0 0
    %381 = vmatprep.subr.bf16.mxu0 0
    %382 = vmatpush1.bf16.msra.mxu0 0
    %383 = vmatprep.subr.bf16.mxu0 0
    %384 = vmatpush1.bf16.msra.mxu0 0
    %385 = vmatprep.subr.bf16.mxu0 0
    %386 = vmatpush1.bf16.msra.mxu0 0
    %387 = vmatprep.subr.bf16.mxu0 0
    %388 = vmatpush1.bf16.msra.mxu0 0
    %389 = vmatprep.subr.bf16.mxu0 0
    %390 = vmatpush1.bf16.msra.mxu0 0
    %391 = vmatprep.subr.bf16.mxu0 0
    %392 = vmatpush1.bf16.msra.mxu0 0
    %393 = vmatprep.subr.bf16.mxu0 0
    %394 = vmatpush1.bf16.msra.mxu0 0
    %395 = vmatprep.subr.bf16.mxu0 0
    %396 = vmatpush1.bf16.msra.mxu0 0
    %397 = vmatprep.subr.bf16.mxu0 0
    %398 = vmatpush1.bf16.msra.mxu0 0
    %399 = vmatprep.mubr.bf16.mxu0 0
    %400 = vmatmul.mubr.bf16.gmra.mrb[0].mxu0 %v365
    %v401 = vpop.f32.mrb[0].mxu0
    %v402 = vadd.f32 0.0, %v401
    %v403 = vpop.f32.mrb[0].mxu0
    %v404 = vpop.f32.mrb[0].mxu0
    %v405 = vpop.f32.mrb[0].mxu0
    %406 = vdwg.mxu0
    %v408 = vrot.slane %v402, 1
    %v409 = vrot.slane %v402, 2
    %v410 = vrot.slane %v402, 3
    %v411 = vrot.slane %v402, 4
    %v412 = vrot.slane %v402, 5
    %v413 = vrot.slane %v402, 6
    %v414 = vrot.slane %v402, 7
    %v423 = vadd.f32 %v343, %v402
    %v424 = vadd.f32 %v344, %v408
    %v425 = vadd.f32 %v345, %v409
    %v426 = vadd.f32 %v346, %v410
    %v427 = vadd.f32 %v347, %v411
    %v428 = vadd.f32 %v348, %v412
    %v429 = vadd.f32 %v349, %v413
    %v430 = vadd.f32 %v350, %v414
    %v431 = vxor.u32 %v423, 2147483648
    %v432 = vxor.u32 %v424, 2147483648
    %v433 = vxor.u32 %v425, 2147483648
    %v434 = vxor.u32 %v426, 2147483648
    %v435 = vxor.u32 %v427, 2147483648
    %v436 = vxor.u32 %v428, 2147483648
    %v437 = vxor.u32 %v429, 2147483648
    %v438 = vxor.u32 %v430, 2147483648
    %v439 = vmul.f32 %v431, 1.442695
    %v440 = vpow.pop %v439
    %v441 = vmul.f32 %v432, 1.442695
    %v442 = vpow.pop %v441
    %v443 = vmul.f32 %v433, 1.442695
    %v444 = vpow.pop %v443
    %v445 = vmul.f32 %v434, 1.442695
    %v446 = vpow.pop %v445
    %v447 = vmul.f32 %v435, 1.442695
    %v448 = vpow.pop %v447
    %v449 = vmul.f32 %v436, 1.442695
    %v450 = vpow.pop %v449
    %v451 = vmul.f32 %v437, 1.442695
    %v452 = vpow.pop %v451
    %v453 = vmul.f32 %v438, 1.442695
    %v454 = vpow.pop %v453
    %v455 = vadd.f32 %v440, 1.0
    %v456 = vadd.f32 %v442, 1.0
    %v457 = vadd.f32 %v444, 1.0
    %v458 = vadd.f32 %v446, 1.0
    %v459 = vadd.f32 %v448, 1.0
    %v460 = vadd.f32 %v450, 1.0
    %v461 = vadd.f32 %v452, 1.0
    %v462 = vadd.f32 %v454, 1.0
    %v463 = vrcp.pop %v455
    %v464 = vmul.f32 1.0, %v463
    %v465 = vrcp.pop %v456
    %v466 = vmul.f32 1.0, %v465
    %v467 = vrcp.pop %v457
    %v468 = vmul.f32 1.0, %v467
    %v469 = vrcp.pop %v458
    %v470 = vmul.f32 1.0, %v469
    %v471 = vrcp.pop %v459
    %v472 = vmul.f32 1.0, %v471
    %v473 = vrcp.pop %v460
    %v474 = vmul.f32 1.0, %v473
    %v475 = vrcp.pop %v461
    %v476 = vmul.f32 1.0, %v475
    %v477 = vrcp.pop %v462
    %v478 = vmul.f32 1.0, %v477
    %v479 = vtanh.pop %v423
    %v480 = vtanh.pop %v424
    %v481 = vtanh.pop %v425
    %v482 = vtanh.pop %v426
    %v483 = vtanh.pop %v427
    %v484 = vtanh.pop %v428
    %v485 = vtanh.pop %v429
    %v486 = vtanh.pop %v430
    %v488 = vrot.slane %v342, 1
    %v489 = vrot.slane %v342, 2
    %v490 = vrot.slane %v342, 3
    %v491 = vrot.slane %v342, 4
    %v492 = vrot.slane %v342, 5
    %v493 = vrot.slane %v342, 6
    %v494 = vrot.slane %v342, 7
    %495 = vrot.lane.b32.xlu0 %v342, 32
    %v496 = vpop.permute.xlu0 %495
    %497 = vrot.lane.b32.xlu0 %v488, 32
    %v498 = vpop.permute.xlu0 %497
    %499 = vrot.lane.b32.xlu0 %v489, 32
    %v500 = vpop.permute.xlu0 %499
    %501 = vrot.lane.b32.xlu0 %v490, 32
    %v502 = vpop.permute.xlu0 %501
    %503 = vrot.lane.b32.xlu0 %v491, 32
    %v504 = vpop.permute.xlu0 %503
    %505 = vrot.lane.b32.xlu0 %v492, 32
    %v506 = vpop.permute.xlu0 %505
    %507 = vrot.lane.b32.xlu0 %v493, 32
    %v508 = vpop.permute.xlu0 %507
    %509 = vrot.lane.b32.xlu0 %v494, 32
    %v510 = vpop.permute.xlu0 %509
    %v519 = vmul.f32 %v464, %v496
    %v520 = vmul.f32 %v466, %v498
    %v521 = vmul.f32 %v468, %v500
    %v522 = vmul.f32 %v470, %v502
    %v523 = vmul.f32 %v472, %v504
    %v524 = vmul.f32 %v474, %v506
    %v525 = vmul.f32 %v476, %v508
    %v526 = vmul.f32 %v478, %v510
    %535 = vrot.lane.b32.xlu0 %v479, 64
    %v536 = vpop.permute.xlu0 %535
    %537 = vrot.lane.b32.xlu0 %v480, 64
    %v538 = vpop.permute.xlu0 %537
    %539 = vrot.lane.b32.xlu0 %v481, 64
    %v540 = vpop.permute.xlu0 %539
    %541 = vrot.lane.b32.xlu0 %v482, 64
    %v542 = vpop.permute.xlu0 %541
    %543 = vrot.lane.b32.xlu0 %v483, 64
    %v544 = vpop.permute.xlu0 %543
    %545 = vrot.lane.b32.xlu0 %v484, 64
    %v546 = vpop.permute.xlu0 %545
    %547 = vrot.lane.b32.xlu0 %v485, 64
    %v548 = vpop.permute.xlu0 %547
    %549 = vrot.lane.b32.xlu0 %v486, 64
    %v550 = vpop.permute.xlu0 %549
    %v559 = vmul.f32 %v464, %v536
    %v560 = vmul.f32 %v466, %v538
    %v561 = vmul.f32 %v468, %v540
    %v562 = vmul.f32 %v470, %v542
    %v563 = vmul.f32 %v472, %v544
    %v564 = vmul.f32 %v474, %v546
    %v565 = vmul.f32 %v476, %v548
    %v566 = vmul.f32 %v478, %v550
    %575 = vrot.lane.b32.xlu0 %v559, 32
    %v576 = vpop.permute.xlu0 %575
    %577 = vrot.lane.b32.xlu0 %v560, 32
    %v578 = vpop.permute.xlu0 %577
    %579 = vrot.lane.b32.xlu0 %v561, 32
    %v580 = vpop.permute.xlu0 %579
    %581 = vrot.lane.b32.xlu0 %v562, 32
    %v582 = vpop.permute.xlu0 %581
    %583 = vrot.lane.b32.xlu0 %v563, 32
    %v584 = vpop.permute.xlu0 %583
    %585 = vrot.lane.b32.xlu0 %v564, 32
    %v586 = vpop.permute.xlu0 %585
    %587 = vrot.lane.b32.xlu0 %v565, 32
    %v588 = vpop.permute.xlu0 %587
    %589 = vrot.lane.b32.xlu0 %v566, 32
    %v590 = vpop.permute.xlu0 %589
    %v599 = vadd.f32 %v519, %v576
    %v600 = vadd.f32 %v520, %v578
    %v601 = vadd.f32 %v521, %v580
    %v602 = vadd.f32 %v522, %v582
    %v603 = vadd.f32 %v523, %v584
    %v604 = vadd.f32 %v524, %v586
    %v605 = vadd.f32 %v525, %v588
    %v606 = vadd.f32 %v526, %v590
    %v607 = vtanh.pop %v599
    %v608 = vtanh.pop %v600
    %v609 = vtanh.pop %v601
    %v610 = vtanh.pop %v602
    %v611 = vtanh.pop %v603
    %v612 = vtanh.pop %v604
    %v613 = vtanh.pop %v605
    %v614 = vtanh.pop %v606
    %623 = vrot.lane.b32.xlu0 %v607, 64
    %v624 = vpop.permute.xlu0 %623
    %625 = vrot.lane.b32.xlu0 %v608, 64
    %v626 = vpop.permute.xlu0 %625
    %627 = vrot.lane.b32.xlu0 %v609, 64
    %v628 = vpop.permute.xlu0 %627
    %629 = vrot.lane.b32.xlu0 %v610, 64
    %v630 = vpop.permute.xlu0 %629
    %631 = vrot.lane.b32.xlu0 %v611, 64
    %v632 = vpop.permute.xlu0 %631
    %633 = vrot.lane.b32.xlu0 %v612, 64
    %v634 = vpop.permute.xlu0 %633
    %635 = vrot.lane.b32.xlu0 %v613, 64
    %v636 = vpop.permute.xlu0 %635
    %637 = vrot.lane.b32.xlu0 %v614, 64
    %v638 = vpop.permute.xlu0 %637
    %v647 = vmul.f32 %v464, %v624
    %v648 = vmul.f32 %v466, %v626
    %v649 = vmul.f32 %v468, %v628
    %v650 = vmul.f32 %v470, %v630
    %v651 = vmul.f32 %v472, %v632
    %v652 = vmul.f32 %v474, %v634
    %v653 = vmul.f32 %v476, %v636
    %v654 = vmul.f32 %v478, %v638
    %v655 = vld [vmem:[#allocation11] sm:$0x1]
    %v656 = vld [vmem:[#allocation11 + $0x8] sm:$0x1]
    %v657 = vld [vmem:[#allocation11 + $0x10] sm:$0x1]
    %v658 = vld [vmem:[#allocation11 + $0x18] sm:$0x1]
    %v659 = vld [vmem:[#allocation11 + $0x20] sm:$0x1]
    %v660 = vld [vmem:[#allocation11 + $0x28] sm:$0x1]
    %v661 = vld [vmem:[#allocation11 + $0x30] sm:$0x1]
    %v662 = vld [vmem:[#allocation11 + $0x38] sm:$0x1]
    %671 = vrot.lane.b32.xlu0 %v647, 32
    %v672 = vpop.permute.xlu0 %671
    %673 = vrot.lane.b32.xlu0 %v648, 32
    %v674 = vpop.permute.xlu0 %673
    %675 = vrot.lane.b32.xlu0 %v649, 32
    %v676 = vpop.permute.xlu0 %675
    %677 = vrot.lane.b32.xlu0 %v650, 32
    %v678 = vpop.permute.xlu0 %677
    %679 = vrot.lane.b32.xlu0 %v651, 32
    %v680 = vpop.permute.xlu0 %679
    %681 = vrot.lane.b32.xlu0 %v652, 32
    %v682 = vpop.permute.xlu0 %681
    %683 = vrot.lane.b32.xlu0 %v653, 32
    %v684 = vpop.permute.xlu0 %683
    %685 = vrot.lane.b32.xlu0 %v654, 32
    %v686 = vpop.permute.xlu0 %685
    %v695 = vadd.f32 %v655, %v672
    %v696 = vadd.f32 %v656, %v674
    %v697 = vadd.f32 %v657, %v676
    %v698 = vadd.f32 %v658, %v678
    %v699 = vadd.f32 %v659, %v680
    %v700 = vadd.f32 %v660, %v682
    %v701 = vadd.f32 %v661, %v684
    %v702 = vadd.f32 %v662, %v686
    %vm703 = vcmask 253952
    %704 = vst.msk [vmem:[#allocation11] sm:$0x1] %vm703, %v695
    %705 = vst.msk [vmem:[#allocation11 + $0x8] sm:$0x1] %vm703, %v696
    %706 = vst.msk [vmem:[#allocation11 + $0x10] sm:$0x1] %vm703, %v697
    %707 = vst.msk [vmem:[#allocation11 + $0x18] sm:$0x1] %vm703, %v698
    %708 = vst.msk [vmem:[#allocation11 + $0x20] sm:$0x1] %vm703, %v699
    %709 = vst.msk [vmem:[#allocation11 + $0x28] sm:$0x1] %vm703, %v700
    %710 = vst.msk [vmem:[#allocation11 + $0x30] sm:$0x1] %vm703, %v701
    %711 = vst.msk [vmem:[#allocation11 + $0x38] sm:$0x1] %vm703, %v702
    %v712 = vld [vmem:[#allocation4 + $0x1] sm:$0x1]
    %v713 = vld [vmem:[#allocation4 + $0x9] sm:$0x1]
    %v714 = vld [vmem:[#allocation4 + $0x11] sm:$0x1]
    %v715 = vld [vmem:[#allocation4 + $0x19] sm:$0x1]
    %v716 = vld [vmem:[#allocation4 + $0x21] sm:$0x1]
    %v717 = vld [vmem:[#allocation4 + $0x29] sm:$0x1]
    %v718 = vld [vmem:[#allocation4 + $0x31] sm:$0x1]
    %v719 = vld [vmem:[#allocation4 + $0x39] sm:$0x1]
    %v720 = vpack.c.bf16 %v647, %v647
    %v721 = vpack.c.bf16 %v648, %v648
    %v722 = vpack.c.bf16 %v649, %v649
    %v723 = vpack.c.bf16 %v650, %v650
    %v724 = vpack.c.bf16 %v651, %v651
    %v725 = vpack.c.bf16 %v652, %v652
    %v726 = vpack.c.bf16 %v653, %v653
    %v727 = vpack.c.bf16 %v654, %v654
    %v736 = vunpack.c.l.b16 %v720
    %v737 = vunpack.c.l.b16 %v721
    %v738 = vunpack.c.l.b16 %v722
    %v739 = vunpack.c.l.b16 %v723
    %v740 = vunpack.c.l.b16 %v724
    %v741 = vunpack.c.l.b16 %v725
    %v742 = vunpack.c.l.b16 %v726
    %v743 = vunpack.c.l.b16 %v727
    %v744 = vrot.slane %v737, 7
    %vm745 = vcmask 1041409
    %v746 = vsel %vm745, %v744, %v736
    %v747 = vrot.slane %v738, 6
    %vm748 = vcmask 1042434
    %v749 = vsel %vm748, %v747, %v746
    %v750 = vrot.slane %v739, 5
    %vm751 = vcmask 1043459
    %v752 = vsel %vm751, %v750, %v749
    %v753 = vrot.slane %v740, 4
    %vm754 = vcmask 1044484
    %v755 = vsel %vm754, %v753, %v752
    %v756 = vrot.slane %v741, 3
    %vm757 = vcmask 1045509
    %v758 = vsel %vm757, %v756, %v755
    %v759 = vrot.slane %v742, 2
    %vm760 = vcmask 1046534
    %v761 = vsel %vm760, %v759, %v758
    %v762 = vrot.slane %v743, 1
    %vm763 = vcmask 1047559
    %v764 = vsel %vm763, %v762, %v761
    %v765 = vpack.c.b16 %v764, %v764
    %766 = vrot.lane.b32.xlu0 %v765, 32
    %v767 = vpop.permute.xlu0 %766
    %v769 = vsel %vm81, %v767, 0
    %771 = vmatprep.subr.bf16.mxu0 0
    %772 = vmatpush1.bf16.msra.mxu0 %v360
    %773 = vmatprep.subr.bf16.mxu0 0
    %774 = vmatpush1.bf16.msra.mxu0 %v361
    %775 = vmatprep.subr.bf16.mxu0 0
    %776 = vmatpush1.bf16.msra.mxu0 0
    %777 = vmatprep.subr.bf16.mxu0 0
    %778 = vmatpush1.bf16.msra.mxu0 0
    %779 = vmatprep.subr.bf16.mxu0 0
    %780 = vmatpush1.bf16.msra.mxu0 0
    %781 = vmatprep.subr.bf16.mxu0 0
    %782 = vmatpush1.bf16.msra.mxu0 0
    %783 = vmatprep.subr.bf16.mxu0 0
    %784 = vmatpush1.bf16.msra.mxu0 0
    %785 = vmatprep.subr.bf16.mxu0 0
    %786 = vmatpush1.bf16.msra.mxu0 0
    %787 = vmatprep.subr.bf16.mxu0 0
    %788 = vmatpush1.bf16.msra.mxu0 0
    %789 = vmatprep.subr.bf16.mxu0 0
    %790 = vmatpush1.bf16.msra.mxu0 0
    %791 = vmatprep.subr.bf16.mxu0 0
    %792 = vmatpush1.bf16.msra.mxu0 0
    %793 = vmatprep.subr.bf16.mxu0 0
    %794 = vmatpush1.bf16.msra.mxu0 0
    %795 = vmatprep.subr.bf16.mxu0 0
    %796 = vmatpush1.bf16.msra.mxu0 0
    %797 = vmatprep.subr.bf16.mxu0 0
    %798 = vmatpush1.bf16.msra.mxu0 0
    %799 = vmatprep.subr.bf16.mxu0 0
    %800 = vmatpush1.bf16.msra.mxu0 0
    %801 = vmatprep.subr.bf16.mxu0 0
    %802 = vmatpush1.bf16.msra.mxu0 0
    %803 = vmatprep.mubr.bf16.mxu0 0
    %804 = vmatmul.mubr.bf16.gmra.mrb[0].mxu0 %v769
    %v805 = vpop.f32.mrb[0].mxu0
    %v806 = vadd.f32 0.0, %v805
    %v807 = vpop.f32.mrb[0].mxu0
    %v808 = vpop.f32.mrb[0].mxu0
    %v809 = vpop.f32.mrb[0].mxu0
    %810 = vdwg.mxu0
    %v812 = vrot.slane %v806, 1
    %v813 = vrot.slane %v806, 2
    %v814 = vrot.slane %v806, 3
    %v815 = vrot.slane %v806, 4
    %v816 = vrot.slane %v806, 5
    %v817 = vrot.slane %v806, 6
    %v818 = vrot.slane %v806, 7
    %v827 = vadd.f32 %v712, %v806
    %v828 = vadd.f32 %v713, %v812
    %v829 = vadd.f32 %v714, %v813
    %v830 = vadd.f32 %v715, %v814
    %v831 = vadd.f32 %v716, %v815
    %v832 = vadd.f32 %v717, %v816
    %v833 = vadd.f32 %v718, %v817
    %v834 = vadd.f32 %v719, %v818
    %v835 = vxor.u32 %v827, 2147483648
    %v836 = vxor.u32 %v828, 2147483648
    %v837 = vxor.u32 %v829, 2147483648
    %v838 = vxor.u32 %v830, 2147483648
    %v839 = vxor.u32 %v831, 2147483648
    %v840 = vxor.u32 %v832, 2147483648
    %v841 = vxor.u32 %v833, 2147483648
    %v842 = vxor.u32 %v834, 2147483648
    %v843 = vmul.f32 %v835, 1.442695
    %v844 = vpow.pop %v843
    %v845 = vmul.f32 %v836, 1.442695
    %v846 = vpow.pop %v845
    %v847 = vmul.f32 %v837, 1.442695
    %v848 = vpow.pop %v847
    %v849 = vmul.f32 %v838, 1.442695
    %v850 = vpow.pop %v849
    %v851 = vmul.f32 %v839, 1.442695
    %v852 = vpow.pop %v851
    %v853 = vmul.f32 %v840, 1.442695
    %v854 = vpow.pop %v853
    %v855 = vmul.f32 %v841, 1.442695
    %v856 = vpow.pop %v855
    %v857 = vmul.f32 %v842, 1.442695
    %v858 = vpow.pop %v857
    %v859 = vadd.f32 %v844, 1.0
    %v860 = vadd.f32 %v846, 1.0
    %v861 = vadd.f32 %v848, 1.0
    %v862 = vadd.f32 %v850, 1.0
    %v863 = vadd.f32 %v852, 1.0
    %v864 = vadd.f32 %v854, 1.0
    %v865 = vadd.f32 %v856, 1.0
    %v866 = vadd.f32 %v858, 1.0
    %v867 = vrcp.pop %v859
    %v868 = vmul.f32 1.0, %v867
    %v869 = vrcp.pop %v860
    %v870 = vmul.f32 1.0, %v869
    %v871 = vrcp.pop %v861
    %v872 = vmul.f32 1.0, %v871
    %v873 = vrcp.pop %v862
    %v874 = vmul.f32 1.0, %v873
    %v875 = vrcp.pop %v863
    %v876 = vmul.f32 1.0, %v875
    %v877 = vrcp.pop %v864
    %v878 = vmul.f32 1.0, %v877
    %v879 = vrcp.pop %v865
    %v880 = vmul.f32 1.0, %v879
    %v881 = vrcp.pop %v866
    %v882 = vmul.f32 1.0, %v881
    %v883 = vtanh.pop %v827
    %v884 = vtanh.pop %v828
    %v885 = vtanh.pop %v829
    %v886 = vtanh.pop %v830
    %v887 = vtanh.pop %v831
    %v888 = vtanh.pop %v832
    %v889 = vtanh.pop %v833
    %v890 = vtanh.pop %v834
    %v891 = vmul.f32 %v868, %v599
    %v892 = vmul.f32 %v870, %v600
    %v893 = vmul.f32 %v872, %v601
    %v894 = vmul.f32 %v874, %v602
    %v895 = vmul.f32 %v876, %v603
    %v896 = vmul.f32 %v878, %v604
    %v897 = vmul.f32 %v880, %v605
    %v898 = vmul.f32 %v882, %v606
    %907 = vrot.lane.b32.xlu0 %v883, 64
    %v908 = vpop.permute.xlu0 %907
    %909 = vrot.lane.b32.xlu0 %v884, 64
    %v910 = vpop.permute.xlu0 %909
    %911 = vrot.lane.b32.xlu0 %v885, 64
    %v912 = vpop.permute.xlu0 %911
    %913 = vrot.lane.b32.xlu0 %v886, 64
    %v914 = vpop.permute.xlu0 %913
    %915 = vrot.lane.b32.xlu0 %v887, 64
    %v916 = vpop.permute.xlu0 %915
    %917 = vrot.lane.b32.xlu0 %v888, 64
    %v918 = vpop.permute.xlu0 %917
    %919 = vrot.lane.b32.xlu0 %v889, 64
    %v920 = vpop.permute.xlu0 %919
    %921 = vrot.lane.b32.xlu0 %v890, 64
    %v922 = vpop.permute.xlu0 %921
    %v931 = vmul.f32 %v868, %v908
    %v932 = vmul.f32 %v870, %v910
    %v933 = vmul.f32 %v872, %v912
    %v934 = vmul.f32 %v874, %v914
    %v935 = vmul.f32 %v876, %v916
    %v936 = vmul.f32 %v878, %v918
    %v937 = vmul.f32 %v880, %v920
    %v938 = vmul.f32 %v882, %v922
    %947 = vrot.lane.b32.xlu0 %v931, 32
    %v948 = vpop.permute.xlu0 %947
    %949 = vrot.lane.b32.xlu0 %v932, 32
    %v950 = vpop.permute.xlu0 %949
    %951 = vrot.lane.b32.xlu0 %v933, 32
    %v952 = vpop.permute.xlu0 %951
    %953 = vrot.lane.b32.xlu0 %v934, 32
    %v954 = vpop.permute.xlu0 %953
    %955 = vrot.lane.b32.xlu0 %v935, 32
    %v956 = vpop.permute.xlu0 %955
    %957 = vrot.lane.b32.xlu0 %v936, 32
    %v958 = vpop.permute.xlu0 %957
    %959 = vrot.lane.b32.xlu0 %v937, 32
    %v960 = vpop.permute.xlu0 %959
    %961 = vrot.lane.b32.xlu0 %v938, 32
    %v962 = vpop.permute.xlu0 %961
    %v971 = vadd.f32 %v891, %v948
    %v972 = vadd.f32 %v892, %v950
    %v973 = vadd.f32 %v893, %v952
    %v974 = vadd.f32 %v894, %v954
    %v975 = vadd.f32 %v895, %v956
    %v976 = vadd.f32 %v896, %v958
    %v977 = vadd.f32 %v897, %v960
    %v978 = vadd.f32 %v898, %v962
    %v979 = vtanh.pop %v971
    %v980 = vtanh.pop %v972
    %v981 = vtanh.pop %v973
    %v982 = vtanh.pop %v974
    %v983 = vtanh.pop %v975
    %v984 = vtanh.pop %v976
    %v985 = vtanh.pop %v977
    %v986 = vtanh.pop %v978
    %995 = vrot.lane.b32.xlu0 %v979, 64
    %v996 = vpop.permute.xlu0 %995
    %997 = vrot.lane.b32.xlu0 %v980, 64
    %v998 = vpop.permute.xlu0 %997
    %999 = vrot.lane.b32.xlu0 %v981, 64
    %v1000 = vpop.permute.xlu0 %999
    %1001 = vrot.lane.b32.xlu0 %v982, 64
    %v1002 = vpop.permute.xlu0 %1001
    %1003 = vrot.lane.b32.xlu0 %v983, 64
    %v1004 = vpop.permute.xlu0 %1003
    %1005 = vrot.lane.b32.xlu0 %v984, 64
    %v1006 = vpop.permute.xlu0 %1005
    %1007 = vrot.lane.b32.xlu0 %v985, 64
    %v1008 = vpop.permute.xlu0 %1007
    %1009 = vrot.lane.b32.xlu0 %v986, 64
    %v1010 = vpop.permute.xlu0 %1009
    %v1019 = vmul.f32 %v868, %v996
    %v1020 = vmul.f32 %v870, %v998
    %v1021 = vmul.f32 %v872, %v1000
    %v1022 = vmul.f32 %v874, %v1002
    %v1023 = vmul.f32 %v876, %v1004
    %v1024 = vmul.f32 %v878, %v1006
    %v1025 = vmul.f32 %v880, %v1008
    %v1026 = vmul.f32 %v882, %v1010
    %v1027 = vld [vmem:[#allocation11 + $0x1] sm:$0x1]
    %v1028 = vld [vmem:[#allocation11 + $0x9] sm:$0x1]
    %v1029 = vld [vmem:[#allocation11 + $0x11] sm:$0x1]
    %v1030 = vld [vmem:[#allocation11 + $0x19] sm:$0x1]
    %v1031 = vld [vmem:[#allocation11 + $0x21] sm:$0x1]
    %v1032 = vld [vmem:[#allocation11 + $0x29] sm:$0x1]
    %v1033 = vld [vmem:[#allocation11 + $0x31] sm:$0x1]
    %v1034 = vld [vmem:[#allocation11 + $0x39] sm:$0x1]
    %1043 = vrot.lane.b32.xlu0 %v1019, 32
    %v1044 = vpop.permute.xlu0 %1043
    %1045 = vrot.lane.b32.xlu0 %v1020, 32
    %v1046 = vpop.permute.xlu0 %1045
    %1047 = vrot.lane.b32.xlu0 %v1021, 32
    %v1048 = vpop.permute.xlu0 %1047
    %1049 = vrot.lane.b32.xlu0 %v1022, 32
    %v1050 = vpop.permute.xlu0 %1049
    %1051 = vrot.lane.b32.xlu0 %v1023, 32
    %v1052 = vpop.permute.xlu0 %1051
    %1053 = vrot.lane.b32.xlu0 %v1024, 32
    %v1054 = vpop.permute.xlu0 %1053
    %1055 = vrot.lane.b32.xlu0 %v1025, 32
    %v1056 = vpop.permute.xlu0 %1055
    %1057 = vrot.lane.b32.xlu0 %v1026, 32
    %v1058 = vpop.permute.xlu0 %1057
    %v1067 = vadd.f32 %v1027, %v1044
    %v1068 = vadd.f32 %v1028, %v1046
    %v1069 = vadd.f32 %v1029, %v1048
    %v1070 = vadd.f32 %v1030, %v1050
    %v1071 = vadd.f32 %v1031, %v1052
    %v1072 = vadd.f32 %v1032, %v1054
    %v1073 = vadd.f32 %v1033, %v1056
    %v1074 = vadd.f32 %v1034, %v1058
    %1075 = vst.msk [vmem:[#allocation11 + $0x1] sm:$0x1] %vm703, %v1067
    %1076 = vst.msk [vmem:[#allocation11 + $0x9] sm:$0x1] %vm703, %v1068
    %1077 = vst.msk [vmem:[#allocation11 + $0x11] sm:$0x1] %vm703, %v1069
    %1078 = vst.msk [vmem:[#allocation11 + $0x19] sm:$0x1] %vm703, %v1070
    %1079 = vst.msk [vmem:[#allocation11 + $0x21] sm:$0x1] %vm703, %v1071
    %1080 = vst.msk [vmem:[#allocation11 + $0x29] sm:$0x1] %vm703, %v1072
    %1081 = vst.msk [vmem:[#allocation11 + $0x31] sm:$0x1] %vm703, %v1073
    %1082 = vst.msk [vmem:[#allocation11 + $0x39] sm:$0x1] %vm703, %v1074
    %v1083 = vld [vmem:[#allocation4 + $0x2] sm:$0x1]
    %v1084 = vld [vmem:[#allocation4 + $0xa] sm:$0x1]
    %v1085 = vld [vmem:[#allocation4 + $0x12] sm:$0x1]
    %v1086 = vld [vmem:[#allocation4 + $0x1a] sm:$0x1]
    %v1087 = vld [vmem:[#allocation4 + $0x22] sm:$0x1]
    %v1088 = vld [vmem:[#allocation4 + $0x2a] sm:$0x1]
    %v1089 = vld [vmem:[#allocation4 + $0x32] sm:$0x1]
    %v1090 = vld [vmem:[#allocation4 + $0x3a] sm:$0x1]
    %v1091 = vpack.c.bf16 %v1019, %v1019
    %v1092 = vpack.c.bf16 %v1020, %v1020
    %v1093 = vpack.c.bf16 %v1021, %v1021
    %v1094 = vpack.c.bf16 %v1022, %v1022
    %v1095 = vpack.c.bf16 %v1023, %v1023
    %v1096 = vpack.c.bf16 %v1024, %v1024
    %v1097 = vpack.c.bf16 %v1025, %v1025
    %v1098 = vpack.c.bf16 %v1026, %v1026
    %v1107 = vunpack.c.l.b16 %v1091
    %v1108 = vunpack.c.l.b16 %v1092
    %v1109 = vunpack.c.l.b16 %v1093
    %v1110 = vunpack.c.l.b16 %v1094
    %v1111 = vunpack.c.l.b16 %v1095
    %v1112 = vunpack.c.l.b16 %v1096
    %v1113 = vunpack.c.l.b16 %v1097
    %v1114 = vunpack.c.l.b16 %v1098
    %v1115 = vrot.slane %v1108, 7
    %v1116 = vsel %vm745, %v1115, %v1107
    %v1117 = vrot.slane %v1109, 6
    %v1118 = vsel %vm748, %v1117, %v1116
    %v1119 = vrot.slane %v1110, 5
    %v1120 = vsel %vm751, %v1119, %v1118
    %v1121 = vrot.slane %v1111, 4
    %v1122 = vsel %vm754, %v1121, %v1120
    %v1123 = vrot.slane %v1112, 3
    %v1124 = vsel %vm757, %v1123, %v1122
    %v1125 = vrot.slane %v1113, 2
    %v1126 = vsel %vm760, %v1125, %v1124
    %v1127 = vrot.slane %v1114, 1
    %v1128 = vsel %vm763, %v1127, %v1126
    %v1129 = vpack.c.b16 %v1128, %v1128
    %1130 = vrot.lane.b32.xlu0 %v1129, 32
    %v1131 = vpop.permute.xlu0 %1130
    %v1133 = vsel %vm81, %v1131, 0
    %1135 = vmatprep.subr.bf16.mxu0 0
    %1136 = vmatpush1.bf16.msra.mxu0 %v360
    %1137 = vmatprep.subr.bf16.mxu0 0
    %1138 = vmatpush1.bf16.msra.mxu0 %v361
    %1139 = vmatprep.subr.bf16.mxu0 0
    %1140 = vmatpush1.bf16.msra.mxu0 0
    %1141 = vmatprep.subr.bf16.mxu0 0
    %1142 = vmatpush1.bf16.msra.mxu0 0
    %1143 = vmatprep.subr.bf16.mxu0 0
    %1144 = vmatpush1.bf16.msra.mxu0 0
    %1145 = vmatprep.subr.bf16.mxu0 0
    %1146 = vmatpush1.bf16.msra.mxu0 0
    %1147 = vmatprep.subr.bf16.mxu0 0
    %1148 = vmatpush1.bf16.msra.mxu0 0
    %1149 = vmatprep.subr.bf16.mxu0 0
    %1150 = vmatpush1.bf16.msra.mxu0 0
    %1151 = vmatprep.subr.bf16.mxu0 0
    %1152 = vmatpush1.bf16.msra.mxu0 0
    %1153 = vmatprep.subr.bf16.mxu0 0
    %1154 = vmatpush1.bf16.msra.mxu0 0
    %1155 = vmatprep.subr.bf16.mxu0 0
    %1156 = vmatpush1.bf16.msra.mxu0 0
    %1157 = vmatprep.subr.bf16.mxu0 0
    %1158 = vmatpush1.bf16.msra.mxu0 0
    %1159 = vmatprep.subr.bf16.mxu0 0
    %1160 = vmatpush1.bf16.msra.mxu0 0
    %1161 = vmatprep.subr.bf16.mxu0 0
    %1162 = vmatpush1.bf16.msra.mxu0 0
    %1163 = vmatprep.subr.bf16.mxu0 0
    %1164 = vmatpush1.bf16.msra.mxu0 0
    %1165 = vmatprep.subr.bf16.mxu0 0
    %1166 = vmatpush1.bf16.msra.mxu0 0
    %1167 = vmatprep.mubr.bf16.mxu0 0
    %1168 = vmatmul.mubr.bf16.gmra.mrb[0].mxu0 %v1133
    %v1169 = vpop.f32.mrb[0].mxu0
    %v1170 = vadd.f32 0.0, %v1169
    %v1171 = vpop.f32.mrb[0].mxu0
    %v1172 = vpop.f32.mrb[0].mxu0
    %v1173 = vpop.f32.mrb[0].mxu0
    %1174 = vdwg.mxu0
    %v1176 = vrot.slane %v1170, 1
    %v1177 = vrot.slane %v1170, 2
    %v1178 = vrot.slane %v1170, 3
    %v1179 = vrot.slane %v1170, 4
    %v1180 = vrot.slane %v1170, 5
    %v1181 = vrot.slane %v1170, 6
    %v1182 = vrot.slane %v1170, 7
    %v1191 = vadd.f32 %v1083, %v1170
    %v1192 = vadd.f32 %v1084, %v1176
    %v1193 = vadd.f32 %v1085, %v1177
    %v1194 = vadd.f32 %v1086, %v1178
    %v1195 = vadd.f32 %v1087, %v1179
    %v1196 = vadd.f32 %v1088, %v1180
    %v1197 = vadd.f32 %v1089, %v1181
    %v1198 = vadd.f32 %v1090, %v1182
    %v1199 = vxor.u32 %v1191, 2147483648
    %v1200 = vxor.u32 %v1192, 2147483648
    %v1201 = vxor.u32 %v1193, 2147483648
    %v1202 = vxor.u32 %v1194, 2147483648
    %v1203 = vxor.u32 %v1195, 2147483648
    %v1204 = vxor.u32 %v1196, 2147483648
    %v1205 = vxor.u32 %v1197, 2147483648
    %v1206 = vxor.u32 %v1198, 2147483648
    %v1207 = vmul.f32 %v1199, 1.442695
    %v1208 = vpow.pop %v1207
    %v1209 = vmul.f32 %v1200, 1.442695
    %v1210 = vpow.pop %v1209
    %v1211 = vmul.f32 %v1201, 1.442695
    %v1212 = vpow.pop %v1211
    %v1213 = vmul.f32 %v1202, 1.442695
    %v1214 = vpow.pop %v1213
    %v1215 = vmul.f32 %v1203, 1.442695
    %v1216 = vpow.pop %v1215
    %v1217 = vmul.f32 %v1204, 1.442695
    %v1218 = vpow.pop %v1217
    %v1219 = vmul.f32 %v1205, 1.442695
    %v1220 = vpow.pop %v1219
    %v1221 = vmul.f32 %v1206, 1.442695
    %v1222 = vpow.pop %v1221
    %v1223 = vadd.f32 %v1208, 1.0
    %v1224 = vadd.f32 %v1210, 1.0
    %v1225 = vadd.f32 %v1212, 1.0
    %v1226 = vadd.f32 %v1214, 1.0
    %v1227 = vadd.f32 %v1216, 1.0
    %v1228 = vadd.f32 %v1218, 1.0
    %v1229 = vadd.f32 %v1220, 1.0
    %v1230 = vadd.f32 %v1222, 1.0
    %v1231 = vrcp.pop %v1223
    %v1232 = vmul.f32 1.0, %v1231
    %v1233 = vrcp.pop %v1224
    %v1234 = vmul.f32 1.0, %v1233
    %v1235 = vrcp.pop %v1225
    %v1236 = vmul.f32 1.0, %v1235
    %v1237 = vrcp.pop %v1226
    %v1238 = vmul.f32 1.0, %v1237
    %v1239 = vrcp.pop %v1227
    %v1240 = vmul.f32 1.0, %v1239
    %v1241 = vrcp.pop %v1228
    %v1242 = vmul.f32 1.0, %v1241
    %v1243 = vrcp.pop %v1229
    %v1244 = vmul.f32 1.0, %v1243
    %v1245 = vrcp.pop %v1230
    %v1246 = vmul.f32 1.0, %v1245
    %v1247 = vtanh.pop %v1191
    %v1248 = vtanh.pop %v1192
    %v1249 = vtanh.pop %v1193
    %v1250 = vtanh.pop %v1194
    %v1251 = vtanh.pop %v1195
    %v1252 = vtanh.pop %v1196
    %v1253 = vtanh.pop %v1197
    %v1254 = vtanh.pop %v1198
    %v1255 = vmul.f32 %v1232, %v971
    %v1256 = vmul.f32 %v1234, %v972
    %v1257 = vmul.f32 %v1236, %v973
    %v1258 = vmul.f32 %v1238, %v974
    %v1259 = vmul.f32 %v1240, %v975
    %v1260 = vmul.f32 %v1242, %v976
    %v1261 = vmul.f32 %v1244, %v977
    %v1262 = vmul.f32 %v1246, %v978
    %1271 = vrot.lane.b32.xlu0 %v1247, 64
    %v1272 = vpop.permute.xlu0 %1271
    %1273 = vrot.lane.b32.xlu0 %v1248, 64
    %v1274 = vpop.permute.xlu0 %1273
    %1275 = vrot.lane.b32.xlu0 %v1249, 64
    %v1276 = vpop.permute.xlu0 %1275
    %1277 = vrot.lane.b32.xlu0 %v1250, 64
    %v1278 = vpop.permute.xlu0 %1277
    %1279 = vrot.lane.b32.xlu0 %v1251, 64
    %v1280 = vpop.permute.xlu0 %1279
    %1281 = vrot.lane.b32.xlu0 %v1252, 64
    %v1282 = vpop.permute.xlu0 %1281
    %1283 = vrot.lane.b32.xlu0 %v1253, 64
    %v1284 = vpop.permute.xlu0 %1283
    %1285 = vrot.lane.b32.xlu0 %v1254, 64
    %v1286 = vpop.permute.xlu0 %1285
    %v1295 = vmul.f32 %v1232, %v1272
    %v1296 = vmul.f32 %v1234, %v1274
    %v1297 = vmul.f32 %v1236, %v1276
    %v1298 = vmul.f32 %v1238, %v1278
    %v1299 = vmul.f32 %v1240, %v1280
    %v1300 = vmul.f32 %v1242, %v1282
    %v1301 = vmul.f32 %v1244, %v1284
    %v1302 = vmul.f32 %v1246, %v1286
    %1311 = vrot.lane.b32.xlu0 %v1295, 32
    %v1312 = vpop.permute.xlu0 %1311
    %1313 = vrot.lane.b32.xlu0 %v1296, 32
    %v1314 = vpop.permute.xlu0 %1313
    %1315 = vrot.lane.b32.xlu0 %v1297, 32
    %v1316 = vpop.permute.xlu0 %1315
    %1317 = vrot.lane.b32.xlu0 %v1298, 32
    %v1318 = vpop.permute.xlu0 %1317
    %1319 = vrot.lane.b32.xlu0 %v1299, 32
    %v1320 = vpop.permute.xlu0 %1319
    %1321 = vrot.lane.b32.xlu0 %v1300, 32
    %v1322 = vpop.permute.xlu0 %1321
    %1323 = vrot.lane.b32.xlu0 %v1301, 32
    %v1324 = vpop.permute.xlu0 %1323
    %1325 = vrot.lane.b32.xlu0 %v1302, 32
    %v1326 = vpop.permute.xlu0 %1325
    %v1335 = vadd.f32 %v1255, %v1312
    %v1336 = vadd.f32 %v1256, %v1314
    %v1337 = vadd.f32 %v1257, %v1316
    %v1338 = vadd.f32 %v1258, %v1318
    %v1339 = vadd.f32 %v1259, %v1320
    %v1340 = vadd.f32 %v1260, %v1322
    %v1341 = vadd.f32 %v1261, %v1324
    %v1342 = vadd.f32 %v1262, %v1326
    %v1343 = vtanh.pop %v1335
    %v1344 = vtanh.pop %v1336
    %v1345 = vtanh.pop %v1337
    %v1346 = vtanh.pop %v1338
    %v1347 = vtanh.pop %v1339
    %v1348 = vtanh.pop %v1340
    %v1349 = vtanh.pop %v1341
    %v1350 = vtanh.pop %v1342
    %1359 = vrot.lane.b32.xlu0 %v1343, 64
    %v1360 = vpop.permute.xlu0 %1359
    %1361 = vrot.lane.b32.xlu0 %v1344, 64
    %v1362 = vpop.permute.xlu0 %1361
    %1363 = vrot.lane.b32.xlu0 %v1345, 64
    %v1364 = vpop.permute.xlu0 %1363
    %1365 = vrot.lane.b32.xlu0 %v1346, 64
    %v1366 = vpop.permute.xlu0 %1365
    %1367 = vrot.lane.b32.xlu0 %v1347, 64
    %v1368 = vpop.permute.xlu0 %1367
    %1369 = vrot.lane.b32.xlu0 %v1348, 64
    %v1370 = vpop.permute.xlu0 %1369
    %1371 = vrot.lane.b32.xlu0 %v1349, 64
    %v1372 = vpop.permute.xlu0 %1371
    %1373 = vrot.lane.b32.xlu0 %v1350, 64
    %v1374 = vpop.permute.xlu0 %1373
    %v1383 = vmul.f32 %v1232, %v1360
    %v1384 = vmul.f32 %v1234, %v1362
    %v1385 = vmul.f32 %v1236, %v1364
    %v1386 = vmul.f32 %v1238, %v1366
    %v1387 = vmul.f32 %v1240, %v1368
    %v1388 = vmul.f32 %v1242, %v1370
    %v1389 = vmul.f32 %v1244, %v1372
    %v1390 = vmul.f32 %v1246, %v1374
    %v1391 = vld [vmem:[#allocation11 + $0x2] sm:$0x1]
    %v1392 = vld [vmem:[#allocation11 + $0xa] sm:$0x1]
    %v1393 = vld [vmem:[#allocation11 + $0x12] sm:$0x1]
    %v1394 = vld [vmem:[#allocation11 + $0x1a] sm:$0x1]
    %v1395 = vld [vmem:[#allocation11 + $0x22] sm:$0x1]
    %v1396 = vld [vmem:[#allocation11 + $0x2a] sm:$0x1]
    %v1397 = vld [vmem:[#allocation11 + $0x32] sm:$0x1]
    %v1398 = vld [vmem:[#allocation11 + $0x3a] sm:$0x1]
    %1407 = vrot.lane.b32.xlu0 %v1383, 32
    %v1408 = vpop.permute.xlu0 %1407
    %1409 = vrot.lane.b32.xlu0 %v1384, 32
    %v1410 = vpop.permute.xlu0 %1409
    %1411 = vrot.lane.b32.xlu0 %v1385, 32
    %v1412 = vpop.permute.xlu0 %1411
    %1413 = vrot.lane.b32.xlu0 %v1386, 32
    %v1414 = vpop.permute.xlu0 %1413
    %1415 = vrot.lane.b32.xlu0 %v1387, 32
    %v1416 = vpop.permute.xlu0 %1415
    %1417 = vrot.lane.b32.xlu0 %v1388, 32
    %v1418 = vpop.permute.xlu0 %1417
    %1419 = vrot.lane.b32.xlu0 %v1389, 32
    %v1420 = vpop.permute.xlu0 %1419
    %1421 = vrot.lane.b32.xlu0 %v1390, 32
    %v1422 = vpop.permute.xlu0 %1421
    %v1431 = vadd.f32 %v1391, %v1408
    %v1432 = vadd.f32 %v1392, %v1410
    %v1433 = vadd.f32 %v1393, %v1412
    %v1434 = vadd.f32 %v1394, %v1414
    %v1435 = vadd.f32 %v1395, %v1416
    %v1436 = vadd.f32 %v1396, %v1418
    %v1437 = vadd.f32 %v1397, %v1420
    %v1438 = vadd.f32 %v1398, %v1422
    %1439 = vst.msk [vmem:[#allocation11 + $0x2] sm:$0x1] %vm703, %v1431
    %1440 = vst.msk [vmem:[#allocation11 + $0xa] sm:$0x1] %vm703, %v1432
    %1441 = vst.msk [vmem:[#allocation11 + $0x12] sm:$0x1] %vm703, %v1433
    %1442 = vst.msk [vmem:[#allocation11 + $0x1a] sm:$0x1] %vm703, %v1434
    %1443 = vst.msk [vmem:[#allocation11 + $0x22] sm:$0x1] %vm703, %v1435
    %1444 = vst.msk [vmem:[#allocation11 + $0x2a] sm:$0x1] %vm703, %v1436
    %1445 = vst.msk [vmem:[#allocation11 + $0x32] sm:$0x1] %vm703, %v1437
    %1446 = vst.msk [vmem:[#allocation11 + $0x3a] sm:$0x1] %vm703, %v1438
    %v1447 = vld [vmem:[#allocation4 + $0x3] sm:$0x1]
    %v1448 = vld [vmem:[#allocation4 + $0xb] sm:$0x1]
    %v1449 = vld [vmem:[#allocation4 + $0x13] sm:$0x1]
    %v1450 = vld [vmem:[#allocation4 + $0x1b] sm:$0x1]
    %v1451 = vld [vmem:[#allocation4 + $0x23] sm:$0x1]
    %v1452 = vld [vmem:[#allocation4 + $0x2b] sm:$0x1]
    %v1453 = vld [vmem:[#allocation4 + $0x33] sm:$0x1]
    %v1454 = vld [vmem:[#allocation4 + $0x3b] sm:$0x1]
    %v1455 = vpack.c.bf16 %v1383, %v1383
    %v1456 = vpack.c.bf16 %v1384, %v1384
    %v1457 = vpack.c.bf16 %v1385, %v1385
    %v1458 = vpack.c.bf16 %v1386, %v1386
    %v1459 = vpack.c.bf16 %v1387, %v1387
    %v1460 = vpack.c.bf16 %v1388, %v1388
    %v1461 = vpack.c.bf16 %v1389, %v1389
    %v1462 = vpack.c.bf16 %v1390, %v1390
    %v1471 = vunpack.c.l.b16 %v1455
    %v1472 = vunpack.c.l.b16 %v1456
    %v1473 = vunpack.c.l.b16 %v1457
    %v1474 = vunpack.c.l.b16 %v1458
    %v1475 = vunpack.c.l.b16 %v1459
    %v1476 = vunpack.c.l.b16 %v1460
    %v1477 = vunpack.c.l.b16 %v1461
    %v1478 = vunpack.c.l.b16 %v1462
    %v1479 = vrot.slane %v1472, 7
    %v1480 = vsel %vm745, %v1479, %v1471
    %v1481 = vrot.slane %v1473, 6
    %v1482 = vsel %vm748, %v1481, %v1480
    %v1483 = vrot.slane %v1474, 5
    %v1484 = vsel %vm751, %v1483, %v1482
    %v1485 = vrot.slane %v1475, 4
    %v1486 = vsel %vm754, %v1485, %v1484
    %v1487 = vrot.slane %v1476, 3
    %v1488 = vsel %vm757, %v1487, %v1486
    %v1489 = vrot.slane %v1477, 2
    %v1490 = vsel %vm760, %v1489, %v1488
    %v1491 = vrot.slane %v1478, 1
    %v1492 = vsel %vm763, %v1491, %v1490
    %v1493 = vpack.c.b16 %v1492, %v1492
    %1494 = vrot.lane.b32.xlu0 %v1493, 32
    %v1495 = vpop.permute.xlu0 %1494
    %v1497 = vsel %vm81, %v1495, 0
    %1499 = vmatprep.subr.bf16.mxu0 0
    %1500 = vmatpush1.bf16.msra.mxu0 %v360
    %1501 = vmatprep.subr.bf16.mxu0 0
    %1502 = vmatpush1.bf16.msra.mxu0 %v361
    %1503 = vmatprep.subr.bf16.mxu0 0
    %1504 = vmatpush1.bf16.msra.mxu0 0
    %1505 = vmatprep.subr.bf16.mxu0 0
    %1506 = vmatpush1.bf16.msra.mxu0 0
    %1507 = vmatprep.subr.bf16.mxu0 0
    %1508 = vmatpush1.bf16.msra.mxu0 0
    %1509 = vmatprep.subr.bf16.mxu0 0
    %1510 = vmatpush1.bf16.msra.mxu0 0
    %1511 = vmatprep.subr.bf16.mxu0 0
    %1512 = vmatpush1.bf16.msra.mxu0 0
    %1513 = vmatprep.subr.bf16.mxu0 0
    %1514 = vmatpush1.bf16.msra.mxu0 0
    %1515 = vmatprep.subr.bf16.mxu0 0
    %1516 = vmatpush1.bf16.msra.mxu0 0
    %1517 = vmatprep.subr.bf16.mxu0 0
    %1518 = vmatpush1.bf16.msra.mxu0 0
    %1519 = vmatprep.subr.bf16.mxu0 0
    %1520 = vmatpush1.bf16.msra.mxu0 0
    %1521 = vmatprep.subr.bf16.mxu0 0
    %1522 = vmatpush1.bf16.msra.mxu0 0
    %1523 = vmatprep.subr.bf16.mxu0 0
    %1524 = vmatpush1.bf16.msra.mxu0 0
    %1525 = vmatprep.subr.bf16.mxu0 0
    %1526 = vmatpush1.bf16.msra.mxu0 0
    %1527 = vmatprep.subr.bf16.mxu0 0
    %1528 = vmatpush1.bf16.msra.mxu0 0
    %1529 = vmatprep.subr.bf16.mxu0 0
    %1530 = vmatpush1.bf16.msra.mxu0 0
    %1531 = vmatprep.mubr.bf16.mxu0 0
    %1532 = vmatmul.mubr.bf16.gmra.mrb[0].mxu0 %v1497
    %v1533 = vpop.f32.mrb[0].mxu0
    %v1534 = vadd.f32 0.0, %v1533
    %v1535 = vpop.f32.mrb[0].mxu0
    %v1536 = vpop.f32.mrb[0].mxu0
    %v1537 = vpop.f32.mrb[0].mxu0
    %1538 = vdwg.mxu0
    %v1540 = vrot.slane %v1534, 1
    %v1541 = vrot.slane %v1534, 2
    %v1542 = vrot.slane %v1534, 3
    %v1543 = vrot.slane %v1534, 4
    %v1544 = vrot.slane %v1534, 5
    %v1545 = vrot.slane %v1534, 6
    %v1546 = vrot.slane %v1534, 7
    %v1555 = vadd.f32 %v1447, %v1534
    %v1556 = vadd.f32 %v1448, %v1540
    %v1557 = vadd.f32 %v1449, %v1541
    %v1558 = vadd.f32 %v1450, %v1542
    %v1559 = vadd.f32 %v1451, %v1543
    %v1560 = vadd.f32 %v1452, %v1544
    %v1561 = vadd.f32 %v1453, %v1545
    %v1562 = vadd.f32 %v1454, %v1546
    %v1563 = vxor.u32 %v1555, 2147483648
    %v1564 = vxor.u32 %v1556, 2147483648
    %v1565 = vxor.u32 %v1557, 2147483648
    %v1566 = vxor.u32 %v1558, 2147483648
    %v1567 = vxor.u32 %v1559, 2147483648
    %v1568 = vxor.u32 %v1560, 2147483648
    %v1569 = vxor.u32 %v1561, 2147483648
    %v1570 = vxor.u32 %v1562, 2147483648
    %v1571 = vmul.f32 %v1563, 1.442695
    %v1572 = vpow.pop %v1571
    %v1573 = vmul.f32 %v1564, 1.442695
    %v1574 = vpow.pop %v1573
    %v1575 = vmul.f32 %v1565, 1.442695
    %v1576 = vpow.pop %v1575
    %v1577 = vmul.f32 %v1566, 1.442695
    %v1578 = vpow.pop %v1577
    %v1579 = vmul.f32 %v1567, 1.442695
    %v1580 = vpow.pop %v1579
    %v1581 = vmul.f32 %v1568, 1.442695
    %v1582 = vpow.pop %v1581
    %v1583 = vmul.f32 %v1569, 1.442695
    %v1584 = vpow.pop %v1583
    %v1585 = vmul.f32 %v1570, 1.442695
    %v1586 = vpow.pop %v1585
    %v1587 = vadd.f32 %v1572, 1.0
    %v1588 = vadd.f32 %v1574, 1.0
    %v1589 = vadd.f32 %v1576, 1.0
    %v1590 = vadd.f32 %v1578, 1.0
    %v1591 = vadd.f32 %v1580, 1.0
    %v1592 = vadd.f32 %v1582, 1.0
    %v1593 = vadd.f32 %v1584, 1.0
    %v1594 = vadd.f32 %v1586, 1.0
    %v1595 = vrcp.pop %v1587
    %v1596 = vmul.f32 1.0, %v1595
    %v1597 = vrcp.pop %v1588
    %v1598 = vmul.f32 1.0, %v1597
    %v1599 = vrcp.pop %v1589
    %v1600 = vmul.f32 1.0, %v1599
    %v1601 = vrcp.pop %v1590
    %v1602 = vmul.f32 1.0, %v1601
    %v1603 = vrcp.pop %v1591
    %v1604 = vmul.f32 1.0, %v1603
    %v1605 = vrcp.pop %v1592
    %v1606 = vmul.f32 1.0, %v1605
    %v1607 = vrcp.pop %v1593
    %v1608 = vmul.f32 1.0, %v1607
    %v1609 = vrcp.pop %v1594
    %v1610 = vmul.f32 1.0, %v1609
    %v1611 = vtanh.pop %v1555
    %v1612 = vtanh.pop %v1556
    %v1613 = vtanh.pop %v1557
    %v1614 = vtanh.pop %v1558
    %v1615 = vtanh.pop %v1559
    %v1616 = vtanh.pop %v1560
    %v1617 = vtanh.pop %v1561
    %v1618 = vtanh.pop %v1562
    %v1619 = vmul.f32 %v1596, %v1335
    %v1620 = vmul.f32 %v1598, %v1336
    %v1621 = vmul.f32 %v1600, %v1337
    %v1622 = vmul.f32 %v1602, %v1338
    %v1623 = vmul.f32 %v1604, %v1339
    %v1624 = vmul.f32 %v1606, %v1340
    %v1625 = vmul.f32 %v1608, %v1341
    %v1626 = vmul.f32 %v1610, %v1342
    %1635 = vrot.lane.b32.xlu0 %v1611, 64
    %v1636 = vpop.permute.xlu0 %1635
    %1637 = vrot.lane.b32.xlu0 %v1612, 64
    %v1638 = vpop.permute.xlu0 %1637
    %1639 = vrot.lane.b32.xlu0 %v1613, 64
    %v1640 = vpop.permute.xlu0 %1639
    %1641 = vrot.lane.b32.xlu0 %v1614, 64
    %v1642 = vpop.permute.xlu0 %1641
    %1643 = vrot.lane.b32.xlu0 %v1615, 64
    %v1644 = vpop.permute.xlu0 %1643
    %1645 = vrot.lane.b32.xlu0 %v1616, 64
    %v1646 = vpop.permute.xlu0 %1645
    %1647 = vrot.lane.b32.xlu0 %v1617, 64
    %v1648 = vpop.permute.xlu0 %1647
    %1649 = vrot.lane.b32.xlu0 %v1618, 64
    %v1650 = vpop.permute.xlu0 %1649
    %v1659 = vmul.f32 %v1596, %v1636
    %v1660 = vmul.f32 %v1598, %v1638
    %v1661 = vmul.f32 %v1600, %v1640
    %v1662 = vmul.f32 %v1602, %v1642
    %v1663 = vmul.f32 %v1604, %v1644
    %v1664 = vmul.f32 %v1606, %v1646
    %v1665 = vmul.f32 %v1608, %v1648
    %v1666 = vmul.f32 %v1610, %v1650
    %1675 = vrot.lane.b32.xlu0 %v1659, 32
    %v1676 = vpop.permute.xlu0 %1675
    %1677 = vrot.lane.b32.xlu0 %v1660, 32
    %v1678 = vpop.permute.xlu0 %1677
    %1679 = vrot.lane.b32.xlu0 %v1661, 32
    %v1680 = vpop.permute.xlu0 %1679
    %1681 = vrot.lane.b32.xlu0 %v1662, 32
    %v1682 = vpop.permute.xlu0 %1681
    %1683 = vrot.lane.b32.xlu0 %v1663, 32
    %v1684 = vpop.permute.xlu0 %1683
    %1685 = vrot.lane.b32.xlu0 %v1664, 32
    %v1686 = vpop.permute.xlu0 %1685
    %1687 = vrot.lane.b32.xlu0 %v1665, 32
    %v1688 = vpop.permute.xlu0 %1687
    %1689 = vrot.lane.b32.xlu0 %v1666, 32
    %v1690 = vpop.permute.xlu0 %1689
    %v1699 = vadd.f32 %v1619, %v1676
    %v1700 = vadd.f32 %v1620, %v1678
    %v1701 = vadd.f32 %v1621, %v1680
    %v1702 = vadd.f32 %v1622, %v1682
    %v1703 = vadd.f32 %v1623, %v1684
    %v1704 = vadd.f32 %v1624, %v1686
    %v1705 = vadd.f32 %v1625, %v1688
    %v1706 = vadd.f32 %v1626, %v1690
    %v1707 = vtanh.pop %v1699
    %v1708 = vtanh.pop %v1700
    %v1709 = vtanh.pop %v1701
    %v1710 = vtanh.pop %v1702
    %v1711 = vtanh.pop %v1703
    %v1712 = vtanh.pop %v1704
    %v1713 = vtanh.pop %v1705
    %v1714 = vtanh.pop %v1706
    %1723 = vrot.lane.b32.xlu0 %v1707, 64
    %v1724 = vpop.permute.xlu0 %1723
    %1725 = vrot.lane.b32.xlu0 %v1708, 64
    %v1726 = vpop.permute.xlu0 %1725
    %1727 = vrot.lane.b32.xlu0 %v1709, 64
    %v1728 = vpop.permute.xlu0 %1727
    %1729 = vrot.lane.b32.xlu0 %v1710, 64
    %v1730 = vpop.permute.xlu0 %1729
    %1731 = vrot.lane.b32.xlu0 %v1711, 64
    %v1732 = vpop.permute.xlu0 %1731
    %1733 = vrot.lane.b32.xlu0 %v1712, 64
    %v1734 = vpop.permute.xlu0 %1733
    %1735 = vrot.lane.b32.xlu0 %v1713, 64
    %v1736 = vpop.permute.xlu0 %1735
    %1737 = vrot.lane.b32.xlu0 %v1714, 64
    %v1738 = vpop.permute.xlu0 %1737
    %v1747 = vmul.f32 %v1596, %v1724
    %v1748 = vmul.f32 %v1598, %v1726
    %v1749 = vmul.f32 %v1600, %v1728
    %v1750 = vmul.f32 %v1602, %v1730
    %v1751 = vmul.f32 %v1604, %v1732
    %v1752 = vmul.f32 %v1606, %v1734
    %v1753 = vmul.f32 %v1608, %v1736
    %v1754 = vmul.f32 %v1610, %v1738
    %v1755 = vld [vmem:[#allocation11 + $0x3] sm:$0x1]
    %v1756 = vld [vmem:[#allocation11 + $0xb] sm:$0x1]
    %v1757 = vld [vmem:[#allocation11 + $0x13] sm:$0x1]
    %v1758 = vld [vmem:[#allocation11 + $0x1b] sm:$0x1]
    %v1759 = vld [vmem:[#allocation11 + $0x23] sm:$0x1]
    %v1760 = vld [vmem:[#allocation11 + $0x2b] sm:$0x1]
    %v1761 = vld [vmem:[#allocation11 + $0x33] sm:$0x1]
    %v1762 = vld [vmem:[#allocation11 + $0x3b] sm:$0x1]
    %1771 = vrot.lane.b32.xlu0 %v1747, 32
    %v1772 = vpop.permute.xlu0 %1771
    %1773 = vrot.lane.b32.xlu0 %v1748, 32
    %v1774 = vpop.permute.xlu0 %1773
    %1775 = vrot.lane.b32.xlu0 %v1749, 32
    %v1776 = vpop.permute.xlu0 %1775
    %1777 = vrot.lane.b32.xlu0 %v1750, 32
    %v1778 = vpop.permute.xlu0 %1777
    %1779 = vrot.lane.b32.xlu0 %v1751, 32
    %v1780 = vpop.permute.xlu0 %1779
    %1781 = vrot.lane.b32.xlu0 %v1752, 32
    %v1782 = vpop.permute.xlu0 %1781
    %1783 = vrot.lane.b32.xlu0 %v1753, 32
    %v1784 = vpop.permute.xlu0 %1783
    %1785 = vrot.lane.b32.xlu0 %v1754, 32
    %v1786 = vpop.permute.xlu0 %1785
    %v1795 = vadd.f32 %v1755, %v1772
    %v1796 = vadd.f32 %v1756, %v1774
    %v1797 = vadd.f32 %v1757, %v1776
    %v1798 = vadd.f32 %v1758, %v1778
    %v1799 = vadd.f32 %v1759, %v1780
    %v1800 = vadd.f32 %v1760, %v1782
    %v1801 = vadd.f32 %v1761, %v1784
    %v1802 = vadd.f32 %v1762, %v1786
    %1803 = vst.msk [vmem:[#allocation11 + $0x3] sm:$0x1] %vm703, %v1795
    %1804 = vst.msk [vmem:[#allocation11 + $0xb] sm:$0x1] %vm703, %v1796
    %1805 = vst.msk [vmem:[#allocation11 + $0x13] sm:$0x1] %vm703, %v1797
    %1806 = vst.msk [vmem:[#allocation11 + $0x1b] sm:$0x1] %vm703, %v1798
    %1807 = vst.msk [vmem:[#allocation11 + $0x23] sm:$0x1] %vm703, %v1799
    %1808 = vst.msk [vmem:[#allocation11 + $0x2b] sm:$0x1] %vm703, %v1800
    %1809 = vst.msk [vmem:[#allocation11 + $0x33] sm:$0x1] %vm703, %v1801
    %1810 = vst.msk [vmem:[#allocation11 + $0x3b] sm:$0x1] %vm703, %v1802
    %v1811 = vld [vmem:[#allocation4 + $0x4] sm:$0x1]
    %v1812 = vld [vmem:[#allocation4 + $0xc] sm:$0x1]
    %v1813 = vld [vmem:[#allocation4 + $0x14] sm:$0x1]
    %v1814 = vld [vmem:[#allocation4 + $0x1c] sm:$0x1]
    %v1815 = vld [vmem:[#allocation4 + $0x24] sm:$0x1]
    %v1816 = vld [vmem:[#allocation4 + $0x2c] sm:$0x1]
    %v1817 = vld [vmem:[#allocation4 + $0x34] sm:$0x1]
    %v1818 = vld [vmem:[#allocation4 + $0x3c] sm:$0x1]
    %v1819 = vpack.c.bf16 %v1747, %v1747
    %v1820 = vpack.c.bf16 %v1748, %v1748
    %v1821 = vpack.c.bf16 %v1749, %v1749
    %v1822 = vpack.c.bf16 %v1750, %v1750
    %v1823 = vpack.c.bf16 %v1751, %v1751
    %v1824 = vpack.c.bf16 %v1752, %v1752
    %v1825 = vpack.c.bf16 %v1753, %v1753
    %v1826 = vpack.c.bf16 %v1754, %v1754
    %v1835 = vunpack.c.l.b16 %v1819
    %v1836 = vunpack.c.l.b16 %v1820
    %v1837 = vunpack.c.l.b16 %v1821
    %v1838 = vunpack.c.l.b16 %v1822
    %v1839 = vunpack.c.l.b16 %v1823
    %v1840 = vunpack.c.l.b16 %v1824
    %v1841 = vunpack.c.l.b16 %v1825
    %v1842 = vunpack.c.l.b16 %v1826
    %v1843 = vrot.slane %v1836, 7
    %v1844 = vsel %vm745, %v1843, %v1835
    %v1845 = vrot.slane %v1837, 6
    %v1846 = vsel %vm748, %v1845, %v1844
    %v1847 = vrot.slane %v1838, 5
    %v1848 = vsel %vm751, %v1847, %v1846
    %v1849 = vrot.slane %v1839, 4
    %v1850 = vsel %vm754, %v1849, %v1848
    %v1851 = vrot.slane %v1840, 3
    %v1852 = vsel %vm757, %v1851, %v1850
    %v1853 = vrot.slane %v1841, 2
    %v1854 = vsel %vm760, %v1853, %v1852
    %v1855 = vrot.slane %v1842, 1
    %v1856 = vsel %vm763, %v1855, %v1854
    %v1857 = vpack.c.b16 %v1856, %v1856
    %1858 = vrot.lane.b32.xlu0 %v1857, 32
    %v1859 = vpop.permute.xlu0 %1858
    %v1861 = vsel %vm81, %v1859, 0
    %1863 = vmatprep.subr.bf16.mxu0 0
    %1864 = vmatpush1.bf16.msra.mxu0 %v360
    %1865 = vmatprep.subr.bf16.mxu0 0
    %1866 = vmatpush1.bf16.msra.mxu0 %v361
    %1867 = vmatprep.subr.bf16.mxu0 0
    %1868 = vmatpush1.bf16.msra.mxu0 0
    %1869 = vmatprep.subr.bf16.mxu0 0
    %1870 = vmatpush1.bf16.msra.mxu0 0
    %1871 = vmatprep.subr.bf16.mxu0 0
    %1872 = vmatpush1.bf16.msra.mxu0 0
    %1873 = vmatprep.subr.bf16.mxu0 0
    %1874 = vmatpush1.bf16.msra.mxu0 0
    %1875 = vmatprep.subr.bf16.mxu0 0
    %1876 = vmatpush1.bf16.msra.mxu0 0
    %1877 = vmatprep.subr.bf16.mxu0 0
    %1878 = vmatpush1.bf16.msra.mxu0 0
    %1879 = vmatprep.subr.bf16.mxu0 0
    %1880 = vmatpush1.bf16.msra.mxu0 0
    %1881 = vmatprep.subr.bf16.mxu0 0
    %1882 = vmatpush1.bf16.msra.mxu0 0
    %1883 = vmatprep.subr.bf16.mxu0 0
    %1884 = vmatpush1.bf16.msra.mxu0 0
    %1885 = vmatprep.subr.bf16.mxu0 0
    %1886 = vmatpush1.bf16.msra.mxu0 0
    %1887 = vmatprep.subr.bf16.mxu0 0
    %1888 = vmatpush1.bf16.msra.mxu0 0
    %1889 = vmatprep.subr.bf16.mxu0 0
    %1890 = vmatpush1.bf16.msra.mxu0 0
    %1891 = vmatprep.subr.bf16.mxu0 0
    %1892 = vmatpush1.bf16.msra.mxu0 0
    %1893 = vmatprep.subr.bf16.mxu0 0
    %1894 = vmatpush1.bf16.msra.mxu0 0
    %1895 = vmatprep.mubr.bf16.mxu0 0
    %1896 = vmatmul.mubr.bf16.gmra.mrb[0].mxu0 %v1861
    %v1897 = vpop.f32.mrb[0].mxu0
    %v1898 = vadd.f32 0.0, %v1897
    %v1899 = vpop.f32.mrb[0].mxu0
    %v1900 = vpop.f32.mrb[0].mxu0
    %v1901 = vpop.f32.mrb[0].mxu0
    %1902 = vdwg.mxu0
    %v1904 = vrot.slane %v1898, 1
    %v1905 = vrot.slane %v1898, 2
    %v1906 = vrot.slane %v1898, 3
    %v1907 = vrot.slane %v1898, 4
    %v1908 = vrot.slane %v1898, 5
    %v1909 = vrot.slane %v1898, 6
    %v1910 = vrot.slane %v1898, 7
    %v1919 = vadd.f32 %v1811, %v1898
    %v1920 = vadd.f32 %v1812, %v1904
    %v1921 = vadd.f32 %v1813, %v1905
    %v1922 = vadd.f32 %v1814, %v1906
    %v1923 = vadd.f32 %v1815, %v1907
    %v1924 = vadd.f32 %v1816, %v1908
    %v1925 = vadd.f32 %v1817, %v1909
    %v1926 = vadd.f32 %v1818, %v1910
    %v1927 = vxor.u32 %v1919, 2147483648
    %v1928 = vxor.u32 %v1920, 2147483648
    %v1929 = vxor.u32 %v1921, 2147483648
    %v1930 = vxor.u32 %v1922, 2147483648
    %v1931 = vxor.u32 %v1923, 2147483648
    %v1932 = vxor.u32 %v1924, 2147483648
    %v1933 = vxor.u32 %v1925, 2147483648
    %v1934 = vxor.u32 %v1926, 2147483648
    %v1935 = vmul.f32 %v1927, 1.442695
    %v1936 = vpow.pop %v1935
    %v1937 = vmul.f32 %v1928, 1.442695
    %v1938 = vpow.pop %v1937
    %v1939 = vmul.f32 %v1929, 1.442695
    %v1940 = vpow.pop %v1939
    %v1941 = vmul.f32 %v1930, 1.442695
    %v1942 = vpow.pop %v1941
    %v1943 = vmul.f32 %v1931, 1.442695
    %v1944 = vpow.pop %v1943
    %v1945 = vmul.f32 %v1932, 1.442695
    %v1946 = vpow.pop %v1945
    %v1947 = vmul.f32 %v1933, 1.442695
    %v1948 = vpow.pop %v1947
    %v1949 = vmul.f32 %v1934, 1.442695
    %v1950 = vpow.pop %v1949
    %v1951 = vadd.f32 %v1936, 1.0
    %v1952 = vadd.f32 %v1938, 1.0
    %v1953 = vadd.f32 %v1940, 1.0
    %v1954 = vadd.f32 %v1942, 1.0
    %v1955 = vadd.f32 %v1944, 1.0
    %v1956 = vadd.f32 %v1946, 1.0
    %v1957 = vadd.f32 %v1948, 1.0
    %v1958 = vadd.f32 %v1950, 1.0
    %v1959 = vrcp.pop %v1951
    %v1960 = vmul.f32 1.0, %v1959
    %v1961 = vrcp.pop %v1952
    %v1962 = vmul.f32 1.0, %v1961
    %v1963 = vrcp.pop %v1953
    %v1964 = vmul.f32 1.0, %v1963
    %v1965 = vrcp.pop %v1954
    %v1966 = vmul.f32 1.0, %v1965
    %v1967 = vrcp.pop %v1955
    %v1968 = vmul.f32 1.0, %v1967
    %v1969 = vrcp.pop %v1956
    %v1970 = vmul.f32 1.0, %v1969
    %v1971 = vrcp.pop %v1957
    %v1972 = vmul.f32 1.0, %v1971
    %v1973 = vrcp.pop %v1958
    %v1974 = vmul.f32 1.0, %v1973
    %v1975 = vtanh.pop %v1919
    %v1976 = vtanh.pop %v1920
    %v1977 = vtanh.pop %v1921
    %v1978 = vtanh.pop %v1922
    %v1979 = vtanh.pop %v1923
    %v1980 = vtanh.pop %v1924
    %v1981 = vtanh.pop %v1925
    %v1982 = vtanh.pop %v1926
    %v1983 = vmul.f32 %v1960, %v1699
    %v1984 = vmul.f32 %v1962, %v1700
    %v1985 = vmul.f32 %v1964, %v1701
    %v1986 = vmul.f32 %v1966, %v1702
    %v1987 = vmul.f32 %v1968, %v1703
    %v1988 = vmul.f32 %v1970, %v1704
    %v1989 = vmul.f32 %v1972, %v1705
    %v1990 = vmul.f32 %v1974, %v1706
    %1999 = vrot.lane.b32.xlu0 %v1975, 64
    %v2000 = vpop.permute.xlu0 %1999
    %2001 = vrot.lane.b32.xlu0 %v1976, 64
    %v2002 = vpop.permute.xlu0 %2001
    %2003 = vrot.lane.b32.xlu0 %v1977, 64
    %v2004 = vpop.permute.xlu0 %2003
    %2005 = vrot.lane.b32.xlu0 %v1978, 64
    %v2006 = vpop.permute.xlu0 %2005
    %2007 = vrot.lane.b32.xlu0 %v1979, 64
    %v2008 = vpop.permute.xlu0 %2007
    %2009 = vrot.lane.b32.xlu0 %v1980, 64
    %v2010 = vpop.permute.xlu0 %2009
    %2011 = vrot.lane.b32.xlu0 %v1981, 64
    %v2012 = vpop.permute.xlu0 %2011
    %2013 = vrot.lane.b32.xlu0 %v1982, 64
    %v2014 = vpop.permute.xlu0 %2013
    %v2023 = vmul.f32 %v1960, %v2000
    %v2024 = vmul.f32 %v1962, %v2002
    %v2025 = vmul.f32 %v1964, %v2004
    %v2026 = vmul.f32 %v1966, %v2006
    %v2027 = vmul.f32 %v1968, %v2008
    %v2028 = vmul.f32 %v1970, %v2010
    %v2029 = vmul.f32 %v1972, %v2012
    %v2030 = vmul.f32 %v1974, %v2014
    %2039 = vrot.lane.b32.xlu0 %v2023, 32
    %v2040 = vpop.permute.xlu0 %2039
    %2041 = vrot.lane.b32.xlu0 %v2024, 32
    %v2042 = vpop.permute.xlu0 %2041
    %2043 = vrot.lane.b32.xlu0 %v2025, 32
    %v2044 = vpop.permute.xlu0 %2043
    %2045 = vrot.lane.b32.xlu0 %v2026, 32
    %v2046 = vpop.permute.xlu0 %2045
    %2047 = vrot.lane.b32.xlu0 %v2027, 32
    %v2048 = vpop.permute.xlu0 %2047
    %2049 = vrot.lane.b32.xlu0 %v2028, 32
    %v2050 = vpop.permute.xlu0 %2049
    %2051 = vrot.lane.b32.xlu0 %v2029, 32
    %v2052 = vpop.permute.xlu0 %2051
    %2053 = vrot.lane.b32.xlu0 %v2030, 32
    %v2054 = vpop.permute.xlu0 %2053
    %v2063 = vadd.f32 %v1983, %v2040
    %v2064 = vadd.f32 %v1984, %v2042
    %v2065 = vadd.f32 %v1985, %v2044
    %v2066 = vadd.f32 %v1986, %v2046
    %v2067 = vadd.f32 %v1987, %v2048
    %v2068 = vadd.f32 %v1988, %v2050
    %v2069 = vadd.f32 %v1989, %v2052
    %v2070 = vadd.f32 %v1990, %v2054
    %v2071 = vtanh.pop %v2063
    %v2072 = vtanh.pop %v2064
    %v2073 = vtanh.pop %v2065
    %v2074 = vtanh.pop %v2066
    %v2075 = vtanh.pop %v2067
    %v2076 = vtanh.pop %v2068
    %v2077 = vtanh.pop %v2069
    %v2078 = vtanh.pop %v2070
    %2087 = vrot.lane.b32.xlu0 %v2071, 64
    %v2088 = vpop.permute.xlu0 %2087
    %2089 = vrot.lane.b32.xlu0 %v2072, 64
    %v2090 = vpop.permute.xlu0 %2089
    %2091 = vrot.lane.b32.xlu0 %v2073, 64
    %v2092 = vpop.permute.xlu0 %2091
    %2093 = vrot.lane.b32.xlu0 %v2074, 64
    %v2094 = vpop.permute.xlu0 %2093
    %2095 = vrot.lane.b32.xlu0 %v2075, 64
    %v2096 = vpop.permute.xlu0 %2095
    %2097 = vrot.lane.b32.xlu0 %v2076, 64
    %v2098 = vpop.permute.xlu0 %2097
    %2099 = vrot.lane.b32.xlu0 %v2077, 64
    %v2100 = vpop.permute.xlu0 %2099
    %2101 = vrot.lane.b32.xlu0 %v2078, 64
    %v2102 = vpop.permute.xlu0 %2101
    %v2111 = vmul.f32 %v1960, %v2088
    %v2112 = vmul.f32 %v1962, %v2090
    %v2113 = vmul.f32 %v1964, %v2092
    %v2114 = vmul.f32 %v1966, %v2094
    %v2115 = vmul.f32 %v1968, %v2096
    %v2116 = vmul.f32 %v1970, %v2098
    %v2117 = vmul.f32 %v1972, %v2100
    %v2118 = vmul.f32 %v1974, %v2102
    %v2119 = vld [vmem:[#allocation11 + $0x4] sm:$0x1]
    %v2120 = vld [vmem:[#allocation11 + $0xc] sm:$0x1]
    %v2121 = vld [vmem:[#allocation11 + $0x14] sm:$0x1]
    %v2122 = vld [vmem:[#allocation11 + $0x1c] sm:$0x1]
    %v2123 = vld [vmem:[#allocation11 + $0x24] sm:$0x1]
    %v2124 = vld [vmem:[#allocation11 + $0x2c] sm:$0x1]
    %v2125 = vld [vmem:[#allocation11 + $0x34] sm:$0x1]
    %v2126 = vld [vmem:[#allocation11 + $0x3c] sm:$0x1]
    %2135 = vrot.lane.b32.xlu0 %v2111, 32
    %v2136 = vpop.permute.xlu0 %2135
    %2137 = vrot.lane.b32.xlu0 %v2112, 32
    %v2138 = vpop.permute.xlu0 %2137
    %2139 = vrot.lane.b32.xlu0 %v2113, 32
    %v2140 = vpop.permute.xlu0 %2139
    %2141 = vrot.lane.b32.xlu0 %v2114, 32
    %v2142 = vpop.permute.xlu0 %2141
    %2143 = vrot.lane.b32.xlu0 %v2115, 32
    %v2144 = vpop.permute.xlu0 %2143
    %2145 = vrot.lane.b32.xlu0 %v2116, 32
    %v2146 = vpop.permute.xlu0 %2145
    %2147 = vrot.lane.b32.xlu0 %v2117, 32
    %v2148 = vpop.permute.xlu0 %2147
    %2149 = vrot.lane.b32.xlu0 %v2118, 32
    %v2150 = vpop.permute.xlu0 %2149
    %v2159 = vadd.f32 %v2119, %v2136
    %v2160 = vadd.f32 %v2120, %v2138
    %v2161 = vadd.f32 %v2121, %v2140
    %v2162 = vadd.f32 %v2122, %v2142
    %v2163 = vadd.f32 %v2123, %v2144
    %v2164 = vadd.f32 %v2124, %v2146
    %v2165 = vadd.f32 %v2125, %v2148
    %v2166 = vadd.f32 %v2126, %v2150
    %2167 = vst.msk [vmem:[#allocation11 + $0x4] sm:$0x1] %vm703, %v2159
    %2168 = vst.msk [vmem:[#allocation11 + $0xc] sm:$0x1] %vm703, %v2160
    %2169 = vst.msk [vmem:[#allocation11 + $0x14] sm:$0x1] %vm703, %v2161
    %2170 = vst.msk [vmem:[#allocation11 + $0x1c] sm:$0x1] %vm703, %v2162
    %2171 = vst.msk [vmem:[#allocation11 + $0x24] sm:$0x1] %vm703, %v2163
    %2172 = vst.msk [vmem:[#allocation11 + $0x2c] sm:$0x1] %vm703, %v2164
    %2173 = vst.msk [vmem:[#allocation11 + $0x34] sm:$0x1] %vm703, %v2165
    %2174 = vst.msk [vmem:[#allocation11 + $0x3c] sm:$0x1] %vm703, %v2166
    %v2175 = vld [vmem:[#allocation4 + $0x5] sm:$0x1]
    %v2176 = vld [vmem:[#allocation4 + $0xd] sm:$0x1]
    %v2177 = vld [vmem:[#allocation4 + $0x15] sm:$0x1]
    %v2178 = vld [vmem:[#allocation4 + $0x1d] sm:$0x1]
    %v2179 = vld [vmem:[#allocation4 + $0x25] sm:$0x1]
    %v2180 = vld [vmem:[#allocation4 + $0x2d] sm:$0x1]
    %v2181 = vld [vmem:[#allocation4 + $0x35] sm:$0x1]
    %v2182 = vld [vmem:[#allocation4 + $0x3d] sm:$0x1]
    %v2183 = vpack.c.bf16 %v2111, %v2111
    %v2184 = vpack.c.bf16 %v2112, %v2112
    %v2185 = vpack.c.bf16 %v2113, %v2113
    %v2186 = vpack.c.bf16 %v2114, %v2114
    %v2187 = vpack.c.bf16 %v2115, %v2115
    %v2188 = vpack.c.bf16 %v2116, %v2116
    %v2189 = vpack.c.bf16 %v2117, %v2117
    %v2190 = vpack.c.bf16 %v2118, %v2118
    %v2199 = vunpack.c.l.b16 %v2183
    %v2200 = vunpack.c.l.b16 %v2184
    %v2201 = vunpack.c.l.b16 %v2185
    %v2202 = vunpack.c.l.b16 %v2186
    %v2203 = vunpack.c.l.b16 %v2187
    %v2204 = vunpack.c.l.b16 %v2188
    %v2205 = vunpack.c.l.b16 %v2189
    %v2206 = vunpack.c.l.b16 %v2190
    %v2207 = vrot.slane %v2200, 7
    %v2208 = vsel %vm745, %v2207, %v2199
    %v2209 = vrot.slane %v2201, 6
    %v2210 = vsel %vm748, %v2209, %v2208
    %v2211 = vrot.slane %v2202, 5
    %v2212 = vsel %vm751, %v2211, %v2210
    %v2213 = vrot.slane %v2203, 4
    %v2214 = vsel %vm754, %v2213, %v2212
    %v2215 = vrot.slane %v2204, 3
    %v2216 = vsel %vm757, %v2215, %v2214
    %v2217 = vrot.slane %v2205, 2
    %v2218 = vsel %vm760, %v2217, %v2216
    %v2219 = vrot.slane %v2206, 1
    %v2220 = vsel %vm763, %v2219, %v2218
    %v2221 = vpack.c.b16 %v2220, %v2220
    %2222 = vrot.lane.b32.xlu0 %v2221, 32
    %v2223 = vpop.permute.xlu0 %2222
    %v2225 = vsel %vm81, %v2223, 0
    %2227 = vmatprep.subr.bf16.mxu0 0
    %2228 = vmatpush1.bf16.msra.mxu0 %v360
    %2229 = vmatprep.subr.bf16.mxu0 0
    %2230 = vmatpush1.bf16.msra.mxu0 %v361
    %2231 = vmatprep.subr.bf16.mxu0 0
    %2232 = vmatpush1.bf16.msra.mxu0 0
    %2233 = vmatprep.subr.bf16.mxu0 0
    %2234 = vmatpush1.bf16.msra.mxu0 0
    %2235 = vmatprep.subr.bf16.mxu0 0
    %2236 = vmatpush1.bf16.msra.mxu0 0
    %2237 = vmatprep.subr.bf16.mxu0 0
    %2238 = vmatpush1.bf16.msra.mxu0 0
    %2239 = vmatprep.subr.bf16.mxu0 0
    %2240 = vmatpush1.bf16.msra.mxu0 0
    %2241 = vmatprep.subr.bf16.mxu0 0
    %2242 = vmatpush1.bf16.msra.mxu0 0
    %2243 = vmatprep.subr.bf16.mxu0 0
    %2244 = vmatpush1.bf16.msra.mxu0 0
    %2245 = vmatprep.subr.bf16.mxu0 0
    %2246 = vmatpush1.bf16.msra.mxu0 0
    %2247 = vmatprep.subr.bf16.mxu0 0
    %2248 = vmatpush1.bf16.msra.mxu0 0
    %2249 = vmatprep.subr.bf16.mxu0 0
    %2250 = vmatpush1.bf16.msra.mxu0 0
    %2251 = vmatprep.subr.bf16.mxu0 0
    %2252 = vmatpush1.bf16.msra.mxu0 0
    %2253 = vmatprep.subr.bf16.mxu0 0
    %2254 = vmatpush1.bf16.msra.mxu0 0
    %2255 = vmatprep.subr.bf16.mxu0 0
    %2256 = vmatpush1.bf16.msra.mxu0 0
    %2257 = vmatprep.subr.bf16.mxu0 0
    %2258 = vmatpush1.bf16.msra.mxu0 0
    %2259 = vmatprep.mubr.bf16.mxu0 0
    %2260 = vmatmul.mubr.bf16.gmra.mrb[0].mxu0 %v2225
    %v2261 = vpop.f32.mrb[0].mxu0
    %v2262 = vadd.f32 0.0, %v2261
    %v2263 = vpop.f32.mrb[0].mxu0
    %v2264 = vpop.f32.mrb[0].mxu0
    %v2265 = vpop.f32.mrb[0].mxu0
    %2266 = vdwg.mxu0
    %v2268 = vrot.slane %v2262, 1
    %v2269 = vrot.slane %v2262, 2
    %v2270 = vrot.slane %v2262, 3
    %v2271 = vrot.slane %v2262, 4
    %v2272 = vrot.slane %v2262, 5
    %v2273 = vrot.slane %v2262, 6
    %v2274 = vrot.slane %v2262, 7
    %v2283 = vadd.f32 %v2175, %v2262
    %v2284 = vadd.f32 %v2176, %v2268
    %v2285 = vadd.f32 %v2177, %v2269
    %v2286 = vadd.f32 %v2178, %v2270
    %v2287 = vadd.f32 %v2179, %v2271
    %v2288 = vadd.f32 %v2180, %v2272
    %v2289 = vadd.f32 %v2181, %v2273
    %v2290 = vadd.f32 %v2182, %v2274
    %v2291 = vxor.u32 %v2283, 2147483648
    %v2292 = vxor.u32 %v2284, 2147483648
    %v2293 = vxor.u32 %v2285, 2147483648
    %v2294 = vxor.u32 %v2286, 2147483648
    %v2295 = vxor.u32 %v2287, 2147483648
    %v2296 = vxor.u32 %v2288, 2147483648
    %v2297 = vxor.u32 %v2289, 2147483648
    %v2298 = vxor.u32 %v2290, 2147483648
    %v2299 = vmul.f32 %v2291, 1.442695
    %v2300 = vpow.pop %v2299
    %v2301 = vmul.f32 %v2292, 1.442695
    %v2302 = vpow.pop %v2301
    %v2303 = vmul.f32 %v2293, 1.442695
    %v2304 = vpow.pop %v2303
    %v2305 = vmul.f32 %v2294, 1.442695
    %v2306 = vpow.pop %v2305
    %v2307 = vmul.f32 %v2295, 1.442695
    %v2308 = vpow.pop %v2307
    %v2309 = vmul.f32 %v2296, 1.442695
    %v2310 = vpow.pop %v2309
    %v2311 = vmul.f32 %v2297, 1.442695
    %v2312 = vpow.pop %v2311
    %v2313 = vmul.f32 %v2298, 1.442695
    %v2314 = vpow.pop %v2313
    %v2315 = vadd.f32 %v2300, 1.0
    %v2316 = vadd.f32 %v2302, 1.0
    %v2317 = vadd.f32 %v2304, 1.0
    %v2318 = vadd.f32 %v2306, 1.0
    %v2319 = vadd.f32 %v2308, 1.0
    %v2320 = vadd.f32 %v2310, 1.0
    %v2321 = vadd.f32 %v2312, 1.0
    %v2322 = vadd.f32 %v2314, 1.0
    %v2323 = vrcp.pop %v2315
    %v2324 = vmul.f32 1.0, %v2323
    %v2325 = vrcp.pop %v2316
    %v2326 = vmul.f32 1.0, %v2325
    %v2327 = vrcp.pop %v2317
    %v2328 = vmul.f32 1.0, %v2327
    %v2329 = vrcp.pop %v2318
    %v2330 = vmul.f32 1.0, %v2329
    %v2331 = vrcp.pop %v2319
    %v2332 = vmul.f32 1.0, %v2331
    %v2333 = vrcp.pop %v2320
    %v2334 = vmul.f32 1.0, %v2333
    %v2335 = vrcp.pop %v2321
    %v2336 = vmul.f32 1.0, %v2335
    %v2337 = vrcp.pop %v2322
    %v2338 = vmul.f32 1.0, %v2337
    %v2339 = vtanh.pop %v2283
    %v2340 = vtanh.pop %v2284
    %v2341 = vtanh.pop %v2285
    %v2342 = vtanh.pop %v2286
    %v2343 = vtanh.pop %v2287
    %v2344 = vtanh.pop %v2288
    %v2345 = vtanh.pop %v2289
    %v2346 = vtanh.pop %v2290
    %v2347 = vmul.f32 %v2324, %v2063
    %v2348 = vmul.f32 %v2326, %v2064
    %v2349 = vmul.f32 %v2328, %v2065
    %v2350 = vmul.f32 %v2330, %v2066
    %v2351 = vmul.f32 %v2332, %v2067
    %v2352 = vmul.f32 %v2334, %v2068
    %v2353 = vmul.f32 %v2336, %v2069
    %v2354 = vmul.f32 %v2338, %v2070
    %2363 = vrot.lane.b32.xlu0 %v2339, 64
    %v2364 = vpop.permute.xlu0 %2363
    %2365 = vrot.lane.b32.xlu0 %v2340, 64
    %v2366 = vpop.permute.xlu0 %2365
    %2367 = vrot.lane.b32.xlu0 %v2341, 64
    %v2368 = vpop.permute.xlu0 %2367
    %2369 = vrot.lane.b32.xlu0 %v2342, 64
    %v2370 = vpop.permute.xlu0 %2369
    %2371 = vrot.lane.b32.xlu0 %v2343, 64
    %v2372 = vpop.permute.xlu0 %2371
    %2373 = vrot.lane.b32.xlu0 %v2344, 64
    %v2374 = vpop.permute.xlu0 %2373
    %2375 = vrot.lane.b32.xlu0 %v2345, 64
    %v2376 = vpop.permute.xlu0 %2375
    %2377 = vrot.lane.b32.xlu0 %v2346, 64
    %v2378 = vpop.permute.xlu0 %2377
    %v2387 = vmul.f32 %v2324, %v2364
    %v2388 = vmul.f32 %v2326, %v2366
    %v2389 = vmul.f32 %v2328, %v2368
    %v2390 = vmul.f32 %v2330, %v2370
    %v2391 = vmul.f32 %v2332, %v2372
    %v2392 = vmul.f32 %v2334, %v2374
    %v2393 = vmul.f32 %v2336, %v2376
    %v2394 = vmul.f32 %v2338, %v2378
    %2403 = vrot.lane.b32.xlu0 %v2387, 32
    %v2404 = vpop.permute.xlu0 %2403
    %2405 = vrot.lane.b32.xlu0 %v2388, 32
    %v2406 = vpop.permute.xlu0 %2405
    %2407 = vrot.lane.b32.xlu0 %v2389, 32
    %v2408 = vpop.permute.xlu0 %2407
    %2409 = vrot.lane.b32.xlu0 %v2390, 32
    %v2410 = vpop.permute.xlu0 %2409
    %2411 = vrot.lane.b32.xlu0 %v2391, 32
    %v2412 = vpop.permute.xlu0 %2411
    %2413 = vrot.lane.b32.xlu0 %v2392, 32
    %v2414 = vpop.permute.xlu0 %2413
    %2415 = vrot.lane.b32.xlu0 %v2393, 32
    %v2416 = vpop.permute.xlu0 %2415
    %2417 = vrot.lane.b32.xlu0 %v2394, 32
    %v2418 = vpop.permute.xlu0 %2417
    %v2427 = vadd.f32 %v2347, %v2404
    %v2428 = vadd.f32 %v2348, %v2406
    %v2429 = vadd.f32 %v2349, %v2408
    %v2430 = vadd.f32 %v2350, %v2410
    %v2431 = vadd.f32 %v2351, %v2412
    %v2432 = vadd.f32 %v2352, %v2414
    %v2433 = vadd.f32 %v2353, %v2416
    %v2434 = vadd.f32 %v2354, %v2418
    %v2435 = vtanh.pop %v2427
    %v2436 = vtanh.pop %v2428
    %v2437 = vtanh.pop %v2429
    %v2438 = vtanh.pop %v2430
    %v2439 = vtanh.pop %v2431
    %v2440 = vtanh.pop %v2432
    %v2441 = vtanh.pop %v2433
    %v2442 = vtanh.pop %v2434
    %2451 = vrot.lane.b32.xlu0 %v2435, 64
    %v2452 = vpop.permute.xlu0 %2451
    %2453 = vrot.lane.b32.xlu0 %v2436, 64
    %v2454 = vpop.permute.xlu0 %2453
    %2455 = vrot.lane.b32.xlu0 %v2437, 64
    %v2456 = vpop.permute.xlu0 %2455
    %2457 = vrot.lane.b32.xlu0 %v2438, 64
    %v2458 = vpop.permute.xlu0 %2457
    %2459 = vrot.lane.b32.xlu0 %v2439, 64
    %v2460 = vpop.permute.xlu0 %2459
    %2461 = vrot.lane.b32.xlu0 %v2440, 64
    %v2462 = vpop.permute.xlu0 %2461
    %2463 = vrot.lane.b32.xlu0 %v2441, 64
    %v2464 = vpop.permute.xlu0 %2463
    %2465 = vrot.lane.b32.xlu0 %v2442, 64
    %v2466 = vpop.permute.xlu0 %2465
    %v2475 = vmul.f32 %v2324, %v2452
    %v2476 = vmul.f32 %v2326, %v2454
    %v2477 = vmul.f32 %v2328, %v2456
    %v2478 = vmul.f32 %v2330, %v2458
    %v2479 = vmul.f32 %v2332, %v2460
    %v2480 = vmul.f32 %v2334, %v2462
    %v2481 = vmul.f32 %v2336, %v2464
    %v2482 = vmul.f32 %v2338, %v2466
    %v2483 = vld [vmem:[#allocation11 + $0x5] sm:$0x1]
    %v2484 = vld [vmem:[#allocation11 + $0xd] sm:$0x1]
    %v2485 = vld [vmem:[#allocation11 + $0x15] sm:$0x1]
    %v2486 = vld [vmem:[#allocation11 + $0x1d] sm:$0x1]
    %v2487 = vld [vmem:[#allocation11 + $0x25] sm:$0x1]
    %v2488 = vld [vmem:[#allocation11 + $0x2d] sm:$0x1]
    %v2489 = vld [vmem:[#allocation11 + $0x35] sm:$0x1]
    %v2490 = vld [vmem:[#allocation11 + $0x3d] sm:$0x1]
    %2499 = vrot.lane.b32.xlu0 %v2475, 32
    %v2500 = vpop.permute.xlu0 %2499
    %2501 = vrot.lane.b32.xlu0 %v2476, 32
    %v2502 = vpop.permute.xlu0 %2501
    %2503 = vrot.lane.b32.xlu0 %v2477, 32
    %v2504 = vpop.permute.xlu0 %2503
    %2505 = vrot.lane.b32.xlu0 %v2478, 32
    %v2506 = vpop.permute.xlu0 %2505
    %2507 = vrot.lane.b32.xlu0 %v2479, 32
    %v2508 = vpop.permute.xlu0 %2507
    %2509 = vrot.lane.b32.xlu0 %v2480, 32
    %v2510 = vpop.permute.xlu0 %2509
    %2511 = vrot.lane.b32.xlu0 %v2481, 32
    %v2512 = vpop.permute.xlu0 %2511
    %2513 = vrot.lane.b32.xlu0 %v2482, 32
    %v2514 = vpop.permute.xlu0 %2513
    %v2523 = vadd.f32 %v2483, %v2500
    %v2524 = vadd.f32 %v2484, %v2502
    %v2525 = vadd.f32 %v2485, %v2504
    %v2526 = vadd.f32 %v2486, %v2506
    %v2527 = vadd.f32 %v2487, %v2508
    %v2528 = vadd.f32 %v2488, %v2510
    %v2529 = vadd.f32 %v2489, %v2512
    %v2530 = vadd.f32 %v2490, %v2514
    %2531 = vst.msk [vmem:[#allocation11 + $0x5] sm:$0x1] %vm703, %v2523
    %2532 = vst.msk [vmem:[#allocation11 + $0xd] sm:$0x1] %vm703, %v2524
    %2533 = vst.msk [vmem:[#allocation11 + $0x15] sm:$0x1] %vm703, %v2525
    %2534 = vst.msk [vmem:[#allocation11 + $0x1d] sm:$0x1] %vm703, %v2526
    %2535 = vst.msk [vmem:[#allocation11 + $0x25] sm:$0x1] %vm703, %v2527
    %2536 = vst.msk [vmem:[#allocation11 + $0x2d] sm:$0x1] %vm703, %v2528
    %2537 = vst.msk [vmem:[#allocation11 + $0x35] sm:$0x1] %vm703, %v2529
    %2538 = vst.msk [vmem:[#allocation11 + $0x3d] sm:$0x1] %vm703, %v2530
    %v2539 = vld [vmem:[#allocation4 + $0x6] sm:$0x1]
    %v2540 = vld [vmem:[#allocation4 + $0xe] sm:$0x1]
    %v2541 = vld [vmem:[#allocation4 + $0x16] sm:$0x1]
    %v2542 = vld [vmem:[#allocation4 + $0x1e] sm:$0x1]
    %v2543 = vld [vmem:[#allocation4 + $0x26] sm:$0x1]
    %v2544 = vld [vmem:[#allocation4 + $0x2e] sm:$0x1]
    %v2545 = vld [vmem:[#allocation4 + $0x36] sm:$0x1]
    %v2546 = vld [vmem:[#allocation4 + $0x3e] sm:$0x1]
    %v2547 = vpack.c.bf16 %v2475, %v2475
    %v2548 = vpack.c.bf16 %v2476, %v2476
    %v2549 = vpack.c.bf16 %v2477, %v2477
    %v2550 = vpack.c.bf16 %v2478, %v2478
    %v2551 = vpack.c.bf16 %v2479, %v2479
    %v2552 = vpack.c.bf16 %v2480, %v2480
    %v2553 = vpack.c.bf16 %v2481, %v2481
    %v2554 = vpack.c.bf16 %v2482, %v2482
    %v2563 = vunpack.c.l.b16 %v2547
    %v2564 = vunpack.c.l.b16 %v2548
    %v2565 = vunpack.c.l.b16 %v2549
    %v2566 = vunpack.c.l.b16 %v2550
    %v2567 = vunpack.c.l.b16 %v2551
    %v2568 = vunpack.c.l.b16 %v2552
    %v2569 = vunpack.c.l.b16 %v2553
    %v2570 = vunpack.c.l.b16 %v2554
    %v2571 = vrot.slane %v2564, 7
    %v2572 = vsel %vm745, %v2571, %v2563
    %v2573 = vrot.slane %v2565, 6
    %v2574 = vsel %vm748, %v2573, %v2572
    %v2575 = vrot.slane %v2566, 5
    %v2576 = vsel %vm751, %v2575, %v2574
    %v2577 = vrot.slane %v2567, 4
    %v2578 = vsel %vm754, %v2577, %v2576
    %v2579 = vrot.slane %v2568, 3
    %v2580 = vsel %vm757, %v2579, %v2578
    %v2581 = vrot.slane %v2569, 2
    %v2582 = vsel %vm760, %v2581, %v2580
    %v2583 = vrot.slane %v2570, 1
    %v2584 = vsel %vm763, %v2583, %v2582
    %v2585 = vpack.c.b16 %v2584, %v2584
    %2586 = vrot.lane.b32.xlu0 %v2585, 32
    %v2587 = vpop.permute.xlu0 %2586
    %v2589 = vsel %vm81, %v2587, 0
    %2591 = vmatprep.subr.bf16.mxu0 0
    %2592 = vmatpush1.bf16.msra.mxu0 %v360
    %2593 = vmatprep.subr.bf16.mxu0 0
    %2594 = vmatpush1.bf16.msra.mxu0 %v361
    %2595 = vmatprep.subr.bf16.mxu0 0
    %2596 = vmatpush1.bf16.msra.mxu0 0
    %2597 = vmatprep.subr.bf16.mxu0 0
    %2598 = vmatpush1.bf16.msra.mxu0 0
    %2599 = vmatprep.subr.bf16.mxu0 0
    %2600 = vmatpush1.bf16.msra.mxu0 0
    %2601 = vmatprep.subr.bf16.mxu0 0
    %2602 = vmatpush1.bf16.msra.mxu0 0
    %2603 = vmatprep.subr.bf16.mxu0 0
    %2604 = vmatpush1.bf16.msra.mxu0 0
    %2605 = vmatprep.subr.bf16.mxu0 0
    %2606 = vmatpush1.bf16.msra.mxu0 0
    %2607 = vmatprep.subr.bf16.mxu0 0
    %2608 = vmatpush1.bf16.msra.mxu0 0
    %2609 = vmatprep.subr.bf16.mxu0 0
    %2610 = vmatpush1.bf16.msra.mxu0 0
    %2611 = vmatprep.subr.bf16.mxu0 0
    %2612 = vmatpush1.bf16.msra.mxu0 0
    %2613 = vmatprep.subr.bf16.mxu0 0
    %2614 = vmatpush1.bf16.msra.mxu0 0
    %2615 = vmatprep.subr.bf16.mxu0 0
    %2616 = vmatpush1.bf16.msra.mxu0 0
    %2617 = vmatprep.subr.bf16.mxu0 0
    %2618 = vmatpush1.bf16.msra.mxu0 0
    %2619 = vmatprep.subr.bf16.mxu0 0
    %2620 = vmatpush1.bf16.msra.mxu0 0
    %2621 = vmatprep.subr.bf16.mxu0 0
    %2622 = vmatpush1.bf16.msra.mxu0 0
    %2623 = vmatprep.mubr.bf16.mxu0 0
    %2624 = vmatmul.mubr.bf16.gmra.mrb[0].mxu0 %v2589
    %v2625 = vpop.f32.mrb[0].mxu0
    %v2626 = vadd.f32 0.0, %v2625
    %v2627 = vpop.f32.mrb[0].mxu0
    %v2628 = vpop.f32.mrb[0].mxu0
    %v2629 = vpop.f32.mrb[0].mxu0
    %2630 = vdwg.mxu0
    %v2632 = vrot.slane %v2626, 1
    %v2633 = vrot.slane %v2626, 2
    %v2634 = vrot.slane %v2626, 3
    %v2635 = vrot.slane %v2626, 4
    %v2636 = vrot.slane %v2626, 5
    %v2637 = vrot.slane %v2626, 6
    %v2638 = vrot.slane %v2626, 7
    %v2647 = vadd.f32 %v2539, %v2626
    %v2648 = vadd.f32 %v2540, %v2632
    %v2649 = vadd.f32 %v2541, %v2633
    %v2650 = vadd.f32 %v2542, %v2634
    %v2651 = vadd.f32 %v2543, %v2635
    %v2652 = vadd.f32 %v2544, %v2636
    %v2653 = vadd.f32 %v2545, %v2637
    %v2654 = vadd.f32 %v2546, %v2638
    %v2655 = vxor.u32 %v2647, 2147483648
    %v2656 = vxor.u32 %v2648, 2147483648
    %v2657 = vxor.u32 %v2649, 2147483648
    %v2658 = vxor.u32 %v2650, 2147483648
    %v2659 = vxor.u32 %v2651, 2147483648
    %v2660 = vxor.u32 %v2652, 2147483648
    %v2661 = vxor.u32 %v2653, 2147483648
    %v2662 = vxor.u32 %v2654, 2147483648
    %v2663 = vmul.f32 %v2655, 1.442695
    %v2664 = vpow.pop %v2663
    %v2665 = vmul.f32 %v2656, 1.442695
    %v2666 = vpow.pop %v2665
    %v2667 = vmul.f32 %v2657, 1.442695
    %v2668 = vpow.pop %v2667
    %v2669 = vmul.f32 %v2658, 1.442695
    %v2670 = vpow.pop %v2669
    %v2671 = vmul.f32 %v2659, 1.442695
    %v2672 = vpow.pop %v2671
    %v2673 = vmul.f32 %v2660, 1.442695
    %v2674 = vpow.pop %v2673
    %v2675 = vmul.f32 %v2661, 1.442695
    %v2676 = vpow.pop %v2675
    %v2677 = vmul.f32 %v2662, 1.442695
    %v2678 = vpow.pop %v2677
    %v2679 = vadd.f32 %v2664, 1.0
    %v2680 = vadd.f32 %v2666, 1.0
    %v2681 = vadd.f32 %v2668, 1.0
    %v2682 = vadd.f32 %v2670, 1.0
    %v2683 = vadd.f32 %v2672, 1.0
    %v2684 = vadd.f32 %v2674, 1.0
    %v2685 = vadd.f32 %v2676, 1.0
    %v2686 = vadd.f32 %v2678, 1.0
    %v2687 = vrcp.pop %v2679
    %v2688 = vmul.f32 1.0, %v2687
    %v2689 = vrcp.pop %v2680
    %v2690 = vmul.f32 1.0, %v2689
    %v2691 = vrcp.pop %v2681
    %v2692 = vmul.f32 1.0, %v2691
    %v2693 = vrcp.pop %v2682
    %v2694 = vmul.f32 1.0, %v2693
    %v2695 = vrcp.pop %v2683
    %v2696 = vmul.f32 1.0, %v2695
    %v2697 = vrcp.pop %v2684
    %v2698 = vmul.f32 1.0, %v2697
    %v2699 = vrcp.pop %v2685
    %v2700 = vmul.f32 1.0, %v2699
    %v2701 = vrcp.pop %v2686
    %v2702 = vmul.f32 1.0, %v2701
    %v2703 = vtanh.pop %v2647
    %v2704 = vtanh.pop %v2648
    %v2705 = vtanh.pop %v2649
    %v2706 = vtanh.pop %v2650
    %v2707 = vtanh.pop %v2651
    %v2708 = vtanh.pop %v2652
    %v2709 = vtanh.pop %v2653
    %v2710 = vtanh.pop %v2654
    %v2711 = vmul.f32 %v2688, %v2427
    %v2712 = vmul.f32 %v2690, %v2428
    %v2713 = vmul.f32 %v2692, %v2429
    %v2714 = vmul.f32 %v2694, %v2430
    %v2715 = vmul.f32 %v2696, %v2431
    %v2716 = vmul.f32 %v2698, %v2432
    %v2717 = vmul.f32 %v2700, %v2433
    %v2718 = vmul.f32 %v2702, %v2434
    %2727 = vrot.lane.b32.xlu0 %v2703, 64
    %v2728 = vpop.permute.xlu0 %2727
    %2729 = vrot.lane.b32.xlu0 %v2704, 64
    %v2730 = vpop.permute.xlu0 %2729
    %2731 = vrot.lane.b32.xlu0 %v2705, 64
    %v2732 = vpop.permute.xlu0 %2731
    %2733 = vrot.lane.b32.xlu0 %v2706, 64
    %v2734 = vpop.permute.xlu0 %2733
    %2735 = vrot.lane.b32.xlu0 %v2707, 64
    %v2736 = vpop.permute.xlu0 %2735
    %2737 = vrot.lane.b32.xlu0 %v2708, 64
    %v2738 = vpop.permute.xlu0 %2737
    %2739 = vrot.lane.b32.xlu0 %v2709, 64
    %v2740 = vpop.permute.xlu0 %2739
    %2741 = vrot.lane.b32.xlu0 %v2710, 64
    %v2742 = vpop.permute.xlu0 %2741
    %v2751 = vmul.f32 %v2688, %v2728
    %v2752 = vmul.f32 %v2690, %v2730
    %v2753 = vmul.f32 %v2692, %v2732
    %v2754 = vmul.f32 %v2694, %v2734
    %v2755 = vmul.f32 %v2696, %v2736
    %v2756 = vmul.f32 %v2698, %v2738
    %v2757 = vmul.f32 %v2700, %v2740
    %v2758 = vmul.f32 %v2702, %v2742
    %2767 = vrot.lane.b32.xlu0 %v2751, 32
    %v2768 = vpop.permute.xlu0 %2767
    %2769 = vrot.lane.b32.xlu0 %v2752, 32
    %v2770 = vpop.permute.xlu0 %2769
    %2771 = vrot.lane.b32.xlu0 %v2753, 32
    %v2772 = vpop.permute.xlu0 %2771
    %2773 = vrot.lane.b32.xlu0 %v2754, 32
    %v2774 = vpop.permute.xlu0 %2773
    %2775 = vrot.lane.b32.xlu0 %v2755, 32
    %v2776 = vpop.permute.xlu0 %2775
    %2777 = vrot.lane.b32.xlu0 %v2756, 32
    %v2778 = vpop.permute.xlu0 %2777
    %2779 = vrot.lane.b32.xlu0 %v2757, 32
    %v2780 = vpop.permute.xlu0 %2779
    %2781 = vrot.lane.b32.xlu0 %v2758, 32
    %v2782 = vpop.permute.xlu0 %2781
    %v2791 = vadd.f32 %v2711, %v2768
    %v2792 = vadd.f32 %v2712, %v2770
    %v2793 = vadd.f32 %v2713, %v2772
    %v2794 = vadd.f32 %v2714, %v2774
    %v2795 = vadd.f32 %v2715, %v2776
    %v2796 = vadd.f32 %v2716, %v2778
    %v2797 = vadd.f32 %v2717, %v2780
    %v2798 = vadd.f32 %v2718, %v2782
    %v2799 = vtanh.pop %v2791
    %v2800 = vtanh.pop %v2792
    %v2801 = vtanh.pop %v2793
    %v2802 = vtanh.pop %v2794
    %v2803 = vtanh.pop %v2795
    %v2804 = vtanh.pop %v2796
    %v2805 = vtanh.pop %v2797
    %v2806 = vtanh.pop %v2798
    %2815 = vrot.lane.b32.xlu0 %v2799, 64
    %v2816 = vpop.permute.xlu0 %2815
    %2817 = vrot.lane.b32.xlu0 %v2800, 64
    %v2818 = vpop.permute.xlu0 %2817
    %2819 = vrot.lane.b32.xlu0 %v2801, 64
    %v2820 = vpop.permute.xlu0 %2819
    %2821 = vrot.lane.b32.xlu0 %v2802, 64
    %v2822 = vpop.permute.xlu0 %2821
    %2823 = vrot.lane.b32.xlu0 %v2803, 64
    %v2824 = vpop.permute.xlu0 %2823
    %2825 = vrot.lane.b32.xlu0 %v2804, 64
    %v2826 = vpop.permute.xlu0 %2825
    %2827 = vrot.lane.b32.xlu0 %v2805, 64
    %v2828 = vpop.permute.xlu0 %2827
    %2829 = vrot.lane.b32.xlu0 %v2806, 64
    %v2830 = vpop.permute.xlu0 %2829
    %v2839 = vmul.f32 %v2688, %v2816
    %v2840 = vmul.f32 %v2690, %v2818
    %v2841 = vmul.f32 %v2692, %v2820
    %v2842 = vmul.f32 %v2694, %v2822
    %v2843 = vmul.f32 %v2696, %v2824
    %v2844 = vmul.f32 %v2698, %v2826
    %v2845 = vmul.f32 %v2700, %v2828
    %v2846 = vmul.f32 %v2702, %v2830
    %v2847 = vld [vmem:[#allocation11 + $0x6] sm:$0x1]
    %v2848 = vld [vmem:[#allocation11 + $0xe] sm:$0x1]
    %v2849 = vld [vmem:[#allocation11 + $0x16] sm:$0x1]
    %v2850 = vld [vmem:[#allocation11 + $0x1e] sm:$0x1]
    %v2851 = vld [vmem:[#allocation11 + $0x26] sm:$0x1]
    %v2852 = vld [vmem:[#allocation11 + $0x2e] sm:$0x1]
    %v2853 = vld [vmem:[#allocation11 + $0x36] sm:$0x1]
    %v2854 = vld [vmem:[#allocation11 + $0x3e] sm:$0x1]
    %2863 = vrot.lane.b32.xlu0 %v2839, 32
    %v2864 = vpop.permute.xlu0 %2863
    %2865 = vrot.lane.b32.xlu0 %v2840, 32
    %v2866 = vpop.permute.xlu0 %2865
    %2867 = vrot.lane.b32.xlu0 %v2841, 32
    %v2868 = vpop.permute.xlu0 %2867
    %2869 = vrot.lane.b32.xlu0 %v2842, 32
    %v2870 = vpop.permute.xlu0 %2869
    %2871 = vrot.lane.b32.xlu0 %v2843, 32
    %v2872 = vpop.permute.xlu0 %2871
    %2873 = vrot.lane.b32.xlu0 %v2844, 32
    %v2874 = vpop.permute.xlu0 %2873
    %2875 = vrot.lane.b32.xlu0 %v2845, 32
    %v2876 = vpop.permute.xlu0 %2875
    %2877 = vrot.lane.b32.xlu0 %v2846, 32
    %v2878 = vpop.permute.xlu0 %2877
    %v2887 = vadd.f32 %v2847, %v2864
    %v2888 = vadd.f32 %v2848, %v2866
    %v2889 = vadd.f32 %v2849, %v2868
    %v2890 = vadd.f32 %v2850, %v2870
    %v2891 = vadd.f32 %v2851, %v2872
    %v2892 = vadd.f32 %v2852, %v2874
    %v2893 = vadd.f32 %v2853, %v2876
    %v2894 = vadd.f32 %v2854, %v2878
    %2895 = vst.msk [vmem:[#allocation11 + $0x6] sm:$0x1] %vm703, %v2887
    %2896 = vst.msk [vmem:[#allocation11 + $0xe] sm:$0x1] %vm703, %v2888
    %2897 = vst.msk [vmem:[#allocation11 + $0x16] sm:$0x1] %vm703, %v2889
    %2898 = vst.msk [vmem:[#allocation11 + $0x1e] sm:$0x1] %vm703, %v2890
    %2899 = vst.msk [vmem:[#allocation11 + $0x26] sm:$0x1] %vm703, %v2891
    %2900 = vst.msk [vmem:[#allocation11 + $0x2e] sm:$0x1] %vm703, %v2892
    %2901 = vst.msk [vmem:[#allocation11 + $0x36] sm:$0x1] %vm703, %v2893
    %2902 = vst.msk [vmem:[#allocation11 + $0x3e] sm:$0x1] %vm703, %v2894
    %v2903 = vld [vmem:[#allocation4 + $0x7] sm:$0x1]
    %v2904 = vld [vmem:[#allocation4 + $0xf] sm:$0x1]
    %v2905 = vld [vmem:[#allocation4 + $0x17] sm:$0x1]
    %v2906 = vld [vmem:[#allocation4 + $0x1f] sm:$0x1]
    %v2907 = vld [vmem:[#allocation4 + $0x27] sm:$0x1]
    %v2908 = vld [vmem:[#allocation4 + $0x2f] sm:$0x1]
    %v2909 = vld [vmem:[#allocation4 + $0x37] sm:$0x1]
    %v2910 = vld [vmem:[#allocation4 + $0x3f] sm:$0x1]
    %v2911 = vpack.c.bf16 %v2839, %v2839
    %v2912 = vpack.c.bf16 %v2840, %v2840
    %v2913 = vpack.c.bf16 %v2841, %v2841
    %v2914 = vpack.c.bf16 %v2842, %v2842
    %v2915 = vpack.c.bf16 %v2843, %v2843
    %v2916 = vpack.c.bf16 %v2844, %v2844
    %v2917 = vpack.c.bf16 %v2845, %v2845
    %v2918 = vpack.c.bf16 %v2846, %v2846
    %v2927 = vunpack.c.l.b16 %v2911
    %v2928 = vunpack.c.l.b16 %v2912
    %v2929 = vunpack.c.l.b16 %v2913
    %v2930 = vunpack.c.l.b16 %v2914
    %v2931 = vunpack.c.l.b16 %v2915
    %v2932 = vunpack.c.l.b16 %v2916
    %v2933 = vunpack.c.l.b16 %v2917
    %v2934 = vunpack.c.l.b16 %v2918
    %v2935 = vrot.slane %v2928, 7
    %v2936 = vsel %vm745, %v2935, %v2927
    %v2937 = vrot.slane %v2929, 6
    %v2938 = vsel %vm748, %v2937, %v2936
    %v2939 = vrot.slane %v2930, 5
    %v2940 = vsel %vm751, %v2939, %v2938
    %v2941 = vrot.slane %v2931, 4
    %v2942 = vsel %vm754, %v2941, %v2940
    %v2943 = vrot.slane %v2932, 3
    %v2944 = vsel %vm757, %v2943, %v2942
    %v2945 = vrot.slane %v2933, 2
    %v2946 = vsel %vm760, %v2945, %v2944
    %v2947 = vrot.slane %v2934, 1
    %v2948 = vsel %vm763, %v2947, %v2946
    %v2949 = vpack.c.b16 %v2948, %v2948
    %2950 = vrot.lane.b32.xlu0 %v2949, 32
    %v2951 = vpop.permute.xlu0 %2950
    %v2953 = vsel %vm81, %v2951, 0
    %2955 = vmatprep.subr.bf16.mxu0 0
    %2956 = vmatpush1.bf16.msra.mxu0 %v360
    %2957 = vmatprep.subr.bf16.mxu0 0
    %2958 = vmatpush1.bf16.msra.mxu0 %v361
    %2959 = vmatprep.subr.bf16.mxu0 0
    %2960 = vmatpush1.bf16.msra.mxu0 0
    %2961 = vmatprep.subr.bf16.mxu0 0
    %2962 = vmatpush1.bf16.msra.mxu0 0
    %2963 = vmatprep.subr.bf16.mxu0 0
    %2964 = vmatpush1.bf16.msra.mxu0 0
    %2965 = vmatprep.subr.bf16.mxu0 0
    %2966 = vmatpush1.bf16.msra.mxu0 0
    %2967 = vmatprep.subr.bf16.mxu0 0
    %2968 = vmatpush1.bf16.msra.mxu0 0
    %2969 = vmatprep.subr.bf16.mxu0 0
    %2970 = vmatpush1.bf16.msra.mxu0 0
    %2971 = vmatprep.subr.bf16.mxu0 0
    %2972 = vmatpush1.bf16.msra.mxu0 0
    %2973 = vmatprep.subr.bf16.mxu0 0
    %2974 = vmatpush1.bf16.msra.mxu0 0
    %2975 = vmatprep.subr.bf16.mxu0 0
    %2976 = vmatpush1.bf16.msra.mxu0 0
    %2977 = vmatprep.subr.bf16.mxu0 0
    %2978 = vmatpush1.bf16.msra.mxu0 0
    %2979 = vmatprep.subr.bf16.mxu0 0
    %2980 = vmatpush1.bf16.msra.mxu0 0
    %2981 = vmatprep.subr.bf16.mxu0 0
    %2982 = vmatpush1.bf16.msra.mxu0 0
    %2983 = vmatprep.subr.bf16.mxu0 0
    %2984 = vmatpush1.bf16.msra.mxu0 0
    %2985 = vmatprep.subr.bf16.mxu0 0
    %2986 = vmatpush1.bf16.msra.mxu0 0
    %2987 = vmatprep.mubr.bf16.mxu0 0
    %2988 = vmatmul.mubr.bf16.gmra.mrb[0].mxu0 %v2953
    %v2989 = vpop.f32.mrb[0].mxu0
    %v2990 = vadd.f32 0.0, %v2989
    %v2991 = vpop.f32.mrb[0].mxu0
    %v2992 = vpop.f32.mrb[0].mxu0
    %v2993 = vpop.f32.mrb[0].mxu0
    %2994 = vdwg.mxu0
    %v2996 = vrot.slane %v2990, 1
    %v2997 = vrot.slane %v2990, 2
    %v2998 = vrot.slane %v2990, 3
    %v2999 = vrot.slane %v2990, 4
    %v3000 = vrot.slane %v2990, 5
    %v3001 = vrot.slane %v2990, 6
    %v3002 = vrot.slane %v2990, 7
    %v3011 = vadd.f32 %v2903, %v2990
    %v3012 = vadd.f32 %v2904, %v2996
    %v3013 = vadd.f32 %v2905, %v2997
    %v3014 = vadd.f32 %v2906, %v2998
    %v3015 = vadd.f32 %v2907, %v2999
    %v3016 = vadd.f32 %v2908, %v3000
    %v3017 = vadd.f32 %v2909, %v3001
    %v3018 = vadd.f32 %v2910, %v3002
    %v3019 = vxor.u32 %v3011, 2147483648
    %v3020 = vxor.u32 %v3012, 2147483648
    %v3021 = vxor.u32 %v3013, 2147483648
    %v3022 = vxor.u32 %v3014, 2147483648
    %v3023 = vxor.u32 %v3015, 2147483648
    %v3024 = vxor.u32 %v3016, 2147483648
    %v3025 = vxor.u32 %v3017, 2147483648
    %v3026 = vxor.u32 %v3018, 2147483648
    %v3027 = vmul.f32 %v3019, 1.442695
    %v3028 = vpow.pop %v3027
    %v3029 = vmul.f32 %v3020, 1.442695
    %v3030 = vpow.pop %v3029
    %v3031 = vmul.f32 %v3021, 1.442695
    %v3032 = vpow.pop %v3031
    %v3033 = vmul.f32 %v3022, 1.442695
    %v3034 = vpow.pop %v3033
    %v3035 = vmul.f32 %v3023, 1.442695
    %v3036 = vpow.pop %v3035
    %v3037 = vmul.f32 %v3024, 1.442695
    %v3038 = vpow.pop %v3037
    %v3039 = vmul.f32 %v3025, 1.442695
    %v3040 = vpow.pop %v3039
    %v3041 = vmul.f32 %v3026, 1.442695
    %v3042 = vpow.pop %v3041
    %v3043 = vadd.f32 %v3028, 1.0
    %v3044 = vadd.f32 %v3030, 1.0
    %v3045 = vadd.f32 %v3032, 1.0
    %v3046 = vadd.f32 %v3034, 1.0
    %v3047 = vadd.f32 %v3036, 1.0
    %v3048 = vadd.f32 %v3038, 1.0
    %v3049 = vadd.f32 %v3040, 1.0
    %v3050 = vadd.f32 %v3042, 1.0
    %v3051 = vrcp.pop %v3043
    %v3052 = vmul.f32 1.0, %v3051
    %v3053 = vrcp.pop %v3044
    %v3054 = vmul.f32 1.0, %v3053
    %v3055 = vrcp.pop %v3045
    %v3056 = vmul.f32 1.0, %v3055
    %v3057 = vrcp.pop %v3046
    %v3058 = vmul.f32 1.0, %v3057
    %v3059 = vrcp.pop %v3047
    %v3060 = vmul.f32 1.0, %v3059
    %v3061 = vrcp.pop %v3048
    %v3062 = vmul.f32 1.0, %v3061
    %v3063 = vrcp.pop %v3049
    %v3064 = vmul.f32 1.0, %v3063
    %v3065 = vrcp.pop %v3050
    %v3066 = vmul.f32 1.0, %v3065
    %v3067 = vtanh.pop %v3011
    %v3068 = vtanh.pop %v3012
    %v3069 = vtanh.pop %v3013
    %v3070 = vtanh.pop %v3014
    %v3071 = vtanh.pop %v3015
    %v3072 = vtanh.pop %v3016
    %v3073 = vtanh.pop %v3017
    %v3074 = vtanh.pop %v3018
    %v3075 = vmul.f32 %v3052, %v2791
    %v3076 = vmul.f32 %v3054, %v2792
    %v3077 = vmul.f32 %v3056, %v2793
    %v3078 = vmul.f32 %v3058, %v2794
    %v3079 = vmul.f32 %v3060, %v2795
    %v3080 = vmul.f32 %v3062, %v2796
    %v3081 = vmul.f32 %v3064, %v2797
    %v3082 = vmul.f32 %v3066, %v2798
    %3091 = vrot.lane.b32.xlu0 %v3067, 64
    %v3092 = vpop.permute.xlu0 %3091
    %3093 = vrot.lane.b32.xlu0 %v3068, 64
    %v3094 = vpop.permute.xlu0 %3093
    %3095 = vrot.lane.b32.xlu0 %v3069, 64
    %v3096 = vpop.permute.xlu0 %3095
    %3097 = vrot.lane.b32.xlu0 %v3070, 64
    %v3098 = vpop.permute.xlu0 %3097
    %3099 = vrot.lane.b32.xlu0 %v3071, 64
    %v3100 = vpop.permute.xlu0 %3099
    %3101 = vrot.lane.b32.xlu0 %v3072, 64
    %v3102 = vpop.permute.xlu0 %3101
    %3103 = vrot.lane.b32.xlu0 %v3073, 64
    %v3104 = vpop.permute.xlu0 %3103
    %3105 = vrot.lane.b32.xlu0 %v3074, 64
    %v3106 = vpop.permute.xlu0 %3105
    %v3115 = vmul.f32 %v3052, %v3092
    %v3116 = vmul.f32 %v3054, %v3094
    %v3117 = vmul.f32 %v3056, %v3096
    %v3118 = vmul.f32 %v3058, %v3098
    %v3119 = vmul.f32 %v3060, %v3100
    %v3120 = vmul.f32 %v3062, %v3102
    %v3121 = vmul.f32 %v3064, %v3104
    %v3122 = vmul.f32 %v3066, %v3106
    %3131 = vrot.lane.b32.xlu0 %v3115, 32
    %v3132 = vpop.permute.xlu0 %3131
    %3133 = vrot.lane.b32.xlu0 %v3116, 32
    %v3134 = vpop.permute.xlu0 %3133
    %3135 = vrot.lane.b32.xlu0 %v3117, 32
    %v3136 = vpop.permute.xlu0 %3135
    %3137 = vrot.lane.b32.xlu0 %v3118, 32
    %v3138 = vpop.permute.xlu0 %3137
    %3139 = vrot.lane.b32.xlu0 %v3119, 32
    %v3140 = vpop.permute.xlu0 %3139
    %3141 = vrot.lane.b32.xlu0 %v3120, 32
    %v3142 = vpop.permute.xlu0 %3141
    %3143 = vrot.lane.b32.xlu0 %v3121, 32
    %v3144 = vpop.permute.xlu0 %3143
    %3145 = vrot.lane.b32.xlu0 %v3122, 32
    %v3146 = vpop.permute.xlu0 %3145
    %v3155 = vadd.f32 %v3075, %v3132
    %v3156 = vadd.f32 %v3076, %v3134
    %v3157 = vadd.f32 %v3077, %v3136
    %v3158 = vadd.f32 %v3078, %v3138
    %v3159 = vadd.f32 %v3079, %v3140
    %v3160 = vadd.f32 %v3080, %v3142
    %v3161 = vadd.f32 %v3081, %v3144
    %v3162 = vadd.f32 %v3082, %v3146
    %v3163 = vtanh.pop %v3155
    %v3164 = vtanh.pop %v3156
    %v3165 = vtanh.pop %v3157
    %v3166 = vtanh.pop %v3158
    %v3167 = vtanh.pop %v3159
    %v3168 = vtanh.pop %v3160
    %v3169 = vtanh.pop %v3161
    %v3170 = vtanh.pop %v3162
    %3179 = vrot.lane.b32.xlu0 %v3163, 64
    %v3180 = vpop.permute.xlu0 %3179
    %3181 = vrot.lane.b32.xlu0 %v3164, 64
    %v3182 = vpop.permute.xlu0 %3181
    %3183 = vrot.lane.b32.xlu0 %v3165, 64
    %v3184 = vpop.permute.xlu0 %3183
    %3185 = vrot.lane.b32.xlu0 %v3166, 64
    %v3186 = vpop.permute.xlu0 %3185
    %3187 = vrot.lane.b32.xlu0 %v3167, 64
    %v3188 = vpop.permute.xlu0 %3187
    %3189 = vrot.lane.b32.xlu0 %v3168, 64
    %v3190 = vpop.permute.xlu0 %3189
    %3191 = vrot.lane.b32.xlu0 %v3169, 64
    %v3192 = vpop.permute.xlu0 %3191
    %3193 = vrot.lane.b32.xlu0 %v3170, 64
    %v3194 = vpop.permute.xlu0 %3193
    %v3203 = vmul.f32 %v3052, %v3180
    %v3204 = vmul.f32 %v3054, %v3182
    %v3205 = vmul.f32 %v3056, %v3184
    %v3206 = vmul.f32 %v3058, %v3186
    %v3207 = vmul.f32 %v3060, %v3188
    %v3208 = vmul.f32 %v3062, %v3190
    %v3209 = vmul.f32 %v3064, %v3192
    %v3210 = vmul.f32 %v3066, %v3194
    %v3211 = vld [vmem:[#allocation11 + $0x7] sm:$0x1]
    %v3212 = vld [vmem:[#allocation11 + $0xf] sm:$0x1]
    %v3213 = vld [vmem:[#allocation11 + $0x17] sm:$0x1]
    %v3214 = vld [vmem:[#allocation11 + $0x1f] sm:$0x1]
    %v3215 = vld [vmem:[#allocation11 + $0x27] sm:$0x1]
    %v3216 = vld [vmem:[#allocation11 + $0x2f] sm:$0x1]
    %v3217 = vld [vmem:[#allocation11 + $0x37] sm:$0x1]
    %v3218 = vld [vmem:[#allocation11 + $0x3f] sm:$0x1]
    %3227 = vrot.lane.b32.xlu0 %v3203, 32
    %v3228 = vpop.permute.xlu0 %3227
    %3229 = vrot.lane.b32.xlu0 %v3204, 32
    %v3230 = vpop.permute.xlu0 %3229
    %3231 = vrot.lane.b32.xlu0 %v3205, 32
    %v3232 = vpop.permute.xlu0 %3231
    %3233 = vrot.lane.b32.xlu0 %v3206, 32
    %v3234 = vpop.permute.xlu0 %3233
    %3235 = vrot.lane.b32.xlu0 %v3207, 32
    %v3236 = vpop.permute.xlu0 %3235
    %3237 = vrot.lane.b32.xlu0 %v3208, 32
    %v3238 = vpop.permute.xlu0 %3237
    %3239 = vrot.lane.b32.xlu0 %v3209, 32
    %v3240 = vpop.permute.xlu0 %3239
    %3241 = vrot.lane.b32.xlu0 %v3210, 32
    %v3242 = vpop.permute.xlu0 %3241
    %v3251 = vadd.f32 %v3211, %v3228
    %v3252 = vadd.f32 %v3212, %v3230
    %v3253 = vadd.f32 %v3213, %v3232
    %v3254 = vadd.f32 %v3214, %v3234
    %v3255 = vadd.f32 %v3215, %v3236
    %v3256 = vadd.f32 %v3216, %v3238
    %v3257 = vadd.f32 %v3217, %v3240
    %v3258 = vadd.f32 %v3218, %v3242
    %3259 = vst.msk [vmem:[#allocation11 + $0x7] sm:$0x1] %vm703, %v3251
    %3260 = vst.msk [vmem:[#allocation11 + $0xf] sm:$0x1] %vm703, %v3252
    %3261 = vst.msk [vmem:[#allocation11 + $0x17] sm:$0x1] %vm703, %v3253
    %3262 = vst.msk [vmem:[#allocation11 + $0x1f] sm:$0x1] %vm703, %v3254
    %3263 = vst.msk [vmem:[#allocation11 + $0x27] sm:$0x1] %vm703, %v3255
    %3264 = vst.msk [vmem:[#allocation11 + $0x2f] sm:$0x1] %vm703, %v3256
    %3265 = vst.msk [vmem:[#allocation11 + $0x37] sm:$0x1] %vm703, %v3257
    %3266 = vst.msk [vmem:[#allocation11 + $0x3f] sm:$0x1] %vm703, %v3258
    %v3267 = vrot.slane %v3204, 7
    %v3268 = vsel %vm745, %v3267, %v3203
    %v3269 = vrot.slane %v3205, 6
    %v3270 = vsel %vm748, %v3269, %v3268
    %v3271 = vrot.slane %v3206, 5
    %v3272 = vsel %vm751, %v3271, %v3270
    %v3273 = vrot.slane %v3207, 4
    %v3274 = vsel %vm754, %v3273, %v3272
    %v3275 = vrot.slane %v3208, 3
    %v3276 = vsel %vm757, %v3275, %v3274
    %v3277 = vrot.slane %v3209, 2
    %v3278 = vsel %vm760, %v3277, %v3276
    %v3279 = vrot.slane %v3210, 1
    %v3280 = vsel %vm763, %v3279, %v3278
    %3281 = vrot.lane.b32.xlu0 %v3280, 32
    %v3282 = vpop.permute.xlu0 %3281
    %3284 = vst.msk [vmem:[#allocation2] sm:$0xff] %vm81, %v3282
    %v3293 = vrot.slane %v3156, 7
    %v3294 = vsel %vm745, %v3293, %v3155
    %v3295 = vrot.slane %v3157, 6
    %v3296 = vsel %vm748, %v3295, %v3294
    %v3297 = vrot.slane %v3158, 5
    %v3298 = vsel %vm751, %v3297, %v3296
    %v3299 = vrot.slane %v3159, 4
    %v3300 = vsel %vm754, %v3299, %v3298
    %v3301 = vrot.slane %v3160, 3
    %v3302 = vsel %vm757, %v3301, %v3300
    %v3303 = vrot.slane %v3161, 2
    %v3304 = vsel %vm760, %v3303, %v3302
    %v3305 = vrot.slane %v3162, 1
    %v3306 = vsel %vm763, %v3305, %v3304
    %3307 = vrot.lane.b32.xlu0 %v3306, 96
    %v3308 = vpop.permute.xlu0 %3307
    %3310 = vst.msk [vmem:[#allocation3] sm:$0xff] %vm81, %v3308
    // Predicated region
    $region42: #{tpu_custom_call.1} parent=1 // pred_check
      _
    $region43: #{tpu_custom_call.1} parent=1 // pred_check_branch
      %3312 = sbr.rel (0) target = $region45
    $region44: #{tpu_custom_call.1} parent=1 // pred_region
      %s3314 = ssub.s32 1024, 1024
      %3315 = vsyncadd [#allocation7], %s3314
      %s3316 = sshll.u32 [#allocation11], 4
      %s3317 = int_to_ptr.vmem [resolvable:$true] %s3316
      %3322 = dma.vmem_to_hbm [thread:$0]  %s3317, 1024, %s6, [#allocation7], 128, 128, 8
    $region45: #{tpu_custom_call.1} parent=1 // pred_fallthru
      _
    // Predicated region
    $region46: #{tpu_custom_call.1} parent=1 // pred_check
      _
    $region47: #{tpu_custom_call.1} parent=1 // pred_check_branch
      %3324 = sbr.rel (0) target = $region49
    $region48: #{tpu_custom_call.1} parent=1 // pred_region
      %3325 = dma.done [#allocation7], 1024
    $region49: #{tpu_custom_call.1} parent=1 // pred_fallthru
      _
    %3326 = vsyncpa [#allocation6], 1
    %3327 = vsyncpa [#allocation9], 1
    %3328 = vsyncpa [#allocation7], 1

</llo_original>
